<compile_context>
chip_gen: v7x
topology: tpu7x:2x2x1
jax: 0.10.0
libtpu: 0.0.40
codegen_flags: <defaults>
</compile_context>

<pallas_src>
import jax
import jax.numpy as jnp
from jax.experimental import pallas as pl
from jax.experimental.pallas import tpu as pltpu

HIDDEN = 128
OUTPUT_SIZE = 1
INPUT_SIZE = 1


# ------------------------------ Pallas kernel ------------------------------ #

def _sig(z):
    # sigmoid via a single tanh (one EUP push instead of exp + reciprocal)
    return 0.5 * jnp.tanh(0.5 * z) + 0.5


def _lstm_cell(gates, c_prev, H):
    # gate column order [i, f, o, g]: one fused sigmoid over 3H lanes + 1 tanh
    sg = _sig(gates[:, 0:3 * H])
    i_g = sg[:, 0:H]
    f_g = sg[:, H:2 * H]
    o_g = sg[:, 2 * H:3 * H]
    g_g = jnp.tanh(gates[:, 3 * H:4 * H])
    c_new = f_g * c_prev + i_g * g_g
    h_new = o_g * jnp.tanh(c_new)
    return h_new, c_new


def _fused_lstmdf_kernel(x_ref,                        # (B*T, 1) flattened input
                         wih0_ref, whh0_ref, b0_ref,   # (1,4H) (H,4H) (1,4H)
                         h0_ref, c0_ref,               # (1,H) (1,H) stateful carry
                         bbig_ref,                     # (2,4H): [b1; b2]
                         wlin_ref, blin_ref,           # (1,H) (1,1)
                         wbig_hbm,                     # (4H,4H) HBM: Wih1|Whh1|Wih2|Whh2
                         out_ref,                      # (B,1)
                         c2_ref,                       # (B,H) lstm_2 final cell
                         hn_ref, cn_ref,               # (1,H) lstm0 final state
                         wbig_sc,                      # VMEM (4H,4H)
                         hseq_sc,                      # VMEM (T*B,H) time-major
                         gx1_sc,                       # VMEM (T*B,4H)
                         dma_sem):                     # DMA sem (1,)
    TB, H = hseq_sc.shape
    B = out_ref.shape[0]
    T = TB // B

    # -- kick off layer-1/2 weight DMA; it overlaps lstm0's serial chain ------
    wbig_cp = pltpu.make_async_copy(wbig_hbm, wbig_sc, dma_sem.at[0])
    wbig_cp.start()

    # ---- lstm0: 1 -> H over the flattened (B*T)-long sequence, batch = 1 ----
    # Input projection (+ bias) for all steps in one VPU broadcast multiply.
    gx0 = x_ref[...] * wih0_ref[...] + b0_ref[...]           # (B*T, 4H)
    h = h0_ref[...]                                          # (1, H)
    c = c0_ref[...]                                          # (1, H)
    for b in range(B):            # static unroll; indices static, B*T small
        for t in range(T):
            n = b * T + t
            gates = gx0[n:n + 1, :] + jnp.dot(
                h, whh0_ref[...], preferred_element_type=jnp.float32)
            h, c = _lstm_cell(gates, c, H)
            # store time-major so lstm1 can read dense (B, H) blocks per step
            hseq_sc[pl.ds(t * B + b, 1), :] = h
    hn_ref[...] = h               # final lstm0 states written exactly once
    cn_ref[...] = c

    # layer-1/2 weights must be resident from here on
    wbig_cp.wait()

    # ---- lstm1 input projection for ALL steps: one (T*B,H)@(H,4H) matmul ----
    gx1_sc[...] = jnp.dot(hseq_sc[...], wbig_sc[0:H, :],
                          preferred_element_type=jnp.float32) + bbig_ref[0:1, :]

    zero = jnp.zeros((B, H), jnp.float32)
    b2 = bbig_ref[1:2, :]

    # ---- lstm1 + lstm2 software-pipelined into one statically-unrolled loop:
    #      iteration t computes lstm1 step t+1 and lstm2 step t; all matmuls in
    #      an iteration depend only on the previous iteration's carries -------
    # prologue: lstm1 step 0 (h1_prev = 0  =>  gates = gx1[0])
    h1, c1 = _lstm_cell(gx1_sc[pl.ds(0, B), :], zero, H)
    h2, c2 = zero, zero

    for t in range(T - 1):
        # lstm1 step t+1 (uses h1[t], c1[t])
        g1 = gx1_sc[pl.ds((t + 1) * B, B), :] + jnp.dot(
            h1, wbig_sc[H:2 * H, :], preferred_element_type=jnp.float32)
        # lstm2 step t (uses h1[t], h2[t-1], c2[t-1]) -- independent of g1
        g2 = (jnp.dot(h1, wbig_sc[2 * H:3 * H, :],
                      preferred_element_type=jnp.float32)
              + jnp.dot(h2, wbig_sc[3 * H:4 * H, :],
                        preferred_element_type=jnp.float32)
              + b2)
        h1_new, c1 = _lstm_cell(g1, c1, H)
        h2, c2 = _lstm_cell(g2, c2, H)
        h1 = h1_new

    # epilogue: lstm2 step T-1
    g2 = (jnp.dot(h1, wbig_sc[2 * H:3 * H, :], preferred_element_type=jnp.float32)
          + jnp.dot(h2, wbig_sc[3 * H:4 * H, :], preferred_element_type=jnp.float32)
          + b2)
    h2, c2 = _lstm_cell(g2, c2, H)

    # ---- Linear(H -> 1) as multiply + lane reduction (no N=1 MXU matmul) ----
    c2_ref[...] = c2
    out_ref[...] = (jnp.sum(h2 * wlin_ref[...], axis=-1, keepdims=True)
                    + blin_ref[...])


# ------------------------------ Model wrapper ------------------------------ #

def init_params(key, hidden=HIDDEN, input_size=INPUT_SIZE, output_size=OUTPUT_SIZE):
    ks = jax.random.split(key, 7)
    scale = 0.1

    def mk(k, shape):
        return (scale * jax.random.normal(k, shape)).astype(jnp.float32)

    params = {
        # first LSTM: forget-gate bias = 1 (as in init_weights of the module);
        # gate column order [i, f, o, g] -> forget gate is columns [H:2H]
        "lstm0": (mk(ks[0], (input_size, 4 * hidden)),
                  mk(ks[1], (hidden, 4 * hidden)),
                  jnp.zeros((1, 4 * hidden), jnp.float32)
                  .at[:, hidden:2 * hidden].set(1.0)),
        "lstm1": (mk(ks[2], (hidden, 4 * hidden)),
                  mk(ks[3], (hidden, 4 * hidden)),
                  jnp.zeros((1, 4 * hidden), jnp.float32)),
        "lstm2": (mk(ks[4], (hidden, 4 * hidden)),
                  mk(ks[5], (hidden, 4 * hidden)),
                  jnp.zeros((1, 4 * hidden), jnp.float32)),
        "linear_w": mk(ks[6], (hidden, output_size)),
        "linear_b": jnp.zeros((1, output_size), jnp.float32),
    }
    return params


def pack_params(params):
    """One-time packing into the kernel's weight layout (outside jit)."""
    wih0, whh0, b0 = params["lstm0"]
    wih1, whh1, b1 = params["lstm1"]
    wih2, whh2, b2 = params["lstm2"]
    return {
        "wih0": wih0, "whh0": whh0, "b0": b0,
        # layer-1/2 weights packed into one HBM slab -> single overlapped DMA
        "wbig": jnp.concatenate([wih1, whh1, wih2, whh2], axis=0),   # (4H, 4H)
        "bbig": jnp.concatenate([b1, b2], axis=0),                   # (2, 4H)
        "wlin": params["linear_w"].T,                                # (1, H)
        "blin": params["linear_b"],                                  # (1, 1)
    }


@jax.jit
def lstmdf_forward(x, packed, hn, cn):
    """x: (B, T, 1) batch_first; hn/cn: (1, 1, H) stateful carry of lstm0."""
    B, T, D = x.shape
    H = HIDDEN

    x_flat = x.reshape(B * T, D)      # contiguous flatten == x.view(1, B*T, 1)
    h0 = hn.reshape(1, H)
    c0 = cn.reshape(1, H)

    vmem = pl.BlockSpec(memory_space=pltpu.MemorySpace.VMEM)
    out_lin, c2, hn_new, cn_new = pl.pallas_call(
        _fused_lstmdf_kernel,
        out_shape=(jax.ShapeDtypeStruct((B, OUTPUT_SIZE), jnp.float32),
                   jax.ShapeDtypeStruct((B, H), jnp.float32),
                   jax.ShapeDtypeStruct((1, H), jnp.float32),
                   jax.ShapeDtypeStruct((1, H), jnp.float32)),
        in_specs=[vmem] * 9 + [pl.BlockSpec(memory_space=pl.ANY)],
        scratch_shapes=[pltpu.VMEM((4 * H, 4 * H), jnp.float32),   # wbig_sc
                        pltpu.VMEM((T * B, H), jnp.float32),       # hseq_sc
                        pltpu.VMEM((T * B, 4 * H), jnp.float32),   # gx1_sc
                        pltpu.SemaphoreType.DMA((1,))],
    )(x_flat, packed["wih0"], packed["whh0"], packed["b0"], h0, c0,
      packed["bbig"], packed["wlin"], packed["blin"], packed["wbig"])

    # dropout / dropout_1 (p=0.2) are identity in eval mode.
    # TODO(synk): training-mode dropout masks not implemented (eval identity).

    cn2 = c2.reshape(1, B, H)   # PyTorch `_` binds to lstm_2's final cell state
    return (out_lin[..., None], cn2, cn2, cn2,
            (hn_new.reshape(1, 1, H), cn_new.reshape(1, 1, H)))


# ------------------------------ Pure-JAX reference ------------------------- #

def _lstm_ref(x_tbd, w_ih, w_hh, b, h0, c0):
    H = h0.shape[-1]

    def step(carry, x_t):
        h, c = carry
        g = x_t @ w_ih + h @ w_hh + b[0]
        i_g = jax.nn.sigmoid(g[:, :H])
        f_g = jax.nn.sigmoid(g[:, H:2 * H])
        o_g = jax.nn.sigmoid(g[:, 2 * H:3 * H])
        g_g = jnp.tanh(g[:, 3 * H:])
        c = f_g * c + i_g * g_g
        h = o_g * jnp.tanh(c)
        return (h, c), h

    (hf, cf), hs = jax.lax.scan(step, (h0, c0), x_tbd)
    return hs, hf, cf


def _forward_ref(x, params, hn, cn):
    B, T, D = x.shape
    H = HIDDEN
    x_tbd = jnp.transpose(x.reshape(1, B * T, D), (1, 0, 2))
    hseq0, h0f, c0f = _lstm_ref(x_tbd, *params["lstm0"],
                                hn.reshape(1, H), cn.reshape(1, H))
    out = jnp.transpose(hseq0, (1, 0, 2)).reshape(B, T, H)
    z = jnp.zeros((B, H), jnp.float32)
    hseq1, _, _ = _lstm_ref(jnp.transpose(out, (1, 0, 2)), *params["lstm1"], z, z)
    hseq2, h2, c2 = _lstm_ref(hseq1, *params["lstm2"], z, z)
    last = hseq2[-1]
    out_lin = last @ params["linear_w"] + params["linear_b"]
    return out_lin[..., None], c2.reshape(1, B, H), h0f, c0f


# ----------------------------------- Main ----------------------------------- #

if __name__ == "__main__":
    key = jax.random.PRNGKey(0)
    k_x, k_p = jax.random.split(key)

    B, T = 2, 8
    x = jax.random.normal(k_x, (B, T, INPUT_SIZE), dtype=jnp.float32)
    params = init_params(k_p)
    packed = pack_params(params)

    # reset_hidden(): zeros stateful carry for the first LSTM
    hn = jnp.zeros((1, 1, HIDDEN), jnp.float32)
    cn = jnp.zeros((1, 1, HIDDEN), jnp.float32)

    out, c_a, c_b, c_c, (hn_new, cn_new) = lstmdf_forward(x, packed, hn, cn)
    jax.block_until_ready(out)

    ref_out, ref_c, ref_h0f, ref_c0f = _forward_ref(x, params, hn, cn)
    assert out.shape == (B, 1, 1), out.shape
    assert c_a.shape == (1, B, HIDDEN), c_a.shape
    assert jnp.allclose(out, ref_out, atol=2e-4, rtol=2e-4)
    assert jnp.allclose(c_a, ref_c, atol=2e-4, rtol=2e-4)
    assert jnp.allclose(hn_new.reshape(1, HIDDEN), ref_h0f, atol=2e-4, rtol=2e-4)
    assert jnp.allclose(cn_new.reshape(1, HIDDEN), ref_c0f, atol=2e-4, rtol=2e-4)

    print("KERNEL_OK")
</pallas_src>

<mosaic_0001>
module attributes {stable_mosaic.version = 11 : i64} {
  func.func @_fused_lstmdf_kernel(%arg0: memref<16x1xf32, #tpu.memory_space<vmem>>, %arg1: memref<1x512xf32, #tpu.memory_space<vmem>>, %arg2: memref<128x512xf32, #tpu.memory_space<vmem>>, %arg3: memref<1x512xf32, #tpu.memory_space<vmem>>, %arg4: memref<1x128xf32, #tpu.memory_space<vmem>>, %arg5: memref<1x128xf32, #tpu.memory_space<vmem>>, %arg6: memref<2x512xf32, #tpu.memory_space<vmem>>, %arg7: memref<1x128xf32, #tpu.memory_space<vmem>>, %arg8: memref<1x1xf32, #tpu.memory_space<vmem>>, %arg9: memref<512x512xf32, #tpu.memory_space<any>>, %arg10: memref<2x1xf32, #tpu.memory_space<vmem>>, %arg11: memref<2x128xf32, #tpu.memory_space<vmem>>, %arg12: memref<1x128xf32, #tpu.memory_space<vmem>>, %arg13: memref<1x128xf32, #tpu.memory_space<vmem>>, %arg14: memref<512x512xf32, #tpu.memory_space<vmem>>, %arg15: memref<16x128xf32, #tpu.memory_space<vmem>>, %arg16: memref<16x512xf32, #tpu.memory_space<vmem>>, %arg17: memref<1x!tpu.dma_semaphore, #tpu.memory_space<semaphore_mem>>) attributes {dimension_semantics = [], scalar_prefetch = 0 : i64, scratch_operands = 4 : i64, tpu.core_type = #tpu.core_type<tc>} {
    %c0_i32 = arith.constant 0 : i32
    %0 = tpu.memref_slice %arg17[%c0_i32] : memref<1x!tpu.dma_semaphore, #tpu.memory_space<semaphore_mem>> -> memref<1x!tpu.dma_semaphore, #tpu.memory_space<semaphore_mem>>
    %1 = tpu.memref_squeeze %0 : memref<1x!tpu.dma_semaphore, #tpu.memory_space<semaphore_mem>> -> memref<!tpu.dma_semaphore, #tpu.memory_space<semaphore_mem>>
    tpu.enqueue_dma source(%arg9 : memref<512x512xf32, #tpu.memory_space<any>>) target(%arg14 : memref<512x512xf32, #tpu.memory_space<vmem>>) target_semaphore(%1 : memref<!tpu.dma_semaphore, #tpu.memory_space<semaphore_mem>>)
    %c0 = arith.constant 0 : index
    %c0_0 = arith.constant 0 : index
    %2 = vector.load %arg0[%c0, %c0_0] : memref<16x1xf32, #tpu.memory_space<vmem>>, vector<16x1xf32>
    %c0_1 = arith.constant 0 : index
    %c0_2 = arith.constant 0 : index
    %3 = vector.load %arg1[%c0_1, %c0_2] : memref<1x512xf32, #tpu.memory_space<vmem>>, vector<1x512xf32>
    %4 = vector.broadcast %2 : vector<16x1xf32> to vector<16x512xf32>
    %5 = vector.broadcast %3 : vector<1x512xf32> to vector<16x512xf32>
    %6 = arith.mulf %4, %5 : vector<16x512xf32>
    %c0_3 = arith.constant 0 : index
    %c0_4 = arith.constant 0 : index
    %7 = vector.load %arg3[%c0_3, %c0_4] : memref<1x512xf32, #tpu.memory_space<vmem>>, vector<1x512xf32>
    %8 = vector.broadcast %7 : vector<1x512xf32> to vector<16x512xf32>
    %9 = arith.addf %6, %8 : vector<16x512xf32>
    %c0_5 = arith.constant 0 : index
    %c0_6 = arith.constant 0 : index
    %10 = vector.load %arg4[%c0_5, %c0_6] : memref<1x128xf32, #tpu.memory_space<vmem>>, vector<1x128xf32>
    %c0_7 = arith.constant 0 : index
    %c0_8 = arith.constant 0 : index
    %11 = vector.load %arg5[%c0_7, %c0_8] : memref<1x128xf32, #tpu.memory_space<vmem>>, vector<1x128xf32>
    %12 = vector.extract_strided_slice %9 {offsets = [0, 0], sizes = [1, 512], strides = [1, 1]} : vector<16x512xf32> to vector<1x512xf32>
    %c0_9 = arith.constant 0 : index
    %c0_10 = arith.constant 0 : index
    %13 = vector.load %arg2[%c0_9, %c0_10] : memref<128x512xf32, #tpu.memory_space<vmem>>, vector<128x512xf32>
    %cst = arith.constant dense<0.000000e+00> : vector<1x512xf32>
    %14 = tpu.matmul %10, %13, %cst {dimension_numbers = #tpu.dot_dimension_numbers<[1], [0], [0], [1], [0, 0, 1, 1], [], []>} : vector<1x128xf32>, vector<128x512xf32>, vector<1x512xf32> -> vector<1x512xf32>
    %15 = arith.addf %12, %14 : vector<1x512xf32>
    %16 = vector.extract_strided_slice %15 {offsets = [0, 0], sizes = [1, 384], strides = [1, 1]} : vector<1x512xf32> to vector<1x384xf32>
    %cst_11 = arith.constant 5.000000e-01 : f32
    %17 = vector.broadcast %cst_11 : f32 to vector<1x384xf32>
    %18 = arith.mulf %17, %16 : vector<1x384xf32>
    %19 = math.tanh %18 : vector<1x384xf32>
    %cst_12 = arith.constant 5.000000e-01 : f32
    %20 = vector.broadcast %cst_12 : f32 to vector<1x384xf32>
    %21 = arith.mulf %20, %19 : vector<1x384xf32>
    %cst_13 = arith.constant 5.000000e-01 : f32
    %22 = vector.broadcast %cst_13 : f32 to vector<1x384xf32>
    %23 = arith.addf %21, %22 : vector<1x384xf32>
    %24 = vector.extract_strided_slice %23 {offsets = [0, 0], sizes = [1, 128], strides = [1, 1]} : vector<1x384xf32> to vector<1x128xf32>
    %25 = vector.extract_strided_slice %23 {offsets = [0, 128], sizes = [1, 128], strides = [1, 1]} : vector<1x384xf32> to vector<1x128xf32>
    %26 = vector.extract_strided_slice %23 {offsets = [0, 256], sizes = [1, 128], strides = [1, 1]} : vector<1x384xf32> to vector<1x128xf32>
    %27 = vector.extract_strided_slice %15 {offsets = [0, 384], sizes = [1, 128], strides = [1, 1]} : vector<1x512xf32> to vector<1x128xf32>
    %28 = math.tanh %27 : vector<1x128xf32>
    %29 = arith.mulf %25, %11 : vector<1x128xf32>
    %30 = arith.mulf %24, %28 : vector<1x128xf32>
    %31 = arith.addf %29, %30 : vector<1x128xf32>
    %32 = math.tanh %31 : vector<1x128xf32>
    %33 = arith.mulf %26, %32 : vector<1x128xf32>
    %c0_14 = arith.constant 0 : index
    %c0_15 = arith.constant 0 : index
    %34 = vector.load %arg15[%c0_14, %c0_15] : memref<16x128xf32, #tpu.memory_space<vmem>>, vector<1x128xf32>
    tpu.vector_store %arg15[%c0_14, %c0_15], %33 {strides = array<i32>} : memref<16x128xf32, #tpu.memory_space<vmem>>, vector<1x128xf32>,
    %35 = vector.extract_strided_slice %9 {offsets = [1, 0], sizes = [1, 512], strides = [1, 1]} : vector<16x512xf32> to vector<1x512xf32>
    %c0_16 = arith.constant 0 : index
    %c0_17 = arith.constant 0 : index
    %36 = vector.load %arg2[%c0_16, %c0_17] : memref<128x512xf32, #tpu.memory_space<vmem>>, vector<128x512xf32>
    %cst_18 = arith.constant dense<0.000000e+00> : vector<1x512xf32>
    %37 = tpu.matmul %33, %36, %cst_18 {dimension_numbers = #tpu.dot_dimension_numbers<[1], [0], [0], [1], [0, 0, 1, 1], [], []>} : vector<1x128xf32>, vector<128x512xf32>, vector<1x512xf32> -> vector<1x512xf32>
    %38 = arith.addf %35, %37 : vector<1x512xf32>
    %39 = vector.extract_strided_slice %38 {offsets = [0, 0], sizes = [1, 384], strides = [1, 1]} : vector<1x512xf32> to vector<1x384xf32>
    %cst_19 = arith.constant 5.000000e-01 : f32
    %40 = vector.broadcast %cst_19 : f32 to vector<1x384xf32>
    %41 = arith.mulf %40, %39 : vector<1x384xf32>
    %42 = math.tanh %41 : vector<1x384xf32>
    %cst_20 = arith.constant 5.000000e-01 : f32
    %43 = vector.broadcast %cst_20 : f32 to vector<1x384xf32>
    %44 = arith.mulf %43, %42 : vector<1x384xf32>
    %cst_21 = arith.constant 5.000000e-01 : f32
    %45 = vector.broadcast %cst_21 : f32 to vector<1x384xf32>
    %46 = arith.addf %44, %45 : vector<1x384xf32>
    %47 = vector.extract_strided_slice %46 {offsets = [0, 0], sizes = [1, 128], strides = [1, 1]} : vector<1x384xf32> to vector<1x128xf32>
    %48 = vector.extract_strided_slice %46 {offsets = [0, 128], sizes = [1, 128], strides = [1, 1]} : vector<1x384xf32> to vector<1x128xf32>
    %49 = vector.extract_strided_slice %46 {offsets = [0, 256], sizes = [1, 128], strides = [1, 1]} : vector<1x384xf32> to vector<1x128xf32>
    %50 = vector.extract_strided_slice %38 {offsets = [0, 384], sizes = [1, 128], strides = [1, 1]} : vector<1x512xf32> to vector<1x128xf32>
    %51 = math.tanh %50 : vector<1x128xf32>
    %52 = arith.mulf %48, %31 : vector<1x128xf32>
    %53 = arith.mulf %47, %51 : vector<1x128xf32>
    %54 = arith.addf %52, %53 : vector<1x128xf32>
    %55 = math.tanh %54 : vector<1x128xf32>
    %56 = arith.mulf %49, %55 : vector<1x128xf32>
    %c2 = arith.constant 2 : index
    %c0_22 = arith.constant 0 : index
    %57 = vector.load %arg15[%c2, %c0_22] : memref<16x128xf32, #tpu.memory_space<vmem>>, vector<1x128xf32>
    tpu.vector_store %arg15[%c2, %c0_22], %56 {strides = array<i32>} : memref<16x128xf32, #tpu.memory_space<vmem>>, vector<1x128xf32>,
    %58 = vector.extract_strided_slice %9 {offsets = [2, 0], sizes = [1, 512], strides = [1, 1]} : vector<16x512xf32> to vector<1x512xf32>
    %c0_23 = arith.constant 0 : index
    %c0_24 = arith.constant 0 : index
    %59 = vector.load %arg2[%c0_23, %c0_24] : memref<128x512xf32, #tpu.memory_space<vmem>>, vector<128x512xf32>
    %cst_25 = arith.constant dense<0.000000e+00> : vector<1x512xf32>
    %60 = tpu.matmul %56, %59, %cst_25 {dimension_numbers = #tpu.dot_dimension_numbers<[1], [0], [0], [1], [0, 0, 1, 1], [], []>} : vector<1x128xf32>, vector<128x512xf32>, vector<1x512xf32> -> vector<1x512xf32>
    %61 = arith.addf %58, %60 : vector<1x512xf32>
    %62 = vector.extract_strided_slice %61 {offsets = [0, 0], sizes = [1, 384], strides = [1, 1]} : vector<1x512xf32> to vector<1x384xf32>
    %cst_26 = arith.constant 5.000000e-01 : f32
    %63 = vector.broadcast %cst_26 : f32 to vector<1x384xf32>
    %64 = arith.mulf %63, %62 : vector<1x384xf32>
    %65 = math.tanh %64 : vector<1x384xf32>
    %cst_27 = arith.constant 5.000000e-01 : f32
    %66 = vector.broadcast %cst_27 : f32 to vector<1x384xf32>
    %67 = arith.mulf %66, %65 : vector<1x384xf32>
    %cst_28 = arith.constant 5.000000e-01 : f32
    %68 = vector.broadcast %cst_28 : f32 to vector<1x384xf32>
    %69 = arith.addf %67, %68 : vector<1x384xf32>
    %70 = vector.extract_strided_slice %69 {offsets = [0, 0], sizes = [1, 128], strides = [1, 1]} : vector<1x384xf32> to vector<1x128xf32>
    %71 = vector.extract_strided_slice %69 {offsets = [0, 128], sizes = [1, 128], strides = [1, 1]} : vector<1x384xf32> to vector<1x128xf32>
    %72 = vector.extract_strided_slice %69 {offsets = [0, 256], sizes = [1, 128], strides = [1, 1]} : vector<1x384xf32> to vector<1x128xf32>
    %73 = vector.extract_strided_slice %61 {offsets = [0, 384], sizes = [1, 128], strides = [1, 1]} : vector<1x512xf32> to vector<1x128xf32>
    %74 = math.tanh %73 : vector<1x128xf32>
    %75 = arith.mulf %71, %54 : vector<1x128xf32>
    %76 = arith.mulf %70, %74 : vector<1x128xf32>
    %77 = arith.addf %75, %76 : vector<1x128xf32>
    %78 = math.tanh %77 : vector<1x128xf32>
    %79 = arith.mulf %72, %78 : vector<1x128xf32>
    %c4 = arith.constant 4 : index
    %c0_29 = arith.constant 0 : index
    %80 = vector.load %arg15[%c4, %c0_29] : memref<16x128xf32, #tpu.memory_space<vmem>>, vector<1x128xf32>
    tpu.vector_store %arg15[%c4, %c0_29], %79 {strides = array<i32>} : memref<16x128xf32, #tpu.memory_space<vmem>>, vector<1x128xf32>,
    %81 = vector.extract_strided_slice %9 {offsets = [3, 0], sizes = [1, 512], strides = [1, 1]} : vector<16x512xf32> to vector<1x512xf32>
    %c0_30 = arith.constant 0 : index
    %c0_31 = arith.constant 0 : index
    %82 = vector.load %arg2[%c0_30, %c0_31] : memref<128x512xf32, #tpu.memory_space<vmem>>, vector<128x512xf32>
    %cst_32 = arith.constant dense<0.000000e+00> : vector<1x512xf32>
    %83 = tpu.matmul %79, %82, %cst_32 {dimension_numbers = #tpu.dot_dimension_numbers<[1], [0], [0], [1], [0, 0, 1, 1], [], []>} : vector<1x128xf32>, vector<128x512xf32>, vector<1x512xf32> -> vector<1x512xf32>
    %84 = arith.addf %81, %83 : vector<1x512xf32>
    %85 = vector.extract_strided_slice %84 {offsets = [0, 0], sizes = [1, 384], strides = [1, 1]} : vector<1x512xf32> to vector<1x384xf32>
    %cst_33 = arith.constant 5.000000e-01 : f32
    %86 = vector.broadcast %cst_33 : f32 to vector<1x384xf32>
    %87 = arith.mulf %86, %85 : vector<1x384xf32>
    %88 = math.tanh %87 : vector<1x384xf32>
    %cst_34 = arith.constant 5.000000e-01 : f32
    %89 = vector.broadcast %cst_34 : f32 to vector<1x384xf32>
    %90 = arith.mulf %89, %88 : vector<1x384xf32>
    %cst_35 = arith.constant 5.000000e-01 : f32
    %91 = vector.broadcast %cst_35 : f32 to vector<1x384xf32>
    %92 = arith.addf %90, %91 : vector<1x384xf32>
    %93 = vector.extract_strided_slice %92 {offsets = [0, 0], sizes = [1, 128], strides = [1, 1]} : vector<1x384xf32> to vector<1x128xf32>
    %94 = vector.extract_strided_slice %92 {offsets = [0, 128], sizes = [1, 128], strides = [1, 1]} : vector<1x384xf32> to vector<1x128xf32>
    %95 = vector.extract_strided_slice %92 {offsets = [0, 256], sizes = [1, 128], strides = [1, 1]} : vector<1x384xf32> to vector<1x128xf32>
    %96 = vector.extract_strided_slice %84 {offsets = [0, 384], sizes = [1, 128], strides = [1, 1]} : vector<1x512xf32> to vector<1x128xf32>
    %97 = math.tanh %96 : vector<1x128xf32>
    %98 = arith.mulf %94, %77 : vector<1x128xf32>
    %99 = arith.mulf %93, %97 : vector<1x128xf32>
    %100 = arith.addf %98, %99 : vector<1x128xf32>
    %101 = math.tanh %100 : vector<1x128xf32>
    %102 = arith.mulf %95, %101 : vector<1x128xf32>
    %c6 = arith.constant 6 : index
    %c0_36 = arith.constant 0 : index
    %103 = vector.load %arg15[%c6, %c0_36] : memref<16x128xf32, #tpu.memory_space<vmem>>, vector<1x128xf32>
    tpu.vector_store %arg15[%c6, %c0_36], %102 {strides = array<i32>} : memref<16x128xf32, #tpu.memory_space<vmem>>, vector<1x128xf32>,
    %104 = vector.extract_strided_slice %9 {offsets = [4, 0], sizes = [1, 512], strides = [1, 1]} : vector<16x512xf32> to vector<1x512xf32>
    %c0_37 = arith.constant 0 : index
    %c0_38 = arith.constant 0 : index
    %105 = vector.load %arg2[%c0_37, %c0_38] : memref<128x512xf32, #tpu.memory_space<vmem>>, vector<128x512xf32>
    %cst_39 = arith.constant dense<0.000000e+00> : vector<1x512xf32>
    %106 = tpu.matmul %102, %105, %cst_39 {dimension_numbers = #tpu.dot_dimension_numbers<[1], [0], [0], [1], [0, 0, 1, 1], [], []>} : vector<1x128xf32>, vector<128x512xf32>, vector<1x512xf32> -> vector<1x512xf32>
    %107 = arith.addf %104, %106 : vector<1x512xf32>
    %108 = vector.extract_strided_slice %107 {offsets = [0, 0], sizes = [1, 384], strides = [1, 1]} : vector<1x512xf32> to vector<1x384xf32>
    %cst_40 = arith.constant 5.000000e-01 : f32
    %109 = vector.broadcast %cst_40 : f32 to vector<1x384xf32>
    %110 = arith.mulf %109, %108 : vector<1x384xf32>
    %111 = math.tanh %110 : vector<1x384xf32>
    %cst_41 = arith.constant 5.000000e-01 : f32
    %112 = vector.broadcast %cst_41 : f32 to vector<1x384xf32>
    %113 = arith.mulf %112, %111 : vector<1x384xf32>
    %cst_42 = arith.constant 5.000000e-01 : f32
    %114 = vector.broadcast %cst_42 : f32 to vector<1x384xf32>
    %115 = arith.addf %113, %114 : vector<1x384xf32>
    %116 = vector.extract_strided_slice %115 {offsets = [0, 0], sizes = [1, 128], strides = [1, 1]} : vector<1x384xf32> to vector<1x128xf32>
    %117 = vector.extract_strided_slice %115 {offsets = [0, 128], sizes = [1, 128], strides = [1, 1]} : vector<1x384xf32> to vector<1x128xf32>
    %118 = vector.extract_strided_slice %115 {offsets = [0, 256], sizes = [1, 128], strides = [1, 1]} : vector<1x384xf32> to vector<1x128xf32>
    %119 = vector.extract_strided_slice %107 {offsets = [0, 384], sizes = [1, 128], strides = [1, 1]} : vector<1x512xf32> to vector<1x128xf32>
    %120 = math.tanh %119 : vector<1x128xf32>
    %121 = arith.mulf %117, %100 : vector<1x128xf32>
    %122 = arith.mulf %116, %120 : vector<1x128xf32>
    %123 = arith.addf %121, %122 : vector<1x128xf32>
    %124 = math.tanh %123 : vector<1x128xf32>
    %125 = arith.mulf %118, %124 : vector<1x128xf32>
    %c8 = arith.constant 8 : index
    %c0_43 = arith.constant 0 : index
    %126 = vector.load %arg15[%c8, %c0_43] : memref<16x128xf32, #tpu.memory_space<vmem>>, vector<1x128xf32>
    tpu.vector_store %arg15[%c8, %c0_43], %125 {strides = array<i32>} : memref<16x128xf32, #tpu.memory_space<vmem>>, vector<1x128xf32>,
    %127 = vector.extract_strided_slice %9 {offsets = [5, 0], sizes = [1, 512], strides = [1, 1]} : vector<16x512xf32> to vector<1x512xf32>
    %c0_44 = arith.constant 0 : index
    %c0_45 = arith.constant 0 : index
    %128 = vector.load %arg2[%c0_44, %c0_45] : memref<128x512xf32, #tpu.memory_space<vmem>>, vector<128x512xf32>
    %cst_46 = arith.constant dense<0.000000e+00> : vector<1x512xf32>
    %129 = tpu.matmul %125, %128, %cst_46 {dimension_numbers = #tpu.dot_dimension_numbers<[1], [0], [0], [1], [0, 0, 1, 1], [], []>} : vector<1x128xf32>, vector<128x512xf32>, vector<1x512xf32> -> vector<1x512xf32>
    %130 = arith.addf %127, %129 : vector<1x512xf32>
    %131 = vector.extract_strided_slice %130 {offsets = [0, 0], sizes = [1, 384], strides = [1, 1]} : vector<1x512xf32> to vector<1x384xf32>
    %cst_47 = arith.constant 5.000000e-01 : f32
    %132 = vector.broadcast %cst_47 : f32 to vector<1x384xf32>
    %133 = arith.mulf %132, %131 : vector<1x384xf32>
    %134 = math.tanh %133 : vector<1x384xf32>
    %cst_48 = arith.constant 5.000000e-01 : f32
    %135 = vector.broadcast %cst_48 : f32 to vector<1x384xf32>
    %136 = arith.mulf %135, %134 : vector<1x384xf32>
    %cst_49 = arith.constant 5.000000e-01 : f32
    %137 = vector.broadcast %cst_49 : f32 to vector<1x384xf32>
    %138 = arith.addf %136, %137 : vector<1x384xf32>
    %139 = vector.extract_strided_slice %138 {offsets = [0, 0], sizes = [1, 128], strides = [1, 1]} : vector<1x384xf32> to vector<1x128xf32>
    %140 = vector.extract_strided_slice %138 {offsets = [0, 128], sizes = [1, 128], strides = [1, 1]} : vector<1x384xf32> to vector<1x128xf32>
    %141 = vector.extract_strided_slice %138 {offsets = [0, 256], sizes = [1, 128], strides = [1, 1]} : vector<1x384xf32> to vector<1x128xf32>
    %142 = vector.extract_strided_slice %130 {offsets = [0, 384], sizes = [1, 128], strides = [1, 1]} : vector<1x512xf32> to vector<1x128xf32>
    %143 = math.tanh %142 : vector<1x128xf32>
    %144 = arith.mulf %140, %123 : vector<1x128xf32>
    %145 = arith.mulf %139, %143 : vector<1x128xf32>
    %146 = arith.addf %144, %145 : vector<1x128xf32>
    %147 = math.tanh %146 : vector<1x128xf32>
    %148 = arith.mulf %141, %147 : vector<1x128xf32>
    %c10 = arith.constant 10 : index
    %c0_50 = arith.constant 0 : index
    %149 = vector.load %arg15[%c10, %c0_50] : memref<16x128xf32, #tpu.memory_space<vmem>>, vector<1x128xf32>
    tpu.vector_store %arg15[%c10, %c0_50], %148 {strides = array<i32>} : memref<16x128xf32, #tpu.memory_space<vmem>>, vector<1x128xf32>,
    %150 = vector.extract_strided_slice %9 {offsets = [6, 0], sizes = [1, 512], strides = [1, 1]} : vector<16x512xf32> to vector<1x512xf32>
    %c0_51 = arith.constant 0 : index
    %c0_52 = arith.constant 0 : index
    %151 = vector.load %arg2[%c0_51, %c0_52] : memref<128x512xf32, #tpu.memory_space<vmem>>, vector<128x512xf32>
    %cst_53 = arith.constant dense<0.000000e+00> : vector<1x512xf32>
    %152 = tpu.matmul %148, %151, %cst_53 {dimension_numbers = #tpu.dot_dimension_numbers<[1], [0], [0], [1], [0, 0, 1, 1], [], []>} : vector<1x128xf32>, vector<128x512xf32>, vector<1x512xf32> -> vector<1x512xf32>
    %153 = arith.addf %150, %152 : vector<1x512xf32>
    %154 = vector.extract_strided_slice %153 {offsets = [0, 0], sizes = [1, 384], strides = [1, 1]} : vector<1x512xf32> to vector<1x384xf32>
    %cst_54 = arith.constant 5.000000e-01 : f32
    %155 = vector.broadcast %cst_54 : f32 to vector<1x384xf32>
    %156 = arith.mulf %155, %154 : vector<1x384xf32>
    %157 = math.tanh %156 : vector<1x384xf32>
    %cst_55 = arith.constant 5.000000e-01 : f32
    %158 = vector.broadcast %cst_55 : f32 to vector<1x384xf32>
    %159 = arith.mulf %158, %157 : vector<1x384xf32>
    %cst_56 = arith.constant 5.000000e-01 : f32
    %160 = vector.broadcast %cst_56 : f32 to vector<1x384xf32>
    %161 = arith.addf %159, %160 : vector<1x384xf32>
    %162 = vector.extract_strided_slice %161 {offsets = [0, 0], sizes = [1, 128], strides = [1, 1]} : vector<1x384xf32> to vector<1x128xf32>
    %163 = vector.extract_strided_slice %161 {offsets = [0, 128], sizes = [1, 128], strides = [1, 1]} : vector<1x384xf32> to vector<1x128xf32>
    %164 = vector.extract_strided_slice %161 {offsets = [0, 256], sizes = [1, 128], strides = [1, 1]} : vector<1x384xf32> to vector<1x128xf32>
    %165 = vector.extract_strided_slice %153 {offsets = [0, 384], sizes = [1, 128], strides = [1, 1]} : vector<1x512xf32> to vector<1x128xf32>
    %166 = math.tanh %165 : vector<1x128xf32>
    %167 = arith.mulf %163, %146 : vector<1x128xf32>
    %168 = arith.mulf %162, %166 : vector<1x128xf32>
    %169 = arith.addf %167, %168 : vector<1x128xf32>
    %170 = math.tanh %169 : vector<1x128xf32>
    %171 = arith.mulf %164, %170 : vector<1x128xf32>
    %c12 = arith.constant 12 : index
    %c0_57 = arith.constant 0 : index
    %172 = vector.load %arg15[%c12, %c0_57] : memref<16x128xf32, #tpu.memory_space<vmem>>, vector<1x128xf32>
    tpu.vector_store %arg15[%c12, %c0_57], %171 {strides = array<i32>} : memref<16x128xf32, #tpu.memory_space<vmem>>, vector<1x128xf32>,
    %173 = vector.extract_strided_slice %9 {offsets = [7, 0], sizes = [1, 512], strides = [1, 1]} : vector<16x512xf32> to vector<1x512xf32>
    %c0_58 = arith.constant 0 : index
    %c0_59 = arith.constant 0 : index
    %174 = vector.load %arg2[%c0_58, %c0_59] : memref<128x512xf32, #tpu.memory_space<vmem>>, vector<128x512xf32>
    %cst_60 = arith.constant dense<0.000000e+00> : vector<1x512xf32>
    %175 = tpu.matmul %171, %174, %cst_60 {dimension_numbers = #tpu.dot_dimension_numbers<[1], [0], [0], [1], [0, 0, 1, 1], [], []>} : vector<1x128xf32>, vector<128x512xf32>, vector<1x512xf32> -> vector<1x512xf32>
    %176 = arith.addf %173, %175 : vector<1x512xf32>
    %177 = vector.extract_strided_slice %176 {offsets = [0, 0], sizes = [1, 384], strides = [1, 1]} : vector<1x512xf32> to vector<1x384xf32>
    %cst_61 = arith.constant 5.000000e-01 : f32
    %178 = vector.broadcast %cst_61 : f32 to vector<1x384xf32>
    %179 = arith.mulf %178, %177 : vector<1x384xf32>
    %180 = math.tanh %179 : vector<1x384xf32>
    %cst_62 = arith.constant 5.000000e-01 : f32
    %181 = vector.broadcast %cst_62 : f32 to vector<1x384xf32>
    %182 = arith.mulf %181, %180 : vector<1x384xf32>
    %cst_63 = arith.constant 5.000000e-01 : f32
    %183 = vector.broadcast %cst_63 : f32 to vector<1x384xf32>
    %184 = arith.addf %182, %183 : vector<1x384xf32>
    %185 = vector.extract_strided_slice %184 {offsets = [0, 0], sizes = [1, 128], strides = [1, 1]} : vector<1x384xf32> to vector<1x128xf32>
    %186 = vector.extract_strided_slice %184 {offsets = [0, 128], sizes = [1, 128], strides = [1, 1]} : vector<1x384xf32> to vector<1x128xf32>
    %187 = vector.extract_strided_slice %184 {offsets = [0, 256], sizes = [1, 128], strides = [1, 1]} : vector<1x384xf32> to vector<1x128xf32>
    %188 = vector.extract_strided_slice %176 {offsets = [0, 384], sizes = [1, 128], strides = [1, 1]} : vector<1x512xf32> to vector<1x128xf32>
    %189 = math.tanh %188 : vector<1x128xf32>
    %190 = arith.mulf %186, %169 : vector<1x128xf32>
    %191 = arith.mulf %185, %189 : vector<1x128xf32>
    %192 = arith.addf %190, %191 : vector<1x128xf32>
    %193 = math.tanh %192 : vector<1x128xf32>
    %194 = arith.mulf %187, %193 : vector<1x128xf32>
    %c14 = arith.constant 14 : index
    %c0_64 = arith.constant 0 : index
    %195 = vector.load %arg15[%c14, %c0_64] : memref<16x128xf32, #tpu.memory_space<vmem>>, vector<1x128xf32>
    tpu.vector_store %arg15[%c14, %c0_64], %194 {strides = array<i32>} : memref<16x128xf32, #tpu.memory_space<vmem>>, vector<1x128xf32>,
    %196 = vector.extract_strided_slice %9 {offsets = [8, 0], sizes = [1, 512], strides = [1, 1]} : vector<16x512xf32> to vector<1x512xf32>
    %c0_65 = arith.constant 0 : index
    %c0_66 = arith.constant 0 : index
    %197 = vector.load %arg2[%c0_65, %c0_66] : memref<128x512xf32, #tpu.memory_space<vmem>>, vector<128x512xf32>
    %cst_67 = arith.constant dense<0.000000e+00> : vector<1x512xf32>
    %198 = tpu.matmul %194, %197, %cst_67 {dimension_numbers = #tpu.dot_dimension_numbers<[1], [0], [0], [1], [0, 0, 1, 1], [], []>} : vector<1x128xf32>, vector<128x512xf32>, vector<1x512xf32> -> vector<1x512xf32>
    %199 = arith.addf %196, %198 : vector<1x512xf32>
    %200 = vector.extract_strided_slice %199 {offsets = [0, 0], sizes = [1, 384], strides = [1, 1]} : vector<1x512xf32> to vector<1x384xf32>
    %cst_68 = arith.constant 5.000000e-01 : f32
    %201 = vector.broadcast %cst_68 : f32 to vector<1x384xf32>
    %202 = arith.mulf %201, %200 : vector<1x384xf32>
    %203 = math.tanh %202 : vector<1x384xf32>
    %cst_69 = arith.constant 5.000000e-01 : f32
    %204 = vector.broadcast %cst_69 : f32 to vector<1x384xf32>
    %205 = arith.mulf %204, %203 : vector<1x384xf32>
    %cst_70 = arith.constant 5.000000e-01 : f32
    %206 = vector.broadcast %cst_70 : f32 to vector<1x384xf32>
    %207 = arith.addf %205, %206 : vector<1x384xf32>
    %208 = vector.extract_strided_slice %207 {offsets = [0, 0], sizes = [1, 128], strides = [1, 1]} : vector<1x384xf32> to vector<1x128xf32>
    %209 = vector.extract_strided_slice %207 {offsets = [0, 128], sizes = [1, 128], strides = [1, 1]} : vector<1x384xf32> to vector<1x128xf32>
    %210 = vector.extract_strided_slice %207 {offsets = [0, 256], sizes = [1, 128], strides = [1, 1]} : vector<1x384xf32> to vector<1x128xf32>
    %211 = vector.extract_strided_slice %199 {offsets = [0, 384], sizes = [1, 128], strides = [1, 1]} : vector<1x512xf32> to vector<1x128xf32>
    %212 = math.tanh %211 : vector<1x128xf32>
    %213 = arith.mulf %209, %192 : vector<1x128xf32>
    %214 = arith.mulf %208, %212 : vector<1x128xf32>
    %215 = arith.addf %213, %214 : vector<1x128xf32>
    %216 = math.tanh %215 : vector<1x128xf32>
    %217 = arith.mulf %210, %216 : vector<1x128xf32>
    %c1 = arith.constant 1 : index
    %c0_71 = arith.constant 0 : index
    %218 = vector.load %arg15[%c1, %c0_71] : memref<16x128xf32, #tpu.memory_space<vmem>>, vector<1x128xf32>
    tpu.vector_store %arg15[%c1, %c0_71], %217 {strides = array<i32>} : memref<16x128xf32, #tpu.memory_space<vmem>>, vector<1x128xf32>,
    %219 = vector.extract_strided_slice %9 {offsets = [9, 0], sizes = [1, 512], strides = [1, 1]} : vector<16x512xf32> to vector<1x512xf32>
    %c0_72 = arith.constant 0 : index
    %c0_73 = arith.constant 0 : index
    %220 = vector.load %arg2[%c0_72, %c0_73] : memref<128x512xf32, #tpu.memory_space<vmem>>, vector<128x512xf32>
    %cst_74 = arith.constant dense<0.000000e+00> : vector<1x512xf32>
    %221 = tpu.matmul %217, %220, %cst_74 {dimension_numbers = #tpu.dot_dimension_numbers<[1], [0], [0], [1], [0, 0, 1, 1], [], []>} : vector<1x128xf32>, vector<128x512xf32>, vector<1x512xf32> -> vector<1x512xf32>
    %222 = arith.addf %219, %221 : vector<1x512xf32>
    %223 = vector.extract_strided_slice %222 {offsets = [0, 0], sizes = [1, 384], strides = [1, 1]} : vector<1x512xf32> to vector<1x384xf32>
    %cst_75 = arith.constant 5.000000e-01 : f32
    %224 = vector.broadcast %cst_75 : f32 to vector<1x384xf32>
    %225 = arith.mulf %224, %223 : vector<1x384xf32>
    %226 = math.tanh %225 : vector<1x384xf32>
    %cst_76 = arith.constant 5.000000e-01 : f32
    %227 = vector.broadcast %cst_76 : f32 to vector<1x384xf32>
    %228 = arith.mulf %227, %226 : vector<1x384xf32>
    %cst_77 = arith.constant 5.000000e-01 : f32
    %229 = vector.broadcast %cst_77 : f32 to vector<1x384xf32>
    %230 = arith.addf %228, %229 : vector<1x384xf32>
    %231 = vector.extract_strided_slice %230 {offsets = [0, 0], sizes = [1, 128], strides = [1, 1]} : vector<1x384xf32> to vector<1x128xf32>
    %232 = vector.extract_strided_slice %230 {offsets = [0, 128], sizes = [1, 128], strides = [1, 1]} : vector<1x384xf32> to vector<1x128xf32>
    %233 = vector.extract_strided_slice %230 {offsets = [0, 256], sizes = [1, 128], strides = [1, 1]} : vector<1x384xf32> to vector<1x128xf32>
    %234 = vector.extract_strided_slice %222 {offsets = [0, 384], sizes = [1, 128], strides = [1, 1]} : vector<1x512xf32> to vector<1x128xf32>
    %235 = math.tanh %234 : vector<1x128xf32>
    %236 = arith.mulf %232, %215 : vector<1x128xf32>
    %237 = arith.mulf %231, %235 : vector<1x128xf32>
    %238 = arith.addf %236, %237 : vector<1x128xf32>
    %239 = math.tanh %238 : vector<1x128xf32>
    %240 = arith.mulf %233, %239 : vector<1x128xf32>
    %c3 = arith.constant 3 : index
    %c0_78 = arith.constant 0 : index
    %241 = vector.load %arg15[%c3, %c0_78] : memref<16x128xf32, #tpu.memory_space<vmem>>, vector<1x128xf32>
    tpu.vector_store %arg15[%c3, %c0_78], %240 {strides = array<i32>} : memref<16x128xf32, #tpu.memory_space<vmem>>, vector<1x128xf32>,
    %242 = vector.extract_strided_slice %9 {offsets = [10, 0], sizes = [1, 512], strides = [1, 1]} : vector<16x512xf32> to vector<1x512xf32>
    %c0_79 = arith.constant 0 : index
    %c0_80 = arith.constant 0 : index
    %243 = vector.load %arg2[%c0_79, %c0_80] : memref<128x512xf32, #tpu.memory_space<vmem>>, vector<128x512xf32>
    %cst_81 = arith.constant dense<0.000000e+00> : vector<1x512xf32>
    %244 = tpu.matmul %240, %243, %cst_81 {dimension_numbers = #tpu.dot_dimension_numbers<[1], [0], [0], [1], [0, 0, 1, 1], [], []>} : vector<1x128xf32>, vector<128x512xf32>, vector<1x512xf32> -> vector<1x512xf32>
    %245 = arith.addf %242, %244 : vector<1x512xf32>
    %246 = vector.extract_strided_slice %245 {offsets = [0, 0], sizes = [1, 384], strides = [1, 1]} : vector<1x512xf32> to vector<1x384xf32>
    %cst_82 = arith.constant 5.000000e-01 : f32
    %247 = vector.broadcast %cst_82 : f32 to vector<1x384xf32>
    %248 = arith.mulf %247, %246 : vector<1x384xf32>
    %249 = math.tanh %248 : vector<1x384xf32>
    %cst_83 = arith.constant 5.000000e-01 : f32
    %250 = vector.broadcast %cst_83 : f32 to vector<1x384xf32>
    %251 = arith.mulf %250, %249 : vector<1x384xf32>
    %cst_84 = arith.constant 5.000000e-01 : f32
    %252 = vector.broadcast %cst_84 : f32 to vector<1x384xf32>
    %253 = arith.addf %251, %252 : vector<1x384xf32>
    %254 = vector.extract_strided_slice %253 {offsets = [0, 0], sizes = [1, 128], strides = [1, 1]} : vector<1x384xf32> to vector<1x128xf32>
    %255 = vector.extract_strided_slice %253 {offsets = [0, 128], sizes = [1, 128], strides = [1, 1]} : vector<1x384xf32> to vector<1x128xf32>
    %256 = vector.extract_strided_slice %253 {offsets = [0, 256], sizes = [1, 128], strides = [1, 1]} : vector<1x384xf32> to vector<1x128xf32>
    %257 = vector.extract_strided_slice %245 {offsets = [0, 384], sizes = [1, 128], strides = [1, 1]} : vector<1x512xf32> to vector<1x128xf32>
    %258 = math.tanh %257 : vector<1x128xf32>
    %259 = arith.mulf %255, %238 : vector<1x128xf32>
    %260 = arith.mulf %254, %258 : vector<1x128xf32>
    %261 = arith.addf %259, %260 : vector<1x128xf32>
    %262 = math.tanh %261 : vector<1x128xf32>
    %263 = arith.mulf %256, %262 : vector<1x128xf32>
    %c5 = arith.constant 5 : index
    %c0_85 = arith.constant 0 : index
    %264 = vector.load %arg15[%c5, %c0_85] : memref<16x128xf32, #tpu.memory_space<vmem>>, vector<1x128xf32>
    tpu.vector_store %arg15[%c5, %c0_85], %263 {strides = array<i32>} : memref<16x128xf32, #tpu.memory_space<vmem>>, vector<1x128xf32>,
    %265 = vector.extract_strided_slice %9 {offsets = [11, 0], sizes = [1, 512], strides = [1, 1]} : vector<16x512xf32> to vector<1x512xf32>
    %c0_86 = arith.constant 0 : index
    %c0_87 = arith.constant 0 : index
    %266 = vector.load %arg2[%c0_86, %c0_87] : memref<128x512xf32, #tpu.memory_space<vmem>>, vector<128x512xf32>
    %cst_88 = arith.constant dense<0.000000e+00> : vector<1x512xf32>
    %267 = tpu.matmul %263, %266, %cst_88 {dimension_numbers = #tpu.dot_dimension_numbers<[1], [0], [0], [1], [0, 0, 1, 1], [], []>} : vector<1x128xf32>, vector<128x512xf32>, vector<1x512xf32> -> vector<1x512xf32>
    %268 = arith.addf %265, %267 : vector<1x512xf32>
    %269 = vector.extract_strided_slice %268 {offsets = [0, 0], sizes = [1, 384], strides = [1, 1]} : vector<1x512xf32> to vector<1x384xf32>
    %cst_89 = arith.constant 5.000000e-01 : f32
    %270 = vector.broadcast %cst_89 : f32 to vector<1x384xf32>
    %271 = arith.mulf %270, %269 : vector<1x384xf32>
    %272 = math.tanh %271 : vector<1x384xf32>
    %cst_90 = arith.constant 5.000000e-01 : f32
    %273 = vector.broadcast %cst_90 : f32 to vector<1x384xf32>
    %274 = arith.mulf %273, %272 : vector<1x384xf32>
    %cst_91 = arith.constant 5.000000e-01 : f32
    %275 = vector.broadcast %cst_91 : f32 to vector<1x384xf32>
    %276 = arith.addf %274, %275 : vector<1x384xf32>
    %277 = vector.extract_strided_slice %276 {offsets = [0, 0], sizes = [1, 128], strides = [1, 1]} : vector<1x384xf32> to vector<1x128xf32>
    %278 = vector.extract_strided_slice %276 {offsets = [0, 128], sizes = [1, 128], strides = [1, 1]} : vector<1x384xf32> to vector<1x128xf32>
    %279 = vector.extract_strided_slice %276 {offsets = [0, 256], sizes = [1, 128], strides = [1, 1]} : vector<1x384xf32> to vector<1x128xf32>
    %280 = vector.extract_strided_slice %268 {offsets = [0, 384], sizes = [1, 128], strides = [1, 1]} : vector<1x512xf32> to vector<1x128xf32>
    %281 = math.tanh %280 : vector<1x128xf32>
    %282 = arith.mulf %278, %261 : vector<1x128xf32>
    %283 = arith.mulf %277, %281 : vector<1x128xf32>
    %284 = arith.addf %282, %283 : vector<1x128xf32>
    %285 = math.tanh %284 : vector<1x128xf32>
    %286 = arith.mulf %279, %285 : vector<1x128xf32>
    %c7 = arith.constant 7 : index
    %c0_92 = arith.constant 0 : index
    %287 = vector.load %arg15[%c7, %c0_92] : memref<16x128xf32, #tpu.memory_space<vmem>>, vector<1x128xf32>
    tpu.vector_store %arg15[%c7, %c0_92], %286 {strides = array<i32>} : memref<16x128xf32, #tpu.memory_space<vmem>>, vector<1x128xf32>,
    %288 = vector.extract_strided_slice %9 {offsets = [12, 0], sizes = [1, 512], strides = [1, 1]} : vector<16x512xf32> to vector<1x512xf32>
    %c0_93 = arith.constant 0 : index
    %c0_94 = arith.constant 0 : index
    %289 = vector.load %arg2[%c0_93, %c0_94] : memref<128x512xf32, #tpu.memory_space<vmem>>, vector<128x512xf32>
    %cst_95 = arith.constant dense<0.000000e+00> : vector<1x512xf32>
    %290 = tpu.matmul %286, %289, %cst_95 {dimension_numbers = #tpu.dot_dimension_numbers<[1], [0], [0], [1], [0, 0, 1, 1], [], []>} : vector<1x128xf32>, vector<128x512xf32>, vector<1x512xf32> -> vector<1x512xf32>
    %291 = arith.addf %288, %290 : vector<1x512xf32>
    %292 = vector.extract_strided_slice %291 {offsets = [0, 0], sizes = [1, 384], strides = [1, 1]} : vector<1x512xf32> to vector<1x384xf32>
    %cst_96 = arith.constant 5.000000e-01 : f32
    %293 = vector.broadcast %cst_96 : f32 to vector<1x384xf32>
    %294 = arith.mulf %293, %292 : vector<1x384xf32>
    %295 = math.tanh %294 : vector<1x384xf32>
    %cst_97 = arith.constant 5.000000e-01 : f32
    %296 = vector.broadcast %cst_97 : f32 to vector<1x384xf32>
    %297 = arith.mulf %296, %295 : vector<1x384xf32>
    %cst_98 = arith.constant 5.000000e-01 : f32
    %298 = vector.broadcast %cst_98 : f32 to vector<1x384xf32>
    %299 = arith.addf %297, %298 : vector<1x384xf32>
    %300 = vector.extract_strided_slice %299 {offsets = [0, 0], sizes = [1, 128], strides = [1, 1]} : vector<1x384xf32> to vector<1x128xf32>
    %301 = vector.extract_strided_slice %299 {offsets = [0, 128], sizes = [1, 128], strides = [1, 1]} : vector<1x384xf32> to vector<1x128xf32>
    %302 = vector.extract_strided_slice %299 {offsets = [0, 256], sizes = [1, 128], strides = [1, 1]} : vector<1x384xf32> to vector<1x128xf32>
    %303 = vector.extract_strided_slice %291 {offsets = [0, 384], sizes = [1, 128], strides = [1, 1]} : vector<1x512xf32> to vector<1x128xf32>
    %304 = math.tanh %303 : vector<1x128xf32>
    %305 = arith.mulf %301, %284 : vector<1x128xf32>
    %306 = arith.mulf %300, %304 : vector<1x128xf32>
    %307 = arith.addf %305, %306 : vector<1x128xf32>
    %308 = math.tanh %307 : vector<1x128xf32>
    %309 = arith.mulf %302, %308 : vector<1x128xf32>
    %c9 = arith.constant 9 : index
    %c0_99 = arith.constant 0 : index
    %310 = vector.load %arg15[%c9, %c0_99] : memref<16x128xf32, #tpu.memory_space<vmem>>, vector<1x128xf32>
    tpu.vector_store %arg15[%c9, %c0_99], %309 {strides = array<i32>} : memref<16x128xf32, #tpu.memory_space<vmem>>, vector<1x128xf32>,
    %311 = vector.extract_strided_slice %9 {offsets = [13, 0], sizes = [1, 512], strides = [1, 1]} : vector<16x512xf32> to vector<1x512xf32>
    %c0_100 = arith.constant 0 : index
    %c0_101 = arith.constant 0 : index
    %312 = vector.load %arg2[%c0_100, %c0_101] : memref<128x512xf32, #tpu.memory_space<vmem>>, vector<128x512xf32>
    %cst_102 = arith.constant dense<0.000000e+00> : vector<1x512xf32>
    %313 = tpu.matmul %309, %312, %cst_102 {dimension_numbers = #tpu.dot_dimension_numbers<[1], [0], [0], [1], [0, 0, 1, 1], [], []>} : vector<1x128xf32>, vector<128x512xf32>, vector<1x512xf32> -> vector<1x512xf32>
    %314 = arith.addf %311, %313 : vector<1x512xf32>
    %315 = vector.extract_strided_slice %314 {offsets = [0, 0], sizes = [1, 384], strides = [1, 1]} : vector<1x512xf32> to vector<1x384xf32>
    %cst_103 = arith.constant 5.000000e-01 : f32
    %316 = vector.broadcast %cst_103 : f32 to vector<1x384xf32>
    %317 = arith.mulf %316, %315 : vector<1x384xf32>
    %318 = math.tanh %317 : vector<1x384xf32>
    %cst_104 = arith.constant 5.000000e-01 : f32
    %319 = vector.broadcast %cst_104 : f32 to vector<1x384xf32>
    %320 = arith.mulf %319, %318 : vector<1x384xf32>
    %cst_105 = arith.constant 5.000000e-01 : f32
    %321 = vector.broadcast %cst_105 : f32 to vector<1x384xf32>
    %322 = arith.addf %320, %321 : vector<1x384xf32>
    %323 = vector.extract_strided_slice %322 {offsets = [0, 0], sizes = [1, 128], strides = [1, 1]} : vector<1x384xf32> to vector<1x128xf32>
    %324 = vector.extract_strided_slice %322 {offsets = [0, 128], sizes = [1, 128], strides = [1, 1]} : vector<1x384xf32> to vector<1x128xf32>
    %325 = vector.extract_strided_slice %322 {offsets = [0, 256], sizes = [1, 128], strides = [1, 1]} : vector<1x384xf32> to vector<1x128xf32>
    %326 = vector.extract_strided_slice %314 {offsets = [0, 384], sizes = [1, 128], strides = [1, 1]} : vector<1x512xf32> to vector<1x128xf32>
    %327 = math.tanh %326 : vector<1x128xf32>
    %328 = arith.mulf %324, %307 : vector<1x128xf32>
    %329 = arith.mulf %323, %327 : vector<1x128xf32>
    %330 = arith.addf %328, %329 : vector<1x128xf32>
    %331 = math.tanh %330 : vector<1x128xf32>
    %332 = arith.mulf %325, %331 : vector<1x128xf32>
    %c11 = arith.constant 11 : index
    %c0_106 = arith.constant 0 : index
    %333 = vector.load %arg15[%c11, %c0_106] : memref<16x128xf32, #tpu.memory_space<vmem>>, vector<1x128xf32>
    tpu.vector_store %arg15[%c11, %c0_106], %332 {strides = array<i32>} : memref<16x128xf32, #tpu.memory_space<vmem>>, vector<1x128xf32>,
    %334 = vector.extract_strided_slice %9 {offsets = [14, 0], sizes = [1, 512], strides = [1, 1]} : vector<16x512xf32> to vector<1x512xf32>
    %c0_107 = arith.constant 0 : index
    %c0_108 = arith.constant 0 : index
    %335 = vector.load %arg2[%c0_107, %c0_108] : memref<128x512xf32, #tpu.memory_space<vmem>>, vector<128x512xf32>
    %cst_109 = arith.constant dense<0.000000e+00> : vector<1x512xf32>
    %336 = tpu.matmul %332, %335, %cst_109 {dimension_numbers = #tpu.dot_dimension_numbers<[1], [0], [0], [1], [0, 0, 1, 1], [], []>} : vector<1x128xf32>, vector<128x512xf32>, vector<1x512xf32> -> vector<1x512xf32>
    %337 = arith.addf %334, %336 : vector<1x512xf32>
    %338 = vector.extract_strided_slice %337 {offsets = [0, 0], sizes = [1, 384], strides = [1, 1]} : vector<1x512xf32> to vector<1x384xf32>
    %cst_110 = arith.constant 5.000000e-01 : f32
    %339 = vector.broadcast %cst_110 : f32 to vector<1x384xf32>
    %340 = arith.mulf %339, %338 : vector<1x384xf32>
    %341 = math.tanh %340 : vector<1x384xf32>
    %cst_111 = arith.constant 5.000000e-01 : f32
    %342 = vector.broadcast %cst_111 : f32 to vector<1x384xf32>
    %343 = arith.mulf %342, %341 : vector<1x384xf32>
    %cst_112 = arith.constant 5.000000e-01 : f32
    %344 = vector.broadcast %cst_112 : f32 to vector<1x384xf32>
    %345 = arith.addf %343, %344 : vector<1x384xf32>
    %346 = vector.extract_strided_slice %345 {offsets = [0, 0], sizes = [1, 128], strides = [1, 1]} : vector<1x384xf32> to vector<1x128xf32>
    %347 = vector.extract_strided_slice %345 {offsets = [0, 128], sizes = [1, 128], strides = [1, 1]} : vector<1x384xf32> to vector<1x128xf32>
    %348 = vector.extract_strided_slice %345 {offsets = [0, 256], sizes = [1, 128], strides = [1, 1]} : vector<1x384xf32> to vector<1x128xf32>
    %349 = vector.extract_strided_slice %337 {offsets = [0, 384], sizes = [1, 128], strides = [1, 1]} : vector<1x512xf32> to vector<1x128xf32>
    %350 = math.tanh %349 : vector<1x128xf32>
    %351 = arith.mulf %347, %330 : vector<1x128xf32>
    %352 = arith.mulf %346, %350 : vector<1x128xf32>
    %353 = arith.addf %351, %352 : vector<1x128xf32>
    %354 = math.tanh %353 : vector<1x128xf32>
    %355 = arith.mulf %348, %354 : vector<1x128xf32>
    %c13 = arith.constant 13 : index
    %c0_113 = arith.constant 0 : index
    %356 = vector.load %arg15[%c13, %c0_113] : memref<16x128xf32, #tpu.memory_space<vmem>>, vector<1x128xf32>
    tpu.vector_store %arg15[%c13, %c0_113], %355 {strides = array<i32>} : memref<16x128xf32, #tpu.memory_space<vmem>>, vector<1x128xf32>,
    %357 = vector.extract_strided_slice %9 {offsets = [15, 0], sizes = [1, 512], strides = [1, 1]} : vector<16x512xf32> to vector<1x512xf32>
    %c0_114 = arith.constant 0 : index
    %c0_115 = arith.constant 0 : index
    %358 = vector.load %arg2[%c0_114, %c0_115] : memref<128x512xf32, #tpu.memory_space<vmem>>, vector<128x512xf32>
    %cst_116 = arith.constant dense<0.000000e+00> : vector<1x512xf32>
    %359 = tpu.matmul %355, %358, %cst_116 {dimension_numbers = #tpu.dot_dimension_numbers<[1], [0], [0], [1], [0, 0, 1, 1], [], []>} : vector<1x128xf32>, vector<128x512xf32>, vector<1x512xf32> -> vector<1x512xf32>
    %360 = arith.addf %357, %359 : vector<1x512xf32>
    %361 = vector.extract_strided_slice %360 {offsets = [0, 0], sizes = [1, 384], strides = [1, 1]} : vector<1x512xf32> to vector<1x384xf32>
    %cst_117 = arith.constant 5.000000e-01 : f32
    %362 = vector.broadcast %cst_117 : f32 to vector<1x384xf32>
    %363 = arith.mulf %362, %361 : vector<1x384xf32>
    %364 = math.tanh %363 : vector<1x384xf32>
    %cst_118 = arith.constant 5.000000e-01 : f32
    %365 = vector.broadcast %cst_118 : f32 to vector<1x384xf32>
    %366 = arith.mulf %365, %364 : vector<1x384xf32>
    %cst_119 = arith.constant 5.000000e-01 : f32
    %367 = vector.broadcast %cst_119 : f32 to vector<1x384xf32>
    %368 = arith.addf %366, %367 : vector<1x384xf32>
    %369 = vector.extract_strided_slice %368 {offsets = [0, 0], sizes = [1, 128], strides = [1, 1]} : vector<1x384xf32> to vector<1x128xf32>
    %370 = vector.extract_strided_slice %368 {offsets = [0, 128], sizes = [1, 128], strides = [1, 1]} : vector<1x384xf32> to vector<1x128xf32>
    %371 = vector.extract_strided_slice %368 {offsets = [0, 256], sizes = [1, 128], strides = [1, 1]} : vector<1x384xf32> to vector<1x128xf32>
    %372 = vector.extract_strided_slice %360 {offsets = [0, 384], sizes = [1, 128], strides = [1, 1]} : vector<1x512xf32> to vector<1x128xf32>
    %373 = math.tanh %372 : vector<1x128xf32>
    %374 = arith.mulf %370, %353 : vector<1x128xf32>
    %375 = arith.mulf %369, %373 : vector<1x128xf32>
    %376 = arith.addf %374, %375 : vector<1x128xf32>
    %377 = math.tanh %376 : vector<1x128xf32>
    %378 = arith.mulf %371, %377 : vector<1x128xf32>
    %c15 = arith.constant 15 : index
    %c0_120 = arith.constant 0 : index
    %379 = vector.load %arg15[%c15, %c0_120] : memref<16x128xf32, #tpu.memory_space<vmem>>, vector<1x128xf32>
    tpu.vector_store %arg15[%c15, %c0_120], %378 {strides = array<i32>} : memref<16x128xf32, #tpu.memory_space<vmem>>, vector<1x128xf32>,
    %c0_121 = arith.constant 0 : index
    %c0_122 = arith.constant 0 : index
    %380 = vector.load %arg12[%c0_121, %c0_122] : memref<1x128xf32, #tpu.memory_space<vmem>>, vector<1x128xf32>
    tpu.vector_store %arg12[%c0_121, %c0_122], %378 {strides = array<i32>} : memref<1x128xf32, #tpu.memory_space<vmem>>, vector<1x128xf32>,
    %c0_123 = arith.constant 0 : index
    %c0_124 = arith.constant 0 : index
    %381 = vector.load %arg13[%c0_123, %c0_124] : memref<1x128xf32, #tpu.memory_space<vmem>>, vector<1x128xf32>
    tpu.vector_store %arg13[%c0_123, %c0_124], %376 {strides = array<i32>} : memref<1x128xf32, #tpu.memory_space<vmem>>, vector<1x128xf32>,
    %c0_i32_125 = arith.constant 0 : i32
    %382 = tpu.memref_slice %arg17[%c0_i32_125] : memref<1x!tpu.dma_semaphore, #tpu.memory_space<semaphore_mem>> -> memref<1x!tpu.dma_semaphore, #tpu.memory_space<semaphore_mem>>
    %383 = tpu.memref_squeeze %382 : memref<1x!tpu.dma_semaphore, #tpu.memory_space<semaphore_mem>> -> memref<!tpu.dma_semaphore, #tpu.memory_space<semaphore_mem>>
    tpu.wait_dma2 semaphore(%383 : memref<!tpu.dma_semaphore, #tpu.memory_space<semaphore_mem>>) src(%arg9 : memref<512x512xf32, #tpu.memory_space<any>>) dst(%arg14 : memref<512x512xf32, #tpu.memory_space<vmem>>)
    %c0_126 = arith.constant 0 : index
    %c0_127 = arith.constant 0 : index
    %384 = vector.load %arg15[%c0_126, %c0_127] : memref<16x128xf32, #tpu.memory_space<vmem>>, vector<16x128xf32>
    %c0_128 = arith.constant 0 : index
    %c0_129 = arith.constant 0 : index
    %385 = vector.load %arg14[%c0_128, %c0_129] : memref<512x512xf32, #tpu.memory_space<vmem>>, vector<128x512xf32>
    %cst_130 = arith.constant dense<0.000000e+00> : vector<16x512xf32>
    %386 = tpu.matmul %384, %385, %cst_130 {dimension_numbers = #tpu.dot_dimension_numbers<[1], [0], [0], [1], [0, 0, 1, 1], [], []>} : vector<16x128xf32>, vector<128x512xf32>, vector<16x512xf32> -> vector<16x512xf32>
    %c0_131 = arith.constant 0 : index
    %c0_132 = arith.constant 0 : index
    %387 = vector.load %arg6[%c0_131, %c0_132] : memref<2x512xf32, #tpu.memory_space<vmem>>, vector<1x512xf32>
    %388 = vector.broadcast %387 : vector<1x512xf32> to vector<16x512xf32>
    %389 = arith.addf %386, %388 : vector<16x512xf32>
    %c0_133 = arith.constant 0 : index
    %c0_134 = arith.constant 0 : index
    %390 = vector.load %arg16[%c0_133, %c0_134] : memref<16x512xf32, #tpu.memory_space<vmem>>, vector<16x512xf32>
    tpu.vector_store %arg16[%c0_133, %c0_134], %389 {strides = array<i32>} : memref<16x512xf32, #tpu.memory_space<vmem>>, vector<16x512xf32>,
    %cst_135 = arith.constant 0.000000e+00 : f32
    %391 = vector.broadcast %cst_135 : f32 to vector<2x128xf32>
    %c1_136 = arith.constant 1 : index
    %c0_137 = arith.constant 0 : index
    %392 = vector.load %arg6[%c1_136, %c0_137] : memref<2x512xf32, #tpu.memory_space<vmem>>, vector<1x512xf32>
    %c0_138 = arith.constant 0 : index
    %c0_139 = arith.constant 0 : index
    %393 = vector.load %arg16[%c0_138, %c0_139] : memref<16x512xf32, #tpu.memory_space<vmem>>, vector<2x512xf32>
    %394 = vector.extract_strided_slice %393 {offsets = [0, 0], sizes = [2, 384], strides = [1, 1]} : vector<2x512xf32> to vector<2x384xf32>
    %cst_140 = arith.constant 5.000000e-01 : f32
    %395 = vector.broadcast %cst_140 : f32 to vector<2x384xf32>
    %396 = arith.mulf %395, %394 : vector<2x384xf32>
    %397 = math.tanh %396 : vector<2x384xf32>
    %cst_141 = arith.constant 5.000000e-01 : f32
    %398 = vector.broadcast %cst_141 : f32 to vector<2x384xf32>
    %399 = arith.mulf %398, %397 : vector<2x384xf32>
    %cst_142 = arith.constant 5.000000e-01 : f32
    %400 = vector.broadcast %cst_142 : f32 to vector<2x384xf32>
    %401 = arith.addf %399, %400 : vector<2x384xf32>
    %402 = vector.extract_strided_slice %401 {offsets = [0, 0], sizes = [2, 128], strides = [1, 1]} : vector<2x384xf32> to vector<2x128xf32>
    %403 = vector.extract_strided_slice %401 {offsets = [0, 128], sizes = [2, 128], strides = [1, 1]} : vector<2x384xf32> to vector<2x128xf32>
    %404 = vector.extract_strided_slice %401 {offsets = [0, 256], sizes = [2, 128], strides = [1, 1]} : vector<2x384xf32> to vector<2x128xf32>
    %405 = vector.extract_strided_slice %393 {offsets = [0, 384], sizes = [2, 128], strides = [1, 1]} : vector<2x512xf32> to vector<2x128xf32>
    %406 = math.tanh %405 : vector<2x128xf32>
    %407 = arith.mulf %403, %391 : vector<2x128xf32>
    %408 = arith.mulf %402, %406 : vector<2x128xf32>
    %409 = arith.addf %407, %408 : vector<2x128xf32>
    %410 = math.tanh %409 : vector<2x128xf32>
    %411 = arith.mulf %404, %410 : vector<2x128xf32>
    %c2_143 = arith.constant 2 : index
    %c0_144 = arith.constant 0 : index
    %412 = vector.load %arg16[%c2_143, %c0_144] : memref<16x512xf32, #tpu.memory_space<vmem>>, vector<2x512xf32>
    %c128 = arith.constant 128 : index
    %c0_145 = arith.constant 0 : index
    %413 = vector.load %arg14[%c128, %c0_145] : memref<512x512xf32, #tpu.memory_space<vmem>>, vector<128x512xf32>
    %cst_146 = arith.constant dense<0.000000e+00> : vector<2x512xf32>
    %414 = tpu.matmul %411, %413, %cst_146 {dimension_numbers = #tpu.dot_dimension_numbers<[1], [0], [0], [1], [0, 0, 1, 1], [], []>} : vector<2x128xf32>, vector<128x512xf32>, vector<2x512xf32> -> vector<2x512xf32>
    %415 = arith.addf %412, %414 : vector<2x512xf32>
    %c256 = arith.constant 256 : index
    %c0_147 = arith.constant 0 : index
    %416 = vector.load %arg14[%c256, %c0_147] : memref<512x512xf32, #tpu.memory_space<vmem>>, vector<128x512xf32>
    %cst_148 = arith.constant dense<0.000000e+00> : vector<2x512xf32>
    %417 = tpu.matmul %411, %416, %cst_148 {dimension_numbers = #tpu.dot_dimension_numbers<[1], [0], [0], [1], [0, 0, 1, 1], [], []>} : vector<2x128xf32>, vector<128x512xf32>, vector<2x512xf32> -> vector<2x512xf32>
    %c384 = arith.constant 384 : index
    %c0_149 = arith.constant 0 : index
    %418 = vector.load %arg14[%c384, %c0_149] : memref<512x512xf32, #tpu.memory_space<vmem>>, vector<128x512xf32>
    %cst_150 = arith.constant dense<0.000000e+00> : vector<2x512xf32>
    %419 = tpu.matmul %391, %418, %cst_150 {dimension_numbers = #tpu.dot_dimension_numbers<[1], [0], [0], [1], [0, 0, 1, 1], [], []>} : vector<2x128xf32>, vector<128x512xf32>, vector<2x512xf32> -> vector<2x512xf32>
    %420 = arith.addf %417, %419 : vector<2x512xf32>
    %421 = vector.broadcast %392 : vector<1x512xf32> to vector<2x512xf32>
    %422 = arith.addf %420, %421 : vector<2x512xf32>
    %423 = vector.extract_strided_slice %415 {offsets = [0, 0], sizes = [2, 384], strides = [1, 1]} : vector<2x512xf32> to vector<2x384xf32>
    %cst_151 = arith.constant 5.000000e-01 : f32
    %424 = vector.broadcast %cst_151 : f32 to vector<2x384xf32>
    %425 = arith.mulf %424, %423 : vector<2x384xf32>
    %426 = math.tanh %425 : vector<2x384xf32>
    %cst_152 = arith.constant 5.000000e-01 : f32
    %427 = vector.broadcast %cst_152 : f32 to vector<2x384xf32>
    %428 = arith.mulf %427, %426 : vector<2x384xf32>
    %cst_153 = arith.constant 5.000000e-01 : f32
    %429 = vector.broadcast %cst_153 : f32 to vector<2x384xf32>
    %430 = arith.addf %428, %429 : vector<2x384xf32>
    %431 = vector.extract_strided_slice %430 {offsets = [0, 0], sizes = [2, 128], strides = [1, 1]} : vector<2x384xf32> to vector<2x128xf32>
    %432 = vector.extract_strided_slice %430 {offsets = [0, 128], sizes = [2, 128], strides = [1, 1]} : vector<2x384xf32> to vector<2x128xf32>
    %433 = vector.extract_strided_slice %430 {offsets = [0, 256], sizes = [2, 128], strides = [1, 1]} : vector<2x384xf32> to vector<2x128xf32>
    %434 = vector.extract_strided_slice %415 {offsets = [0, 384], sizes = [2, 128], strides = [1, 1]} : vector<2x512xf32> to vector<2x128xf32>
    %435 = math.tanh %434 : vector<2x128xf32>
    %436 = arith.mulf %432, %409 : vector<2x128xf32>
    %437 = arith.mulf %431, %435 : vector<2x128xf32>
    %438 = arith.addf %436, %437 : vector<2x128xf32>
    %439 = math.tanh %438 : vector<2x128xf32>
    %440 = arith.mulf %433, %439 : vector<2x128xf32>
    %441 = vector.extract_strided_slice %422 {offsets = [0, 0], sizes = [2, 384], strides = [1, 1]} : vector<2x512xf32> to vector<2x384xf32>
    %cst_154 = arith.constant 5.000000e-01 : f32
    %442 = vector.broadcast %cst_154 : f32 to vector<2x384xf32>
    %443 = arith.mulf %442, %441 : vector<2x384xf32>
    %444 = math.tanh %443 : vector<2x384xf32>
    %cst_155 = arith.constant 5.000000e-01 : f32
    %445 = vector.broadcast %cst_155 : f32 to vector<2x384xf32>
    %446 = arith.mulf %445, %444 : vector<2x384xf32>
    %cst_156 = arith.constant 5.000000e-01 : f32
    %447 = vector.broadcast %cst_156 : f32 to vector<2x384xf32>
    %448 = arith.addf %446, %447 : vector<2x384xf32>
    %449 = vector.extract_strided_slice %448 {offsets = [0, 0], sizes = [2, 128], strides = [1, 1]} : vector<2x384xf32> to vector<2x128xf32>
    %450 = vector.extract_strided_slice %448 {offsets = [0, 128], sizes = [2, 128], strides = [1, 1]} : vector<2x384xf32> to vector<2x128xf32>
    %451 = vector.extract_strided_slice %448 {offsets = [0, 256], sizes = [2, 128], strides = [1, 1]} : vector<2x384xf32> to vector<2x128xf32>
    %452 = vector.extract_strided_slice %422 {offsets = [0, 384], sizes = [2, 128], strides = [1, 1]} : vector<2x512xf32> to vector<2x128xf32>
    %453 = math.tanh %452 : vector<2x128xf32>
    %454 = arith.mulf %450, %391 : vector<2x128xf32>
    %455 = arith.mulf %449, %453 : vector<2x128xf32>
    %456 = arith.addf %454, %455 : vector<2x128xf32>
    %457 = math.tanh %456 : vector<2x128xf32>
    %458 = arith.mulf %451, %457 : vector<2x128xf32>
    %c4_157 = arith.constant 4 : index
    %c0_158 = arith.constant 0 : index
    %459 = vector.load %arg16[%c4_157, %c0_158] : memref<16x512xf32, #tpu.memory_space<vmem>>, vector<2x512xf32>
    %c128_159 = arith.constant 128 : index
    %c0_160 = arith.constant 0 : index
    %460 = vector.load %arg14[%c128_159, %c0_160] : memref<512x512xf32, #tpu.memory_space<vmem>>, vector<128x512xf32>
    %cst_161 = arith.constant dense<0.000000e+00> : vector<2x512xf32>
    %461 = tpu.matmul %440, %460, %cst_161 {dimension_numbers = #tpu.dot_dimension_numbers<[1], [0], [0], [1], [0, 0, 1, 1], [], []>} : vector<2x128xf32>, vector<128x512xf32>, vector<2x512xf32> -> vector<2x512xf32>
    %462 = arith.addf %459, %461 : vector<2x512xf32>
    %c256_162 = arith.constant 256 : index
    %c0_163 = arith.constant 0 : index
    %463 = vector.load %arg14[%c256_162, %c0_163] : memref<512x512xf32, #tpu.memory_space<vmem>>, vector<128x512xf32>
    %cst_164 = arith.constant dense<0.000000e+00> : vector<2x512xf32>
    %464 = tpu.matmul %440, %463, %cst_164 {dimension_numbers = #tpu.dot_dimension_numbers<[1], [0], [0], [1], [0, 0, 1, 1], [], []>} : vector<2x128xf32>, vector<128x512xf32>, vector<2x512xf32> -> vector<2x512xf32>
    %c384_165 = arith.constant 384 : index
    %c0_166 = arith.constant 0 : index
    %465 = vector.load %arg14[%c384_165, %c0_166] : memref<512x512xf32, #tpu.memory_space<vmem>>, vector<128x512xf32>
    %cst_167 = arith.constant dense<0.000000e+00> : vector<2x512xf32>
    %466 = tpu.matmul %458, %465, %cst_167 {dimension_numbers = #tpu.dot_dimension_numbers<[1], [0], [0], [1], [0, 0, 1, 1], [], []>} : vector<2x128xf32>, vector<128x512xf32>, vector<2x512xf32> -> vector<2x512xf32>
    %467 = arith.addf %464, %466 : vector<2x512xf32>
    %468 = vector.broadcast %392 : vector<1x512xf32> to vector<2x512xf32>
    %469 = arith.addf %467, %468 : vector<2x512xf32>
    %470 = vector.extract_strided_slice %462 {offsets = [0, 0], sizes = [2, 384], strides = [1, 1]} : vector<2x512xf32> to vector<2x384xf32>
    %cst_168 = arith.constant 5.000000e-01 : f32
    %471 = vector.broadcast %cst_168 : f32 to vector<2x384xf32>
    %472 = arith.mulf %471, %470 : vector<2x384xf32>
    %473 = math.tanh %472 : vector<2x384xf32>
    %cst_169 = arith.constant 5.000000e-01 : f32
    %474 = vector.broadcast %cst_169 : f32 to vector<2x384xf32>
    %475 = arith.mulf %474, %473 : vector<2x384xf32>
    %cst_170 = arith.constant 5.000000e-01 : f32
    %476 = vector.broadcast %cst_170 : f32 to vector<2x384xf32>
    %477 = arith.addf %475, %476 : vector<2x384xf32>
    %478 = vector.extract_strided_slice %477 {offsets = [0, 0], sizes = [2, 128], strides = [1, 1]} : vector<2x384xf32> to vector<2x128xf32>
    %479 = vector.extract_strided_slice %477 {offsets = [0, 128], sizes = [2, 128], strides = [1, 1]} : vector<2x384xf32> to vector<2x128xf32>
    %480 = vector.extract_strided_slice %477 {offsets = [0, 256], sizes = [2, 128], strides = [1, 1]} : vector<2x384xf32> to vector<2x128xf32>
    %481 = vector.extract_strided_slice %462 {offsets = [0, 384], sizes = [2, 128], strides = [1, 1]} : vector<2x512xf32> to vector<2x128xf32>
    %482 = math.tanh %481 : vector<2x128xf32>
    %483 = arith.mulf %479, %438 : vector<2x128xf32>
    %484 = arith.mulf %478, %482 : vector<2x128xf32>
    %485 = arith.addf %483, %484 : vector<2x128xf32>
    %486 = math.tanh %485 : vector<2x128xf32>
    %487 = arith.mulf %480, %486 : vector<2x128xf32>
    %488 = vector.extract_strided_slice %469 {offsets = [0, 0], sizes = [2, 384], strides = [1, 1]} : vector<2x512xf32> to vector<2x384xf32>
    %cst_171 = arith.constant 5.000000e-01 : f32
    %489 = vector.broadcast %cst_171 : f32 to vector<2x384xf32>
    %490 = arith.mulf %489, %488 : vector<2x384xf32>
    %491 = math.tanh %490 : vector<2x384xf32>
    %cst_172 = arith.constant 5.000000e-01 : f32
    %492 = vector.broadcast %cst_172 : f32 to vector<2x384xf32>
    %493 = arith.mulf %492, %491 : vector<2x384xf32>
    %cst_173 = arith.constant 5.000000e-01 : f32
    %494 = vector.broadcast %cst_173 : f32 to vector<2x384xf32>
    %495 = arith.addf %493, %494 : vector<2x384xf32>
    %496 = vector.extract_strided_slice %495 {offsets = [0, 0], sizes = [2, 128], strides = [1, 1]} : vector<2x384xf32> to vector<2x128xf32>
    %497 = vector.extract_strided_slice %495 {offsets = [0, 128], sizes = [2, 128], strides = [1, 1]} : vector<2x384xf32> to vector<2x128xf32>
    %498 = vector.extract_strided_slice %495 {offsets = [0, 256], sizes = [2, 128], strides = [1, 1]} : vector<2x384xf32> to vector<2x128xf32>
    %499 = vector.extract_strided_slice %469 {offsets = [0, 384], sizes = [2, 128], strides = [1, 1]} : vector<2x512xf32> to vector<2x128xf32>
    %500 = math.tanh %499 : vector<2x128xf32>
    %501 = arith.mulf %497, %456 : vector<2x128xf32>
    %502 = arith.mulf %496, %500 : vector<2x128xf32>
    %503 = arith.addf %501, %502 : vector<2x128xf32>
    %504 = math.tanh %503 : vector<2x128xf32>
    %505 = arith.mulf %498, %504 : vector<2x128xf32>
    %c6_174 = arith.constant 6 : index
    %c0_175 = arith.constant 0 : index
    %506 = vector.load %arg16[%c6_174, %c0_175] : memref<16x512xf32, #tpu.memory_space<vmem>>, vector<2x512xf32>
    %c128_176 = arith.constant 128 : index
    %c0_177 = arith.constant 0 : index
    %507 = vector.load %arg14[%c128_176, %c0_177] : memref<512x512xf32, #tpu.memory_space<vmem>>, vector<128x512xf32>
    %cst_178 = arith.constant dense<0.000000e+00> : vector<2x512xf32>
    %508 = tpu.matmul %487, %507, %cst_178 {dimension_numbers = #tpu.dot_dimension_numbers<[1], [0], [0], [1], [0, 0, 1, 1], [], []>} : vector<2x128xf32>, vector<128x512xf32>, vector<2x512xf32> -> vector<2x512xf32>
    %509 = arith.addf %506, %508 : vector<2x512xf32>
    %c256_179 = arith.constant 256 : index
    %c0_180 = arith.constant 0 : index
    %510 = vector.load %arg14[%c256_179, %c0_180] : memref<512x512xf32, #tpu.memory_space<vmem>>, vector<128x512xf32>
    %cst_181 = arith.constant dense<0.000000e+00> : vector<2x512xf32>
    %511 = tpu.matmul %487, %510, %cst_181 {dimension_numbers = #tpu.dot_dimension_numbers<[1], [0], [0], [1], [0, 0, 1, 1], [], []>} : vector<2x128xf32>, vector<128x512xf32>, vector<2x512xf32> -> vector<2x512xf32>
    %c384_182 = arith.constant 384 : index
    %c0_183 = arith.constant 0 : index
    %512 = vector.load %arg14[%c384_182, %c0_183] : memref<512x512xf32, #tpu.memory_space<vmem>>, vector<128x512xf32>
    %cst_184 = arith.constant dense<0.000000e+00> : vector<2x512xf32>
    %513 = tpu.matmul %505, %512, %cst_184 {dimension_numbers = #tpu.dot_dimension_numbers<[1], [0], [0], [1], [0, 0, 1, 1], [], []>} : vector<2x128xf32>, vector<128x512xf32>, vector<2x512xf32> -> vector<2x512xf32>
    %514 = arith.addf %511, %513 : vector<2x512xf32>
    %515 = vector.broadcast %392 : vector<1x512xf32> to vector<2x512xf32>
    %516 = arith.addf %514, %515 : vector<2x512xf32>
    %517 = vector.extract_strided_slice %509 {offsets = [0, 0], sizes = [2, 384], strides = [1, 1]} : vector<2x512xf32> to vector<2x384xf32>
    %cst_185 = arith.constant 5.000000e-01 : f32
    %518 = vector.broadcast %cst_185 : f32 to vector<2x384xf32>
    %519 = arith.mulf %518, %517 : vector<2x384xf32>
    %520 = math.tanh %519 : vector<2x384xf32>
    %cst_186 = arith.constant 5.000000e-01 : f32
    %521 = vector.broadcast %cst_186 : f32 to vector<2x384xf32>
    %522 = arith.mulf %521, %520 : vector<2x384xf32>
    %cst_187 = arith.constant 5.000000e-01 : f32
    %523 = vector.broadcast %cst_187 : f32 to vector<2x384xf32>
    %524 = arith.addf %522, %523 : vector<2x384xf32>
    %525 = vector.extract_strided_slice %524 {offsets = [0, 0], sizes = [2, 128], strides = [1, 1]} : vector<2x384xf32> to vector<2x128xf32>
    %526 = vector.extract_strided_slice %524 {offsets = [0, 128], sizes = [2, 128], strides = [1, 1]} : vector<2x384xf32> to vector<2x128xf32>
    %527 = vector.extract_strided_slice %524 {offsets = [0, 256], sizes = [2, 128], strides = [1, 1]} : vector<2x384xf32> to vector<2x128xf32>
    %528 = vector.extract_strided_slice %509 {offsets = [0, 384], sizes = [2, 128], strides = [1, 1]} : vector<2x512xf32> to vector<2x128xf32>
    %529 = math.tanh %528 : vector<2x128xf32>
    %530 = arith.mulf %526, %485 : vector<2x128xf32>
    %531 = arith.mulf %525, %529 : vector<2x128xf32>
    %532 = arith.addf %530, %531 : vector<2x128xf32>
    %533 = math.tanh %532 : vector<2x128xf32>
    %534 = arith.mulf %527, %533 : vector<2x128xf32>
    %535 = vector.extract_strided_slice %516 {offsets = [0, 0], sizes = [2, 384], strides = [1, 1]} : vector<2x512xf32> to vector<2x384xf32>
    %cst_188 = arith.constant 5.000000e-01 : f32
    %536 = vector.broadcast %cst_188 : f32 to vector<2x384xf32>
    %537 = arith.mulf %536, %535 : vector<2x384xf32>
    %538 = math.tanh %537 : vector<2x384xf32>
    %cst_189 = arith.constant 5.000000e-01 : f32
    %539 = vector.broadcast %cst_189 : f32 to vector<2x384xf32>
    %540 = arith.mulf %539, %538 : vector<2x384xf32>
    %cst_190 = arith.constant 5.000000e-01 : f32
    %541 = vector.broadcast %cst_190 : f32 to vector<2x384xf32>
    %542 = arith.addf %540, %541 : vector<2x384xf32>
    %543 = vector.extract_strided_slice %542 {offsets = [0, 0], sizes = [2, 128], strides = [1, 1]} : vector<2x384xf32> to vector<2x128xf32>
    %544 = vector.extract_strided_slice %542 {offsets = [0, 128], sizes = [2, 128], strides = [1, 1]} : vector<2x384xf32> to vector<2x128xf32>
    %545 = vector.extract_strided_slice %542 {offsets = [0, 256], sizes = [2, 128], strides = [1, 1]} : vector<2x384xf32> to vector<2x128xf32>
    %546 = vector.extract_strided_slice %516 {offsets = [0, 384], sizes = [2, 128], strides = [1, 1]} : vector<2x512xf32> to vector<2x128xf32>
    %547 = math.tanh %546 : vector<2x128xf32>
    %548 = arith.mulf %544, %503 : vector<2x128xf32>
    %549 = arith.mulf %543, %547 : vector<2x128xf32>
    %550 = arith.addf %548, %549 : vector<2x128xf32>
    %551 = math.tanh %550 : vector<2x128xf32>
    %552 = arith.mulf %545, %551 : vector<2x128xf32>
    %c8_191 = arith.constant 8 : index
    %c0_192 = arith.constant 0 : index
    %553 = vector.load %arg16[%c8_191, %c0_192] : memref<16x512xf32, #tpu.memory_space<vmem>>, vector<2x512xf32>
    %c128_193 = arith.constant 128 : index
    %c0_194 = arith.constant 0 : index
    %554 = vector.load %arg14[%c128_193, %c0_194] : memref<512x512xf32, #tpu.memory_space<vmem>>, vector<128x512xf32>
    %cst_195 = arith.constant dense<0.000000e+00> : vector<2x512xf32>
    %555 = tpu.matmul %534, %554, %cst_195 {dimension_numbers = #tpu.dot_dimension_numbers<[1], [0], [0], [1], [0, 0, 1, 1], [], []>} : vector<2x128xf32>, vector<128x512xf32>, vector<2x512xf32> -> vector<2x512xf32>
    %556 = arith.addf %553, %555 : vector<2x512xf32>
    %c256_196 = arith.constant 256 : index
    %c0_197 = arith.constant 0 : index
    %557 = vector.load %arg14[%c256_196, %c0_197] : memref<512x512xf32, #tpu.memory_space<vmem>>, vector<128x512xf32>
    %cst_198 = arith.constant dense<0.000000e+00> : vector<2x512xf32>
    %558 = tpu.matmul %534, %557, %cst_198 {dimension_numbers = #tpu.dot_dimension_numbers<[1], [0], [0], [1], [0, 0, 1, 1], [], []>} : vector<2x128xf32>, vector<128x512xf32>, vector<2x512xf32> -> vector<2x512xf32>
    %c384_199 = arith.constant 384 : index
    %c0_200 = arith.constant 0 : index
    %559 = vector.load %arg14[%c384_199, %c0_200] : memref<512x512xf32, #tpu.memory_space<vmem>>, vector<128x512xf32>
    %cst_201 = arith.constant dense<0.000000e+00> : vector<2x512xf32>
    %560 = tpu.matmul %552, %559, %cst_201 {dimension_numbers = #tpu.dot_dimension_numbers<[1], [0], [0], [1], [0, 0, 1, 1], [], []>} : vector<2x128xf32>, vector<128x512xf32>, vector<2x512xf32> -> vector<2x512xf32>
    %561 = arith.addf %558, %560 : vector<2x512xf32>
    %562 = vector.broadcast %392 : vector<1x512xf32> to vector<2x512xf32>
    %563 = arith.addf %561, %562 : vector<2x512xf32>
    %564 = vector.extract_strided_slice %556 {offsets = [0, 0], sizes = [2, 384], strides = [1, 1]} : vector<2x512xf32> to vector<2x384xf32>
    %cst_202 = arith.constant 5.000000e-01 : f32
    %565 = vector.broadcast %cst_202 : f32 to vector<2x384xf32>
    %566 = arith.mulf %565, %564 : vector<2x384xf32>
    %567 = math.tanh %566 : vector<2x384xf32>
    %cst_203 = arith.constant 5.000000e-01 : f32
    %568 = vector.broadcast %cst_203 : f32 to vector<2x384xf32>
    %569 = arith.mulf %568, %567 : vector<2x384xf32>
    %cst_204 = arith.constant 5.000000e-01 : f32
    %570 = vector.broadcast %cst_204 : f32 to vector<2x384xf32>
    %571 = arith.addf %569, %570 : vector<2x384xf32>
    %572 = vector.extract_strided_slice %571 {offsets = [0, 0], sizes = [2, 128], strides = [1, 1]} : vector<2x384xf32> to vector<2x128xf32>
    %573 = vector.extract_strided_slice %571 {offsets = [0, 128], sizes = [2, 128], strides = [1, 1]} : vector<2x384xf32> to vector<2x128xf32>
    %574 = vector.extract_strided_slice %571 {offsets = [0, 256], sizes = [2, 128], strides = [1, 1]} : vector<2x384xf32> to vector<2x128xf32>
    %575 = vector.extract_strided_slice %556 {offsets = [0, 384], sizes = [2, 128], strides = [1, 1]} : vector<2x512xf32> to vector<2x128xf32>
    %576 = math.tanh %575 : vector<2x128xf32>
    %577 = arith.mulf %573, %532 : vector<2x128xf32>
    %578 = arith.mulf %572, %576 : vector<2x128xf32>
    %579 = arith.addf %577, %578 : vector<2x128xf32>
    %580 = math.tanh %579 : vector<2x128xf32>
    %581 = arith.mulf %574, %580 : vector<2x128xf32>
    %582 = vector.extract_strided_slice %563 {offsets = [0, 0], sizes = [2, 384], strides = [1, 1]} : vector<2x512xf32> to vector<2x384xf32>
    %cst_205 = arith.constant 5.000000e-01 : f32
    %583 = vector.broadcast %cst_205 : f32 to vector<2x384xf32>
    %584 = arith.mulf %583, %582 : vector<2x384xf32>
    %585 = math.tanh %584 : vector<2x384xf32>
    %cst_206 = arith.constant 5.000000e-01 : f32
    %586 = vector.broadcast %cst_206 : f32 to vector<2x384xf32>
    %587 = arith.mulf %586, %585 : vector<2x384xf32>
    %cst_207 = arith.constant 5.000000e-01 : f32
    %588 = vector.broadcast %cst_207 : f32 to vector<2x384xf32>
    %589 = arith.addf %587, %588 : vector<2x384xf32>
    %590 = vector.extract_strided_slice %589 {offsets = [0, 0], sizes = [2, 128], strides = [1, 1]} : vector<2x384xf32> to vector<2x128xf32>
    %591 = vector.extract_strided_slice %589 {offsets = [0, 128], sizes = [2, 128], strides = [1, 1]} : vector<2x384xf32> to vector<2x128xf32>
    %592 = vector.extract_strided_slice %589 {offsets = [0, 256], sizes = [2, 128], strides = [1, 1]} : vector<2x384xf32> to vector<2x128xf32>
    %593 = vector.extract_strided_slice %563 {offsets = [0, 384], sizes = [2, 128], strides = [1, 1]} : vector<2x512xf32> to vector<2x128xf32>
    %594 = math.tanh %593 : vector<2x128xf32>
    %595 = arith.mulf %591, %550 : vector<2x128xf32>
    %596 = arith.mulf %590, %594 : vector<2x128xf32>
    %597 = arith.addf %595, %596 : vector<2x128xf32>
    %598 = math.tanh %597 : vector<2x128xf32>
    %599 = arith.mulf %592, %598 : vector<2x128xf32>
    %c10_208 = arith.constant 10 : index
    %c0_209 = arith.constant 0 : index
    %600 = vector.load %arg16[%c10_208, %c0_209] : memref<16x512xf32, #tpu.memory_space<vmem>>, vector<2x512xf32>
    %c128_210 = arith.constant 128 : index
    %c0_211 = arith.constant 0 : index
    %601 = vector.load %arg14[%c128_210, %c0_211] : memref<512x512xf32, #tpu.memory_space<vmem>>, vector<128x512xf32>
    %cst_212 = arith.constant dense<0.000000e+00> : vector<2x512xf32>
    %602 = tpu.matmul %581, %601, %cst_212 {dimension_numbers = #tpu.dot_dimension_numbers<[1], [0], [0], [1], [0, 0, 1, 1], [], []>} : vector<2x128xf32>, vector<128x512xf32>, vector<2x512xf32> -> vector<2x512xf32>
    %603 = arith.addf %600, %602 : vector<2x512xf32>
    %c256_213 = arith.constant 256 : index
    %c0_214 = arith.constant 0 : index
    %604 = vector.load %arg14[%c256_213, %c0_214] : memref<512x512xf32, #tpu.memory_space<vmem>>, vector<128x512xf32>
    %cst_215 = arith.constant dense<0.000000e+00> : vector<2x512xf32>
    %605 = tpu.matmul %581, %604, %cst_215 {dimension_numbers = #tpu.dot_dimension_numbers<[1], [0], [0], [1], [0, 0, 1, 1], [], []>} : vector<2x128xf32>, vector<128x512xf32>, vector<2x512xf32> -> vector<2x512xf32>
    %c384_216 = arith.constant 384 : index
    %c0_217 = arith.constant 0 : index
    %606 = vector.load %arg14[%c384_216, %c0_217] : memref<512x512xf32, #tpu.memory_space<vmem>>, vector<128x512xf32>
    %cst_218 = arith.constant dense<0.000000e+00> : vector<2x512xf32>
    %607 = tpu.matmul %599, %606, %cst_218 {dimension_numbers = #tpu.dot_dimension_numbers<[1], [0], [0], [1], [0, 0, 1, 1], [], []>} : vector<2x128xf32>, vector<128x512xf32>, vector<2x512xf32> -> vector<2x512xf32>
    %608 = arith.addf %605, %607 : vector<2x512xf32>
    %609 = vector.broadcast %392 : vector<1x512xf32> to vector<2x512xf32>
    %610 = arith.addf %608, %609 : vector<2x512xf32>
    %611 = vector.extract_strided_slice %603 {offsets = [0, 0], sizes = [2, 384], strides = [1, 1]} : vector<2x512xf32> to vector<2x384xf32>
    %cst_219 = arith.constant 5.000000e-01 : f32
    %612 = vector.broadcast %cst_219 : f32 to vector<2x384xf32>
    %613 = arith.mulf %612, %611 : vector<2x384xf32>
    %614 = math.tanh %613 : vector<2x384xf32>
    %cst_220 = arith.constant 5.000000e-01 : f32
    %615 = vector.broadcast %cst_220 : f32 to vector<2x384xf32>
    %616 = arith.mulf %615, %614 : vector<2x384xf32>
    %cst_221 = arith.constant 5.000000e-01 : f32
    %617 = vector.broadcast %cst_221 : f32 to vector<2x384xf32>
    %618 = arith.addf %616, %617 : vector<2x384xf32>
    %619 = vector.extract_strided_slice %618 {offsets = [0, 0], sizes = [2, 128], strides = [1, 1]} : vector<2x384xf32> to vector<2x128xf32>
    %620 = vector.extract_strided_slice %618 {offsets = [0, 128], sizes = [2, 128], strides = [1, 1]} : vector<2x384xf32> to vector<2x128xf32>
    %621 = vector.extract_strided_slice %618 {offsets = [0, 256], sizes = [2, 128], strides = [1, 1]} : vector<2x384xf32> to vector<2x128xf32>
    %622 = vector.extract_strided_slice %603 {offsets = [0, 384], sizes = [2, 128], strides = [1, 1]} : vector<2x512xf32> to vector<2x128xf32>
    %623 = math.tanh %622 : vector<2x128xf32>
    %624 = arith.mulf %620, %579 : vector<2x128xf32>
    %625 = arith.mulf %619, %623 : vector<2x128xf32>
    %626 = arith.addf %624, %625 : vector<2x128xf32>
    %627 = math.tanh %626 : vector<2x128xf32>
    %628 = arith.mulf %621, %627 : vector<2x128xf32>
    %629 = vector.extract_strided_slice %610 {offsets = [0, 0], sizes = [2, 384], strides = [1, 1]} : vector<2x512xf32> to vector<2x384xf32>
    %cst_222 = arith.constant 5.000000e-01 : f32
    %630 = vector.broadcast %cst_222 : f32 to vector<2x384xf32>
    %631 = arith.mulf %630, %629 : vector<2x384xf32>
    %632 = math.tanh %631 : vector<2x384xf32>
    %cst_223 = arith.constant 5.000000e-01 : f32
    %633 = vector.broadcast %cst_223 : f32 to vector<2x384xf32>
    %634 = arith.mulf %633, %632 : vector<2x384xf32>
    %cst_224 = arith.constant 5.000000e-01 : f32
    %635 = vector.broadcast %cst_224 : f32 to vector<2x384xf32>
    %636 = arith.addf %634, %635 : vector<2x384xf32>
    %637 = vector.extract_strided_slice %636 {offsets = [0, 0], sizes = [2, 128], strides = [1, 1]} : vector<2x384xf32> to vector<2x128xf32>
    %638 = vector.extract_strided_slice %636 {offsets = [0, 128], sizes = [2, 128], strides = [1, 1]} : vector<2x384xf32> to vector<2x128xf32>
    %639 = vector.extract_strided_slice %636 {offsets = [0, 256], sizes = [2, 128], strides = [1, 1]} : vector<2x384xf32> to vector<2x128xf32>
    %640 = vector.extract_strided_slice %610 {offsets = [0, 384], sizes = [2, 128], strides = [1, 1]} : vector<2x512xf32> to vector<2x128xf32>
    %641 = math.tanh %640 : vector<2x128xf32>
    %642 = arith.mulf %638, %597 : vector<2x128xf32>
    %643 = arith.mulf %637, %641 : vector<2x128xf32>
    %644 = arith.addf %642, %643 : vector<2x128xf32>
    %645 = math.tanh %644 : vector<2x128xf32>
    %646 = arith.mulf %639, %645 : vector<2x128xf32>
    %c12_225 = arith.constant 12 : index
    %c0_226 = arith.constant 0 : index
    %647 = vector.load %arg16[%c12_225, %c0_226] : memref<16x512xf32, #tpu.memory_space<vmem>>, vector<2x512xf32>
    %c128_227 = arith.constant 128 : index
    %c0_228 = arith.constant 0 : index
    %648 = vector.load %arg14[%c128_227, %c0_228] : memref<512x512xf32, #tpu.memory_space<vmem>>, vector<128x512xf32>
    %cst_229 = arith.constant dense<0.000000e+00> : vector<2x512xf32>
    %649 = tpu.matmul %628, %648, %cst_229 {dimension_numbers = #tpu.dot_dimension_numbers<[1], [0], [0], [1], [0, 0, 1, 1], [], []>} : vector<2x128xf32>, vector<128x512xf32>, vector<2x512xf32> -> vector<2x512xf32>
    %650 = arith.addf %647, %649 : vector<2x512xf32>
    %c256_230 = arith.constant 256 : index
    %c0_231 = arith.constant 0 : index
    %651 = vector.load %arg14[%c256_230, %c0_231] : memref<512x512xf32, #tpu.memory_space<vmem>>, vector<128x512xf32>
    %cst_232 = arith.constant dense<0.000000e+00> : vector<2x512xf32>
    %652 = tpu.matmul %628, %651, %cst_232 {dimension_numbers = #tpu.dot_dimension_numbers<[1], [0], [0], [1], [0, 0, 1, 1], [], []>} : vector<2x128xf32>, vector<128x512xf32>, vector<2x512xf32> -> vector<2x512xf32>
    %c384_233 = arith.constant 384 : index
    %c0_234 = arith.constant 0 : index
    %653 = vector.load %arg14[%c384_233, %c0_234] : memref<512x512xf32, #tpu.memory_space<vmem>>, vector<128x512xf32>
    %cst_235 = arith.constant dense<0.000000e+00> : vector<2x512xf32>
    %654 = tpu.matmul %646, %653, %cst_235 {dimension_numbers = #tpu.dot_dimension_numbers<[1], [0], [0], [1], [0, 0, 1, 1], [], []>} : vector<2x128xf32>, vector<128x512xf32>, vector<2x512xf32> -> vector<2x512xf32>
    %655 = arith.addf %652, %654 : vector<2x512xf32>
    %656 = vector.broadcast %392 : vector<1x512xf32> to vector<2x512xf32>
    %657 = arith.addf %655, %656 : vector<2x512xf32>
    %658 = vector.extract_strided_slice %650 {offsets = [0, 0], sizes = [2, 384], strides = [1, 1]} : vector<2x512xf32> to vector<2x384xf32>
    %cst_236 = arith.constant 5.000000e-01 : f32
    %659 = vector.broadcast %cst_236 : f32 to vector<2x384xf32>
    %660 = arith.mulf %659, %658 : vector<2x384xf32>
    %661 = math.tanh %660 : vector<2x384xf32>
    %cst_237 = arith.constant 5.000000e-01 : f32
    %662 = vector.broadcast %cst_237 : f32 to vector<2x384xf32>
    %663 = arith.mulf %662, %661 : vector<2x384xf32>
    %cst_238 = arith.constant 5.000000e-01 : f32
    %664 = vector.broadcast %cst_238 : f32 to vector<2x384xf32>
    %665 = arith.addf %663, %664 : vector<2x384xf32>
    %666 = vector.extract_strided_slice %665 {offsets = [0, 0], sizes = [2, 128], strides = [1, 1]} : vector<2x384xf32> to vector<2x128xf32>
    %667 = vector.extract_strided_slice %665 {offsets = [0, 128], sizes = [2, 128], strides = [1, 1]} : vector<2x384xf32> to vector<2x128xf32>
    %668 = vector.extract_strided_slice %665 {offsets = [0, 256], sizes = [2, 128], strides = [1, 1]} : vector<2x384xf32> to vector<2x128xf32>
    %669 = vector.extract_strided_slice %650 {offsets = [0, 384], sizes = [2, 128], strides = [1, 1]} : vector<2x512xf32> to vector<2x128xf32>
    %670 = math.tanh %669 : vector<2x128xf32>
    %671 = arith.mulf %667, %626 : vector<2x128xf32>
    %672 = arith.mulf %666, %670 : vector<2x128xf32>
    %673 = arith.addf %671, %672 : vector<2x128xf32>
    %674 = math.tanh %673 : vector<2x128xf32>
    %675 = arith.mulf %668, %674 : vector<2x128xf32>
    %676 = vector.extract_strided_slice %657 {offsets = [0, 0], sizes = [2, 384], strides = [1, 1]} : vector<2x512xf32> to vector<2x384xf32>
    %cst_239 = arith.constant 5.000000e-01 : f32
    %677 = vector.broadcast %cst_239 : f32 to vector<2x384xf32>
    %678 = arith.mulf %677, %676 : vector<2x384xf32>
    %679 = math.tanh %678 : vector<2x384xf32>
    %cst_240 = arith.constant 5.000000e-01 : f32
    %680 = vector.broadcast %cst_240 : f32 to vector<2x384xf32>
    %681 = arith.mulf %680, %679 : vector<2x384xf32>
    %cst_241 = arith.constant 5.000000e-01 : f32
    %682 = vector.broadcast %cst_241 : f32 to vector<2x384xf32>
    %683 = arith.addf %681, %682 : vector<2x384xf32>
    %684 = vector.extract_strided_slice %683 {offsets = [0, 0], sizes = [2, 128], strides = [1, 1]} : vector<2x384xf32> to vector<2x128xf32>
    %685 = vector.extract_strided_slice %683 {offsets = [0, 128], sizes = [2, 128], strides = [1, 1]} : vector<2x384xf32> to vector<2x128xf32>
    %686 = vector.extract_strided_slice %683 {offsets = [0, 256], sizes = [2, 128], strides = [1, 1]} : vector<2x384xf32> to vector<2x128xf32>
    %687 = vector.extract_strided_slice %657 {offsets = [0, 384], sizes = [2, 128], strides = [1, 1]} : vector<2x512xf32> to vector<2x128xf32>
    %688 = math.tanh %687 : vector<2x128xf32>
    %689 = arith.mulf %685, %644 : vector<2x128xf32>
    %690 = arith.mulf %684, %688 : vector<2x128xf32>
    %691 = arith.addf %689, %690 : vector<2x128xf32>
    %692 = math.tanh %691 : vector<2x128xf32>
    %693 = arith.mulf %686, %692 : vector<2x128xf32>
    %c14_242 = arith.constant 14 : index
    %c0_243 = arith.constant 0 : index
    %694 = vector.load %arg16[%c14_242, %c0_243] : memref<16x512xf32, #tpu.memory_space<vmem>>, vector<2x512xf32>
    %c128_244 = arith.constant 128 : index
    %c0_245 = arith.constant 0 : index
    %695 = vector.load %arg14[%c128_244, %c0_245] : memref<512x512xf32, #tpu.memory_space<vmem>>, vector<128x512xf32>
    %cst_246 = arith.constant dense<0.000000e+00> : vector<2x512xf32>
    %696 = tpu.matmul %675, %695, %cst_246 {dimension_numbers = #tpu.dot_dimension_numbers<[1], [0], [0], [1], [0, 0, 1, 1], [], []>} : vector<2x128xf32>, vector<128x512xf32>, vector<2x512xf32> -> vector<2x512xf32>
    %697 = arith.addf %694, %696 : vector<2x512xf32>
    %c256_247 = arith.constant 256 : index
    %c0_248 = arith.constant 0 : index
    %698 = vector.load %arg14[%c256_247, %c0_248] : memref<512x512xf32, #tpu.memory_space<vmem>>, vector<128x512xf32>
    %cst_249 = arith.constant dense<0.000000e+00> : vector<2x512xf32>
    %699 = tpu.matmul %675, %698, %cst_249 {dimension_numbers = #tpu.dot_dimension_numbers<[1], [0], [0], [1], [0, 0, 1, 1], [], []>} : vector<2x128xf32>, vector<128x512xf32>, vector<2x512xf32> -> vector<2x512xf32>
    %c384_250 = arith.constant 384 : index
    %c0_251 = arith.constant 0 : index
    %700 = vector.load %arg14[%c384_250, %c0_251] : memref<512x512xf32, #tpu.memory_space<vmem>>, vector<128x512xf32>
    %cst_252 = arith.constant dense<0.000000e+00> : vector<2x512xf32>
    %701 = tpu.matmul %693, %700, %cst_252 {dimension_numbers = #tpu.dot_dimension_numbers<[1], [0], [0], [1], [0, 0, 1, 1], [], []>} : vector<2x128xf32>, vector<128x512xf32>, vector<2x512xf32> -> vector<2x512xf32>
    %702 = arith.addf %699, %701 : vector<2x512xf32>
    %703 = vector.broadcast %392 : vector<1x512xf32> to vector<2x512xf32>
    %704 = arith.addf %702, %703 : vector<2x512xf32>
    %705 = vector.extract_strided_slice %697 {offsets = [0, 0], sizes = [2, 384], strides = [1, 1]} : vector<2x512xf32> to vector<2x384xf32>
    %cst_253 = arith.constant 5.000000e-01 : f32
    %706 = vector.broadcast %cst_253 : f32 to vector<2x384xf32>
    %707 = arith.mulf %706, %705 : vector<2x384xf32>
    %708 = math.tanh %707 : vector<2x384xf32>
    %cst_254 = arith.constant 5.000000e-01 : f32
    %709 = vector.broadcast %cst_254 : f32 to vector<2x384xf32>
    %710 = arith.mulf %709, %708 : vector<2x384xf32>
    %cst_255 = arith.constant 5.000000e-01 : f32
    %711 = vector.broadcast %cst_255 : f32 to vector<2x384xf32>
    %712 = arith.addf %710, %711 : vector<2x384xf32>
    %713 = vector.extract_strided_slice %712 {offsets = [0, 0], sizes = [2, 128], strides = [1, 1]} : vector<2x384xf32> to vector<2x128xf32>
    %714 = vector.extract_strided_slice %712 {offsets = [0, 128], sizes = [2, 128], strides = [1, 1]} : vector<2x384xf32> to vector<2x128xf32>
    %715 = vector.extract_strided_slice %712 {offsets = [0, 256], sizes = [2, 128], strides = [1, 1]} : vector<2x384xf32> to vector<2x128xf32>
    %716 = vector.extract_strided_slice %697 {offsets = [0, 384], sizes = [2, 128], strides = [1, 1]} : vector<2x512xf32> to vector<2x128xf32>
    %717 = math.tanh %716 : vector<2x128xf32>
    %718 = arith.mulf %714, %673 : vector<2x128xf32>
    %719 = arith.mulf %713, %717 : vector<2x128xf32>
    %720 = arith.addf %718, %719 : vector<2x128xf32>
    %721 = math.tanh %720 : vector<2x128xf32>
    %722 = arith.mulf %715, %721 : vector<2x128xf32>
    %723 = vector.extract_strided_slice %704 {offsets = [0, 0], sizes = [2, 384], strides = [1, 1]} : vector<2x512xf32> to vector<2x384xf32>
    %cst_256 = arith.constant 5.000000e-01 : f32
    %724 = vector.broadcast %cst_256 : f32 to vector<2x384xf32>
    %725 = arith.mulf %724, %723 : vector<2x384xf32>
    %726 = math.tanh %725 : vector<2x384xf32>
    %cst_257 = arith.constant 5.000000e-01 : f32
    %727 = vector.broadcast %cst_257 : f32 to vector<2x384xf32>
    %728 = arith.mulf %727, %726 : vector<2x384xf32>
    %cst_258 = arith.constant 5.000000e-01 : f32
    %729 = vector.broadcast %cst_258 : f32 to vector<2x384xf32>
    %730 = arith.addf %728, %729 : vector<2x384xf32>
    %731 = vector.extract_strided_slice %730 {offsets = [0, 0], sizes = [2, 128], strides = [1, 1]} : vector<2x384xf32> to vector<2x128xf32>
    %732 = vector.extract_strided_slice %730 {offsets = [0, 128], sizes = [2, 128], strides = [1, 1]} : vector<2x384xf32> to vector<2x128xf32>
    %733 = vector.extract_strided_slice %730 {offsets = [0, 256], sizes = [2, 128], strides = [1, 1]} : vector<2x384xf32> to vector<2x128xf32>
    %734 = vector.extract_strided_slice %704 {offsets = [0, 384], sizes = [2, 128], strides = [1, 1]} : vector<2x512xf32> to vector<2x128xf32>
    %735 = math.tanh %734 : vector<2x128xf32>
    %736 = arith.mulf %732, %691 : vector<2x128xf32>
    %737 = arith.mulf %731, %735 : vector<2x128xf32>
    %738 = arith.addf %736, %737 : vector<2x128xf32>
    %739 = math.tanh %738 : vector<2x128xf32>
    %740 = arith.mulf %733, %739 : vector<2x128xf32>
    %c256_259 = arith.constant 256 : index
    %c0_260 = arith.constant 0 : index
    %741 = vector.load %arg14[%c256_259, %c0_260] : memref<512x512xf32, #tpu.memory_space<vmem>>, vector<128x512xf32>
    %cst_261 = arith.constant dense<0.000000e+00> : vector<2x512xf32>
    %742 = tpu.matmul %722, %741, %cst_261 {dimension_numbers = #tpu.dot_dimension_numbers<[1], [0], [0], [1], [0, 0, 1, 1], [], []>} : vector<2x128xf32>, vector<128x512xf32>, vector<2x512xf32> -> vector<2x512xf32>
    %c384_262 = arith.constant 384 : index
    %c0_263 = arith.constant 0 : index
    %743 = vector.load %arg14[%c384_262, %c0_263] : memref<512x512xf32, #tpu.memory_space<vmem>>, vector<128x512xf32>
    %cst_264 = arith.constant dense<0.000000e+00> : vector<2x512xf32>
    %744 = tpu.matmul %740, %743, %cst_264 {dimension_numbers = #tpu.dot_dimension_numbers<[1], [0], [0], [1], [0, 0, 1, 1], [], []>} : vector<2x128xf32>, vector<128x512xf32>, vector<2x512xf32> -> vector<2x512xf32>
    %745 = arith.addf %742, %744 : vector<2x512xf32>
    %746 = vector.broadcast %392 : vector<1x512xf32> to vector<2x512xf32>
    %747 = arith.addf %745, %746 : vector<2x512xf32>
    %748 = vector.extract_strided_slice %747 {offsets = [0, 0], sizes = [2, 384], strides = [1, 1]} : vector<2x512xf32> to vector<2x384xf32>
    %cst_265 = arith.constant 5.000000e-01 : f32
    %749 = vector.broadcast %cst_265 : f32 to vector<2x384xf32>
    %750 = arith.mulf %749, %748 : vector<2x384xf32>
    %751 = math.tanh %750 : vector<2x384xf32>
    %cst_266 = arith.constant 5.000000e-01 : f32
    %752 = vector.broadcast %cst_266 : f32 to vector<2x384xf32>
    %753 = arith.mulf %752, %751 : vector<2x384xf32>
    %cst_267 = arith.constant 5.000000e-01 : f32
    %754 = vector.broadcast %cst_267 : f32 to vector<2x384xf32>
    %755 = arith.addf %753, %754 : vector<2x384xf32>
    %756 = vector.extract_strided_slice %755 {offsets = [0, 0], sizes = [2, 128], strides = [1, 1]} : vector<2x384xf32> to vector<2x128xf32>
    %757 = vector.extract_strided_slice %755 {offsets = [0, 128], sizes = [2, 128], strides = [1, 1]} : vector<2x384xf32> to vector<2x128xf32>
    %758 = vector.extract_strided_slice %755 {offsets = [0, 256], sizes = [2, 128], strides = [1, 1]} : vector<2x384xf32> to vector<2x128xf32>
    %759 = vector.extract_strided_slice %747 {offsets = [0, 384], sizes = [2, 128], strides = [1, 1]} : vector<2x512xf32> to vector<2x128xf32>
    %760 = math.tanh %759 : vector<2x128xf32>
    %761 = arith.mulf %757, %738 : vector<2x128xf32>
    %762 = arith.mulf %756, %760 : vector<2x128xf32>
    %763 = arith.addf %761, %762 : vector<2x128xf32>
    %764 = math.tanh %763 : vector<2x128xf32>
    %765 = arith.mulf %758, %764 : vector<2x128xf32>
    %c0_268 = arith.constant 0 : index
    %c0_269 = arith.constant 0 : index
    %766 = vector.load %arg11[%c0_268, %c0_269] : memref<2x128xf32, #tpu.memory_space<vmem>>, vector<2x128xf32>
    tpu.vector_store %arg11[%c0_268, %c0_269], %763 {strides = array<i32>} : memref<2x128xf32, #tpu.memory_space<vmem>>, vector<2x128xf32>,
    %c0_270 = arith.constant 0 : index
    %c0_271 = arith.constant 0 : index
    %767 = vector.load %arg7[%c0_270, %c0_271] : memref<1x128xf32, #tpu.memory_space<vmem>>, vector<1x128xf32>
    %768 = vector.broadcast %767 : vector<1x128xf32> to vector<2x128xf32>
    %769 = arith.mulf %765, %768 : vector<2x128xf32>
    %cst_272 = arith.constant dense<0.000000e+00> : vector<2xf32>
    %770 = vector.multi_reduction <add>, %769, %cst_272 [1] : vector<2x128xf32> to vector<2xf32>
    %771 = vector.shape_cast %770 : vector<2xf32> to vector<2x1xf32>
    %c0_273 = arith.constant 0 : index
    %c0_274 = arith.constant 0 : index
    %772 = vector.load %arg8[%c0_273, %c0_274] : memref<1x1xf32, #tpu.memory_space<vmem>>, vector<1x1xf32>
    %773 = vector.broadcast %772 : vector<1x1xf32> to vector<2x1xf32>
    %774 = arith.addf %771, %773 : vector<2x1xf32>
    %c0_275 = arith.constant 0 : index
    %c0_276 = arith.constant 0 : index
    %775 = vector.load %arg10[%c0_275, %c0_276] : memref<2x1xf32, #tpu.memory_space<vmem>>, vector<2x1xf32>
    tpu.vector_store %arg10[%c0_275, %c0_276], %774 {strides = array<i32>} : memref<2x1xf32, #tpu.memory_space<vmem>>, vector<2x1xf32>,
    return
  }
}

</mosaic_0001>

<llo_original>
// kernel: lstmdf_forward.1
$region0: #{lstmdf_forward.1}
  #allocation0 [shape = 'u32[]', space=smem, size = 0x4, offset = 0x4, fixed_abs, tag = 'smem constant byte address 0x4 - core index']
  #allocation1 [shape = 'u32[144,128]{1,0:T(1,128)}', space=vmem, size = 0x12000, scoped, tag = 'internal scratch']
  #allocation2 [shape = 'f32[512,512]{1,0:T(8,128)}', space=vmem, size = 0x100000, scoped, tag = 'scratch operand']
  #allocation3 [shape = 'f32[16,128]{1,0:T(8,128)}', space=vmem, size = 0x2000, scoped, tag = 'scratch operand']
  #allocation4 [shape = 'f32[16,512]{1,0:T(8,128)}', space=vmem, size = 0x8000, scoped, tag = 'scratch operand']
  #allocation5 [shape = 's32[1]{0}', space=sflag, size = 0x4, scoped, tag = 'scratch operand']
  #allocation6 [shape = 'f32[1,1]{1,0:T(1,128)S(1)}', space=vmem, size = 0x200, scoped, tag = 'scoped memory for lstmdf_forward.1']
  #allocation13 [shape = 's32[]', space=sflag, size = 0x4, offset = 0, fixed_abs, tag = 'sflag constant byte address 0x0 - dummy sync flag']
  #allocation14 [shape = 's32[]', space=sflag, size = 0x4, offset = 0, fixed_abs, tag = 'sflag constant byte address 0x0 - dummy sync flag']
  #allocation15 [shape = 'u32[]', space=smem, size = 0x4, offset = 0x44, fixed_abs, tag = 'smem constant byte address 0x44 - assertion arg 0']
  #allocation16 [shape = 'u32[]', space=smem, size = 0x4, offset = 0x48, fixed_abs, tag = 'smem constant byte address 0x48 - assertion arg 1']
  %s0 = inlined_call_operand.vmem [shape: f32[16,1], index: 0, kind: input, shape index: {}]
  %s1 = inlined_call_operand.vmem [shape: f32[1,512], index: 1, kind: input, shape index: {}]
  %s2 = inlined_call_operand.hbm [shape: f32[128,512], index: 2, kind: input, shape index: {}]
  %s3 = inlined_call_operand.vmem [shape: f32[1,512], index: 3, kind: input, shape index: {}]
  %s4 = inlined_call_operand.vmem [shape: f32[1,128], index: 4, kind: input, shape index: {}]
  %s5 = inlined_call_operand.vmem [shape: f32[1,128], index: 5, kind: input, shape index: {}]
  %s6 = inlined_call_operand.vmem [shape: f32[2,512], index: 6, kind: input, shape index: {}]
  %s7 = inlined_call_operand.vmem [shape: f32[1,128], index: 7, kind: input, shape index: {}]
  %s8 = inlined_call_operand.<no memory space> [shape: f32[1,1], index: 8, kind: input, shape index: {}]
  %s9 = inlined_call_operand.hbm [shape: f32[512,512], index: 9, kind: input, shape index: {}]
  %s10 = inlined_call_operand.vmem [shape: f32[2,1], index: 10, kind: output, shape index: {0}]
  %s11 = inlined_call_operand.vmem [shape: f32[2,128], index: 11, kind: output, shape index: {1}]
  %s12 = inlined_call_operand.hbm [shape: f32[1,128], index: 12, kind: output, shape index: {2}]
  %s13 = inlined_call_operand.hbm [shape: f32[1,128], index: 13, kind: output, shape index: {3}]
  %14 = xla_tuple %s10, %s11, %s12, %s13
  %s15 = sld [smem:[#allocation0]]
  $region78: #{lstmdf_forward.1} parent=0
    _
  %s17 = ssub.s32 1, %s15
  %s18 = scalar_select 0, %s17, %s15
  %v19 = vstv %s8
  %20 = vst [vmem:[#allocation6] sm:$0x1] %v19
  $region1: #{lstmdf_forward.1} parent=0
    #allocation7 [shape = 'u8[262144]{0}', space=vmem, size = 0x40000, scoped, tag = 'input window, operand 2, single buffered']
    #allocation8 [shape = 's32[1]{0}', space=sflag, size = 0x4, scoped, tag = 'scoped memory for lstmdf_forward.1']
    #allocation9 [shape = 's32[1]{0}', space=sflag, size = 0x4, scoped, tag = 'scoped memory for lstmdf_forward.1']
    #allocation10 [shape = 'u8[512]{0}', space=vmem, size = 0x400, scoped, tag = 'output window, operand 2, single buffered']
    #allocation11 [shape = 'u8[512]{0}', space=vmem, size = 0x400, scoped, tag = 'output window, operand 3, single buffered']
    #allocation12 [shape = 's32[1]{0}', space=sflag, size = 0x4, scoped, tag = 'scoped memory for lstmdf_forward.1']
    %21 = vsyncpa [#allocation8], 0
    %22 = vsyncpa [#allocation9], 0
    %23 = vsyncpa [#allocation12], 0
    // Predicated region
    $region2: #{lstmdf_forward.1} parent=1 // pred_check
      _
    $region3: #{lstmdf_forward.1} parent=1 // pred_check_branch
      %25 = sbr.rel (0) target = $region5
    $region4: #{lstmdf_forward.1} parent=1 // pred_region
      _
    $region5: #{lstmdf_forward.1} parent=1 // pred_fallthru
      _
    // Predicated region
    $region6: #{lstmdf_forward.1} parent=1 // pred_check
      _
    $region7: #{lstmdf_forward.1} parent=1 // pred_check_branch
      %27 = sbr.rel (0) target = $region9
    $region8: #{lstmdf_forward.1} parent=1 // pred_region
      _
    $region9: #{lstmdf_forward.1} parent=1 // pred_fallthru
      _
    // Predicated region
    $region10: #{lstmdf_forward.1} parent=1 // pred_check
      _
    $region11: #{lstmdf_forward.1} parent=1 // pred_check_branch
      %29 = sbr.rel (0) target = $region13
    $region12: #{lstmdf_forward.1} parent=1 // pred_region
      %s31 = ssub.s32 8192, 8192
      %32 = vsyncadd [#allocation8], %s31
      %s33 = sshll.u32 [#allocation7], 4
      %s34 = int_to_ptr.vmem [resolvable:$true] %s33
      %39 = dma.hbm_to_vmem [thread:$0]  %s2, 8192, %s34, [#allocation8], 512, 512, 32
    $region13: #{lstmdf_forward.1} parent=1 // pred_fallthru
      _
    // Predicated region
    $region14: #{lstmdf_forward.1} parent=1 // pred_check
      _
    $region15: #{lstmdf_forward.1} parent=1 // pred_check_branch
      %41 = sbr.rel (0) target = $region17
    $region16: #{lstmdf_forward.1} parent=1 // pred_region
      _
    $region17: #{lstmdf_forward.1} parent=1 // pred_fallthru
      _
    // Predicated region
    $region18: #{lstmdf_forward.1} parent=1 // pred_check
      _
    $region19: #{lstmdf_forward.1} parent=1 // pred_check_branch
      %43 = sbr.rel (0) target = $region21
    $region20: #{lstmdf_forward.1} parent=1 // pred_region
      _
    $region21: #{lstmdf_forward.1} parent=1 // pred_fallthru
      _
    // Predicated region
    $region22: #{lstmdf_forward.1} parent=1 // pred_check
      _
    $region23: #{lstmdf_forward.1} parent=1 // pred_check_branch
      %45 = sbr.rel (0) target = $region25
    $region24: #{lstmdf_forward.1} parent=1 // pred_region
      _
    $region25: #{lstmdf_forward.1} parent=1 // pred_fallthru
      _
    // Predicated region
    $region26: #{lstmdf_forward.1} parent=1 // pred_check
      _
    $region27: #{lstmdf_forward.1} parent=1 // pred_check_branch
      %47 = sbr.rel (0) target = $region29
    $region28: #{lstmdf_forward.1} parent=1 // pred_region
      _
    $region29: #{lstmdf_forward.1} parent=1 // pred_fallthru
      _
    // Predicated region
    $region30: #{lstmdf_forward.1} parent=1 // pred_check
      _
    $region31: #{lstmdf_forward.1} parent=1 // pred_check_branch
      %49 = sbr.rel (0) target = $region33
    $region32: #{lstmdf_forward.1} parent=1 // pred_region
      _
    $region33: #{lstmdf_forward.1} parent=1 // pred_fallthru
      _
    // Predicated region
    $region34: #{lstmdf_forward.1} parent=1 // pred_check
      _
    $region35: #{lstmdf_forward.1} parent=1 // pred_check_branch
      %51 = sbr.rel (0) target = $region37
    $region36: #{lstmdf_forward.1} parent=1 // pred_region
      _
    $region37: #{lstmdf_forward.1} parent=1 // pred_fallthru
      _
    // Predicated region
    $region38: #{lstmdf_forward.1} parent=1 // pred_check
      _
    $region39: #{lstmdf_forward.1} parent=1 // pred_check_branch
      %53 = sbr.rel (0) target = $region41
    $region40: #{lstmdf_forward.1} parent=1 // pred_region
      %54 = dma.done [#allocation8], 8192
    $region41: #{lstmdf_forward.1} parent=1 // pred_fallthru
      _
    // Predicated region
    $region42: #{lstmdf_forward.1} parent=1 // pred_check
      _
    $region43: #{lstmdf_forward.1} parent=1 // pred_check_branch
      %56 = sbr.rel target = $region45
    $region44: #{lstmdf_forward.1} parent=1 // pred_region
      %57 = sst [smem:[#allocation15]] [#allocation14]
      %58 = sst [smem:[#allocation16]] [#allocation13]
    $region45: #{lstmdf_forward.1} parent=1 // pred_fallthru
      _
    %60 = shalt.err (0)
    %s62 = sshll.u32 [#allocation2], 4
    %s63 = int_to_ptr.vmem [resolvable:$true] %s62
    %65 = dma.hbm_to_vmem [thread:$0]  %s9, 32768, %s63, [#allocation5]
    %v66 = vld [vmem:[%s0] sm:$0xff]
    %v67 = vld [vmem:[%s0 + $0x8] sm:$0xff]
    %v68 = vld [vmem:[%s1] sm:$0xf]
    %70 = vset.pattern.permute.xlu0 0
    %71 = vperm.xlu0 %70, %v66
    %v72 = vpop.permute.xlu0 %71
    %75 = vset.pattern.permute.xlu0 0
    %76 = vperm.xlu0 %75, %v67
    %v77 = vpop.permute.xlu0 %76
    %v80 = vlaneseq
    %v81 = vshrl.u32 %v80, 7
    %v82 = vsub.s32 0, %v81
    %v83 = vrot.slane %v68, %v82
    %v84 = vlaneseq
    %v85 = vshrl.u32 %v84, 7
    %v86 = vsub.s32 1, %v85
    %v87 = vrot.slane %v68, %v86
    %v88 = vlaneseq
    %v89 = vshrl.u32 %v88, 7
    %v90 = vsub.s32 2, %v89
    %v91 = vrot.slane %v68, %v90
    %v92 = vlaneseq
    %v93 = vshrl.u32 %v92, 7
    %v94 = vsub.s32 3, %v93
    %v95 = vrot.slane %v68, %v94
    %v100 = vmul.f32 %v72, %v83
    %v101 = vmul.f32 %v72, %v87
    %v102 = vmul.f32 %v72, %v91
    %v103 = vmul.f32 %v72, %v95
    %v104 = vmul.f32 %v77, %v83
    %v105 = vmul.f32 %v77, %v87
    %v106 = vmul.f32 %v77, %v91
    %v107 = vmul.f32 %v77, %v95
    %v108 = vld [vmem:[%s3] sm:$0xf]
    %v110 = vlaneseq
    %v111 = vshrl.u32 %v110, 7
    %v112 = vsub.s32 0, %v111
    %v113 = vrot.slane %v108, %v112
    %v114 = vlaneseq
    %v115 = vshrl.u32 %v114, 7
    %v116 = vsub.s32 1, %v115
    %v117 = vrot.slane %v108, %v116
    %v118 = vlaneseq
    %v119 = vshrl.u32 %v118, 7
    %v120 = vsub.s32 2, %v119
    %v121 = vrot.slane %v108, %v120
    %v122 = vlaneseq
    %v123 = vshrl.u32 %v122, 7
    %v124 = vsub.s32 3, %v123
    %v125 = vrot.slane %v108, %v124
    %v130 = vadd.f32 %v100, %v113
    %v131 = vadd.f32 %v101, %v117
    %v132 = vadd.f32 %v102, %v121
    %v133 = vadd.f32 %v103, %v125
    %v134 = vadd.f32 %v104, %v113
    %v135 = vadd.f32 %v105, %v117
    %v136 = vadd.f32 %v106, %v121
    %v137 = vadd.f32 %v107, %v125
    %v138 = vld [vmem:[%s4] sm:$0x1]
    %v139 = vld [vmem:[%s5] sm:$0x1]
    %v140 = vld [vmem:[#allocation7] sm:$0xff]
    %v141 = vld [vmem:[#allocation7 + $0x8] sm:$0xff]
    %v142 = vld [vmem:[#allocation7 + $0x10] sm:$0xff]
    %v143 = vld [vmem:[#allocation7 + $0x18] sm:$0xff]
    %v144 = vld [vmem:[#allocation7 + $0x20] sm:$0xff]
    %v145 = vld [vmem:[#allocation7 + $0x28] sm:$0xff]
    %v146 = vld [vmem:[#allocation7 + $0x30] sm:$0xff]
    %v147 = vld [vmem:[#allocation7 + $0x38] sm:$0xff]
    %v148 = vld [vmem:[#allocation7 + $0x40] sm:$0xff]
    %v149 = vld [vmem:[#allocation7 + $0x48] sm:$0xff]
    %v150 = vld [vmem:[#allocation7 + $0x50] sm:$0xff]
    %v151 = vld [vmem:[#allocation7 + $0x58] sm:$0xff]
    %v152 = vld [vmem:[#allocation7 + $0x60] sm:$0xff]
    %v153 = vld [vmem:[#allocation7 + $0x68] sm:$0xff]
    %v154 = vld [vmem:[#allocation7 + $0x70] sm:$0xff]
    %v155 = vld [vmem:[#allocation7 + $0x78] sm:$0xff]
    %v156 = vld [vmem:[#allocation7 + $0x80] sm:$0xff]
    %v157 = vld [vmem:[#allocation7 + $0x88] sm:$0xff]
    %v158 = vld [vmem:[#allocation7 + $0x90] sm:$0xff]
    %v159 = vld [vmem:[#allocation7 + $0x98] sm:$0xff]
    %v160 = vld [vmem:[#allocation7 + $0xa0] sm:$0xff]
    %v161 = vld [vmem:[#allocation7 + $0xa8] sm:$0xff]
    %v162 = vld [vmem:[#allocation7 + $0xb0] sm:$0xff]
    %v163 = vld [vmem:[#allocation7 + $0xb8] sm:$0xff]
    %v164 = vld [vmem:[#allocation7 + $0xc0] sm:$0xff]
    %v165 = vld [vmem:[#allocation7 + $0xc8] sm:$0xff]
    %v166 = vld [vmem:[#allocation7 + $0xd0] sm:$0xff]
    %v167 = vld [vmem:[#allocation7 + $0xd8] sm:$0xff]
    %v168 = vld [vmem:[#allocation7 + $0xe0] sm:$0xff]
    %v169 = vld [vmem:[#allocation7 + $0xe8] sm:$0xff]
    %v170 = vld [vmem:[#allocation7 + $0xf0] sm:$0xff]
    %v171 = vld [vmem:[#allocation7 + $0xf8] sm:$0xff]
    %v172 = vld [vmem:[#allocation7 + $0x100] sm:$0xff]
    %v173 = vld [vmem:[#allocation7 + $0x108] sm:$0xff]
    %v174 = vld [vmem:[#allocation7 + $0x110] sm:$0xff]
    %v175 = vld [vmem:[#allocation7 + $0x118] sm:$0xff]
    %v176 = vld [vmem:[#allocation7 + $0x120] sm:$0xff]
    %v177 = vld [vmem:[#allocation7 + $0x128] sm:$0xff]
    %v178 = vld [vmem:[#allocation7 + $0x130] sm:$0xff]
    %v179 = vld [vmem:[#allocation7 + $0x138] sm:$0xff]
    %v180 = vld [vmem:[#allocation7 + $0x140] sm:$0xff]
    %v181 = vld [vmem:[#allocation7 + $0x148] sm:$0xff]
    %v182 = vld [vmem:[#allocation7 + $0x150] sm:$0xff]
    %v183 = vld [vmem:[#allocation7 + $0x158] sm:$0xff]
    %v184 = vld [vmem:[#allocation7 + $0x160] sm:$0xff]
    %v185 = vld [vmem:[#allocation7 + $0x168] sm:$0xff]
    %v186 = vld [vmem:[#allocation7 + $0x170] sm:$0xff]
    %v187 = vld [vmem:[#allocation7 + $0x178] sm:$0xff]
    %v188 = vld [vmem:[#allocation7 + $0x180] sm:$0xff]
    %v189 = vld [vmem:[#allocation7 + $0x188] sm:$0xff]
    %v190 = vld [vmem:[#allocation7 + $0x190] sm:$0xff]
    %v191 = vld [vmem:[#allocation7 + $0x198] sm:$0xff]
    %v192 = vld [vmem:[#allocation7 + $0x1a0] sm:$0xff]
    %v193 = vld [vmem:[#allocation7 + $0x1a8] sm:$0xff]
    %v194 = vld [vmem:[#allocation7 + $0x1b0] sm:$0xff]
    %v195 = vld [vmem:[#allocation7 + $0x1b8] sm:$0xff]
    %v196 = vld [vmem:[#allocation7 + $0x1c0] sm:$0xff]
    %v197 = vld [vmem:[#allocation7 + $0x1c8] sm:$0xff]
    %v198 = vld [vmem:[#allocation7 + $0x1d0] sm:$0xff]
    %v199 = vld [vmem:[#allocation7 + $0x1d8] sm:$0xff]
    %v200 = vld [vmem:[#allocation7 + $0x1e0] sm:$0xff]
    %v201 = vld [vmem:[#allocation7 + $0x1e8] sm:$0xff]
    %v202 = vld [vmem:[#allocation7 + $0x1f0] sm:$0xff]
    %v203 = vld [vmem:[#allocation7 + $0x1f8] sm:$0xff]
    %204 = vmatprep.subr.mxu0 %v141
    %205 = vmatpush1.msra.mxu0 %v140
    %206 = vmatprep.subr.mxu0 %v145
    %207 = vmatpush1.msra.mxu0 %v144
    %208 = vmatprep.subr.mxu0 %v149
    %209 = vmatpush1.msra.mxu0 %v148
    %210 = vmatprep.subr.mxu0 %v153
    %211 = vmatpush1.msra.mxu0 %v152
    %212 = vmatprep.subr.mxu0 %v157
    %213 = vmatpush1.msra.mxu0 %v156
    %214 = vmatprep.subr.mxu0 %v161
    %215 = vmatpush1.msra.mxu0 %v160
    %216 = vmatprep.subr.mxu0 %v165
    %217 = vmatpush1.msra.mxu0 %v164
    %218 = vmatprep.subr.mxu0 %v169
    %219 = vmatpush1.msra.mxu0 %v168
    %220 = vmatprep.subr.mxu0 %v173
    %221 = vmatpush1.msra.mxu0 %v172
    %222 = vmatprep.subr.mxu0 %v177
    %223 = vmatpush1.msra.mxu0 %v176
    %224 = vmatprep.subr.mxu0 %v181
    %225 = vmatpush1.msra.mxu0 %v180
    %226 = vmatprep.subr.mxu0 %v185
    %227 = vmatpush1.msra.mxu0 %v184
    %228 = vmatprep.subr.mxu0 %v189
    %229 = vmatpush1.msra.mxu0 %v188
    %230 = vmatprep.subr.mxu0 %v193
    %231 = vmatpush1.msra.mxu0 %v192
    %232 = vmatprep.subr.mxu0 %v197
    %233 = vmatpush1.msra.mxu0 %v196
    %234 = vmatprep.subr.mxu0 %v201
    %235 = vmatpush1.msra.mxu0 %v200
    %236 = vmatprep.subr.mxu0 0.0
    %237 = vmatpush1.msra.mxu0 0.0
    %238 = vmatprep.subr.mxu0 0.0
    %239 = vmatpush1.msra.mxu0 0.0
    %240 = vmatprep.subr.mxu0 0.0
    %241 = vmatpush1.msra.mxu0 0.0
    %242 = vmatprep.subr.mxu0 0.0
    %243 = vmatpush1.msra.mxu0 0.0
    %244 = vmatprep.subr.mxu0 0.0
    %245 = vmatpush1.msra.mxu0 0.0
    %246 = vmatprep.subr.mxu0 0.0
    %247 = vmatpush1.msra.mxu0 0.0
    %248 = vmatprep.subr.mxu0 0.0
    %249 = vmatpush1.msra.mxu0 0.0
    %250 = vmatprep.subr.mxu0 0.0
    %251 = vmatpush1.msra.mxu0 0.0
    %252 = vmatprep.subr.mxu0 0.0
    %253 = vmatpush1.msra.mxu0 0.0
    %254 = vmatprep.subr.mxu0 0.0
    %255 = vmatpush1.msra.mxu0 0.0
    %256 = vmatprep.subr.mxu0 0.0
    %257 = vmatpush1.msra.mxu0 0.0
    %258 = vmatprep.subr.mxu0 0.0
    %259 = vmatpush1.msra.mxu0 0.0
    %260 = vmatprep.subr.mxu0 0.0
    %261 = vmatpush1.msra.mxu0 0.0
    %262 = vmatprep.subr.mxu0 0.0
    %263 = vmatpush1.msra.mxu0 0.0
    %264 = vmatprep.subr.mxu0 0.0
    %265 = vmatpush1.msra.mxu0 0.0
    %266 = vmatprep.subr.mxu0 0.0
    %267 = vmatpush1.msra.mxu0 0.0
    %268 = vmatprep.mubr.f32.mxu0 0.0
    %269 = vmatmul.mubr.f32.gmra.mrb[0].mxu0 %v138
    %v270 = vpop.f32.mrb[0].mxu0
    %v271 = vadd.f32 0.0, %v270
    %v272 = vpop.f32.mrb[0].mxu0
    %v273 = vadd.f32 0.0, %v272
    %274 = vdwg.mxu0
    %275 = vmatprep.subr.mxu0 %v143
    %276 = vmatpush1.msra.mxu0 %v142
    %277 = vmatprep.subr.mxu0 %v147
    %278 = vmatpush1.msra.mxu0 %v146
    %279 = vmatprep.subr.mxu0 %v151
    %280 = vmatpush1.msra.mxu0 %v150
    %281 = vmatprep.subr.mxu0 %v155
    %282 = vmatpush1.msra.mxu0 %v154
    %283 = vmatprep.subr.mxu0 %v159
    %284 = vmatpush1.msra.mxu0 %v158
    %285 = vmatprep.subr.mxu0 %v163
    %286 = vmatpush1.msra.mxu0 %v162
    %287 = vmatprep.subr.mxu0 %v167
    %288 = vmatpush1.msra.mxu0 %v166
    %289 = vmatprep.subr.mxu0 %v171
    %290 = vmatpush1.msra.mxu0 %v170
    %291 = vmatprep.subr.mxu0 %v175
    %292 = vmatpush1.msra.mxu0 %v174
    %293 = vmatprep.subr.mxu0 %v179
    %294 = vmatpush1.msra.mxu0 %v178
    %295 = vmatprep.subr.mxu0 %v183
    %296 = vmatpush1.msra.mxu0 %v182
    %297 = vmatprep.subr.mxu0 %v187
    %298 = vmatpush1.msra.mxu0 %v186
    %299 = vmatprep.subr.mxu0 %v191
    %300 = vmatpush1.msra.mxu0 %v190
    %301 = vmatprep.subr.mxu0 %v195
    %302 = vmatpush1.msra.mxu0 %v194
    %303 = vmatprep.subr.mxu0 %v199
    %304 = vmatpush1.msra.mxu0 %v198
    %305 = vmatprep.subr.mxu0 %v203
    %306 = vmatpush1.msra.mxu0 %v202
    %307 = vmatprep.subr.mxu0 0.0
    %308 = vmatpush1.msra.mxu0 0.0
    %309 = vmatprep.subr.mxu0 0.0
    %310 = vmatpush1.msra.mxu0 0.0
    %311 = vmatprep.subr.mxu0 0.0
    %312 = vmatpush1.msra.mxu0 0.0
    %313 = vmatprep.subr.mxu0 0.0
    %314 = vmatpush1.msra.mxu0 0.0
    %315 = vmatprep.subr.mxu0 0.0
    %316 = vmatpush1.msra.mxu0 0.0
    %317 = vmatprep.subr.mxu0 0.0
    %318 = vmatpush1.msra.mxu0 0.0
    %319 = vmatprep.subr.mxu0 0.0
    %320 = vmatpush1.msra.mxu0 0.0
    %321 = vmatprep.subr.mxu0 0.0
    %322 = vmatpush1.msra.mxu0 0.0
    %323 = vmatprep.subr.mxu0 0.0
    %324 = vmatpush1.msra.mxu0 0.0
    %325 = vmatprep.subr.mxu0 0.0
    %326 = vmatpush1.msra.mxu0 0.0
    %327 = vmatprep.subr.mxu0 0.0
    %328 = vmatpush1.msra.mxu0 0.0
    %329 = vmatprep.subr.mxu0 0.0
    %330 = vmatpush1.msra.mxu0 0.0
    %331 = vmatprep.subr.mxu0 0.0
    %332 = vmatpush1.msra.mxu0 0.0
    %333 = vmatprep.subr.mxu0 0.0
    %334 = vmatpush1.msra.mxu0 0.0
    %335 = vmatprep.subr.mxu0 0.0
    %336 = vmatpush1.msra.mxu0 0.0
    %337 = vmatprep.subr.mxu0 0.0
    %338 = vmatpush1.msra.mxu0 0.0
    %339 = vmatprep.mubr.f32.mxu0 0.0
    %340 = vmatmul.mubr.f32.gmra.mrb[0].mxu0 %v138
    %v341 = vpop.f32.mrb[0].mxu0
    %v342 = vadd.f32 0.0, %v341
    %v343 = vpop.f32.mrb[0].mxu0
    %v344 = vadd.f32 0.0, %v343
    %345 = vdwg.mxu0
    %v346 = vadd.f32 %v130, %v271
    %v347 = vadd.f32 %v131, %v273
    %v348 = vadd.f32 %v132, %v342
    %v349 = vadd.f32 %v133, %v344
    %v350 = vmul.f32 %v346, 0.5
    %v351 = vmul.f32 %v347, 0.5
    %v352 = vmul.f32 %v348, 0.5
    %v353 = vtanh.pop %v350
    %v354 = vtanh.pop %v351
    %v355 = vtanh.pop %v352
    %v356 = vmul.f32 %v353, 0.5
    %v357 = vmul.f32 %v354, 0.5
    %v358 = vmul.f32 %v355, 0.5
    %v359 = vadd.f32 %v356, 0.5
    %v360 = vadd.f32 %v357, 0.5
    %v361 = vadd.f32 %v358, 0.5
    %v362 = vtanh.pop %v349
    %v363 = vmul.f32 %v360, %v139
    %v364 = vmul.f32 %v359, %v362
    %v365 = vadd.f32 %v363, %v364
    %v366 = vtanh.pop %v365
    %v367 = vmul.f32 %v361, %v366
    %368 = vst [vmem:[#allocation3] sm:$0x1] %v367
    %v369 = vld [vmem:[#allocation7] sm:$0xff]
    %v370 = vld [vmem:[#allocation7 + $0x8] sm:$0xff]
    %v371 = vld [vmem:[#allocation7 + $0x10] sm:$0xff]
    %v372 = vld [vmem:[#allocation7 + $0x18] sm:$0xff]
    %v373 = vld [vmem:[#allocation7 + $0x20] sm:$0xff]
    %v374 = vld [vmem:[#allocation7 + $0x28] sm:$0xff]
    %v375 = vld [vmem:[#allocation7 + $0x30] sm:$0xff]
    %v376 = vld [vmem:[#allocation7 + $0x38] sm:$0xff]
    %v377 = vld [vmem:[#allocation7 + $0x40] sm:$0xff]
    %v378 = vld [vmem:[#allocation7 + $0x48] sm:$0xff]
    %v379 = vld [vmem:[#allocation7 + $0x50] sm:$0xff]
    %v380 = vld [vmem:[#allocation7 + $0x58] sm:$0xff]
    %v381 = vld [vmem:[#allocation7 + $0x60] sm:$0xff]
    %v382 = vld [vmem:[#allocation7 + $0x68] sm:$0xff]
    %v383 = vld [vmem:[#allocation7 + $0x70] sm:$0xff]
    %v384 = vld [vmem:[#allocation7 + $0x78] sm:$0xff]
    %v385 = vld [vmem:[#allocation7 + $0x80] sm:$0xff]
    %v386 = vld [vmem:[#allocation7 + $0x88] sm:$0xff]
    %v387 = vld [vmem:[#allocation7 + $0x90] sm:$0xff]
    %v388 = vld [vmem:[#allocation7 + $0x98] sm:$0xff]
    %v389 = vld [vmem:[#allocation7 + $0xa0] sm:$0xff]
    %v390 = vld [vmem:[#allocation7 + $0xa8] sm:$0xff]
    %v391 = vld [vmem:[#allocation7 + $0xb0] sm:$0xff]
    %v392 = vld [vmem:[#allocation7 + $0xb8] sm:$0xff]
    %v393 = vld [vmem:[#allocation7 + $0xc0] sm:$0xff]
    %v394 = vld [vmem:[#allocation7 + $0xc8] sm:$0xff]
    %v395 = vld [vmem:[#allocation7 + $0xd0] sm:$0xff]
    %v396 = vld [vmem:[#allocation7 + $0xd8] sm:$0xff]
    %v397 = vld [vmem:[#allocation7 + $0xe0] sm:$0xff]
    %v398 = vld [vmem:[#allocation7 + $0xe8] sm:$0xff]
    %v399 = vld [vmem:[#allocation7 + $0xf0] sm:$0xff]
    %v400 = vld [vmem:[#allocation7 + $0xf8] sm:$0xff]
    %v401 = vld [vmem:[#allocation7 + $0x100] sm:$0xff]
    %v402 = vld [vmem:[#allocation7 + $0x108] sm:$0xff]
    %v403 = vld [vmem:[#allocation7 + $0x110] sm:$0xff]
    %v404 = vld [vmem:[#allocation7 + $0x118] sm:$0xff]
    %v405 = vld [vmem:[#allocation7 + $0x120] sm:$0xff]
    %v406 = vld [vmem:[#allocation7 + $0x128] sm:$0xff]
    %v407 = vld [vmem:[#allocation7 + $0x130] sm:$0xff]
    %v408 = vld [vmem:[#allocation7 + $0x138] sm:$0xff]
    %v409 = vld [vmem:[#allocation7 + $0x140] sm:$0xff]
    %v410 = vld [vmem:[#allocation7 + $0x148] sm:$0xff]
    %v411 = vld [vmem:[#allocation7 + $0x150] sm:$0xff]
    %v412 = vld [vmem:[#allocation7 + $0x158] sm:$0xff]
    %v413 = vld [vmem:[#allocation7 + $0x160] sm:$0xff]
    %v414 = vld [vmem:[#allocation7 + $0x168] sm:$0xff]
    %v415 = vld [vmem:[#allocation7 + $0x170] sm:$0xff]
    %v416 = vld [vmem:[#allocation7 + $0x178] sm:$0xff]
    %v417 = vld [vmem:[#allocation7 + $0x180] sm:$0xff]
    %v418 = vld [vmem:[#allocation7 + $0x188] sm:$0xff]
    %v419 = vld [vmem:[#allocation7 + $0x190] sm:$0xff]
    %v420 = vld [vmem:[#allocation7 + $0x198] sm:$0xff]
    %v421 = vld [vmem:[#allocation7 + $0x1a0] sm:$0xff]
    %v422 = vld [vmem:[#allocation7 + $0x1a8] sm:$0xff]
    %v423 = vld [vmem:[#allocation7 + $0x1b0] sm:$0xff]
    %v424 = vld [vmem:[#allocation7 + $0x1b8] sm:$0xff]
    %v425 = vld [vmem:[#allocation7 + $0x1c0] sm:$0xff]
    %v426 = vld [vmem:[#allocation7 + $0x1c8] sm:$0xff]
    %v427 = vld [vmem:[#allocation7 + $0x1d0] sm:$0xff]
    %v428 = vld [vmem:[#allocation7 + $0x1d8] sm:$0xff]
    %v429 = vld [vmem:[#allocation7 + $0x1e0] sm:$0xff]
    %v430 = vld [vmem:[#allocation7 + $0x1e8] sm:$0xff]
    %v431 = vld [vmem:[#allocation7 + $0x1f0] sm:$0xff]
    %v432 = vld [vmem:[#allocation7 + $0x1f8] sm:$0xff]
    %433 = vmatprep.subr.mxu0 %v370
    %434 = vmatpush1.msra.mxu0 %v369
    %435 = vmatprep.subr.mxu0 %v374
    %436 = vmatpush1.msra.mxu0 %v373
    %437 = vmatprep.subr.mxu0 %v378
    %438 = vmatpush1.msra.mxu0 %v377
    %439 = vmatprep.subr.mxu0 %v382
    %440 = vmatpush1.msra.mxu0 %v381
    %441 = vmatprep.subr.mxu0 %v386
    %442 = vmatpush1.msra.mxu0 %v385
    %443 = vmatprep.subr.mxu0 %v390
    %444 = vmatpush1.msra.mxu0 %v389
    %445 = vmatprep.subr.mxu0 %v394
    %446 = vmatpush1.msra.mxu0 %v393
    %447 = vmatprep.subr.mxu0 %v398
    %448 = vmatpush1.msra.mxu0 %v397
    %449 = vmatprep.subr.mxu0 %v402
    %450 = vmatpush1.msra.mxu0 %v401
    %451 = vmatprep.subr.mxu0 %v406
    %452 = vmatpush1.msra.mxu0 %v405
    %453 = vmatprep.subr.mxu0 %v410
    %454 = vmatpush1.msra.mxu0 %v409
    %455 = vmatprep.subr.mxu0 %v414
    %456 = vmatpush1.msra.mxu0 %v413
    %457 = vmatprep.subr.mxu0 %v418
    %458 = vmatpush1.msra.mxu0 %v417
    %459 = vmatprep.subr.mxu0 %v422
    %460 = vmatpush1.msra.mxu0 %v421
    %461 = vmatprep.subr.mxu0 %v426
    %462 = vmatpush1.msra.mxu0 %v425
    %463 = vmatprep.subr.mxu0 %v430
    %464 = vmatpush1.msra.mxu0 %v429
    %465 = vmatprep.subr.mxu0 0.0
    %466 = vmatpush1.msra.mxu0 0.0
    %467 = vmatprep.subr.mxu0 0.0
    %468 = vmatpush1.msra.mxu0 0.0
    %469 = vmatprep.subr.mxu0 0.0
    %470 = vmatpush1.msra.mxu0 0.0
    %471 = vmatprep.subr.mxu0 0.0
    %472 = vmatpush1.msra.mxu0 0.0
    %473 = vmatprep.subr.mxu0 0.0
    %474 = vmatpush1.msra.mxu0 0.0
    %475 = vmatprep.subr.mxu0 0.0
    %476 = vmatpush1.msra.mxu0 0.0
    %477 = vmatprep.subr.mxu0 0.0
    %478 = vmatpush1.msra.mxu0 0.0
    %479 = vmatprep.subr.mxu0 0.0
    %480 = vmatpush1.msra.mxu0 0.0
    %481 = vmatprep.subr.mxu0 0.0
    %482 = vmatpush1.msra.mxu0 0.0
    %483 = vmatprep.subr.mxu0 0.0
    %484 = vmatpush1.msra.mxu0 0.0
    %485 = vmatprep.subr.mxu0 0.0
    %486 = vmatpush1.msra.mxu0 0.0
    %487 = vmatprep.subr.mxu0 0.0
    %488 = vmatpush1.msra.mxu0 0.0
    %489 = vmatprep.subr.mxu0 0.0
    %490 = vmatpush1.msra.mxu0 0.0
    %491 = vmatprep.subr.mxu0 0.0
    %492 = vmatpush1.msra.mxu0 0.0
    %493 = vmatprep.subr.mxu0 0.0
    %494 = vmatpush1.msra.mxu0 0.0
    %495 = vmatprep.subr.mxu0 0.0
    %496 = vmatpush1.msra.mxu0 0.0
    %497 = vmatprep.mubr.f32.mxu0 0.0
    %498 = vmatmul.mubr.f32.gmra.mrb[0].mxu0 %v367
    %v499 = vpop.f32.mrb[0].mxu0
    %v500 = vadd.f32 0.0, %v499
    %v501 = vpop.f32.mrb[0].mxu0
    %v502 = vadd.f32 0.0, %v501
    %503 = vdwg.mxu0
    %504 = vmatprep.subr.mxu0 %v372
    %505 = vmatpush1.msra.mxu0 %v371
    %506 = vmatprep.subr.mxu0 %v376
    %507 = vmatpush1.msra.mxu0 %v375
    %508 = vmatprep.subr.mxu0 %v380
    %509 = vmatpush1.msra.mxu0 %v379
    %510 = vmatprep.subr.mxu0 %v384
    %511 = vmatpush1.msra.mxu0 %v383
    %512 = vmatprep.subr.mxu0 %v388
    %513 = vmatpush1.msra.mxu0 %v387
    %514 = vmatprep.subr.mxu0 %v392
    %515 = vmatpush1.msra.mxu0 %v391
    %516 = vmatprep.subr.mxu0 %v396
    %517 = vmatpush1.msra.mxu0 %v395
    %518 = vmatprep.subr.mxu0 %v400
    %519 = vmatpush1.msra.mxu0 %v399
    %520 = vmatprep.subr.mxu0 %v404
    %521 = vmatpush1.msra.mxu0 %v403
    %522 = vmatprep.subr.mxu0 %v408
    %523 = vmatpush1.msra.mxu0 %v407
    %524 = vmatprep.subr.mxu0 %v412
    %525 = vmatpush1.msra.mxu0 %v411
    %526 = vmatprep.subr.mxu0 %v416
    %527 = vmatpush1.msra.mxu0 %v415
    %528 = vmatprep.subr.mxu0 %v420
    %529 = vmatpush1.msra.mxu0 %v419
    %530 = vmatprep.subr.mxu0 %v424
    %531 = vmatpush1.msra.mxu0 %v423
    %532 = vmatprep.subr.mxu0 %v428
    %533 = vmatpush1.msra.mxu0 %v427
    %534 = vmatprep.subr.mxu0 %v432
    %535 = vmatpush1.msra.mxu0 %v431
    %536 = vmatprep.subr.mxu0 0.0
    %537 = vmatpush1.msra.mxu0 0.0
    %538 = vmatprep.subr.mxu0 0.0
    %539 = vmatpush1.msra.mxu0 0.0
    %540 = vmatprep.subr.mxu0 0.0
    %541 = vmatpush1.msra.mxu0 0.0
    %542 = vmatprep.subr.mxu0 0.0
    %543 = vmatpush1.msra.mxu0 0.0
    %544 = vmatprep.subr.mxu0 0.0
    %545 = vmatpush1.msra.mxu0 0.0
    %546 = vmatprep.subr.mxu0 0.0
    %547 = vmatpush1.msra.mxu0 0.0
    %548 = vmatprep.subr.mxu0 0.0
    %549 = vmatpush1.msra.mxu0 0.0
    %550 = vmatprep.subr.mxu0 0.0
    %551 = vmatpush1.msra.mxu0 0.0
    %552 = vmatprep.subr.mxu0 0.0
    %553 = vmatpush1.msra.mxu0 0.0
    %554 = vmatprep.subr.mxu0 0.0
    %555 = vmatpush1.msra.mxu0 0.0
    %556 = vmatprep.subr.mxu0 0.0
    %557 = vmatpush1.msra.mxu0 0.0
    %558 = vmatprep.subr.mxu0 0.0
    %559 = vmatpush1.msra.mxu0 0.0
    %560 = vmatprep.subr.mxu0 0.0
    %561 = vmatpush1.msra.mxu0 0.0
    %562 = vmatprep.subr.mxu0 0.0
    %563 = vmatpush1.msra.mxu0 0.0
    %564 = vmatprep.subr.mxu0 0.0
    %565 = vmatpush1.msra.mxu0 0.0
    %566 = vmatprep.subr.mxu0 0.0
    %567 = vmatpush1.msra.mxu0 0.0
    %568 = vmatprep.mubr.f32.mxu0 0.0
    %569 = vmatmul.mubr.f32.gmra.mrb[0].mxu0 %v367
    %v570 = vpop.f32.mrb[0].mxu0
    %v571 = vadd.f32 0.0, %v570
    %v572 = vpop.f32.mrb[0].mxu0
    %v573 = vadd.f32 0.0, %v572
    %574 = vdwg.mxu0
    %v579 = vrot.slane %v500, 7
    %v580 = vrot.slane %v502, 7
    %v581 = vrot.slane %v571, 7
    %v582 = vrot.slane %v573, 7
    %v587 = vadd.f32 %v130, %v579
    %v588 = vadd.f32 %v131, %v580
    %v589 = vadd.f32 %v132, %v581
    %v590 = vadd.f32 %v133, %v582
    %v591 = vmul.f32 %v587, 0.5
    %v592 = vmul.f32 %v588, 0.5
    %v593 = vmul.f32 %v589, 0.5
    %v594 = vtanh.pop %v591
    %v595 = vtanh.pop %v592
    %v596 = vtanh.pop %v593
    %v597 = vmul.f32 %v594, 0.5
    %v598 = vmul.f32 %v595, 0.5
    %v599 = vmul.f32 %v596, 0.5
    %v600 = vadd.f32 %v597, 0.5
    %v601 = vadd.f32 %v598, 0.5
    %v602 = vadd.f32 %v599, 0.5
    %v603 = vtanh.pop %v590
    %v605 = vrot.slane %v365, 7
    %v607 = vmul.f32 %v601, %v605
    %v608 = vmul.f32 %v600, %v603
    %v609 = vadd.f32 %v607, %v608
    %v610 = vtanh.pop %v609
    %v611 = vmul.f32 %v602, %v610
    %612 = vst [vmem:[#allocation3 + $0x1] sm:$0x2] %v611
    %v613 = vld [vmem:[#allocation7] sm:$0xff]
    %v614 = vld [vmem:[#allocation7 + $0x8] sm:$0xff]
    %v615 = vld [vmem:[#allocation7 + $0x10] sm:$0xff]
    %v616 = vld [vmem:[#allocation7 + $0x18] sm:$0xff]
    %v617 = vld [vmem:[#allocation7 + $0x20] sm:$0xff]
    %v618 = vld [vmem:[#allocation7 + $0x28] sm:$0xff]
    %v619 = vld [vmem:[#allocation7 + $0x30] sm:$0xff]
    %v620 = vld [vmem:[#allocation7 + $0x38] sm:$0xff]
    %v621 = vld [vmem:[#allocation7 + $0x40] sm:$0xff]
    %v622 = vld [vmem:[#allocation7 + $0x48] sm:$0xff]
    %v623 = vld [vmem:[#allocation7 + $0x50] sm:$0xff]
    %v624 = vld [vmem:[#allocation7 + $0x58] sm:$0xff]
    %v625 = vld [vmem:[#allocation7 + $0x60] sm:$0xff]
    %v626 = vld [vmem:[#allocation7 + $0x68] sm:$0xff]
    %v627 = vld [vmem:[#allocation7 + $0x70] sm:$0xff]
    %v628 = vld [vmem:[#allocation7 + $0x78] sm:$0xff]
    %v629 = vld [vmem:[#allocation7 + $0x80] sm:$0xff]
    %v630 = vld [vmem:[#allocation7 + $0x88] sm:$0xff]
    %v631 = vld [vmem:[#allocation7 + $0x90] sm:$0xff]
    %v632 = vld [vmem:[#allocation7 + $0x98] sm:$0xff]
    %v633 = vld [vmem:[#allocation7 + $0xa0] sm:$0xff]
    %v634 = vld [vmem:[#allocation7 + $0xa8] sm:$0xff]
    %v635 = vld [vmem:[#allocation7 + $0xb0] sm:$0xff]
    %v636 = vld [vmem:[#allocation7 + $0xb8] sm:$0xff]
    %v637 = vld [vmem:[#allocation7 + $0xc0] sm:$0xff]
    %v638 = vld [vmem:[#allocation7 + $0xc8] sm:$0xff]
    %v639 = vld [vmem:[#allocation7 + $0xd0] sm:$0xff]
    %v640 = vld [vmem:[#allocation7 + $0xd8] sm:$0xff]
    %v641 = vld [vmem:[#allocation7 + $0xe0] sm:$0xff]
    %v642 = vld [vmem:[#allocation7 + $0xe8] sm:$0xff]
    %v643 = vld [vmem:[#allocation7 + $0xf0] sm:$0xff]
    %v644 = vld [vmem:[#allocation7 + $0xf8] sm:$0xff]
    %v645 = vld [vmem:[#allocation7 + $0x100] sm:$0xff]
    %v646 = vld [vmem:[#allocation7 + $0x108] sm:$0xff]
    %v647 = vld [vmem:[#allocation7 + $0x110] sm:$0xff]
    %v648 = vld [vmem:[#allocation7 + $0x118] sm:$0xff]
    %v649 = vld [vmem:[#allocation7 + $0x120] sm:$0xff]
    %v650 = vld [vmem:[#allocation7 + $0x128] sm:$0xff]
    %v651 = vld [vmem:[#allocation7 + $0x130] sm:$0xff]
    %v652 = vld [vmem:[#allocation7 + $0x138] sm:$0xff]
    %v653 = vld [vmem:[#allocation7 + $0x140] sm:$0xff]
    %v654 = vld [vmem:[#allocation7 + $0x148] sm:$0xff]
    %v655 = vld [vmem:[#allocation7 + $0x150] sm:$0xff]
    %v656 = vld [vmem:[#allocation7 + $0x158] sm:$0xff]
    %v657 = vld [vmem:[#allocation7 + $0x160] sm:$0xff]
    %v658 = vld [vmem:[#allocation7 + $0x168] sm:$0xff]
    %v659 = vld [vmem:[#allocation7 + $0x170] sm:$0xff]
    %v660 = vld [vmem:[#allocation7 + $0x178] sm:$0xff]
    %v661 = vld [vmem:[#allocation7 + $0x180] sm:$0xff]
    %v662 = vld [vmem:[#allocation7 + $0x188] sm:$0xff]
    %v663 = vld [vmem:[#allocation7 + $0x190] sm:$0xff]
    %v664 = vld [vmem:[#allocation7 + $0x198] sm:$0xff]
    %v665 = vld [vmem:[#allocation7 + $0x1a0] sm:$0xff]
    %v666 = vld [vmem:[#allocation7 + $0x1a8] sm:$0xff]
    %v667 = vld [vmem:[#allocation7 + $0x1b0] sm:$0xff]
    %v668 = vld [vmem:[#allocation7 + $0x1b8] sm:$0xff]
    %v669 = vld [vmem:[#allocation7 + $0x1c0] sm:$0xff]
    %v670 = vld [vmem:[#allocation7 + $0x1c8] sm:$0xff]
    %v671 = vld [vmem:[#allocation7 + $0x1d0] sm:$0xff]
    %v672 = vld [vmem:[#allocation7 + $0x1d8] sm:$0xff]
    %v673 = vld [vmem:[#allocation7 + $0x1e0] sm:$0xff]
    %v674 = vld [vmem:[#allocation7 + $0x1e8] sm:$0xff]
    %v675 = vld [vmem:[#allocation7 + $0x1f0] sm:$0xff]
    %v676 = vld [vmem:[#allocation7 + $0x1f8] sm:$0xff]
    %v678 = vrot.slane %v611, 1
    %680 = vmatprep.subr.mxu0 %v614
    %681 = vmatpush1.msra.mxu0 %v613
    %682 = vmatprep.subr.mxu0 %v618
    %683 = vmatpush1.msra.mxu0 %v617
    %684 = vmatprep.subr.mxu0 %v622
    %685 = vmatpush1.msra.mxu0 %v621
    %686 = vmatprep.subr.mxu0 %v626
    %687 = vmatpush1.msra.mxu0 %v625
    %688 = vmatprep.subr.mxu0 %v630
    %689 = vmatpush1.msra.mxu0 %v629
    %690 = vmatprep.subr.mxu0 %v634
    %691 = vmatpush1.msra.mxu0 %v633
    %692 = vmatprep.subr.mxu0 %v638
    %693 = vmatpush1.msra.mxu0 %v637
    %694 = vmatprep.subr.mxu0 %v642
    %695 = vmatpush1.msra.mxu0 %v641
    %696 = vmatprep.subr.mxu0 %v646
    %697 = vmatpush1.msra.mxu0 %v645
    %698 = vmatprep.subr.mxu0 %v650
    %699 = vmatpush1.msra.mxu0 %v649
    %700 = vmatprep.subr.mxu0 %v654
    %701 = vmatpush1.msra.mxu0 %v653
    %702 = vmatprep.subr.mxu0 %v658
    %703 = vmatpush1.msra.mxu0 %v657
    %704 = vmatprep.subr.mxu0 %v662
    %705 = vmatpush1.msra.mxu0 %v661
    %706 = vmatprep.subr.mxu0 %v666
    %707 = vmatpush1.msra.mxu0 %v665
    %708 = vmatprep.subr.mxu0 %v670
    %709 = vmatpush1.msra.mxu0 %v669
    %710 = vmatprep.subr.mxu0 %v674
    %711 = vmatpush1.msra.mxu0 %v673
    %712 = vmatprep.subr.mxu0 0.0
    %713 = vmatpush1.msra.mxu0 0.0
    %714 = vmatprep.subr.mxu0 0.0
    %715 = vmatpush1.msra.mxu0 0.0
    %716 = vmatprep.subr.mxu0 0.0
    %717 = vmatpush1.msra.mxu0 0.0
    %718 = vmatprep.subr.mxu0 0.0
    %719 = vmatpush1.msra.mxu0 0.0
    %720 = vmatprep.subr.mxu0 0.0
    %721 = vmatpush1.msra.mxu0 0.0
    %722 = vmatprep.subr.mxu0 0.0
    %723 = vmatpush1.msra.mxu0 0.0
    %724 = vmatprep.subr.mxu0 0.0
    %725 = vmatpush1.msra.mxu0 0.0
    %726 = vmatprep.subr.mxu0 0.0
    %727 = vmatpush1.msra.mxu0 0.0
    %728 = vmatprep.subr.mxu0 0.0
    %729 = vmatpush1.msra.mxu0 0.0
    %730 = vmatprep.subr.mxu0 0.0
    %731 = vmatpush1.msra.mxu0 0.0
    %732 = vmatprep.subr.mxu0 0.0
    %733 = vmatpush1.msra.mxu0 0.0
    %734 = vmatprep.subr.mxu0 0.0
    %735 = vmatpush1.msra.mxu0 0.0
    %736 = vmatprep.subr.mxu0 0.0
    %737 = vmatpush1.msra.mxu0 0.0
    %738 = vmatprep.subr.mxu0 0.0
    %739 = vmatpush1.msra.mxu0 0.0
    %740 = vmatprep.subr.mxu0 0.0
    %741 = vmatpush1.msra.mxu0 0.0
    %742 = vmatprep.subr.mxu0 0.0
    %743 = vmatpush1.msra.mxu0 0.0
    %744 = vmatprep.mubr.f32.mxu0 0.0
    %745 = vmatmul.mubr.f32.gmra.mrb[0].mxu0 %v678
    %v746 = vpop.f32.mrb[0].mxu0
    %v747 = vadd.f32 0.0, %v746
    %v748 = vpop.f32.mrb[0].mxu0
    %v749 = vadd.f32 0.0, %v748
    %750 = vdwg.mxu0
    %751 = vmatprep.subr.mxu0 %v616
    %752 = vmatpush1.msra.mxu0 %v615
    %753 = vmatprep.subr.mxu0 %v620
    %754 = vmatpush1.msra.mxu0 %v619
    %755 = vmatprep.subr.mxu0 %v624
    %756 = vmatpush1.msra.mxu0 %v623
    %757 = vmatprep.subr.mxu0 %v628
    %758 = vmatpush1.msra.mxu0 %v627
    %759 = vmatprep.subr.mxu0 %v632
    %760 = vmatpush1.msra.mxu0 %v631
    %761 = vmatprep.subr.mxu0 %v636
    %762 = vmatpush1.msra.mxu0 %v635
    %763 = vmatprep.subr.mxu0 %v640
    %764 = vmatpush1.msra.mxu0 %v639
    %765 = vmatprep.subr.mxu0 %v644
    %766 = vmatpush1.msra.mxu0 %v643
    %767 = vmatprep.subr.mxu0 %v648
    %768 = vmatpush1.msra.mxu0 %v647
    %769 = vmatprep.subr.mxu0 %v652
    %770 = vmatpush1.msra.mxu0 %v651
    %771 = vmatprep.subr.mxu0 %v656
    %772 = vmatpush1.msra.mxu0 %v655
    %773 = vmatprep.subr.mxu0 %v660
    %774 = vmatpush1.msra.mxu0 %v659
    %775 = vmatprep.subr.mxu0 %v664
    %776 = vmatpush1.msra.mxu0 %v663
    %777 = vmatprep.subr.mxu0 %v668
    %778 = vmatpush1.msra.mxu0 %v667
    %779 = vmatprep.subr.mxu0 %v672
    %780 = vmatpush1.msra.mxu0 %v671
    %781 = vmatprep.subr.mxu0 %v676
    %782 = vmatpush1.msra.mxu0 %v675
    %783 = vmatprep.subr.mxu0 0.0
    %784 = vmatpush1.msra.mxu0 0.0
    %785 = vmatprep.subr.mxu0 0.0
    %786 = vmatpush1.msra.mxu0 0.0
    %787 = vmatprep.subr.mxu0 0.0
    %788 = vmatpush1.msra.mxu0 0.0
    %789 = vmatprep.subr.mxu0 0.0
    %790 = vmatpush1.msra.mxu0 0.0
    %791 = vmatprep.subr.mxu0 0.0
    %792 = vmatpush1.msra.mxu0 0.0
    %793 = vmatprep.subr.mxu0 0.0
    %794 = vmatpush1.msra.mxu0 0.0
    %795 = vmatprep.subr.mxu0 0.0
    %796 = vmatpush1.msra.mxu0 0.0
    %797 = vmatprep.subr.mxu0 0.0
    %798 = vmatpush1.msra.mxu0 0.0
    %799 = vmatprep.subr.mxu0 0.0
    %800 = vmatpush1.msra.mxu0 0.0
    %801 = vmatprep.subr.mxu0 0.0
    %802 = vmatpush1.msra.mxu0 0.0
    %803 = vmatprep.subr.mxu0 0.0
    %804 = vmatpush1.msra.mxu0 0.0
    %805 = vmatprep.subr.mxu0 0.0
    %806 = vmatpush1.msra.mxu0 0.0
    %807 = vmatprep.subr.mxu0 0.0
    %808 = vmatpush1.msra.mxu0 0.0
    %809 = vmatprep.subr.mxu0 0.0
    %810 = vmatpush1.msra.mxu0 0.0
    %811 = vmatprep.subr.mxu0 0.0
    %812 = vmatpush1.msra.mxu0 0.0
    %813 = vmatprep.subr.mxu0 0.0
    %814 = vmatpush1.msra.mxu0 0.0
    %815 = vmatprep.mubr.f32.mxu0 0.0
    %816 = vmatmul.mubr.f32.gmra.mrb[0].mxu0 %v678
    %v817 = vpop.f32.mrb[0].mxu0
    %v818 = vadd.f32 0.0, %v817
    %v819 = vpop.f32.mrb[0].mxu0
    %v820 = vadd.f32 0.0, %v819
    %821 = vdwg.mxu0
    %v826 = vrot.slane %v747, 6
    %v827 = vrot.slane %v749, 6
    %v828 = vrot.slane %v818, 6
    %v829 = vrot.slane %v820, 6
    %v834 = vadd.f32 %v130, %v826
    %v835 = vadd.f32 %v131, %v827
    %v836 = vadd.f32 %v132, %v828
    %v837 = vadd.f32 %v133, %v829
    %v838 = vmul.f32 %v834, 0.5
    %v839 = vmul.f32 %v835, 0.5
    %v840 = vmul.f32 %v836, 0.5
    %v841 = vtanh.pop %v838
    %v842 = vtanh.pop %v839
    %v843 = vtanh.pop %v840
    %v844 = vmul.f32 %v841, 0.5
    %v845 = vmul.f32 %v842, 0.5
    %v846 = vmul.f32 %v843, 0.5
    %v847 = vadd.f32 %v844, 0.5
    %v848 = vadd.f32 %v845, 0.5
    %v849 = vadd.f32 %v846, 0.5
    %v850 = vtanh.pop %v837
    %v852 = vrot.slane %v609, 7
    %v854 = vmul.f32 %v848, %v852
    %v855 = vmul.f32 %v847, %v850
    %v856 = vadd.f32 %v854, %v855
    %v857 = vtanh.pop %v856
    %v858 = vmul.f32 %v849, %v857
    %859 = vst [vmem:[#allocation3 + $0x2] sm:$0x4] %v858
    %v860 = vld [vmem:[#allocation7] sm:$0xff]
    %v861 = vld [vmem:[#allocation7 + $0x8] sm:$0xff]
    %v862 = vld [vmem:[#allocation7 + $0x10] sm:$0xff]
    %v863 = vld [vmem:[#allocation7 + $0x18] sm:$0xff]
    %v864 = vld [vmem:[#allocation7 + $0x20] sm:$0xff]
    %v865 = vld [vmem:[#allocation7 + $0x28] sm:$0xff]
    %v866 = vld [vmem:[#allocation7 + $0x30] sm:$0xff]
    %v867 = vld [vmem:[#allocation7 + $0x38] sm:$0xff]
    %v868 = vld [vmem:[#allocation7 + $0x40] sm:$0xff]
    %v869 = vld [vmem:[#allocation7 + $0x48] sm:$0xff]
    %v870 = vld [vmem:[#allocation7 + $0x50] sm:$0xff]
    %v871 = vld [vmem:[#allocation7 + $0x58] sm:$0xff]
    %v872 = vld [vmem:[#allocation7 + $0x60] sm:$0xff]
    %v873 = vld [vmem:[#allocation7 + $0x68] sm:$0xff]
    %v874 = vld [vmem:[#allocation7 + $0x70] sm:$0xff]
    %v875 = vld [vmem:[#allocation7 + $0x78] sm:$0xff]
    %v876 = vld [vmem:[#allocation7 + $0x80] sm:$0xff]
    %v877 = vld [vmem:[#allocation7 + $0x88] sm:$0xff]
    %v878 = vld [vmem:[#allocation7 + $0x90] sm:$0xff]
    %v879 = vld [vmem:[#allocation7 + $0x98] sm:$0xff]
    %v880 = vld [vmem:[#allocation7 + $0xa0] sm:$0xff]
    %v881 = vld [vmem:[#allocation7 + $0xa8] sm:$0xff]
    %v882 = vld [vmem:[#allocation7 + $0xb0] sm:$0xff]
    %v883 = vld [vmem:[#allocation7 + $0xb8] sm:$0xff]
    %v884 = vld [vmem:[#allocation7 + $0xc0] sm:$0xff]
    %v885 = vld [vmem:[#allocation7 + $0xc8] sm:$0xff]
    %v886 = vld [vmem:[#allocation7 + $0xd0] sm:$0xff]
    %v887 = vld [vmem:[#allocation7 + $0xd8] sm:$0xff]
    %v888 = vld [vmem:[#allocation7 + $0xe0] sm:$0xff]
    %v889 = vld [vmem:[#allocation7 + $0xe8] sm:$0xff]
    %v890 = vld [vmem:[#allocation7 + $0xf0] sm:$0xff]
    %v891 = vld [vmem:[#allocation7 + $0xf8] sm:$0xff]
    %v892 = vld [vmem:[#allocation7 + $0x100] sm:$0xff]
    %v893 = vld [vmem:[#allocation7 + $0x108] sm:$0xff]
    %v894 = vld [vmem:[#allocation7 + $0x110] sm:$0xff]
    %v895 = vld [vmem:[#allocation7 + $0x118] sm:$0xff]
    %v896 = vld [vmem:[#allocation7 + $0x120] sm:$0xff]
    %v897 = vld [vmem:[#allocation7 + $0x128] sm:$0xff]
    %v898 = vld [vmem:[#allocation7 + $0x130] sm:$0xff]
    %v899 = vld [vmem:[#allocation7 + $0x138] sm:$0xff]
    %v900 = vld [vmem:[#allocation7 + $0x140] sm:$0xff]
    %v901 = vld [vmem:[#allocation7 + $0x148] sm:$0xff]
    %v902 = vld [vmem:[#allocation7 + $0x150] sm:$0xff]
    %v903 = vld [vmem:[#allocation7 + $0x158] sm:$0xff]
    %v904 = vld [vmem:[#allocation7 + $0x160] sm:$0xff]
    %v905 = vld [vmem:[#allocation7 + $0x168] sm:$0xff]
    %v906 = vld [vmem:[#allocation7 + $0x170] sm:$0xff]
    %v907 = vld [vmem:[#allocation7 + $0x178] sm:$0xff]
    %v908 = vld [vmem:[#allocation7 + $0x180] sm:$0xff]
    %v909 = vld [vmem:[#allocation7 + $0x188] sm:$0xff]
    %v910 = vld [vmem:[#allocation7 + $0x190] sm:$0xff]
    %v911 = vld [vmem:[#allocation7 + $0x198] sm:$0xff]
    %v912 = vld [vmem:[#allocation7 + $0x1a0] sm:$0xff]
    %v913 = vld [vmem:[#allocation7 + $0x1a8] sm:$0xff]
    %v914 = vld [vmem:[#allocation7 + $0x1b0] sm:$0xff]
    %v915 = vld [vmem:[#allocation7 + $0x1b8] sm:$0xff]
    %v916 = vld [vmem:[#allocation7 + $0x1c0] sm:$0xff]
    %v917 = vld [vmem:[#allocation7 + $0x1c8] sm:$0xff]
    %v918 = vld [vmem:[#allocation7 + $0x1d0] sm:$0xff]
    %v919 = vld [vmem:[#allocation7 + $0x1d8] sm:$0xff]
    %v920 = vld [vmem:[#allocation7 + $0x1e0] sm:$0xff]
    %v921 = vld [vmem:[#allocation7 + $0x1e8] sm:$0xff]
    %v922 = vld [vmem:[#allocation7 + $0x1f0] sm:$0xff]
    %v923 = vld [vmem:[#allocation7 + $0x1f8] sm:$0xff]
    %v925 = vrot.slane %v858, 2
    %927 = vmatprep.subr.mxu0 %v861
    %928 = vmatpush1.msra.mxu0 %v860
    %929 = vmatprep.subr.mxu0 %v865
    %930 = vmatpush1.msra.mxu0 %v864
    %931 = vmatprep.subr.mxu0 %v869
    %932 = vmatpush1.msra.mxu0 %v868
    %933 = vmatprep.subr.mxu0 %v873
    %934 = vmatpush1.msra.mxu0 %v872
    %935 = vmatprep.subr.mxu0 %v877
    %936 = vmatpush1.msra.mxu0 %v876
    %937 = vmatprep.subr.mxu0 %v881
    %938 = vmatpush1.msra.mxu0 %v880
    %939 = vmatprep.subr.mxu0 %v885
    %940 = vmatpush1.msra.mxu0 %v884
    %941 = vmatprep.subr.mxu0 %v889
    %942 = vmatpush1.msra.mxu0 %v888
    %943 = vmatprep.subr.mxu0 %v893
    %944 = vmatpush1.msra.mxu0 %v892
    %945 = vmatprep.subr.mxu0 %v897
    %946 = vmatpush1.msra.mxu0 %v896
    %947 = vmatprep.subr.mxu0 %v901
    %948 = vmatpush1.msra.mxu0 %v900
    %949 = vmatprep.subr.mxu0 %v905
    %950 = vmatpush1.msra.mxu0 %v904
    %951 = vmatprep.subr.mxu0 %v909
    %952 = vmatpush1.msra.mxu0 %v908
    %953 = vmatprep.subr.mxu0 %v913
    %954 = vmatpush1.msra.mxu0 %v912
    %955 = vmatprep.subr.mxu0 %v917
    %956 = vmatpush1.msra.mxu0 %v916
    %957 = vmatprep.subr.mxu0 %v921
    %958 = vmatpush1.msra.mxu0 %v920
    %959 = vmatprep.subr.mxu0 0.0
    %960 = vmatpush1.msra.mxu0 0.0
    %961 = vmatprep.subr.mxu0 0.0
    %962 = vmatpush1.msra.mxu0 0.0
    %963 = vmatprep.subr.mxu0 0.0
    %964 = vmatpush1.msra.mxu0 0.0
    %965 = vmatprep.subr.mxu0 0.0
    %966 = vmatpush1.msra.mxu0 0.0
    %967 = vmatprep.subr.mxu0 0.0
    %968 = vmatpush1.msra.mxu0 0.0
    %969 = vmatprep.subr.mxu0 0.0
    %970 = vmatpush1.msra.mxu0 0.0
    %971 = vmatprep.subr.mxu0 0.0
    %972 = vmatpush1.msra.mxu0 0.0
    %973 = vmatprep.subr.mxu0 0.0
    %974 = vmatpush1.msra.mxu0 0.0
    %975 = vmatprep.subr.mxu0 0.0
    %976 = vmatpush1.msra.mxu0 0.0
    %977 = vmatprep.subr.mxu0 0.0
    %978 = vmatpush1.msra.mxu0 0.0
    %979 = vmatprep.subr.mxu0 0.0
    %980 = vmatpush1.msra.mxu0 0.0
    %981 = vmatprep.subr.mxu0 0.0
    %982 = vmatpush1.msra.mxu0 0.0
    %983 = vmatprep.subr.mxu0 0.0
    %984 = vmatpush1.msra.mxu0 0.0
    %985 = vmatprep.subr.mxu0 0.0
    %986 = vmatpush1.msra.mxu0 0.0
    %987 = vmatprep.subr.mxu0 0.0
    %988 = vmatpush1.msra.mxu0 0.0
    %989 = vmatprep.subr.mxu0 0.0
    %990 = vmatpush1.msra.mxu0 0.0
    %991 = vmatprep.mubr.f32.mxu0 0.0
    %992 = vmatmul.mubr.f32.gmra.mrb[0].mxu0 %v925
    %v993 = vpop.f32.mrb[0].mxu0
    %v994 = vadd.f32 0.0, %v993
    %v995 = vpop.f32.mrb[0].mxu0
    %v996 = vadd.f32 0.0, %v995
    %997 = vdwg.mxu0
    %998 = vmatprep.subr.mxu0 %v863
    %999 = vmatpush1.msra.mxu0 %v862
    %1000 = vmatprep.subr.mxu0 %v867
    %1001 = vmatpush1.msra.mxu0 %v866
    %1002 = vmatprep.subr.mxu0 %v871
    %1003 = vmatpush1.msra.mxu0 %v870
    %1004 = vmatprep.subr.mxu0 %v875
    %1005 = vmatpush1.msra.mxu0 %v874
    %1006 = vmatprep.subr.mxu0 %v879
    %1007 = vmatpush1.msra.mxu0 %v878
    %1008 = vmatprep.subr.mxu0 %v883
    %1009 = vmatpush1.msra.mxu0 %v882
    %1010 = vmatprep.subr.mxu0 %v887
    %1011 = vmatpush1.msra.mxu0 %v886
    %1012 = vmatprep.subr.mxu0 %v891
    %1013 = vmatpush1.msra.mxu0 %v890
    %1014 = vmatprep.subr.mxu0 %v895
    %1015 = vmatpush1.msra.mxu0 %v894
    %1016 = vmatprep.subr.mxu0 %v899
    %1017 = vmatpush1.msra.mxu0 %v898
    %1018 = vmatprep.subr.mxu0 %v903
    %1019 = vmatpush1.msra.mxu0 %v902
    %1020 = vmatprep.subr.mxu0 %v907
    %1021 = vmatpush1.msra.mxu0 %v906
    %1022 = vmatprep.subr.mxu0 %v911
    %1023 = vmatpush1.msra.mxu0 %v910
    %1024 = vmatprep.subr.mxu0 %v915
    %1025 = vmatpush1.msra.mxu0 %v914
    %1026 = vmatprep.subr.mxu0 %v919
    %1027 = vmatpush1.msra.mxu0 %v918
    %1028 = vmatprep.subr.mxu0 %v923
    %1029 = vmatpush1.msra.mxu0 %v922
    %1030 = vmatprep.subr.mxu0 0.0
    %1031 = vmatpush1.msra.mxu0 0.0
    %1032 = vmatprep.subr.mxu0 0.0
    %1033 = vmatpush1.msra.mxu0 0.0
    %1034 = vmatprep.subr.mxu0 0.0
    %1035 = vmatpush1.msra.mxu0 0.0
    %1036 = vmatprep.subr.mxu0 0.0
    %1037 = vmatpush1.msra.mxu0 0.0
    %1038 = vmatprep.subr.mxu0 0.0
    %1039 = vmatpush1.msra.mxu0 0.0
    %1040 = vmatprep.subr.mxu0 0.0
    %1041 = vmatpush1.msra.mxu0 0.0
    %1042 = vmatprep.subr.mxu0 0.0
    %1043 = vmatpush1.msra.mxu0 0.0
    %1044 = vmatprep.subr.mxu0 0.0
    %1045 = vmatpush1.msra.mxu0 0.0
    %1046 = vmatprep.subr.mxu0 0.0
    %1047 = vmatpush1.msra.mxu0 0.0
    %1048 = vmatprep.subr.mxu0 0.0
    %1049 = vmatpush1.msra.mxu0 0.0
    %1050 = vmatprep.subr.mxu0 0.0
    %1051 = vmatpush1.msra.mxu0 0.0
    %1052 = vmatprep.subr.mxu0 0.0
    %1053 = vmatpush1.msra.mxu0 0.0
    %1054 = vmatprep.subr.mxu0 0.0
    %1055 = vmatpush1.msra.mxu0 0.0
    %1056 = vmatprep.subr.mxu0 0.0
    %1057 = vmatpush1.msra.mxu0 0.0
    %1058 = vmatprep.subr.mxu0 0.0
    %1059 = vmatpush1.msra.mxu0 0.0
    %1060 = vmatprep.subr.mxu0 0.0
    %1061 = vmatpush1.msra.mxu0 0.0
    %1062 = vmatprep.mubr.f32.mxu0 0.0
    %1063 = vmatmul.mubr.f32.gmra.mrb[0].mxu0 %v925
    %v1064 = vpop.f32.mrb[0].mxu0
    %v1065 = vadd.f32 0.0, %v1064
    %v1066 = vpop.f32.mrb[0].mxu0
    %v1067 = vadd.f32 0.0, %v1066
    %1068 = vdwg.mxu0
    %v1073 = vrot.slane %v994, 5
    %v1074 = vrot.slane %v996, 5
    %v1075 = vrot.slane %v1065, 5
    %v1076 = vrot.slane %v1067, 5
    %v1081 = vadd.f32 %v130, %v1073
    %v1082 = vadd.f32 %v131, %v1074
    %v1083 = vadd.f32 %v132, %v1075
    %v1084 = vadd.f32 %v133, %v1076
    %v1085 = vmul.f32 %v1081, 0.5
    %v1086 = vmul.f32 %v1082, 0.5
    %v1087 = vmul.f32 %v1083, 0.5
    %v1088 = vtanh.pop %v1085
    %v1089 = vtanh.pop %v1086
    %v1090 = vtanh.pop %v1087
    %v1091 = vmul.f32 %v1088, 0.5
    %v1092 = vmul.f32 %v1089, 0.5
    %v1093 = vmul.f32 %v1090, 0.5
    %v1094 = vadd.f32 %v1091, 0.5
    %v1095 = vadd.f32 %v1092, 0.5
    %v1096 = vadd.f32 %v1093, 0.5
    %v1097 = vtanh.pop %v1084
    %v1099 = vrot.slane %v856, 7
    %v1101 = vmul.f32 %v1095, %v1099
    %v1102 = vmul.f32 %v1094, %v1097
    %v1103 = vadd.f32 %v1101, %v1102
    %v1104 = vtanh.pop %v1103
    %v1105 = vmul.f32 %v1096, %v1104
    %1106 = vst [vmem:[#allocation3 + $0x3] sm:$0x8] %v1105
    %v1107 = vld [vmem:[#allocation7] sm:$0xff]
    %v1108 = vld [vmem:[#allocation7 + $0x8] sm:$0xff]
    %v1109 = vld [vmem:[#allocation7 + $0x10] sm:$0xff]
    %v1110 = vld [vmem:[#allocation7 + $0x18] sm:$0xff]
    %v1111 = vld [vmem:[#allocation7 + $0x20] sm:$0xff]
    %v1112 = vld [vmem:[#allocation7 + $0x28] sm:$0xff]
    %v1113 = vld [vmem:[#allocation7 + $0x30] sm:$0xff]
    %v1114 = vld [vmem:[#allocation7 + $0x38] sm:$0xff]
    %v1115 = vld [vmem:[#allocation7 + $0x40] sm:$0xff]
    %v1116 = vld [vmem:[#allocation7 + $0x48] sm:$0xff]
    %v1117 = vld [vmem:[#allocation7 + $0x50] sm:$0xff]
    %v1118 = vld [vmem:[#allocation7 + $0x58] sm:$0xff]
    %v1119 = vld [vmem:[#allocation7 + $0x60] sm:$0xff]
    %v1120 = vld [vmem:[#allocation7 + $0x68] sm:$0xff]
    %v1121 = vld [vmem:[#allocation7 + $0x70] sm:$0xff]
    %v1122 = vld [vmem:[#allocation7 + $0x78] sm:$0xff]
    %v1123 = vld [vmem:[#allocation7 + $0x80] sm:$0xff]
    %v1124 = vld [vmem:[#allocation7 + $0x88] sm:$0xff]
    %v1125 = vld [vmem:[#allocation7 + $0x90] sm:$0xff]
    %v1126 = vld [vmem:[#allocation7 + $0x98] sm:$0xff]
    %v1127 = vld [vmem:[#allocation7 + $0xa0] sm:$0xff]
    %v1128 = vld [vmem:[#allocation7 + $0xa8] sm:$0xff]
    %v1129 = vld [vmem:[#allocation7 + $0xb0] sm:$0xff]
    %v1130 = vld [vmem:[#allocation7 + $0xb8] sm:$0xff]
    %v1131 = vld [vmem:[#allocation7 + $0xc0] sm:$0xff]
    %v1132 = vld [vmem:[#allocation7 + $0xc8] sm:$0xff]
    %v1133 = vld [vmem:[#allocation7 + $0xd0] sm:$0xff]
    %v1134 = vld [vmem:[#allocation7 + $0xd8] sm:$0xff]
    %v1135 = vld [vmem:[#allocation7 + $0xe0] sm:$0xff]
    %v1136 = vld [vmem:[#allocation7 + $0xe8] sm:$0xff]
    %v1137 = vld [vmem:[#allocation7 + $0xf0] sm:$0xff]
    %v1138 = vld [vmem:[#allocation7 + $0xf8] sm:$0xff]
    %v1139 = vld [vmem:[#allocation7 + $0x100] sm:$0xff]
    %v1140 = vld [vmem:[#allocation7 + $0x108] sm:$0xff]
    %v1141 = vld [vmem:[#allocation7 + $0x110] sm:$0xff]
    %v1142 = vld [vmem:[#allocation7 + $0x118] sm:$0xff]
    %v1143 = vld [vmem:[#allocation7 + $0x120] sm:$0xff]
    %v1144 = vld [vmem:[#allocation7 + $0x128] sm:$0xff]
    %v1145 = vld [vmem:[#allocation7 + $0x130] sm:$0xff]
    %v1146 = vld [vmem:[#allocation7 + $0x138] sm:$0xff]
    %v1147 = vld [vmem:[#allocation7 + $0x140] sm:$0xff]
    %v1148 = vld [vmem:[#allocation7 + $0x148] sm:$0xff]
    %v1149 = vld [vmem:[#allocation7 + $0x150] sm:$0xff]
    %v1150 = vld [vmem:[#allocation7 + $0x158] sm:$0xff]
    %v1151 = vld [vmem:[#allocation7 + $0x160] sm:$0xff]
    %v1152 = vld [vmem:[#allocation7 + $0x168] sm:$0xff]
    %v1153 = vld [vmem:[#allocation7 + $0x170] sm:$0xff]
    %v1154 = vld [vmem:[#allocation7 + $0x178] sm:$0xff]
    %v1155 = vld [vmem:[#allocation7 + $0x180] sm:$0xff]
    %v1156 = vld [vmem:[#allocation7 + $0x188] sm:$0xff]
    %v1157 = vld [vmem:[#allocation7 + $0x190] sm:$0xff]
    %v1158 = vld [vmem:[#allocation7 + $0x198] sm:$0xff]
    %v1159 = vld [vmem:[#allocation7 + $0x1a0] sm:$0xff]
    %v1160 = vld [vmem:[#allocation7 + $0x1a8] sm:$0xff]
    %v1161 = vld [vmem:[#allocation7 + $0x1b0] sm:$0xff]
    %v1162 = vld [vmem:[#allocation7 + $0x1b8] sm:$0xff]
    %v1163 = vld [vmem:[#allocation7 + $0x1c0] sm:$0xff]
    %v1164 = vld [vmem:[#allocation7 + $0x1c8] sm:$0xff]
    %v1165 = vld [vmem:[#allocation7 + $0x1d0] sm:$0xff]
    %v1166 = vld [vmem:[#allocation7 + $0x1d8] sm:$0xff]
    %v1167 = vld [vmem:[#allocation7 + $0x1e0] sm:$0xff]
    %v1168 = vld [vmem:[#allocation7 + $0x1e8] sm:$0xff]
    %v1169 = vld [vmem:[#allocation7 + $0x1f0] sm:$0xff]
    %v1170 = vld [vmem:[#allocation7 + $0x1f8] sm:$0xff]
    %v1172 = vrot.slane %v1105, 3
    %1174 = vmatprep.subr.mxu0 %v1108
    %1175 = vmatpush1.msra.mxu0 %v1107
    %1176 = vmatprep.subr.mxu0 %v1112
    %1177 = vmatpush1.msra.mxu0 %v1111
    %1178 = vmatprep.subr.mxu0 %v1116
    %1179 = vmatpush1.msra.mxu0 %v1115
    %1180 = vmatprep.subr.mxu0 %v1120
    %1181 = vmatpush1.msra.mxu0 %v1119
    %1182 = vmatprep.subr.mxu0 %v1124
    %1183 = vmatpush1.msra.mxu0 %v1123
    %1184 = vmatprep.subr.mxu0 %v1128
    %1185 = vmatpush1.msra.mxu0 %v1127
    %1186 = vmatprep.subr.mxu0 %v1132
    %1187 = vmatpush1.msra.mxu0 %v1131
    %1188 = vmatprep.subr.mxu0 %v1136
    %1189 = vmatpush1.msra.mxu0 %v1135
    %1190 = vmatprep.subr.mxu0 %v1140
    %1191 = vmatpush1.msra.mxu0 %v1139
    %1192 = vmatprep.subr.mxu0 %v1144
    %1193 = vmatpush1.msra.mxu0 %v1143
    %1194 = vmatprep.subr.mxu0 %v1148
    %1195 = vmatpush1.msra.mxu0 %v1147
    %1196 = vmatprep.subr.mxu0 %v1152
    %1197 = vmatpush1.msra.mxu0 %v1151
    %1198 = vmatprep.subr.mxu0 %v1156
    %1199 = vmatpush1.msra.mxu0 %v1155
    %1200 = vmatprep.subr.mxu0 %v1160
    %1201 = vmatpush1.msra.mxu0 %v1159
    %1202 = vmatprep.subr.mxu0 %v1164
    %1203 = vmatpush1.msra.mxu0 %v1163
    %1204 = vmatprep.subr.mxu0 %v1168
    %1205 = vmatpush1.msra.mxu0 %v1167
    %1206 = vmatprep.subr.mxu0 0.0
    %1207 = vmatpush1.msra.mxu0 0.0
    %1208 = vmatprep.subr.mxu0 0.0
    %1209 = vmatpush1.msra.mxu0 0.0
    %1210 = vmatprep.subr.mxu0 0.0
    %1211 = vmatpush1.msra.mxu0 0.0
    %1212 = vmatprep.subr.mxu0 0.0
    %1213 = vmatpush1.msra.mxu0 0.0
    %1214 = vmatprep.subr.mxu0 0.0
    %1215 = vmatpush1.msra.mxu0 0.0
    %1216 = vmatprep.subr.mxu0 0.0
    %1217 = vmatpush1.msra.mxu0 0.0
    %1218 = vmatprep.subr.mxu0 0.0
    %1219 = vmatpush1.msra.mxu0 0.0
    %1220 = vmatprep.subr.mxu0 0.0
    %1221 = vmatpush1.msra.mxu0 0.0
    %1222 = vmatprep.subr.mxu0 0.0
    %1223 = vmatpush1.msra.mxu0 0.0
    %1224 = vmatprep.subr.mxu0 0.0
    %1225 = vmatpush1.msra.mxu0 0.0
    %1226 = vmatprep.subr.mxu0 0.0
    %1227 = vmatpush1.msra.mxu0 0.0
    %1228 = vmatprep.subr.mxu0 0.0
    %1229 = vmatpush1.msra.mxu0 0.0
    %1230 = vmatprep.subr.mxu0 0.0
    %1231 = vmatpush1.msra.mxu0 0.0
    %1232 = vmatprep.subr.mxu0 0.0
    %1233 = vmatpush1.msra.mxu0 0.0
    %1234 = vmatprep.subr.mxu0 0.0
    %1235 = vmatpush1.msra.mxu0 0.0
    %1236 = vmatprep.subr.mxu0 0.0
    %1237 = vmatpush1.msra.mxu0 0.0
    %1238 = vmatprep.mubr.f32.mxu0 0.0
    %1239 = vmatmul.mubr.f32.gmra.mrb[0].mxu0 %v1172
    %v1240 = vpop.f32.mrb[0].mxu0
    %v1241 = vadd.f32 0.0, %v1240
    %v1242 = vpop.f32.mrb[0].mxu0
    %v1243 = vadd.f32 0.0, %v1242
    %1244 = vdwg.mxu0
    %1245 = vmatprep.subr.mxu0 %v1110
    %1246 = vmatpush1.msra.mxu0 %v1109
    %1247 = vmatprep.subr.mxu0 %v1114
    %1248 = vmatpush1.msra.mxu0 %v1113
    %1249 = vmatprep.subr.mxu0 %v1118
    %1250 = vmatpush1.msra.mxu0 %v1117
    %1251 = vmatprep.subr.mxu0 %v1122
    %1252 = vmatpush1.msra.mxu0 %v1121
    %1253 = vmatprep.subr.mxu0 %v1126
    %1254 = vmatpush1.msra.mxu0 %v1125
    %1255 = vmatprep.subr.mxu0 %v1130
    %1256 = vmatpush1.msra.mxu0 %v1129
    %1257 = vmatprep.subr.mxu0 %v1134
    %1258 = vmatpush1.msra.mxu0 %v1133
    %1259 = vmatprep.subr.mxu0 %v1138
    %1260 = vmatpush1.msra.mxu0 %v1137
    %1261 = vmatprep.subr.mxu0 %v1142
    %1262 = vmatpush1.msra.mxu0 %v1141
    %1263 = vmatprep.subr.mxu0 %v1146
    %1264 = vmatpush1.msra.mxu0 %v1145
    %1265 = vmatprep.subr.mxu0 %v1150
    %1266 = vmatpush1.msra.mxu0 %v1149
    %1267 = vmatprep.subr.mxu0 %v1154
    %1268 = vmatpush1.msra.mxu0 %v1153
    %1269 = vmatprep.subr.mxu0 %v1158
    %1270 = vmatpush1.msra.mxu0 %v1157
    %1271 = vmatprep.subr.mxu0 %v1162
    %1272 = vmatpush1.msra.mxu0 %v1161
    %1273 = vmatprep.subr.mxu0 %v1166
    %1274 = vmatpush1.msra.mxu0 %v1165
    %1275 = vmatprep.subr.mxu0 %v1170
    %1276 = vmatpush1.msra.mxu0 %v1169
    %1277 = vmatprep.subr.mxu0 0.0
    %1278 = vmatpush1.msra.mxu0 0.0
    %1279 = vmatprep.subr.mxu0 0.0
    %1280 = vmatpush1.msra.mxu0 0.0
    %1281 = vmatprep.subr.mxu0 0.0
    %1282 = vmatpush1.msra.mxu0 0.0
    %1283 = vmatprep.subr.mxu0 0.0
    %1284 = vmatpush1.msra.mxu0 0.0
    %1285 = vmatprep.subr.mxu0 0.0
    %1286 = vmatpush1.msra.mxu0 0.0
    %1287 = vmatprep.subr.mxu0 0.0
    %1288 = vmatpush1.msra.mxu0 0.0
    %1289 = vmatprep.subr.mxu0 0.0
    %1290 = vmatpush1.msra.mxu0 0.0
    %1291 = vmatprep.subr.mxu0 0.0
    %1292 = vmatpush1.msra.mxu0 0.0
    %1293 = vmatprep.subr.mxu0 0.0
    %1294 = vmatpush1.msra.mxu0 0.0
    %1295 = vmatprep.subr.mxu0 0.0
    %1296 = vmatpush1.msra.mxu0 0.0
    %1297 = vmatprep.subr.mxu0 0.0
    %1298 = vmatpush1.msra.mxu0 0.0
    %1299 = vmatprep.subr.mxu0 0.0
    %1300 = vmatpush1.msra.mxu0 0.0
    %1301 = vmatprep.subr.mxu0 0.0
    %1302 = vmatpush1.msra.mxu0 0.0
    %1303 = vmatprep.subr.mxu0 0.0
    %1304 = vmatpush1.msra.mxu0 0.0
    %1305 = vmatprep.subr.mxu0 0.0
    %1306 = vmatpush1.msra.mxu0 0.0
    %1307 = vmatprep.subr.mxu0 0.0
    %1308 = vmatpush1.msra.mxu0 0.0
    %1309 = vmatprep.mubr.f32.mxu0 0.0
    %1310 = vmatmul.mubr.f32.gmra.mrb[0].mxu0 %v1172
    %v1311 = vpop.f32.mrb[0].mxu0
    %v1312 = vadd.f32 0.0, %v1311
    %v1313 = vpop.f32.mrb[0].mxu0
    %v1314 = vadd.f32 0.0, %v1313
    %1315 = vdwg.mxu0
    %v1320 = vrot.slane %v1241, 4
    %v1321 = vrot.slane %v1243, 4
    %v1322 = vrot.slane %v1312, 4
    %v1323 = vrot.slane %v1314, 4
    %v1328 = vadd.f32 %v130, %v1320
    %v1329 = vadd.f32 %v131, %v1321
    %v1330 = vadd.f32 %v132, %v1322
    %v1331 = vadd.f32 %v133, %v1323
    %v1332 = vmul.f32 %v1328, 0.5
    %v1333 = vmul.f32 %v1329, 0.5
    %v1334 = vmul.f32 %v1330, 0.5
    %v1335 = vtanh.pop %v1332
    %v1336 = vtanh.pop %v1333
    %v1337 = vtanh.pop %v1334
    %v1338 = vmul.f32 %v1335, 0.5
    %v1339 = vmul.f32 %v1336, 0.5
    %v1340 = vmul.f32 %v1337, 0.5
    %v1341 = vadd.f32 %v1338, 0.5
    %v1342 = vadd.f32 %v1339, 0.5
    %v1343 = vadd.f32 %v1340, 0.5
    %v1344 = vtanh.pop %v1331
    %v1346 = vrot.slane %v1103, 7
    %v1348 = vmul.f32 %v1342, %v1346
    %v1349 = vmul.f32 %v1341, %v1344
    %v1350 = vadd.f32 %v1348, %v1349
    %v1351 = vtanh.pop %v1350
    %v1352 = vmul.f32 %v1343, %v1351
    %1353 = vst [vmem:[#allocation3 + $0x4] sm:$0x10] %v1352
    %v1354 = vld [vmem:[#allocation7] sm:$0xff]
    %v1355 = vld [vmem:[#allocation7 + $0x8] sm:$0xff]
    %v1356 = vld [vmem:[#allocation7 + $0x10] sm:$0xff]
    %v1357 = vld [vmem:[#allocation7 + $0x18] sm:$0xff]
    %v1358 = vld [vmem:[#allocation7 + $0x20] sm:$0xff]
    %v1359 = vld [vmem:[#allocation7 + $0x28] sm:$0xff]
    %v1360 = vld [vmem:[#allocation7 + $0x30] sm:$0xff]
    %v1361 = vld [vmem:[#allocation7 + $0x38] sm:$0xff]
    %v1362 = vld [vmem:[#allocation7 + $0x40] sm:$0xff]
    %v1363 = vld [vmem:[#allocation7 + $0x48] sm:$0xff]
    %v1364 = vld [vmem:[#allocation7 + $0x50] sm:$0xff]
    %v1365 = vld [vmem:[#allocation7 + $0x58] sm:$0xff]
    %v1366 = vld [vmem:[#allocation7 + $0x60] sm:$0xff]
    %v1367 = vld [vmem:[#allocation7 + $0x68] sm:$0xff]
    %v1368 = vld [vmem:[#allocation7 + $0x70] sm:$0xff]
    %v1369 = vld [vmem:[#allocation7 + $0x78] sm:$0xff]
    %v1370 = vld [vmem:[#allocation7 + $0x80] sm:$0xff]
    %v1371 = vld [vmem:[#allocation7 + $0x88] sm:$0xff]
    %v1372 = vld [vmem:[#allocation7 + $0x90] sm:$0xff]
    %v1373 = vld [vmem:[#allocation7 + $0x98] sm:$0xff]
    %v1374 = vld [vmem:[#allocation7 + $0xa0] sm:$0xff]
    %v1375 = vld [vmem:[#allocation7 + $0xa8] sm:$0xff]
    %v1376 = vld [vmem:[#allocation7 + $0xb0] sm:$0xff]
    %v1377 = vld [vmem:[#allocation7 + $0xb8] sm:$0xff]
    %v1378 = vld [vmem:[#allocation7 + $0xc0] sm:$0xff]
    %v1379 = vld [vmem:[#allocation7 + $0xc8] sm:$0xff]
    %v1380 = vld [vmem:[#allocation7 + $0xd0] sm:$0xff]
    %v1381 = vld [vmem:[#allocation7 + $0xd8] sm:$0xff]
    %v1382 = vld [vmem:[#allocation7 + $0xe0] sm:$0xff]
    %v1383 = vld [vmem:[#allocation7 + $0xe8] sm:$0xff]
    %v1384 = vld [vmem:[#allocation7 + $0xf0] sm:$0xff]
    %v1385 = vld [vmem:[#allocation7 + $0xf8] sm:$0xff]
    %v1386 = vld [vmem:[#allocation7 + $0x100] sm:$0xff]
    %v1387 = vld [vmem:[#allocation7 + $0x108] sm:$0xff]
    %v1388 = vld [vmem:[#allocation7 + $0x110] sm:$0xff]
    %v1389 = vld [vmem:[#allocation7 + $0x118] sm:$0xff]
    %v1390 = vld [vmem:[#allocation7 + $0x120] sm:$0xff]
    %v1391 = vld [vmem:[#allocation7 + $0x128] sm:$0xff]
    %v1392 = vld [vmem:[#allocation7 + $0x130] sm:$0xff]
    %v1393 = vld [vmem:[#allocation7 + $0x138] sm:$0xff]
    %v1394 = vld [vmem:[#allocation7 + $0x140] sm:$0xff]
    %v1395 = vld [vmem:[#allocation7 + $0x148] sm:$0xff]
    %v1396 = vld [vmem:[#allocation7 + $0x150] sm:$0xff]
    %v1397 = vld [vmem:[#allocation7 + $0x158] sm:$0xff]
    %v1398 = vld [vmem:[#allocation7 + $0x160] sm:$0xff]
    %v1399 = vld [vmem:[#allocation7 + $0x168] sm:$0xff]
    %v1400 = vld [vmem:[#allocation7 + $0x170] sm:$0xff]
    %v1401 = vld [vmem:[#allocation7 + $0x178] sm:$0xff]
    %v1402 = vld [vmem:[#allocation7 + $0x180] sm:$0xff]
    %v1403 = vld [vmem:[#allocation7 + $0x188] sm:$0xff]
    %v1404 = vld [vmem:[#allocation7 + $0x190] sm:$0xff]
    %v1405 = vld [vmem:[#allocation7 + $0x198] sm:$0xff]
    %v1406 = vld [vmem:[#allocation7 + $0x1a0] sm:$0xff]
    %v1407 = vld [vmem:[#allocation7 + $0x1a8] sm:$0xff]
    %v1408 = vld [vmem:[#allocation7 + $0x1b0] sm:$0xff]
    %v1409 = vld [vmem:[#allocation7 + $0x1b8] sm:$0xff]
    %v1410 = vld [vmem:[#allocation7 + $0x1c0] sm:$0xff]
    %v1411 = vld [vmem:[#allocation7 + $0x1c8] sm:$0xff]
    %v1412 = vld [vmem:[#allocation7 + $0x1d0] sm:$0xff]
    %v1413 = vld [vmem:[#allocation7 + $0x1d8] sm:$0xff]
    %v1414 = vld [vmem:[#allocation7 + $0x1e0] sm:$0xff]
    %v1415 = vld [vmem:[#allocation7 + $0x1e8] sm:$0xff]
    %v1416 = vld [vmem:[#allocation7 + $0x1f0] sm:$0xff]
    %v1417 = vld [vmem:[#allocation7 + $0x1f8] sm:$0xff]
    %v1419 = vrot.slane %v1352, 4
    %1421 = vmatprep.subr.mxu0 %v1355
    %1422 = vmatpush1.msra.mxu0 %v1354
    %1423 = vmatprep.subr.mxu0 %v1359
    %1424 = vmatpush1.msra.mxu0 %v1358
    %1425 = vmatprep.subr.mxu0 %v1363
    %1426 = vmatpush1.msra.mxu0 %v1362
    %1427 = vmatprep.subr.mxu0 %v1367
    %1428 = vmatpush1.msra.mxu0 %v1366
    %1429 = vmatprep.subr.mxu0 %v1371
    %1430 = vmatpush1.msra.mxu0 %v1370
    %1431 = vmatprep.subr.mxu0 %v1375
    %1432 = vmatpush1.msra.mxu0 %v1374
    %1433 = vmatprep.subr.mxu0 %v1379
    %1434 = vmatpush1.msra.mxu0 %v1378
    %1435 = vmatprep.subr.mxu0 %v1383
    %1436 = vmatpush1.msra.mxu0 %v1382
    %1437 = vmatprep.subr.mxu0 %v1387
    %1438 = vmatpush1.msra.mxu0 %v1386
    %1439 = vmatprep.subr.mxu0 %v1391
    %1440 = vmatpush1.msra.mxu0 %v1390
    %1441 = vmatprep.subr.mxu0 %v1395
    %1442 = vmatpush1.msra.mxu0 %v1394
    %1443 = vmatprep.subr.mxu0 %v1399
    %1444 = vmatpush1.msra.mxu0 %v1398
    %1445 = vmatprep.subr.mxu0 %v1403
    %1446 = vmatpush1.msra.mxu0 %v1402
    %1447 = vmatprep.subr.mxu0 %v1407
    %1448 = vmatpush1.msra.mxu0 %v1406
    %1449 = vmatprep.subr.mxu0 %v1411
    %1450 = vmatpush1.msra.mxu0 %v1410
    %1451 = vmatprep.subr.mxu0 %v1415
    %1452 = vmatpush1.msra.mxu0 %v1414
    %1453 = vmatprep.subr.mxu0 0.0
    %1454 = vmatpush1.msra.mxu0 0.0
    %1455 = vmatprep.subr.mxu0 0.0
    %1456 = vmatpush1.msra.mxu0 0.0
    %1457 = vmatprep.subr.mxu0 0.0
    %1458 = vmatpush1.msra.mxu0 0.0
    %1459 = vmatprep.subr.mxu0 0.0
    %1460 = vmatpush1.msra.mxu0 0.0
    %1461 = vmatprep.subr.mxu0 0.0
    %1462 = vmatpush1.msra.mxu0 0.0
    %1463 = vmatprep.subr.mxu0 0.0
    %1464 = vmatpush1.msra.mxu0 0.0
    %1465 = vmatprep.subr.mxu0 0.0
    %1466 = vmatpush1.msra.mxu0 0.0
    %1467 = vmatprep.subr.mxu0 0.0
    %1468 = vmatpush1.msra.mxu0 0.0
    %1469 = vmatprep.subr.mxu0 0.0
    %1470 = vmatpush1.msra.mxu0 0.0
    %1471 = vmatprep.subr.mxu0 0.0
    %1472 = vmatpush1.msra.mxu0 0.0
    %1473 = vmatprep.subr.mxu0 0.0
    %1474 = vmatpush1.msra.mxu0 0.0
    %1475 = vmatprep.subr.mxu0 0.0
    %1476 = vmatpush1.msra.mxu0 0.0
    %1477 = vmatprep.subr.mxu0 0.0
    %1478 = vmatpush1.msra.mxu0 0.0
    %1479 = vmatprep.subr.mxu0 0.0
    %1480 = vmatpush1.msra.mxu0 0.0
    %1481 = vmatprep.subr.mxu0 0.0
    %1482 = vmatpush1.msra.mxu0 0.0
    %1483 = vmatprep.subr.mxu0 0.0
    %1484 = vmatpush1.msra.mxu0 0.0
    %1485 = vmatprep.mubr.f32.mxu0 0.0
    %1486 = vmatmul.mubr.f32.gmra.mrb[0].mxu0 %v1419
    %v1487 = vpop.f32.mrb[0].mxu0
    %v1488 = vadd.f32 0.0, %v1487
    %v1489 = vpop.f32.mrb[0].mxu0
    %v1490 = vadd.f32 0.0, %v1489
    %1491 = vdwg.mxu0
    %1492 = vmatprep.subr.mxu0 %v1357
    %1493 = vmatpush1.msra.mxu0 %v1356
    %1494 = vmatprep.subr.mxu0 %v1361
    %1495 = vmatpush1.msra.mxu0 %v1360
    %1496 = vmatprep.subr.mxu0 %v1365
    %1497 = vmatpush1.msra.mxu0 %v1364
    %1498 = vmatprep.subr.mxu0 %v1369
    %1499 = vmatpush1.msra.mxu0 %v1368
    %1500 = vmatprep.subr.mxu0 %v1373
    %1501 = vmatpush1.msra.mxu0 %v1372
    %1502 = vmatprep.subr.mxu0 %v1377
    %1503 = vmatpush1.msra.mxu0 %v1376
    %1504 = vmatprep.subr.mxu0 %v1381
    %1505 = vmatpush1.msra.mxu0 %v1380
    %1506 = vmatprep.subr.mxu0 %v1385
    %1507 = vmatpush1.msra.mxu0 %v1384
    %1508 = vmatprep.subr.mxu0 %v1389
    %1509 = vmatpush1.msra.mxu0 %v1388
    %1510 = vmatprep.subr.mxu0 %v1393
    %1511 = vmatpush1.msra.mxu0 %v1392
    %1512 = vmatprep.subr.mxu0 %v1397
    %1513 = vmatpush1.msra.mxu0 %v1396
    %1514 = vmatprep.subr.mxu0 %v1401
    %1515 = vmatpush1.msra.mxu0 %v1400
    %1516 = vmatprep.subr.mxu0 %v1405
    %1517 = vmatpush1.msra.mxu0 %v1404
    %1518 = vmatprep.subr.mxu0 %v1409
    %1519 = vmatpush1.msra.mxu0 %v1408
    %1520 = vmatprep.subr.mxu0 %v1413
    %1521 = vmatpush1.msra.mxu0 %v1412
    %1522 = vmatprep.subr.mxu0 %v1417
    %1523 = vmatpush1.msra.mxu0 %v1416
    %1524 = vmatprep.subr.mxu0 0.0
    %1525 = vmatpush1.msra.mxu0 0.0
    %1526 = vmatprep.subr.mxu0 0.0
    %1527 = vmatpush1.msra.mxu0 0.0
    %1528 = vmatprep.subr.mxu0 0.0
    %1529 = vmatpush1.msra.mxu0 0.0
    %1530 = vmatprep.subr.mxu0 0.0
    %1531 = vmatpush1.msra.mxu0 0.0
    %1532 = vmatprep.subr.mxu0 0.0
    %1533 = vmatpush1.msra.mxu0 0.0
    %1534 = vmatprep.subr.mxu0 0.0
    %1535 = vmatpush1.msra.mxu0 0.0
    %1536 = vmatprep.subr.mxu0 0.0
    %1537 = vmatpush1.msra.mxu0 0.0
    %1538 = vmatprep.subr.mxu0 0.0
    %1539 = vmatpush1.msra.mxu0 0.0
    %1540 = vmatprep.subr.mxu0 0.0
    %1541 = vmatpush1.msra.mxu0 0.0
    %1542 = vmatprep.subr.mxu0 0.0
    %1543 = vmatpush1.msra.mxu0 0.0
    %1544 = vmatprep.subr.mxu0 0.0
    %1545 = vmatpush1.msra.mxu0 0.0
    %1546 = vmatprep.subr.mxu0 0.0
    %1547 = vmatpush1.msra.mxu0 0.0
    %1548 = vmatprep.subr.mxu0 0.0
    %1549 = vmatpush1.msra.mxu0 0.0
    %1550 = vmatprep.subr.mxu0 0.0
    %1551 = vmatpush1.msra.mxu0 0.0
    %1552 = vmatprep.subr.mxu0 0.0
    %1553 = vmatpush1.msra.mxu0 0.0
    %1554 = vmatprep.subr.mxu0 0.0
    %1555 = vmatpush1.msra.mxu0 0.0
    %1556 = vmatprep.mubr.f32.mxu0 0.0
    %1557 = vmatmul.mubr.f32.gmra.mrb[0].mxu0 %v1419
    %v1558 = vpop.f32.mrb[0].mxu0
    %v1559 = vadd.f32 0.0, %v1558
    %v1560 = vpop.f32.mrb[0].mxu0
    %v1561 = vadd.f32 0.0, %v1560
    %1562 = vdwg.mxu0
    %v1567 = vrot.slane %v1488, 3
    %v1568 = vrot.slane %v1490, 3
    %v1569 = vrot.slane %v1559, 3
    %v1570 = vrot.slane %v1561, 3
    %v1575 = vadd.f32 %v130, %v1567
    %v1576 = vadd.f32 %v131, %v1568
    %v1577 = vadd.f32 %v132, %v1569
    %v1578 = vadd.f32 %v133, %v1570
    %v1579 = vmul.f32 %v1575, 0.5
    %v1580 = vmul.f32 %v1576, 0.5
    %v1581 = vmul.f32 %v1577, 0.5
    %v1582 = vtanh.pop %v1579
    %v1583 = vtanh.pop %v1580
    %v1584 = vtanh.pop %v1581
    %v1585 = vmul.f32 %v1582, 0.5
    %v1586 = vmul.f32 %v1583, 0.5
    %v1587 = vmul.f32 %v1584, 0.5
    %v1588 = vadd.f32 %v1585, 0.5
    %v1589 = vadd.f32 %v1586, 0.5
    %v1590 = vadd.f32 %v1587, 0.5
    %v1591 = vtanh.pop %v1578
    %v1593 = vrot.slane %v1350, 7
    %v1595 = vmul.f32 %v1589, %v1593
    %v1596 = vmul.f32 %v1588, %v1591
    %v1597 = vadd.f32 %v1595, %v1596
    %v1598 = vtanh.pop %v1597
    %v1599 = vmul.f32 %v1590, %v1598
    %1600 = vst [vmem:[#allocation3 + $0x5] sm:$0x20] %v1599
    %v1601 = vld [vmem:[#allocation7] sm:$0xff]
    %v1602 = vld [vmem:[#allocation7 + $0x8] sm:$0xff]
    %v1603 = vld [vmem:[#allocation7 + $0x10] sm:$0xff]
    %v1604 = vld [vmem:[#allocation7 + $0x18] sm:$0xff]
    %v1605 = vld [vmem:[#allocation7 + $0x20] sm:$0xff]
    %v1606 = vld [vmem:[#allocation7 + $0x28] sm:$0xff]
    %v1607 = vld [vmem:[#allocation7 + $0x30] sm:$0xff]
    %v1608 = vld [vmem:[#allocation7 + $0x38] sm:$0xff]
    %v1609 = vld [vmem:[#allocation7 + $0x40] sm:$0xff]
    %v1610 = vld [vmem:[#allocation7 + $0x48] sm:$0xff]
    %v1611 = vld [vmem:[#allocation7 + $0x50] sm:$0xff]
    %v1612 = vld [vmem:[#allocation7 + $0x58] sm:$0xff]
    %v1613 = vld [vmem:[#allocation7 + $0x60] sm:$0xff]
    %v1614 = vld [vmem:[#allocation7 + $0x68] sm:$0xff]
    %v1615 = vld [vmem:[#allocation7 + $0x70] sm:$0xff]
    %v1616 = vld [vmem:[#allocation7 + $0x78] sm:$0xff]
    %v1617 = vld [vmem:[#allocation7 + $0x80] sm:$0xff]
    %v1618 = vld [vmem:[#allocation7 + $0x88] sm:$0xff]
    %v1619 = vld [vmem:[#allocation7 + $0x90] sm:$0xff]
    %v1620 = vld [vmem:[#allocation7 + $0x98] sm:$0xff]
    %v1621 = vld [vmem:[#allocation7 + $0xa0] sm:$0xff]
    %v1622 = vld [vmem:[#allocation7 + $0xa8] sm:$0xff]
    %v1623 = vld [vmem:[#allocation7 + $0xb0] sm:$0xff]
    %v1624 = vld [vmem:[#allocation7 + $0xb8] sm:$0xff]
    %v1625 = vld [vmem:[#allocation7 + $0xc0] sm:$0xff]
    %v1626 = vld [vmem:[#allocation7 + $0xc8] sm:$0xff]
    %v1627 = vld [vmem:[#allocation7 + $0xd0] sm:$0xff]
    %v1628 = vld [vmem:[#allocation7 + $0xd8] sm:$0xff]
    %v1629 = vld [vmem:[#allocation7 + $0xe0] sm:$0xff]
    %v1630 = vld [vmem:[#allocation7 + $0xe8] sm:$0xff]
    %v1631 = vld [vmem:[#allocation7 + $0xf0] sm:$0xff]
    %v1632 = vld [vmem:[#allocation7 + $0xf8] sm:$0xff]
    %v1633 = vld [vmem:[#allocation7 + $0x100] sm:$0xff]
    %v1634 = vld [vmem:[#allocation7 + $0x108] sm:$0xff]
    %v1635 = vld [vmem:[#allocation7 + $0x110] sm:$0xff]
    %v1636 = vld [vmem:[#allocation7 + $0x118] sm:$0xff]
    %v1637 = vld [vmem:[#allocation7 + $0x120] sm:$0xff]
    %v1638 = vld [vmem:[#allocation7 + $0x128] sm:$0xff]
    %v1639 = vld [vmem:[#allocation7 + $0x130] sm:$0xff]
    %v1640 = vld [vmem:[#allocation7 + $0x138] sm:$0xff]
    %v1641 = vld [vmem:[#allocation7 + $0x140] sm:$0xff]
    %v1642 = vld [vmem:[#allocation7 + $0x148] sm:$0xff]
    %v1643 = vld [vmem:[#allocation7 + $0x150] sm:$0xff]
    %v1644 = vld [vmem:[#allocation7 + $0x158] sm:$0xff]
    %v1645 = vld [vmem:[#allocation7 + $0x160] sm:$0xff]
    %v1646 = vld [vmem:[#allocation7 + $0x168] sm:$0xff]
    %v1647 = vld [vmem:[#allocation7 + $0x170] sm:$0xff]
    %v1648 = vld [vmem:[#allocation7 + $0x178] sm:$0xff]
    %v1649 = vld [vmem:[#allocation7 + $0x180] sm:$0xff]
    %v1650 = vld [vmem:[#allocation7 + $0x188] sm:$0xff]
    %v1651 = vld [vmem:[#allocation7 + $0x190] sm:$0xff]
    %v1652 = vld [vmem:[#allocation7 + $0x198] sm:$0xff]
    %v1653 = vld [vmem:[#allocation7 + $0x1a0] sm:$0xff]
    %v1654 = vld [vmem:[#allocation7 + $0x1a8] sm:$0xff]
    %v1655 = vld [vmem:[#allocation7 + $0x1b0] sm:$0xff]
    %v1656 = vld [vmem:[#allocation7 + $0x1b8] sm:$0xff]
    %v1657 = vld [vmem:[#allocation7 + $0x1c0] sm:$0xff]
    %v1658 = vld [vmem:[#allocation7 + $0x1c8] sm:$0xff]
    %v1659 = vld [vmem:[#allocation7 + $0x1d0] sm:$0xff]
    %v1660 = vld [vmem:[#allocation7 + $0x1d8] sm:$0xff]
    %v1661 = vld [vmem:[#allocation7 + $0x1e0] sm:$0xff]
    %v1662 = vld [vmem:[#allocation7 + $0x1e8] sm:$0xff]
    %v1663 = vld [vmem:[#allocation7 + $0x1f0] sm:$0xff]
    %v1664 = vld [vmem:[#allocation7 + $0x1f8] sm:$0xff]
    %v1666 = vrot.slane %v1599, 5
    %1668 = vmatprep.subr.mxu0 %v1602
    %1669 = vmatpush1.msra.mxu0 %v1601
    %1670 = vmatprep.subr.mxu0 %v1606
    %1671 = vmatpush1.msra.mxu0 %v1605
    %1672 = vmatprep.subr.mxu0 %v1610
    %1673 = vmatpush1.msra.mxu0 %v1609
    %1674 = vmatprep.subr.mxu0 %v1614
    %1675 = vmatpush1.msra.mxu0 %v1613
    %1676 = vmatprep.subr.mxu0 %v1618
    %1677 = vmatpush1.msra.mxu0 %v1617
    %1678 = vmatprep.subr.mxu0 %v1622
    %1679 = vmatpush1.msra.mxu0 %v1621
    %1680 = vmatprep.subr.mxu0 %v1626
    %1681 = vmatpush1.msra.mxu0 %v1625
    %1682 = vmatprep.subr.mxu0 %v1630
    %1683 = vmatpush1.msra.mxu0 %v1629
    %1684 = vmatprep.subr.mxu0 %v1634
    %1685 = vmatpush1.msra.mxu0 %v1633
    %1686 = vmatprep.subr.mxu0 %v1638
    %1687 = vmatpush1.msra.mxu0 %v1637
    %1688 = vmatprep.subr.mxu0 %v1642
    %1689 = vmatpush1.msra.mxu0 %v1641
    %1690 = vmatprep.subr.mxu0 %v1646
    %1691 = vmatpush1.msra.mxu0 %v1645
    %1692 = vmatprep.subr.mxu0 %v1650
    %1693 = vmatpush1.msra.mxu0 %v1649
    %1694 = vmatprep.subr.mxu0 %v1654
    %1695 = vmatpush1.msra.mxu0 %v1653
    %1696 = vmatprep.subr.mxu0 %v1658
    %1697 = vmatpush1.msra.mxu0 %v1657
    %1698 = vmatprep.subr.mxu0 %v1662
    %1699 = vmatpush1.msra.mxu0 %v1661
    %1700 = vmatprep.subr.mxu0 0.0
    %1701 = vmatpush1.msra.mxu0 0.0
    %1702 = vmatprep.subr.mxu0 0.0
    %1703 = vmatpush1.msra.mxu0 0.0
    %1704 = vmatprep.subr.mxu0 0.0
    %1705 = vmatpush1.msra.mxu0 0.0
    %1706 = vmatprep.subr.mxu0 0.0
    %1707 = vmatpush1.msra.mxu0 0.0
    %1708 = vmatprep.subr.mxu0 0.0
    %1709 = vmatpush1.msra.mxu0 0.0
    %1710 = vmatprep.subr.mxu0 0.0
    %1711 = vmatpush1.msra.mxu0 0.0
    %1712 = vmatprep.subr.mxu0 0.0
    %1713 = vmatpush1.msra.mxu0 0.0
    %1714 = vmatprep.subr.mxu0 0.0
    %1715 = vmatpush1.msra.mxu0 0.0
    %1716 = vmatprep.subr.mxu0 0.0
    %1717 = vmatpush1.msra.mxu0 0.0
    %1718 = vmatprep.subr.mxu0 0.0
    %1719 = vmatpush1.msra.mxu0 0.0
    %1720 = vmatprep.subr.mxu0 0.0
    %1721 = vmatpush1.msra.mxu0 0.0
    %1722 = vmatprep.subr.mxu0 0.0
    %1723 = vmatpush1.msra.mxu0 0.0
    %1724 = vmatprep.subr.mxu0 0.0
    %1725 = vmatpush1.msra.mxu0 0.0
    %1726 = vmatprep.subr.mxu0 0.0
    %1727 = vmatpush1.msra.mxu0 0.0
    %1728 = vmatprep.subr.mxu0 0.0
    %1729 = vmatpush1.msra.mxu0 0.0
    %1730 = vmatprep.subr.mxu0 0.0
    %1731 = vmatpush1.msra.mxu0 0.0
    %1732 = vmatprep.mubr.f32.mxu0 0.0
    %1733 = vmatmul.mubr.f32.gmra.mrb[0].mxu0 %v1666
    %v1734 = vpop.f32.mrb[0].mxu0
    %v1735 = vadd.f32 0.0, %v1734
    %v1736 = vpop.f32.mrb[0].mxu0
    %v1737 = vadd.f32 0.0, %v1736
    %1738 = vdwg.mxu0
    %1739 = vmatprep.subr.mxu0 %v1604
    %1740 = vmatpush1.msra.mxu0 %v1603
    %1741 = vmatprep.subr.mxu0 %v1608
    %1742 = vmatpush1.msra.mxu0 %v1607
    %1743 = vmatprep.subr.mxu0 %v1612
    %1744 = vmatpush1.msra.mxu0 %v1611
    %1745 = vmatprep.subr.mxu0 %v1616
    %1746 = vmatpush1.msra.mxu0 %v1615
    %1747 = vmatprep.subr.mxu0 %v1620
    %1748 = vmatpush1.msra.mxu0 %v1619
    %1749 = vmatprep.subr.mxu0 %v1624
    %1750 = vmatpush1.msra.mxu0 %v1623
    %1751 = vmatprep.subr.mxu0 %v1628
    %1752 = vmatpush1.msra.mxu0 %v1627
    %1753 = vmatprep.subr.mxu0 %v1632
    %1754 = vmatpush1.msra.mxu0 %v1631
    %1755 = vmatprep.subr.mxu0 %v1636
    %1756 = vmatpush1.msra.mxu0 %v1635
    %1757 = vmatprep.subr.mxu0 %v1640
    %1758 = vmatpush1.msra.mxu0 %v1639
    %1759 = vmatprep.subr.mxu0 %v1644
    %1760 = vmatpush1.msra.mxu0 %v1643
    %1761 = vmatprep.subr.mxu0 %v1648
    %1762 = vmatpush1.msra.mxu0 %v1647
    %1763 = vmatprep.subr.mxu0 %v1652
    %1764 = vmatpush1.msra.mxu0 %v1651
    %1765 = vmatprep.subr.mxu0 %v1656
    %1766 = vmatpush1.msra.mxu0 %v1655
    %1767 = vmatprep.subr.mxu0 %v1660
    %1768 = vmatpush1.msra.mxu0 %v1659
    %1769 = vmatprep.subr.mxu0 %v1664
    %1770 = vmatpush1.msra.mxu0 %v1663
    %1771 = vmatprep.subr.mxu0 0.0
    %1772 = vmatpush1.msra.mxu0 0.0
    %1773 = vmatprep.subr.mxu0 0.0
    %1774 = vmatpush1.msra.mxu0 0.0
    %1775 = vmatprep.subr.mxu0 0.0
    %1776 = vmatpush1.msra.mxu0 0.0
    %1777 = vmatprep.subr.mxu0 0.0
    %1778 = vmatpush1.msra.mxu0 0.0
    %1779 = vmatprep.subr.mxu0 0.0
    %1780 = vmatpush1.msra.mxu0 0.0
    %1781 = vmatprep.subr.mxu0 0.0
    %1782 = vmatpush1.msra.mxu0 0.0
    %1783 = vmatprep.subr.mxu0 0.0
    %1784 = vmatpush1.msra.mxu0 0.0
    %1785 = vmatprep.subr.mxu0 0.0
    %1786 = vmatpush1.msra.mxu0 0.0
    %1787 = vmatprep.subr.mxu0 0.0
    %1788 = vmatpush1.msra.mxu0 0.0
    %1789 = vmatprep.subr.mxu0 0.0
    %1790 = vmatpush1.msra.mxu0 0.0
    %1791 = vmatprep.subr.mxu0 0.0
    %1792 = vmatpush1.msra.mxu0 0.0
    %1793 = vmatprep.subr.mxu0 0.0
    %1794 = vmatpush1.msra.mxu0 0.0
    %1795 = vmatprep.subr.mxu0 0.0
    %1796 = vmatpush1.msra.mxu0 0.0
    %1797 = vmatprep.subr.mxu0 0.0
    %1798 = vmatpush1.msra.mxu0 0.0
    %1799 = vmatprep.subr.mxu0 0.0
    %1800 = vmatpush1.msra.mxu0 0.0
    %1801 = vmatprep.subr.mxu0 0.0
    %1802 = vmatpush1.msra.mxu0 0.0
    %1803 = vmatprep.mubr.f32.mxu0 0.0
    %1804 = vmatmul.mubr.f32.gmra.mrb[0].mxu0 %v1666
    %v1805 = vpop.f32.mrb[0].mxu0
    %v1806 = vadd.f32 0.0, %v1805
    %v1807 = vpop.f32.mrb[0].mxu0
    %v1808 = vadd.f32 0.0, %v1807
    %1809 = vdwg.mxu0
    %v1814 = vrot.slane %v1735, 2
    %v1815 = vrot.slane %v1737, 2
    %v1816 = vrot.slane %v1806, 2
    %v1817 = vrot.slane %v1808, 2
    %v1822 = vadd.f32 %v130, %v1814
    %v1823 = vadd.f32 %v131, %v1815
    %v1824 = vadd.f32 %v132, %v1816
    %v1825 = vadd.f32 %v133, %v1817
    %v1826 = vmul.f32 %v1822, 0.5
    %v1827 = vmul.f32 %v1823, 0.5
    %v1828 = vmul.f32 %v1824, 0.5
    %v1829 = vtanh.pop %v1826
    %v1830 = vtanh.pop %v1827
    %v1831 = vtanh.pop %v1828
    %v1832 = vmul.f32 %v1829, 0.5
    %v1833 = vmul.f32 %v1830, 0.5
    %v1834 = vmul.f32 %v1831, 0.5
    %v1835 = vadd.f32 %v1832, 0.5
    %v1836 = vadd.f32 %v1833, 0.5
    %v1837 = vadd.f32 %v1834, 0.5
    %v1838 = vtanh.pop %v1825
    %v1840 = vrot.slane %v1597, 7
    %v1842 = vmul.f32 %v1836, %v1840
    %v1843 = vmul.f32 %v1835, %v1838
    %v1844 = vadd.f32 %v1842, %v1843
    %v1845 = vtanh.pop %v1844
    %v1846 = vmul.f32 %v1837, %v1845
    %1847 = vst [vmem:[#allocation3 + $0x6] sm:$0x40] %v1846
    %v1848 = vld [vmem:[#allocation7] sm:$0xff]
    %v1849 = vld [vmem:[#allocation7 + $0x8] sm:$0xff]
    %v1850 = vld [vmem:[#allocation7 + $0x10] sm:$0xff]
    %v1851 = vld [vmem:[#allocation7 + $0x18] sm:$0xff]
    %v1852 = vld [vmem:[#allocation7 + $0x20] sm:$0xff]
    %v1853 = vld [vmem:[#allocation7 + $0x28] sm:$0xff]
    %v1854 = vld [vmem:[#allocation7 + $0x30] sm:$0xff]
    %v1855 = vld [vmem:[#allocation7 + $0x38] sm:$0xff]
    %v1856 = vld [vmem:[#allocation7 + $0x40] sm:$0xff]
    %v1857 = vld [vmem:[#allocation7 + $0x48] sm:$0xff]
    %v1858 = vld [vmem:[#allocation7 + $0x50] sm:$0xff]
    %v1859 = vld [vmem:[#allocation7 + $0x58] sm:$0xff]
    %v1860 = vld [vmem:[#allocation7 + $0x60] sm:$0xff]
    %v1861 = vld [vmem:[#allocation7 + $0x68] sm:$0xff]
    %v1862 = vld [vmem:[#allocation7 + $0x70] sm:$0xff]
    %v1863 = vld [vmem:[#allocation7 + $0x78] sm:$0xff]
    %v1864 = vld [vmem:[#allocation7 + $0x80] sm:$0xff]
    %v1865 = vld [vmem:[#allocation7 + $0x88] sm:$0xff]
    %v1866 = vld [vmem:[#allocation7 + $0x90] sm:$0xff]
    %v1867 = vld [vmem:[#allocation7 + $0x98] sm:$0xff]
    %v1868 = vld [vmem:[#allocation7 + $0xa0] sm:$0xff]
    %v1869 = vld [vmem:[#allocation7 + $0xa8] sm:$0xff]
    %v1870 = vld [vmem:[#allocation7 + $0xb0] sm:$0xff]
    %v1871 = vld [vmem:[#allocation7 + $0xb8] sm:$0xff]
    %v1872 = vld [vmem:[#allocation7 + $0xc0] sm:$0xff]
    %v1873 = vld [vmem:[#allocation7 + $0xc8] sm:$0xff]
    %v1874 = vld [vmem:[#allocation7 + $0xd0] sm:$0xff]
    %v1875 = vld [vmem:[#allocation7 + $0xd8] sm:$0xff]
    %v1876 = vld [vmem:[#allocation7 + $0xe0] sm:$0xff]
    %v1877 = vld [vmem:[#allocation7 + $0xe8] sm:$0xff]
    %v1878 = vld [vmem:[#allocation7 + $0xf0] sm:$0xff]
    %v1879 = vld [vmem:[#allocation7 + $0xf8] sm:$0xff]
    %v1880 = vld [vmem:[#allocation7 + $0x100] sm:$0xff]
    %v1881 = vld [vmem:[#allocation7 + $0x108] sm:$0xff]
    %v1882 = vld [vmem:[#allocation7 + $0x110] sm:$0xff]
    %v1883 = vld [vmem:[#allocation7 + $0x118] sm:$0xff]
    %v1884 = vld [vmem:[#allocation7 + $0x120] sm:$0xff]
    %v1885 = vld [vmem:[#allocation7 + $0x128] sm:$0xff]
    %v1886 = vld [vmem:[#allocation7 + $0x130] sm:$0xff]
    %v1887 = vld [vmem:[#allocation7 + $0x138] sm:$0xff]
    %v1888 = vld [vmem:[#allocation7 + $0x140] sm:$0xff]
    %v1889 = vld [vmem:[#allocation7 + $0x148] sm:$0xff]
    %v1890 = vld [vmem:[#allocation7 + $0x150] sm:$0xff]
    %v1891 = vld [vmem:[#allocation7 + $0x158] sm:$0xff]
    %v1892 = vld [vmem:[#allocation7 + $0x160] sm:$0xff]
    %v1893 = vld [vmem:[#allocation7 + $0x168] sm:$0xff]
    %v1894 = vld [vmem:[#allocation7 + $0x170] sm:$0xff]
    %v1895 = vld [vmem:[#allocation7 + $0x178] sm:$0xff]
    %v1896 = vld [vmem:[#allocation7 + $0x180] sm:$0xff]
    %v1897 = vld [vmem:[#allocation7 + $0x188] sm:$0xff]
    %v1898 = vld [vmem:[#allocation7 + $0x190] sm:$0xff]
    %v1899 = vld [vmem:[#allocation7 + $0x198] sm:$0xff]
    %v1900 = vld [vmem:[#allocation7 + $0x1a0] sm:$0xff]
    %v1901 = vld [vmem:[#allocation7 + $0x1a8] sm:$0xff]
    %v1902 = vld [vmem:[#allocation7 + $0x1b0] sm:$0xff]
    %v1903 = vld [vmem:[#allocation7 + $0x1b8] sm:$0xff]
    %v1904 = vld [vmem:[#allocation7 + $0x1c0] sm:$0xff]
    %v1905 = vld [vmem:[#allocation7 + $0x1c8] sm:$0xff]
    %v1906 = vld [vmem:[#allocation7 + $0x1d0] sm:$0xff]
    %v1907 = vld [vmem:[#allocation7 + $0x1d8] sm:$0xff]
    %v1908 = vld [vmem:[#allocation7 + $0x1e0] sm:$0xff]
    %v1909 = vld [vmem:[#allocation7 + $0x1e8] sm:$0xff]
    %v1910 = vld [vmem:[#allocation7 + $0x1f0] sm:$0xff]
    %v1911 = vld [vmem:[#allocation7 + $0x1f8] sm:$0xff]
    %v1913 = vrot.slane %v1846, 6
    %1915 = vmatprep.subr.mxu0 %v1849
    %1916 = vmatpush1.msra.mxu0 %v1848
    %1917 = vmatprep.subr.mxu0 %v1853
    %1918 = vmatpush1.msra.mxu0 %v1852
    %1919 = vmatprep.subr.mxu0 %v1857
    %1920 = vmatpush1.msra.mxu0 %v1856
    %1921 = vmatprep.subr.mxu0 %v1861
    %1922 = vmatpush1.msra.mxu0 %v1860
    %1923 = vmatprep.subr.mxu0 %v1865
    %1924 = vmatpush1.msra.mxu0 %v1864
    %1925 = vmatprep.subr.mxu0 %v1869
    %1926 = vmatpush1.msra.mxu0 %v1868
    %1927 = vmatprep.subr.mxu0 %v1873
    %1928 = vmatpush1.msra.mxu0 %v1872
    %1929 = vmatprep.subr.mxu0 %v1877
    %1930 = vmatpush1.msra.mxu0 %v1876
    %1931 = vmatprep.subr.mxu0 %v1881
    %1932 = vmatpush1.msra.mxu0 %v1880
    %1933 = vmatprep.subr.mxu0 %v1885
    %1934 = vmatpush1.msra.mxu0 %v1884
    %1935 = vmatprep.subr.mxu0 %v1889
    %1936 = vmatpush1.msra.mxu0 %v1888
    %1937 = vmatprep.subr.mxu0 %v1893
    %1938 = vmatpush1.msra.mxu0 %v1892
    %1939 = vmatprep.subr.mxu0 %v1897
    %1940 = vmatpush1.msra.mxu0 %v1896
    %1941 = vmatprep.subr.mxu0 %v1901
    %1942 = vmatpush1.msra.mxu0 %v1900
    %1943 = vmatprep.subr.mxu0 %v1905
    %1944 = vmatpush1.msra.mxu0 %v1904
    %1945 = vmatprep.subr.mxu0 %v1909
    %1946 = vmatpush1.msra.mxu0 %v1908
    %1947 = vmatprep.subr.mxu0 0.0
    %1948 = vmatpush1.msra.mxu0 0.0
    %1949 = vmatprep.subr.mxu0 0.0
    %1950 = vmatpush1.msra.mxu0 0.0
    %1951 = vmatprep.subr.mxu0 0.0
    %1952 = vmatpush1.msra.mxu0 0.0
    %1953 = vmatprep.subr.mxu0 0.0
    %1954 = vmatpush1.msra.mxu0 0.0
    %1955 = vmatprep.subr.mxu0 0.0
    %1956 = vmatpush1.msra.mxu0 0.0
    %1957 = vmatprep.subr.mxu0 0.0
    %1958 = vmatpush1.msra.mxu0 0.0
    %1959 = vmatprep.subr.mxu0 0.0
    %1960 = vmatpush1.msra.mxu0 0.0
    %1961 = vmatprep.subr.mxu0 0.0
    %1962 = vmatpush1.msra.mxu0 0.0
    %1963 = vmatprep.subr.mxu0 0.0
    %1964 = vmatpush1.msra.mxu0 0.0
    %1965 = vmatprep.subr.mxu0 0.0
    %1966 = vmatpush1.msra.mxu0 0.0
    %1967 = vmatprep.subr.mxu0 0.0
    %1968 = vmatpush1.msra.mxu0 0.0
    %1969 = vmatprep.subr.mxu0 0.0
    %1970 = vmatpush1.msra.mxu0 0.0
    %1971 = vmatprep.subr.mxu0 0.0
    %1972 = vmatpush1.msra.mxu0 0.0
    %1973 = vmatprep.subr.mxu0 0.0
    %1974 = vmatpush1.msra.mxu0 0.0
    %1975 = vmatprep.subr.mxu0 0.0
    %1976 = vmatpush1.msra.mxu0 0.0
    %1977 = vmatprep.subr.mxu0 0.0
    %1978 = vmatpush1.msra.mxu0 0.0
    %1979 = vmatprep.mubr.f32.mxu0 0.0
    %1980 = vmatmul.mubr.f32.gmra.mrb[0].mxu0 %v1913
    %v1981 = vpop.f32.mrb[0].mxu0
    %v1982 = vadd.f32 0.0, %v1981
    %v1983 = vpop.f32.mrb[0].mxu0
    %v1984 = vadd.f32 0.0, %v1983
    %1985 = vdwg.mxu0
    %1986 = vmatprep.subr.mxu0 %v1851
    %1987 = vmatpush1.msra.mxu0 %v1850
    %1988 = vmatprep.subr.mxu0 %v1855
    %1989 = vmatpush1.msra.mxu0 %v1854
    %1990 = vmatprep.subr.mxu0 %v1859
    %1991 = vmatpush1.msra.mxu0 %v1858
    %1992 = vmatprep.subr.mxu0 %v1863
    %1993 = vmatpush1.msra.mxu0 %v1862
    %1994 = vmatprep.subr.mxu0 %v1867
    %1995 = vmatpush1.msra.mxu0 %v1866
    %1996 = vmatprep.subr.mxu0 %v1871
    %1997 = vmatpush1.msra.mxu0 %v1870
    %1998 = vmatprep.subr.mxu0 %v1875
    %1999 = vmatpush1.msra.mxu0 %v1874
    %2000 = vmatprep.subr.mxu0 %v1879
    %2001 = vmatpush1.msra.mxu0 %v1878
    %2002 = vmatprep.subr.mxu0 %v1883
    %2003 = vmatpush1.msra.mxu0 %v1882
    %2004 = vmatprep.subr.mxu0 %v1887
    %2005 = vmatpush1.msra.mxu0 %v1886
    %2006 = vmatprep.subr.mxu0 %v1891
    %2007 = vmatpush1.msra.mxu0 %v1890
    %2008 = vmatprep.subr.mxu0 %v1895
    %2009 = vmatpush1.msra.mxu0 %v1894
    %2010 = vmatprep.subr.mxu0 %v1899
    %2011 = vmatpush1.msra.mxu0 %v1898
    %2012 = vmatprep.subr.mxu0 %v1903
    %2013 = vmatpush1.msra.mxu0 %v1902
    %2014 = vmatprep.subr.mxu0 %v1907
    %2015 = vmatpush1.msra.mxu0 %v1906
    %2016 = vmatprep.subr.mxu0 %v1911
    %2017 = vmatpush1.msra.mxu0 %v1910
    %2018 = vmatprep.subr.mxu0 0.0
    %2019 = vmatpush1.msra.mxu0 0.0
    %2020 = vmatprep.subr.mxu0 0.0
    %2021 = vmatpush1.msra.mxu0 0.0
    %2022 = vmatprep.subr.mxu0 0.0
    %2023 = vmatpush1.msra.mxu0 0.0
    %2024 = vmatprep.subr.mxu0 0.0
    %2025 = vmatpush1.msra.mxu0 0.0
    %2026 = vmatprep.subr.mxu0 0.0
    %2027 = vmatpush1.msra.mxu0 0.0
    %2028 = vmatprep.subr.mxu0 0.0
    %2029 = vmatpush1.msra.mxu0 0.0
    %2030 = vmatprep.subr.mxu0 0.0
    %2031 = vmatpush1.msra.mxu0 0.0
    %2032 = vmatprep.subr.mxu0 0.0
    %2033 = vmatpush1.msra.mxu0 0.0
    %2034 = vmatprep.subr.mxu0 0.0
    %2035 = vmatpush1.msra.mxu0 0.0
    %2036 = vmatprep.subr.mxu0 0.0
    %2037 = vmatpush1.msra.mxu0 0.0
    %2038 = vmatprep.subr.mxu0 0.0
    %2039 = vmatpush1.msra.mxu0 0.0
    %2040 = vmatprep.subr.mxu0 0.0
    %2041 = vmatpush1.msra.mxu0 0.0
    %2042 = vmatprep.subr.mxu0 0.0
    %2043 = vmatpush1.msra.mxu0 0.0
    %2044 = vmatprep.subr.mxu0 0.0
    %2045 = vmatpush1.msra.mxu0 0.0
    %2046 = vmatprep.subr.mxu0 0.0
    %2047 = vmatpush1.msra.mxu0 0.0
    %2048 = vmatprep.subr.mxu0 0.0
    %2049 = vmatpush1.msra.mxu0 0.0
    %2050 = vmatprep.mubr.f32.mxu0 0.0
    %2051 = vmatmul.mubr.f32.gmra.mrb[0].mxu0 %v1913
    %v2052 = vpop.f32.mrb[0].mxu0
    %v2053 = vadd.f32 0.0, %v2052
    %v2054 = vpop.f32.mrb[0].mxu0
    %v2055 = vadd.f32 0.0, %v2054
    %2056 = vdwg.mxu0
    %v2061 = vrot.slane %v1982, 1
    %v2062 = vrot.slane %v1984, 1
    %v2063 = vrot.slane %v2053, 1
    %v2064 = vrot.slane %v2055, 1
    %v2069 = vadd.f32 %v130, %v2061
    %v2070 = vadd.f32 %v131, %v2062
    %v2071 = vadd.f32 %v132, %v2063
    %v2072 = vadd.f32 %v133, %v2064
    %v2073 = vmul.f32 %v2069, 0.5
    %v2074 = vmul.f32 %v2070, 0.5
    %v2075 = vmul.f32 %v2071, 0.5
    %v2076 = vtanh.pop %v2073
    %v2077 = vtanh.pop %v2074
    %v2078 = vtanh.pop %v2075
    %v2079 = vmul.f32 %v2076, 0.5
    %v2080 = vmul.f32 %v2077, 0.5
    %v2081 = vmul.f32 %v2078, 0.5
    %v2082 = vadd.f32 %v2079, 0.5
    %v2083 = vadd.f32 %v2080, 0.5
    %v2084 = vadd.f32 %v2081, 0.5
    %v2085 = vtanh.pop %v2072
    %v2087 = vrot.slane %v1844, 7
    %v2089 = vmul.f32 %v2083, %v2087
    %v2090 = vmul.f32 %v2082, %v2085
    %v2091 = vadd.f32 %v2089, %v2090
    %v2092 = vtanh.pop %v2091
    %v2093 = vmul.f32 %v2084, %v2092
    %2094 = vst [vmem:[#allocation3 + $0x7] sm:$0x80] %v2093
    %v2095 = vld [vmem:[#allocation7] sm:$0xff]
    %v2096 = vld [vmem:[#allocation7 + $0x8] sm:$0xff]
    %v2097 = vld [vmem:[#allocation7 + $0x10] sm:$0xff]
    %v2098 = vld [vmem:[#allocation7 + $0x18] sm:$0xff]
    %v2099 = vld [vmem:[#allocation7 + $0x20] sm:$0xff]
    %v2100 = vld [vmem:[#allocation7 + $0x28] sm:$0xff]
    %v2101 = vld [vmem:[#allocation7 + $0x30] sm:$0xff]
    %v2102 = vld [vmem:[#allocation7 + $0x38] sm:$0xff]
    %v2103 = vld [vmem:[#allocation7 + $0x40] sm:$0xff]
    %v2104 = vld [vmem:[#allocation7 + $0x48] sm:$0xff]
    %v2105 = vld [vmem:[#allocation7 + $0x50] sm:$0xff]
    %v2106 = vld [vmem:[#allocation7 + $0x58] sm:$0xff]
    %v2107 = vld [vmem:[#allocation7 + $0x60] sm:$0xff]
    %v2108 = vld [vmem:[#allocation7 + $0x68] sm:$0xff]
    %v2109 = vld [vmem:[#allocation7 + $0x70] sm:$0xff]
    %v2110 = vld [vmem:[#allocation7 + $0x78] sm:$0xff]
    %v2111 = vld [vmem:[#allocation7 + $0x80] sm:$0xff]
    %v2112 = vld [vmem:[#allocation7 + $0x88] sm:$0xff]
    %v2113 = vld [vmem:[#allocation7 + $0x90] sm:$0xff]
    %v2114 = vld [vmem:[#allocation7 + $0x98] sm:$0xff]
    %v2115 = vld [vmem:[#allocation7 + $0xa0] sm:$0xff]
    %v2116 = vld [vmem:[#allocation7 + $0xa8] sm:$0xff]
    %v2117 = vld [vmem:[#allocation7 + $0xb0] sm:$0xff]
    %v2118 = vld [vmem:[#allocation7 + $0xb8] sm:$0xff]
    %v2119 = vld [vmem:[#allocation7 + $0xc0] sm:$0xff]
    %v2120 = vld [vmem:[#allocation7 + $0xc8] sm:$0xff]
    %v2121 = vld [vmem:[#allocation7 + $0xd0] sm:$0xff]
    %v2122 = vld [vmem:[#allocation7 + $0xd8] sm:$0xff]
    %v2123 = vld [vmem:[#allocation7 + $0xe0] sm:$0xff]
    %v2124 = vld [vmem:[#allocation7 + $0xe8] sm:$0xff]
    %v2125 = vld [vmem:[#allocation7 + $0xf0] sm:$0xff]
    %v2126 = vld [vmem:[#allocation7 + $0xf8] sm:$0xff]
    %v2127 = vld [vmem:[#allocation7 + $0x100] sm:$0xff]
    %v2128 = vld [vmem:[#allocation7 + $0x108] sm:$0xff]
    %v2129 = vld [vmem:[#allocation7 + $0x110] sm:$0xff]
    %v2130 = vld [vmem:[#allocation7 + $0x118] sm:$0xff]
    %v2131 = vld [vmem:[#allocation7 + $0x120] sm:$0xff]
    %v2132 = vld [vmem:[#allocation7 + $0x128] sm:$0xff]
    %v2133 = vld [vmem:[#allocation7 + $0x130] sm:$0xff]
    %v2134 = vld [vmem:[#allocation7 + $0x138] sm:$0xff]
    %v2135 = vld [vmem:[#allocation7 + $0x140] sm:$0xff]
    %v2136 = vld [vmem:[#allocation7 + $0x148] sm:$0xff]
    %v2137 = vld [vmem:[#allocation7 + $0x150] sm:$0xff]
    %v2138 = vld [vmem:[#allocation7 + $0x158] sm:$0xff]
    %v2139 = vld [vmem:[#allocation7 + $0x160] sm:$0xff]
    %v2140 = vld [vmem:[#allocation7 + $0x168] sm:$0xff]
    %v2141 = vld [vmem:[#allocation7 + $0x170] sm:$0xff]
    %v2142 = vld [vmem:[#allocation7 + $0x178] sm:$0xff]
    %v2143 = vld [vmem:[#allocation7 + $0x180] sm:$0xff]
    %v2144 = vld [vmem:[#allocation7 + $0x188] sm:$0xff]
    %v2145 = vld [vmem:[#allocation7 + $0x190] sm:$0xff]
    %v2146 = vld [vmem:[#allocation7 + $0x198] sm:$0xff]
    %v2147 = vld [vmem:[#allocation7 + $0x1a0] sm:$0xff]
    %v2148 = vld [vmem:[#allocation7 + $0x1a8] sm:$0xff]
    %v2149 = vld [vmem:[#allocation7 + $0x1b0] sm:$0xff]
    %v2150 = vld [vmem:[#allocation7 + $0x1b8] sm:$0xff]
    %v2151 = vld [vmem:[#allocation7 + $0x1c0] sm:$0xff]
    %v2152 = vld [vmem:[#allocation7 + $0x1c8] sm:$0xff]
    %v2153 = vld [vmem:[#allocation7 + $0x1d0] sm:$0xff]
    %v2154 = vld [vmem:[#allocation7 + $0x1d8] sm:$0xff]
    %v2155 = vld [vmem:[#allocation7 + $0x1e0] sm:$0xff]
    %v2156 = vld [vmem:[#allocation7 + $0x1e8] sm:$0xff]
    %v2157 = vld [vmem:[#allocation7 + $0x1f0] sm:$0xff]
    %v2158 = vld [vmem:[#allocation7 + $0x1f8] sm:$0xff]
    %v2160 = vrot.slane %v2093, 7
    %2162 = vmatprep.subr.mxu0 %v2096
    %2163 = vmatpush1.msra.mxu0 %v2095
    %2164 = vmatprep.subr.mxu0 %v2100
    %2165 = vmatpush1.msra.mxu0 %v2099
    %2166 = vmatprep.subr.mxu0 %v2104
    %2167 = vmatpush1.msra.mxu0 %v2103
    %2168 = vmatprep.subr.mxu0 %v2108
    %2169 = vmatpush1.msra.mxu0 %v2107
    %2170 = vmatprep.subr.mxu0 %v2112
    %2171 = vmatpush1.msra.mxu0 %v2111
    %2172 = vmatprep.subr.mxu0 %v2116
    %2173 = vmatpush1.msra.mxu0 %v2115
    %2174 = vmatprep.subr.mxu0 %v2120
    %2175 = vmatpush1.msra.mxu0 %v2119
    %2176 = vmatprep.subr.mxu0 %v2124
    %2177 = vmatpush1.msra.mxu0 %v2123
    %2178 = vmatprep.subr.mxu0 %v2128
    %2179 = vmatpush1.msra.mxu0 %v2127
    %2180 = vmatprep.subr.mxu0 %v2132
    %2181 = vmatpush1.msra.mxu0 %v2131
    %2182 = vmatprep.subr.mxu0 %v2136
    %2183 = vmatpush1.msra.mxu0 %v2135
    %2184 = vmatprep.subr.mxu0 %v2140
    %2185 = vmatpush1.msra.mxu0 %v2139
    %2186 = vmatprep.subr.mxu0 %v2144
    %2187 = vmatpush1.msra.mxu0 %v2143
    %2188 = vmatprep.subr.mxu0 %v2148
    %2189 = vmatpush1.msra.mxu0 %v2147
    %2190 = vmatprep.subr.mxu0 %v2152
    %2191 = vmatpush1.msra.mxu0 %v2151
    %2192 = vmatprep.subr.mxu0 %v2156
    %2193 = vmatpush1.msra.mxu0 %v2155
    %2194 = vmatprep.subr.mxu0 0.0
    %2195 = vmatpush1.msra.mxu0 0.0
    %2196 = vmatprep.subr.mxu0 0.0
    %2197 = vmatpush1.msra.mxu0 0.0
    %2198 = vmatprep.subr.mxu0 0.0
    %2199 = vmatpush1.msra.mxu0 0.0
    %2200 = vmatprep.subr.mxu0 0.0
    %2201 = vmatpush1.msra.mxu0 0.0
    %2202 = vmatprep.subr.mxu0 0.0
    %2203 = vmatpush1.msra.mxu0 0.0
    %2204 = vmatprep.subr.mxu0 0.0
    %2205 = vmatpush1.msra.mxu0 0.0
    %2206 = vmatprep.subr.mxu0 0.0
    %2207 = vmatpush1.msra.mxu0 0.0
    %2208 = vmatprep.subr.mxu0 0.0
    %2209 = vmatpush1.msra.mxu0 0.0
    %2210 = vmatprep.subr.mxu0 0.0
    %2211 = vmatpush1.msra.mxu0 0.0
    %2212 = vmatprep.subr.mxu0 0.0
    %2213 = vmatpush1.msra.mxu0 0.0
    %2214 = vmatprep.subr.mxu0 0.0
    %2215 = vmatpush1.msra.mxu0 0.0
    %2216 = vmatprep.subr.mxu0 0.0
    %2217 = vmatpush1.msra.mxu0 0.0
    %2218 = vmatprep.subr.mxu0 0.0
    %2219 = vmatpush1.msra.mxu0 0.0
    %2220 = vmatprep.subr.mxu0 0.0
    %2221 = vmatpush1.msra.mxu0 0.0
    %2222 = vmatprep.subr.mxu0 0.0
    %2223 = vmatpush1.msra.mxu0 0.0
    %2224 = vmatprep.subr.mxu0 0.0
    %2225 = vmatpush1.msra.mxu0 0.0
    %2226 = vmatprep.mubr.f32.mxu0 0.0
    %2227 = vmatmul.mubr.f32.gmra.mrb[0].mxu0 %v2160
    %v2228 = vpop.f32.mrb[0].mxu0
    %v2229 = vadd.f32 0.0, %v2228
    %v2230 = vpop.f32.mrb[0].mxu0
    %v2231 = vadd.f32 0.0, %v2230
    %2232 = vdwg.mxu0
    %2233 = vmatprep.subr.mxu0 %v2098
    %2234 = vmatpush1.msra.mxu0 %v2097
    %2235 = vmatprep.subr.mxu0 %v2102
    %2236 = vmatpush1.msra.mxu0 %v2101
    %2237 = vmatprep.subr.mxu0 %v2106
    %2238 = vmatpush1.msra.mxu0 %v2105
    %2239 = vmatprep.subr.mxu0 %v2110
    %2240 = vmatpush1.msra.mxu0 %v2109
    %2241 = vmatprep.subr.mxu0 %v2114
    %2242 = vmatpush1.msra.mxu0 %v2113
    %2243 = vmatprep.subr.mxu0 %v2118
    %2244 = vmatpush1.msra.mxu0 %v2117
    %2245 = vmatprep.subr.mxu0 %v2122
    %2246 = vmatpush1.msra.mxu0 %v2121
    %2247 = vmatprep.subr.mxu0 %v2126
    %2248 = vmatpush1.msra.mxu0 %v2125
    %2249 = vmatprep.subr.mxu0 %v2130
    %2250 = vmatpush1.msra.mxu0 %v2129
    %2251 = vmatprep.subr.mxu0 %v2134
    %2252 = vmatpush1.msra.mxu0 %v2133
    %2253 = vmatprep.subr.mxu0 %v2138
    %2254 = vmatpush1.msra.mxu0 %v2137
    %2255 = vmatprep.subr.mxu0 %v2142
    %2256 = vmatpush1.msra.mxu0 %v2141
    %2257 = vmatprep.subr.mxu0 %v2146
    %2258 = vmatpush1.msra.mxu0 %v2145
    %2259 = vmatprep.subr.mxu0 %v2150
    %2260 = vmatpush1.msra.mxu0 %v2149
    %2261 = vmatprep.subr.mxu0 %v2154
    %2262 = vmatpush1.msra.mxu0 %v2153
    %2263 = vmatprep.subr.mxu0 %v2158
    %2264 = vmatpush1.msra.mxu0 %v2157
    %2265 = vmatprep.subr.mxu0 0.0
    %2266 = vmatpush1.msra.mxu0 0.0
    %2267 = vmatprep.subr.mxu0 0.0
    %2268 = vmatpush1.msra.mxu0 0.0
    %2269 = vmatprep.subr.mxu0 0.0
    %2270 = vmatpush1.msra.mxu0 0.0
    %2271 = vmatprep.subr.mxu0 0.0
    %2272 = vmatpush1.msra.mxu0 0.0
    %2273 = vmatprep.subr.mxu0 0.0
    %2274 = vmatpush1.msra.mxu0 0.0
    %2275 = vmatprep.subr.mxu0 0.0
    %2276 = vmatpush1.msra.mxu0 0.0
    %2277 = vmatprep.subr.mxu0 0.0
    %2278 = vmatpush1.msra.mxu0 0.0
    %2279 = vmatprep.subr.mxu0 0.0
    %2280 = vmatpush1.msra.mxu0 0.0
    %2281 = vmatprep.subr.mxu0 0.0
    %2282 = vmatpush1.msra.mxu0 0.0
    %2283 = vmatprep.subr.mxu0 0.0
    %2284 = vmatpush1.msra.mxu0 0.0
    %2285 = vmatprep.subr.mxu0 0.0
    %2286 = vmatpush1.msra.mxu0 0.0
    %2287 = vmatprep.subr.mxu0 0.0
    %2288 = vmatpush1.msra.mxu0 0.0
    %2289 = vmatprep.subr.mxu0 0.0
    %2290 = vmatpush1.msra.mxu0 0.0
    %2291 = vmatprep.subr.mxu0 0.0
    %2292 = vmatpush1.msra.mxu0 0.0
    %2293 = vmatprep.subr.mxu0 0.0
    %2294 = vmatpush1.msra.mxu0 0.0
    %2295 = vmatprep.subr.mxu0 0.0
    %2296 = vmatpush1.msra.mxu0 0.0
    %2297 = vmatprep.mubr.f32.mxu0 0.0
    %2298 = vmatmul.mubr.f32.gmra.mrb[0].mxu0 %v2160
    %v2299 = vpop.f32.mrb[0].mxu0
    %v2300 = vadd.f32 0.0, %v2299
    %v2301 = vpop.f32.mrb[0].mxu0
    %v2302 = vadd.f32 0.0, %v2301
    %2303 = vdwg.mxu0
    %v2304 = vadd.f32 %v134, %v2229
    %v2305 = vadd.f32 %v135, %v2231
    %v2306 = vadd.f32 %v136, %v2300
    %v2307 = vadd.f32 %v137, %v2302
    %v2308 = vmul.f32 %v2304, 0.5
    %v2309 = vmul.f32 %v2305, 0.5
    %v2310 = vmul.f32 %v2306, 0.5
    %v2311 = vtanh.pop %v2308
    %v2312 = vtanh.pop %v2309
    %v2313 = vtanh.pop %v2310
    %v2314 = vmul.f32 %v2311, 0.5
    %v2315 = vmul.f32 %v2312, 0.5
    %v2316 = vmul.f32 %v2313, 0.5
    %v2317 = vadd.f32 %v2314, 0.5
    %v2318 = vadd.f32 %v2315, 0.5
    %v2319 = vadd.f32 %v2316, 0.5
    %v2320 = vtanh.pop %v2307
    %v2322 = vrot.slane %v2091, 7
    %v2324 = vmul.f32 %v2318, %v2322
    %v2325 = vmul.f32 %v2317, %v2320
    %v2326 = vadd.f32 %v2324, %v2325
    %v2327 = vtanh.pop %v2326
    %v2328 = vmul.f32 %v2319, %v2327
    %2329 = vst [vmem:[#allocation3 + $0x1] sm:$0x1] %v2328
    %v2330 = vld [vmem:[#allocation7] sm:$0xff]
    %v2331 = vld [vmem:[#allocation7 + $0x8] sm:$0xff]
    %v2332 = vld [vmem:[#allocation7 + $0x10] sm:$0xff]
    %v2333 = vld [vmem:[#allocation7 + $0x18] sm:$0xff]
    %v2334 = vld [vmem:[#allocation7 + $0x20] sm:$0xff]
    %v2335 = vld [vmem:[#allocation7 + $0x28] sm:$0xff]
    %v2336 = vld [vmem:[#allocation7 + $0x30] sm:$0xff]
    %v2337 = vld [vmem:[#allocation7 + $0x38] sm:$0xff]
    %v2338 = vld [vmem:[#allocation7 + $0x40] sm:$0xff]
    %v2339 = vld [vmem:[#allocation7 + $0x48] sm:$0xff]
    %v2340 = vld [vmem:[#allocation7 + $0x50] sm:$0xff]
    %v2341 = vld [vmem:[#allocation7 + $0x58] sm:$0xff]
    %v2342 = vld [vmem:[#allocation7 + $0x60] sm:$0xff]
    %v2343 = vld [vmem:[#allocation7 + $0x68] sm:$0xff]
    %v2344 = vld [vmem:[#allocation7 + $0x70] sm:$0xff]
    %v2345 = vld [vmem:[#allocation7 + $0x78] sm:$0xff]
    %v2346 = vld [vmem:[#allocation7 + $0x80] sm:$0xff]
    %v2347 = vld [vmem:[#allocation7 + $0x88] sm:$0xff]
    %v2348 = vld [vmem:[#allocation7 + $0x90] sm:$0xff]
    %v2349 = vld [vmem:[#allocation7 + $0x98] sm:$0xff]
    %v2350 = vld [vmem:[#allocation7 + $0xa0] sm:$0xff]
    %v2351 = vld [vmem:[#allocation7 + $0xa8] sm:$0xff]
    %v2352 = vld [vmem:[#allocation7 + $0xb0] sm:$0xff]
    %v2353 = vld [vmem:[#allocation7 + $0xb8] sm:$0xff]
    %v2354 = vld [vmem:[#allocation7 + $0xc0] sm:$0xff]
    %v2355 = vld [vmem:[#allocation7 + $0xc8] sm:$0xff]
    %v2356 = vld [vmem:[#allocation7 + $0xd0] sm:$0xff]
    %v2357 = vld [vmem:[#allocation7 + $0xd8] sm:$0xff]
    %v2358 = vld [vmem:[#allocation7 + $0xe0] sm:$0xff]
    %v2359 = vld [vmem:[#allocation7 + $0xe8] sm:$0xff]
    %v2360 = vld [vmem:[#allocation7 + $0xf0] sm:$0xff]
    %v2361 = vld [vmem:[#allocation7 + $0xf8] sm:$0xff]
    %v2362 = vld [vmem:[#allocation7 + $0x100] sm:$0xff]
    %v2363 = vld [vmem:[#allocation7 + $0x108] sm:$0xff]
    %v2364 = vld [vmem:[#allocation7 + $0x110] sm:$0xff]
    %v2365 = vld [vmem:[#allocation7 + $0x118] sm:$0xff]
    %v2366 = vld [vmem:[#allocation7 + $0x120] sm:$0xff]
    %v2367 = vld [vmem:[#allocation7 + $0x128] sm:$0xff]
    %v2368 = vld [vmem:[#allocation7 + $0x130] sm:$0xff]
    %v2369 = vld [vmem:[#allocation7 + $0x138] sm:$0xff]
    %v2370 = vld [vmem:[#allocation7 + $0x140] sm:$0xff]
    %v2371 = vld [vmem:[#allocation7 + $0x148] sm:$0xff]
    %v2372 = vld [vmem:[#allocation7 + $0x150] sm:$0xff]
    %v2373 = vld [vmem:[#allocation7 + $0x158] sm:$0xff]
    %v2374 = vld [vmem:[#allocation7 + $0x160] sm:$0xff]
    %v2375 = vld [vmem:[#allocation7 + $0x168] sm:$0xff]
    %v2376 = vld [vmem:[#allocation7 + $0x170] sm:$0xff]
    %v2377 = vld [vmem:[#allocation7 + $0x178] sm:$0xff]
    %v2378 = vld [vmem:[#allocation7 + $0x180] sm:$0xff]
    %v2379 = vld [vmem:[#allocation7 + $0x188] sm:$0xff]
    %v2380 = vld [vmem:[#allocation7 + $0x190] sm:$0xff]
    %v2381 = vld [vmem:[#allocation7 + $0x198] sm:$0xff]
    %v2382 = vld [vmem:[#allocation7 + $0x1a0] sm:$0xff]
    %v2383 = vld [vmem:[#allocation7 + $0x1a8] sm:$0xff]
    %v2384 = vld [vmem:[#allocation7 + $0x1b0] sm:$0xff]
    %v2385 = vld [vmem:[#allocation7 + $0x1b8] sm:$0xff]
    %v2386 = vld [vmem:[#allocation7 + $0x1c0] sm:$0xff]
    %v2387 = vld [vmem:[#allocation7 + $0x1c8] sm:$0xff]
    %v2388 = vld [vmem:[#allocation7 + $0x1d0] sm:$0xff]
    %v2389 = vld [vmem:[#allocation7 + $0x1d8] sm:$0xff]
    %v2390 = vld [vmem:[#allocation7 + $0x1e0] sm:$0xff]
    %v2391 = vld [vmem:[#allocation7 + $0x1e8] sm:$0xff]
    %v2392 = vld [vmem:[#allocation7 + $0x1f0] sm:$0xff]
    %v2393 = vld [vmem:[#allocation7 + $0x1f8] sm:$0xff]
    %2394 = vmatprep.subr.mxu0 %v2331
    %2395 = vmatpush1.msra.mxu0 %v2330
    %2396 = vmatprep.subr.mxu0 %v2335
    %2397 = vmatpush1.msra.mxu0 %v2334
    %2398 = vmatprep.subr.mxu0 %v2339
    %2399 = vmatpush1.msra.mxu0 %v2338
    %2400 = vmatprep.subr.mxu0 %v2343
    %2401 = vmatpush1.msra.mxu0 %v2342
    %2402 = vmatprep.subr.mxu0 %v2347
    %2403 = vmatpush1.msra.mxu0 %v2346
    %2404 = vmatprep.subr.mxu0 %v2351
    %2405 = vmatpush1.msra.mxu0 %v2350
    %2406 = vmatprep.subr.mxu0 %v2355
    %2407 = vmatpush1.msra.mxu0 %v2354
    %2408 = vmatprep.subr.mxu0 %v2359
    %2409 = vmatpush1.msra.mxu0 %v2358
    %2410 = vmatprep.subr.mxu0 %v2363
    %2411 = vmatpush1.msra.mxu0 %v2362
    %2412 = vmatprep.subr.mxu0 %v2367
    %2413 = vmatpush1.msra.mxu0 %v2366
    %2414 = vmatprep.subr.mxu0 %v2371
    %2415 = vmatpush1.msra.mxu0 %v2370
    %2416 = vmatprep.subr.mxu0 %v2375
    %2417 = vmatpush1.msra.mxu0 %v2374
    %2418 = vmatprep.subr.mxu0 %v2379
    %2419 = vmatpush1.msra.mxu0 %v2378
    %2420 = vmatprep.subr.mxu0 %v2383
    %2421 = vmatpush1.msra.mxu0 %v2382
    %2422 = vmatprep.subr.mxu0 %v2387
    %2423 = vmatpush1.msra.mxu0 %v2386
    %2424 = vmatprep.subr.mxu0 %v2391
    %2425 = vmatpush1.msra.mxu0 %v2390
    %2426 = vmatprep.subr.mxu0 0.0
    %2427 = vmatpush1.msra.mxu0 0.0
    %2428 = vmatprep.subr.mxu0 0.0
    %2429 = vmatpush1.msra.mxu0 0.0
    %2430 = vmatprep.subr.mxu0 0.0
    %2431 = vmatpush1.msra.mxu0 0.0
    %2432 = vmatprep.subr.mxu0 0.0
    %2433 = vmatpush1.msra.mxu0 0.0
    %2434 = vmatprep.subr.mxu0 0.0
    %2435 = vmatpush1.msra.mxu0 0.0
    %2436 = vmatprep.subr.mxu0 0.0
    %2437 = vmatpush1.msra.mxu0 0.0
    %2438 = vmatprep.subr.mxu0 0.0
    %2439 = vmatpush1.msra.mxu0 0.0
    %2440 = vmatprep.subr.mxu0 0.0
    %2441 = vmatpush1.msra.mxu0 0.0
    %2442 = vmatprep.subr.mxu0 0.0
    %2443 = vmatpush1.msra.mxu0 0.0
    %2444 = vmatprep.subr.mxu0 0.0
    %2445 = vmatpush1.msra.mxu0 0.0
    %2446 = vmatprep.subr.mxu0 0.0
    %2447 = vmatpush1.msra.mxu0 0.0
    %2448 = vmatprep.subr.mxu0 0.0
    %2449 = vmatpush1.msra.mxu0 0.0
    %2450 = vmatprep.subr.mxu0 0.0
    %2451 = vmatpush1.msra.mxu0 0.0
    %2452 = vmatprep.subr.mxu0 0.0
    %2453 = vmatpush1.msra.mxu0 0.0
    %2454 = vmatprep.subr.mxu0 0.0
    %2455 = vmatpush1.msra.mxu0 0.0
    %2456 = vmatprep.subr.mxu0 0.0
    %2457 = vmatpush1.msra.mxu0 0.0
    %2458 = vmatprep.mubr.f32.mxu0 0.0
    %2459 = vmatmul.mubr.f32.gmra.mrb[0].mxu0 %v2328
    %v2460 = vpop.f32.mrb[0].mxu0
    %v2461 = vadd.f32 0.0, %v2460
    %v2462 = vpop.f32.mrb[0].mxu0
    %v2463 = vadd.f32 0.0, %v2462
    %2464 = vdwg.mxu0
    %2465 = vmatprep.subr.mxu0 %v2333
    %2466 = vmatpush1.msra.mxu0 %v2332
    %2467 = vmatprep.subr.mxu0 %v2337
    %2468 = vmatpush1.msra.mxu0 %v2336
    %2469 = vmatprep.subr.mxu0 %v2341
    %2470 = vmatpush1.msra.mxu0 %v2340
    %2471 = vmatprep.subr.mxu0 %v2345
    %2472 = vmatpush1.msra.mxu0 %v2344
    %2473 = vmatprep.subr.mxu0 %v2349
    %2474 = vmatpush1.msra.mxu0 %v2348
    %2475 = vmatprep.subr.mxu0 %v2353
    %2476 = vmatpush1.msra.mxu0 %v2352
    %2477 = vmatprep.subr.mxu0 %v2357
    %2478 = vmatpush1.msra.mxu0 %v2356
    %2479 = vmatprep.subr.mxu0 %v2361
    %2480 = vmatpush1.msra.mxu0 %v2360
    %2481 = vmatprep.subr.mxu0 %v2365
    %2482 = vmatpush1.msra.mxu0 %v2364
    %2483 = vmatprep.subr.mxu0 %v2369
    %2484 = vmatpush1.msra.mxu0 %v2368
    %2485 = vmatprep.subr.mxu0 %v2373
    %2486 = vmatpush1.msra.mxu0 %v2372
    %2487 = vmatprep.subr.mxu0 %v2377
    %2488 = vmatpush1.msra.mxu0 %v2376
    %2489 = vmatprep.subr.mxu0 %v2381
    %2490 = vmatpush1.msra.mxu0 %v2380
    %2491 = vmatprep.subr.mxu0 %v2385
    %2492 = vmatpush1.msra.mxu0 %v2384
    %2493 = vmatprep.subr.mxu0 %v2389
    %2494 = vmatpush1.msra.mxu0 %v2388
    %2495 = vmatprep.subr.mxu0 %v2393
    %2496 = vmatpush1.msra.mxu0 %v2392
    %2497 = vmatprep.subr.mxu0 0.0
    %2498 = vmatpush1.msra.mxu0 0.0
    %2499 = vmatprep.subr.mxu0 0.0
    %2500 = vmatpush1.msra.mxu0 0.0
    %2501 = vmatprep.subr.mxu0 0.0
    %2502 = vmatpush1.msra.mxu0 0.0
    %2503 = vmatprep.subr.mxu0 0.0
    %2504 = vmatpush1.msra.mxu0 0.0
    %2505 = vmatprep.subr.mxu0 0.0
    %2506 = vmatpush1.msra.mxu0 0.0
    %2507 = vmatprep.subr.mxu0 0.0
    %2508 = vmatpush1.msra.mxu0 0.0
    %2509 = vmatprep.subr.mxu0 0.0
    %2510 = vmatpush1.msra.mxu0 0.0
    %2511 = vmatprep.subr.mxu0 0.0
    %2512 = vmatpush1.msra.mxu0 0.0
    %2513 = vmatprep.subr.mxu0 0.0
    %2514 = vmatpush1.msra.mxu0 0.0
    %2515 = vmatprep.subr.mxu0 0.0
    %2516 = vmatpush1.msra.mxu0 0.0
    %2517 = vmatprep.subr.mxu0 0.0
    %2518 = vmatpush1.msra.mxu0 0.0
    %2519 = vmatprep.subr.mxu0 0.0
    %2520 = vmatpush1.msra.mxu0 0.0
    %2521 = vmatprep.subr.mxu0 0.0
    %2522 = vmatpush1.msra.mxu0 0.0
    %2523 = vmatprep.subr.mxu0 0.0
    %2524 = vmatpush1.msra.mxu0 0.0
    %2525 = vmatprep.subr.mxu0 0.0
    %2526 = vmatpush1.msra.mxu0 0.0
    %2527 = vmatprep.subr.mxu0 0.0
    %2528 = vmatpush1.msra.mxu0 0.0
    %2529 = vmatprep.mubr.f32.mxu0 0.0
    %2530 = vmatmul.mubr.f32.gmra.mrb[0].mxu0 %v2328
    %v2531 = vpop.f32.mrb[0].mxu0
    %v2532 = vadd.f32 0.0, %v2531
    %v2533 = vpop.f32.mrb[0].mxu0
    %v2534 = vadd.f32 0.0, %v2533
    %2535 = vdwg.mxu0
    %v2540 = vrot.slane %v2461, 7
    %v2541 = vrot.slane %v2463, 7
    %v2542 = vrot.slane %v2532, 7
    %v2543 = vrot.slane %v2534, 7
    %v2548 = vadd.f32 %v134, %v2540
    %v2549 = vadd.f32 %v135, %v2541
    %v2550 = vadd.f32 %v136, %v2542
    %v2551 = vadd.f32 %v137, %v2543
    %v2552 = vmul.f32 %v2548, 0.5
    %v2553 = vmul.f32 %v2549, 0.5
    %v2554 = vmul.f32 %v2550, 0.5
    %v2555 = vtanh.pop %v2552
    %v2556 = vtanh.pop %v2553
    %v2557 = vtanh.pop %v2554
    %v2558 = vmul.f32 %v2555, 0.5
    %v2559 = vmul.f32 %v2556, 0.5
    %v2560 = vmul.f32 %v2557, 0.5
    %v2561 = vadd.f32 %v2558, 0.5
    %v2562 = vadd.f32 %v2559, 0.5
    %v2563 = vadd.f32 %v2560, 0.5
    %v2564 = vtanh.pop %v2551
    %v2566 = vrot.slane %v2326, 7
    %v2568 = vmul.f32 %v2562, %v2566
    %v2569 = vmul.f32 %v2561, %v2564
    %v2570 = vadd.f32 %v2568, %v2569
    %v2571 = vtanh.pop %v2570
    %v2572 = vmul.f32 %v2563, %v2571
    %2573 = vst [vmem:[#allocation3 + $0x2] sm:$0x2] %v2572
    %v2574 = vld [vmem:[#allocation7] sm:$0xff]
    %v2575 = vld [vmem:[#allocation7 + $0x8] sm:$0xff]
    %v2576 = vld [vmem:[#allocation7 + $0x10] sm:$0xff]
    %v2577 = vld [vmem:[#allocation7 + $0x18] sm:$0xff]
    %v2578 = vld [vmem:[#allocation7 + $0x20] sm:$0xff]
    %v2579 = vld [vmem:[#allocation7 + $0x28] sm:$0xff]
    %v2580 = vld [vmem:[#allocation7 + $0x30] sm:$0xff]
    %v2581 = vld [vmem:[#allocation7 + $0x38] sm:$0xff]
    %v2582 = vld [vmem:[#allocation7 + $0x40] sm:$0xff]
    %v2583 = vld [vmem:[#allocation7 + $0x48] sm:$0xff]
    %v2584 = vld [vmem:[#allocation7 + $0x50] sm:$0xff]
    %v2585 = vld [vmem:[#allocation7 + $0x58] sm:$0xff]
    %v2586 = vld [vmem:[#allocation7 + $0x60] sm:$0xff]
    %v2587 = vld [vmem:[#allocation7 + $0x68] sm:$0xff]
    %v2588 = vld [vmem:[#allocation7 + $0x70] sm:$0xff]
    %v2589 = vld [vmem:[#allocation7 + $0x78] sm:$0xff]
    %v2590 = vld [vmem:[#allocation7 + $0x80] sm:$0xff]
    %v2591 = vld [vmem:[#allocation7 + $0x88] sm:$0xff]
    %v2592 = vld [vmem:[#allocation7 + $0x90] sm:$0xff]
    %v2593 = vld [vmem:[#allocation7 + $0x98] sm:$0xff]
    %v2594 = vld [vmem:[#allocation7 + $0xa0] sm:$0xff]
    %v2595 = vld [vmem:[#allocation7 + $0xa8] sm:$0xff]
    %v2596 = vld [vmem:[#allocation7 + $0xb0] sm:$0xff]
    %v2597 = vld [vmem:[#allocation7 + $0xb8] sm:$0xff]
    %v2598 = vld [vmem:[#allocation7 + $0xc0] sm:$0xff]
    %v2599 = vld [vmem:[#allocation7 + $0xc8] sm:$0xff]
    %v2600 = vld [vmem:[#allocation7 + $0xd0] sm:$0xff]
    %v2601 = vld [vmem:[#allocation7 + $0xd8] sm:$0xff]
    %v2602 = vld [vmem:[#allocation7 + $0xe0] sm:$0xff]
    %v2603 = vld [vmem:[#allocation7 + $0xe8] sm:$0xff]
    %v2604 = vld [vmem:[#allocation7 + $0xf0] sm:$0xff]
    %v2605 = vld [vmem:[#allocation7 + $0xf8] sm:$0xff]
    %v2606 = vld [vmem:[#allocation7 + $0x100] sm:$0xff]
    %v2607 = vld [vmem:[#allocation7 + $0x108] sm:$0xff]
    %v2608 = vld [vmem:[#allocation7 + $0x110] sm:$0xff]
    %v2609 = vld [vmem:[#allocation7 + $0x118] sm:$0xff]
    %v2610 = vld [vmem:[#allocation7 + $0x120] sm:$0xff]
    %v2611 = vld [vmem:[#allocation7 + $0x128] sm:$0xff]
    %v2612 = vld [vmem:[#allocation7 + $0x130] sm:$0xff]
    %v2613 = vld [vmem:[#allocation7 + $0x138] sm:$0xff]
    %v2614 = vld [vmem:[#allocation7 + $0x140] sm:$0xff]
    %v2615 = vld [vmem:[#allocation7 + $0x148] sm:$0xff]
    %v2616 = vld [vmem:[#allocation7 + $0x150] sm:$0xff]
    %v2617 = vld [vmem:[#allocation7 + $0x158] sm:$0xff]
    %v2618 = vld [vmem:[#allocation7 + $0x160] sm:$0xff]
    %v2619 = vld [vmem:[#allocation7 + $0x168] sm:$0xff]
    %v2620 = vld [vmem:[#allocation7 + $0x170] sm:$0xff]
    %v2621 = vld [vmem:[#allocation7 + $0x178] sm:$0xff]
    %v2622 = vld [vmem:[#allocation7 + $0x180] sm:$0xff]
    %v2623 = vld [vmem:[#allocation7 + $0x188] sm:$0xff]
    %v2624 = vld [vmem:[#allocation7 + $0x190] sm:$0xff]
    %v2625 = vld [vmem:[#allocation7 + $0x198] sm:$0xff]
    %v2626 = vld [vmem:[#allocation7 + $0x1a0] sm:$0xff]
    %v2627 = vld [vmem:[#allocation7 + $0x1a8] sm:$0xff]
    %v2628 = vld [vmem:[#allocation7 + $0x1b0] sm:$0xff]
    %v2629 = vld [vmem:[#allocation7 + $0x1b8] sm:$0xff]
    %v2630 = vld [vmem:[#allocation7 + $0x1c0] sm:$0xff]
    %v2631 = vld [vmem:[#allocation7 + $0x1c8] sm:$0xff]
    %v2632 = vld [vmem:[#allocation7 + $0x1d0] sm:$0xff]
    %v2633 = vld [vmem:[#allocation7 + $0x1d8] sm:$0xff]
    %v2634 = vld [vmem:[#allocation7 + $0x1e0] sm:$0xff]
    %v2635 = vld [vmem:[#allocation7 + $0x1e8] sm:$0xff]
    %v2636 = vld [vmem:[#allocation7 + $0x1f0] sm:$0xff]
    %v2637 = vld [vmem:[#allocation7 + $0x1f8] sm:$0xff]
    %v2639 = vrot.slane %v2572, 1
    %2641 = vmatprep.subr.mxu0 %v2575
    %2642 = vmatpush1.msra.mxu0 %v2574
    %2643 = vmatprep.subr.mxu0 %v2579
    %2644 = vmatpush1.msra.mxu0 %v2578
    %2645 = vmatprep.subr.mxu0 %v2583
    %2646 = vmatpush1.msra.mxu0 %v2582
    %2647 = vmatprep.subr.mxu0 %v2587
    %2648 = vmatpush1.msra.mxu0 %v2586
    %2649 = vmatprep.subr.mxu0 %v2591
    %2650 = vmatpush1.msra.mxu0 %v2590
    %2651 = vmatprep.subr.mxu0 %v2595
    %2652 = vmatpush1.msra.mxu0 %v2594
    %2653 = vmatprep.subr.mxu0 %v2599
    %2654 = vmatpush1.msra.mxu0 %v2598
    %2655 = vmatprep.subr.mxu0 %v2603
    %2656 = vmatpush1.msra.mxu0 %v2602
    %2657 = vmatprep.subr.mxu0 %v2607
    %2658 = vmatpush1.msra.mxu0 %v2606
    %2659 = vmatprep.subr.mxu0 %v2611
    %2660 = vmatpush1.msra.mxu0 %v2610
    %2661 = vmatprep.subr.mxu0 %v2615
    %2662 = vmatpush1.msra.mxu0 %v2614
    %2663 = vmatprep.subr.mxu0 %v2619
    %2664 = vmatpush1.msra.mxu0 %v2618
    %2665 = vmatprep.subr.mxu0 %v2623
    %2666 = vmatpush1.msra.mxu0 %v2622
    %2667 = vmatprep.subr.mxu0 %v2627
    %2668 = vmatpush1.msra.mxu0 %v2626
    %2669 = vmatprep.subr.mxu0 %v2631
    %2670 = vmatpush1.msra.mxu0 %v2630
    %2671 = vmatprep.subr.mxu0 %v2635
    %2672 = vmatpush1.msra.mxu0 %v2634
    %2673 = vmatprep.subr.mxu0 0.0
    %2674 = vmatpush1.msra.mxu0 0.0
    %2675 = vmatprep.subr.mxu0 0.0
    %2676 = vmatpush1.msra.mxu0 0.0
    %2677 = vmatprep.subr.mxu0 0.0
    %2678 = vmatpush1.msra.mxu0 0.0
    %2679 = vmatprep.subr.mxu0 0.0
    %2680 = vmatpush1.msra.mxu0 0.0
    %2681 = vmatprep.subr.mxu0 0.0
    %2682 = vmatpush1.msra.mxu0 0.0
    %2683 = vmatprep.subr.mxu0 0.0
    %2684 = vmatpush1.msra.mxu0 0.0
    %2685 = vmatprep.subr.mxu0 0.0
    %2686 = vmatpush1.msra.mxu0 0.0
    %2687 = vmatprep.subr.mxu0 0.0
    %2688 = vmatpush1.msra.mxu0 0.0
    %2689 = vmatprep.subr.mxu0 0.0
    %2690 = vmatpush1.msra.mxu0 0.0
    %2691 = vmatprep.subr.mxu0 0.0
    %2692 = vmatpush1.msra.mxu0 0.0
    %2693 = vmatprep.subr.mxu0 0.0
    %2694 = vmatpush1.msra.mxu0 0.0
    %2695 = vmatprep.subr.mxu0 0.0
    %2696 = vmatpush1.msra.mxu0 0.0
    %2697 = vmatprep.subr.mxu0 0.0
    %2698 = vmatpush1.msra.mxu0 0.0
    %2699 = vmatprep.subr.mxu0 0.0
    %2700 = vmatpush1.msra.mxu0 0.0
    %2701 = vmatprep.subr.mxu0 0.0
    %2702 = vmatpush1.msra.mxu0 0.0
    %2703 = vmatprep.subr.mxu0 0.0
    %2704 = vmatpush1.msra.mxu0 0.0
    %2705 = vmatprep.mubr.f32.mxu0 0.0
    %2706 = vmatmul.mubr.f32.gmra.mrb[0].mxu0 %v2639
    %v2707 = vpop.f32.mrb[0].mxu0
    %v2708 = vadd.f32 0.0, %v2707
    %v2709 = vpop.f32.mrb[0].mxu0
    %v2710 = vadd.f32 0.0, %v2709
    %2711 = vdwg.mxu0
    %2712 = vmatprep.subr.mxu0 %v2577
    %2713 = vmatpush1.msra.mxu0 %v2576
    %2714 = vmatprep.subr.mxu0 %v2581
    %2715 = vmatpush1.msra.mxu0 %v2580
    %2716 = vmatprep.subr.mxu0 %v2585
    %2717 = vmatpush1.msra.mxu0 %v2584
    %2718 = vmatprep.subr.mxu0 %v2589
    %2719 = vmatpush1.msra.mxu0 %v2588
    %2720 = vmatprep.subr.mxu0 %v2593
    %2721 = vmatpush1.msra.mxu0 %v2592
    %2722 = vmatprep.subr.mxu0 %v2597
    %2723 = vmatpush1.msra.mxu0 %v2596
    %2724 = vmatprep.subr.mxu0 %v2601
    %2725 = vmatpush1.msra.mxu0 %v2600
    %2726 = vmatprep.subr.mxu0 %v2605
    %2727 = vmatpush1.msra.mxu0 %v2604
    %2728 = vmatprep.subr.mxu0 %v2609
    %2729 = vmatpush1.msra.mxu0 %v2608
    %2730 = vmatprep.subr.mxu0 %v2613
    %2731 = vmatpush1.msra.mxu0 %v2612
    %2732 = vmatprep.subr.mxu0 %v2617
    %2733 = vmatpush1.msra.mxu0 %v2616
    %2734 = vmatprep.subr.mxu0 %v2621
    %2735 = vmatpush1.msra.mxu0 %v2620
    %2736 = vmatprep.subr.mxu0 %v2625
    %2737 = vmatpush1.msra.mxu0 %v2624
    %2738 = vmatprep.subr.mxu0 %v2629
    %2739 = vmatpush1.msra.mxu0 %v2628
    %2740 = vmatprep.subr.mxu0 %v2633
    %2741 = vmatpush1.msra.mxu0 %v2632
    %2742 = vmatprep.subr.mxu0 %v2637
    %2743 = vmatpush1.msra.mxu0 %v2636
    %2744 = vmatprep.subr.mxu0 0.0
    %2745 = vmatpush1.msra.mxu0 0.0
    %2746 = vmatprep.subr.mxu0 0.0
    %2747 = vmatpush1.msra.mxu0 0.0
    %2748 = vmatprep.subr.mxu0 0.0
    %2749 = vmatpush1.msra.mxu0 0.0
    %2750 = vmatprep.subr.mxu0 0.0
    %2751 = vmatpush1.msra.mxu0 0.0
    %2752 = vmatprep.subr.mxu0 0.0
    %2753 = vmatpush1.msra.mxu0 0.0
    %2754 = vmatprep.subr.mxu0 0.0
    %2755 = vmatpush1.msra.mxu0 0.0
    %2756 = vmatprep.subr.mxu0 0.0
    %2757 = vmatpush1.msra.mxu0 0.0
    %2758 = vmatprep.subr.mxu0 0.0
    %2759 = vmatpush1.msra.mxu0 0.0
    %2760 = vmatprep.subr.mxu0 0.0
    %2761 = vmatpush1.msra.mxu0 0.0
    %2762 = vmatprep.subr.mxu0 0.0
    %2763 = vmatpush1.msra.mxu0 0.0
    %2764 = vmatprep.subr.mxu0 0.0
    %2765 = vmatpush1.msra.mxu0 0.0
    %2766 = vmatprep.subr.mxu0 0.0
    %2767 = vmatpush1.msra.mxu0 0.0
    %2768 = vmatprep.subr.mxu0 0.0
    %2769 = vmatpush1.msra.mxu0 0.0
    %2770 = vmatprep.subr.mxu0 0.0
    %2771 = vmatpush1.msra.mxu0 0.0
    %2772 = vmatprep.subr.mxu0 0.0
    %2773 = vmatpush1.msra.mxu0 0.0
    %2774 = vmatprep.subr.mxu0 0.0
    %2775 = vmatpush1.msra.mxu0 0.0
    %2776 = vmatprep.mubr.f32.mxu0 0.0
    %2777 = vmatmul.mubr.f32.gmra.mrb[0].mxu0 %v2639
    %v2778 = vpop.f32.mrb[0].mxu0
    %v2779 = vadd.f32 0.0, %v2778
    %v2780 = vpop.f32.mrb[0].mxu0
    %v2781 = vadd.f32 0.0, %v2780
    %2782 = vdwg.mxu0
    %v2787 = vrot.slane %v2708, 6
    %v2788 = vrot.slane %v2710, 6
    %v2789 = vrot.slane %v2779, 6
    %v2790 = vrot.slane %v2781, 6
    %v2795 = vadd.f32 %v134, %v2787
    %v2796 = vadd.f32 %v135, %v2788
    %v2797 = vadd.f32 %v136, %v2789
    %v2798 = vadd.f32 %v137, %v2790
    %v2799 = vmul.f32 %v2795, 0.5
    %v2800 = vmul.f32 %v2796, 0.5
    %v2801 = vmul.f32 %v2797, 0.5
    %v2802 = vtanh.pop %v2799
    %v2803 = vtanh.pop %v2800
    %v2804 = vtanh.pop %v2801
    %v2805 = vmul.f32 %v2802, 0.5
    %v2806 = vmul.f32 %v2803, 0.5
    %v2807 = vmul.f32 %v2804, 0.5
    %v2808 = vadd.f32 %v2805, 0.5
    %v2809 = vadd.f32 %v2806, 0.5
    %v2810 = vadd.f32 %v2807, 0.5
    %v2811 = vtanh.pop %v2798
    %v2813 = vrot.slane %v2570, 7
    %v2815 = vmul.f32 %v2809, %v2813
    %v2816 = vmul.f32 %v2808, %v2811
    %v2817 = vadd.f32 %v2815, %v2816
    %v2818 = vtanh.pop %v2817
    %v2819 = vmul.f32 %v2810, %v2818
    %2820 = vst [vmem:[#allocation3 + $0x3] sm:$0x4] %v2819
    %v2821 = vld [vmem:[#allocation7] sm:$0xff]
    %v2822 = vld [vmem:[#allocation7 + $0x8] sm:$0xff]
    %v2823 = vld [vmem:[#allocation7 + $0x10] sm:$0xff]
    %v2824 = vld [vmem:[#allocation7 + $0x18] sm:$0xff]
    %v2825 = vld [vmem:[#allocation7 + $0x20] sm:$0xff]
    %v2826 = vld [vmem:[#allocation7 + $0x28] sm:$0xff]
    %v2827 = vld [vmem:[#allocation7 + $0x30] sm:$0xff]
    %v2828 = vld [vmem:[#allocation7 + $0x38] sm:$0xff]
    %v2829 = vld [vmem:[#allocation7 + $0x40] sm:$0xff]
    %v2830 = vld [vmem:[#allocation7 + $0x48] sm:$0xff]
    %v2831 = vld [vmem:[#allocation7 + $0x50] sm:$0xff]
    %v2832 = vld [vmem:[#allocation7 + $0x58] sm:$0xff]
    %v2833 = vld [vmem:[#allocation7 + $0x60] sm:$0xff]
    %v2834 = vld [vmem:[#allocation7 + $0x68] sm:$0xff]
    %v2835 = vld [vmem:[#allocation7 + $0x70] sm:$0xff]
    %v2836 = vld [vmem:[#allocation7 + $0x78] sm:$0xff]
    %v2837 = vld [vmem:[#allocation7 + $0x80] sm:$0xff]
    %v2838 = vld [vmem:[#allocation7 + $0x88] sm:$0xff]
    %v2839 = vld [vmem:[#allocation7 + $0x90] sm:$0xff]
    %v2840 = vld [vmem:[#allocation7 + $0x98] sm:$0xff]
    %v2841 = vld [vmem:[#allocation7 + $0xa0] sm:$0xff]
    %v2842 = vld [vmem:[#allocation7 + $0xa8] sm:$0xff]
    %v2843 = vld [vmem:[#allocation7 + $0xb0] sm:$0xff]
    %v2844 = vld [vmem:[#allocation7 + $0xb8] sm:$0xff]
    %v2845 = vld [vmem:[#allocation7 + $0xc0] sm:$0xff]
    %v2846 = vld [vmem:[#allocation7 + $0xc8] sm:$0xff]
    %v2847 = vld [vmem:[#allocation7 + $0xd0] sm:$0xff]
    %v2848 = vld [vmem:[#allocation7 + $0xd8] sm:$0xff]
    %v2849 = vld [vmem:[#allocation7 + $0xe0] sm:$0xff]
    %v2850 = vld [vmem:[#allocation7 + $0xe8] sm:$0xff]
    %v2851 = vld [vmem:[#allocation7 + $0xf0] sm:$0xff]
    %v2852 = vld [vmem:[#allocation7 + $0xf8] sm:$0xff]
    %v2853 = vld [vmem:[#allocation7 + $0x100] sm:$0xff]
    %v2854 = vld [vmem:[#allocation7 + $0x108] sm:$0xff]
    %v2855 = vld [vmem:[#allocation7 + $0x110] sm:$0xff]
    %v2856 = vld [vmem:[#allocation7 + $0x118] sm:$0xff]
    %v2857 = vld [vmem:[#allocation7 + $0x120] sm:$0xff]
    %v2858 = vld [vmem:[#allocation7 + $0x128] sm:$0xff]
    %v2859 = vld [vmem:[#allocation7 + $0x130] sm:$0xff]
    %v2860 = vld [vmem:[#allocation7 + $0x138] sm:$0xff]
    %v2861 = vld [vmem:[#allocation7 + $0x140] sm:$0xff]
    %v2862 = vld [vmem:[#allocation7 + $0x148] sm:$0xff]
    %v2863 = vld [vmem:[#allocation7 + $0x150] sm:$0xff]
    %v2864 = vld [vmem:[#allocation7 + $0x158] sm:$0xff]
    %v2865 = vld [vmem:[#allocation7 + $0x160] sm:$0xff]
    %v2866 = vld [vmem:[#allocation7 + $0x168] sm:$0xff]
    %v2867 = vld [vmem:[#allocation7 + $0x170] sm:$0xff]
    %v2868 = vld [vmem:[#allocation7 + $0x178] sm:$0xff]
    %v2869 = vld [vmem:[#allocation7 + $0x180] sm:$0xff]
    %v2870 = vld [vmem:[#allocation7 + $0x188] sm:$0xff]
    %v2871 = vld [vmem:[#allocation7 + $0x190] sm:$0xff]
    %v2872 = vld [vmem:[#allocation7 + $0x198] sm:$0xff]
    %v2873 = vld [vmem:[#allocation7 + $0x1a0] sm:$0xff]
    %v2874 = vld [vmem:[#allocation7 + $0x1a8] sm:$0xff]
    %v2875 = vld [vmem:[#allocation7 + $0x1b0] sm:$0xff]
    %v2876 = vld [vmem:[#allocation7 + $0x1b8] sm:$0xff]
    %v2877 = vld [vmem:[#allocation7 + $0x1c0] sm:$0xff]
    %v2878 = vld [vmem:[#allocation7 + $0x1c8] sm:$0xff]
    %v2879 = vld [vmem:[#allocation7 + $0x1d0] sm:$0xff]
    %v2880 = vld [vmem:[#allocation7 + $0x1d8] sm:$0xff]
    %v2881 = vld [vmem:[#allocation7 + $0x1e0] sm:$0xff]
    %v2882 = vld [vmem:[#allocation7 + $0x1e8] sm:$0xff]
    %v2883 = vld [vmem:[#allocation7 + $0x1f0] sm:$0xff]
    %v2884 = vld [vmem:[#allocation7 + $0x1f8] sm:$0xff]
    %v2886 = vrot.slane %v2819, 2
    %2888 = vmatprep.subr.mxu0 %v2822
    %2889 = vmatpush1.msra.mxu0 %v2821
    %2890 = vmatprep.subr.mxu0 %v2826
    %2891 = vmatpush1.msra.mxu0 %v2825
    %2892 = vmatprep.subr.mxu0 %v2830
    %2893 = vmatpush1.msra.mxu0 %v2829
    %2894 = vmatprep.subr.mxu0 %v2834
    %2895 = vmatpush1.msra.mxu0 %v2833
    %2896 = vmatprep.subr.mxu0 %v2838
    %2897 = vmatpush1.msra.mxu0 %v2837
    %2898 = vmatprep.subr.mxu0 %v2842
    %2899 = vmatpush1.msra.mxu0 %v2841
    %2900 = vmatprep.subr.mxu0 %v2846
    %2901 = vmatpush1.msra.mxu0 %v2845
    %2902 = vmatprep.subr.mxu0 %v2850
    %2903 = vmatpush1.msra.mxu0 %v2849
    %2904 = vmatprep.subr.mxu0 %v2854
    %2905 = vmatpush1.msra.mxu0 %v2853
    %2906 = vmatprep.subr.mxu0 %v2858
    %2907 = vmatpush1.msra.mxu0 %v2857
    %2908 = vmatprep.subr.mxu0 %v2862
    %2909 = vmatpush1.msra.mxu0 %v2861
    %2910 = vmatprep.subr.mxu0 %v2866
    %2911 = vmatpush1.msra.mxu0 %v2865
    %2912 = vmatprep.subr.mxu0 %v2870
    %2913 = vmatpush1.msra.mxu0 %v2869
    %2914 = vmatprep.subr.mxu0 %v2874
    %2915 = vmatpush1.msra.mxu0 %v2873
    %2916 = vmatprep.subr.mxu0 %v2878
    %2917 = vmatpush1.msra.mxu0 %v2877
    %2918 = vmatprep.subr.mxu0 %v2882
    %2919 = vmatpush1.msra.mxu0 %v2881
    %2920 = vmatprep.subr.mxu0 0.0
    %2921 = vmatpush1.msra.mxu0 0.0
    %2922 = vmatprep.subr.mxu0 0.0
    %2923 = vmatpush1.msra.mxu0 0.0
    %2924 = vmatprep.subr.mxu0 0.0
    %2925 = vmatpush1.msra.mxu0 0.0
    %2926 = vmatprep.subr.mxu0 0.0
    %2927 = vmatpush1.msra.mxu0 0.0
    %2928 = vmatprep.subr.mxu0 0.0
    %2929 = vmatpush1.msra.mxu0 0.0
    %2930 = vmatprep.subr.mxu0 0.0
    %2931 = vmatpush1.msra.mxu0 0.0
    %2932 = vmatprep.subr.mxu0 0.0
    %2933 = vmatpush1.msra.mxu0 0.0
    %2934 = vmatprep.subr.mxu0 0.0
    %2935 = vmatpush1.msra.mxu0 0.0
    %2936 = vmatprep.subr.mxu0 0.0
    %2937 = vmatpush1.msra.mxu0 0.0
    %2938 = vmatprep.subr.mxu0 0.0
    %2939 = vmatpush1.msra.mxu0 0.0
    %2940 = vmatprep.subr.mxu0 0.0
    %2941 = vmatpush1.msra.mxu0 0.0
    %2942 = vmatprep.subr.mxu0 0.0
    %2943 = vmatpush1.msra.mxu0 0.0
    %2944 = vmatprep.subr.mxu0 0.0
    %2945 = vmatpush1.msra.mxu0 0.0
    %2946 = vmatprep.subr.mxu0 0.0
    %2947 = vmatpush1.msra.mxu0 0.0
    %2948 = vmatprep.subr.mxu0 0.0
    %2949 = vmatpush1.msra.mxu0 0.0
    %2950 = vmatprep.subr.mxu0 0.0
    %2951 = vmatpush1.msra.mxu0 0.0
    %2952 = vmatprep.mubr.f32.mxu0 0.0
    %2953 = vmatmul.mubr.f32.gmra.mrb[0].mxu0 %v2886
    %v2954 = vpop.f32.mrb[0].mxu0
    %v2955 = vadd.f32 0.0, %v2954
    %v2956 = vpop.f32.mrb[0].mxu0
    %v2957 = vadd.f32 0.0, %v2956
    %2958 = vdwg.mxu0
    %2959 = vmatprep.subr.mxu0 %v2824
    %2960 = vmatpush1.msra.mxu0 %v2823
    %2961 = vmatprep.subr.mxu0 %v2828
    %2962 = vmatpush1.msra.mxu0 %v2827
    %2963 = vmatprep.subr.mxu0 %v2832
    %2964 = vmatpush1.msra.mxu0 %v2831
    %2965 = vmatprep.subr.mxu0 %v2836
    %2966 = vmatpush1.msra.mxu0 %v2835
    %2967 = vmatprep.subr.mxu0 %v2840
    %2968 = vmatpush1.msra.mxu0 %v2839
    %2969 = vmatprep.subr.mxu0 %v2844
    %2970 = vmatpush1.msra.mxu0 %v2843
    %2971 = vmatprep.subr.mxu0 %v2848
    %2972 = vmatpush1.msra.mxu0 %v2847
    %2973 = vmatprep.subr.mxu0 %v2852
    %2974 = vmatpush1.msra.mxu0 %v2851
    %2975 = vmatprep.subr.mxu0 %v2856
    %2976 = vmatpush1.msra.mxu0 %v2855
    %2977 = vmatprep.subr.mxu0 %v2860
    %2978 = vmatpush1.msra.mxu0 %v2859
    %2979 = vmatprep.subr.mxu0 %v2864
    %2980 = vmatpush1.msra.mxu0 %v2863
    %2981 = vmatprep.subr.mxu0 %v2868
    %2982 = vmatpush1.msra.mxu0 %v2867
    %2983 = vmatprep.subr.mxu0 %v2872
    %2984 = vmatpush1.msra.mxu0 %v2871
    %2985 = vmatprep.subr.mxu0 %v2876
    %2986 = vmatpush1.msra.mxu0 %v2875
    %2987 = vmatprep.subr.mxu0 %v2880
    %2988 = vmatpush1.msra.mxu0 %v2879
    %2989 = vmatprep.subr.mxu0 %v2884
    %2990 = vmatpush1.msra.mxu0 %v2883
    %2991 = vmatprep.subr.mxu0 0.0
    %2992 = vmatpush1.msra.mxu0 0.0
    %2993 = vmatprep.subr.mxu0 0.0
    %2994 = vmatpush1.msra.mxu0 0.0
    %2995 = vmatprep.subr.mxu0 0.0
    %2996 = vmatpush1.msra.mxu0 0.0
    %2997 = vmatprep.subr.mxu0 0.0
    %2998 = vmatpush1.msra.mxu0 0.0
    %2999 = vmatprep.subr.mxu0 0.0
    %3000 = vmatpush1.msra.mxu0 0.0
    %3001 = vmatprep.subr.mxu0 0.0
    %3002 = vmatpush1.msra.mxu0 0.0
    %3003 = vmatprep.subr.mxu0 0.0
    %3004 = vmatpush1.msra.mxu0 0.0
    %3005 = vmatprep.subr.mxu0 0.0
    %3006 = vmatpush1.msra.mxu0 0.0
    %3007 = vmatprep.subr.mxu0 0.0
    %3008 = vmatpush1.msra.mxu0 0.0
    %3009 = vmatprep.subr.mxu0 0.0
    %3010 = vmatpush1.msra.mxu0 0.0
    %3011 = vmatprep.subr.mxu0 0.0
    %3012 = vmatpush1.msra.mxu0 0.0
    %3013 = vmatprep.subr.mxu0 0.0
    %3014 = vmatpush1.msra.mxu0 0.0
    %3015 = vmatprep.subr.mxu0 0.0
    %3016 = vmatpush1.msra.mxu0 0.0
    %3017 = vmatprep.subr.mxu0 0.0
    %3018 = vmatpush1.msra.mxu0 0.0
    %3019 = vmatprep.subr.mxu0 0.0
    %3020 = vmatpush1.msra.mxu0 0.0
    %3021 = vmatprep.subr.mxu0 0.0
    %3022 = vmatpush1.msra.mxu0 0.0
    %3023 = vmatprep.mubr.f32.mxu0 0.0
    %3024 = vmatmul.mubr.f32.gmra.mrb[0].mxu0 %v2886
    %v3025 = vpop.f32.mrb[0].mxu0
    %v3026 = vadd.f32 0.0, %v3025
    %v3027 = vpop.f32.mrb[0].mxu0
    %v3028 = vadd.f32 0.0, %v3027
    %3029 = vdwg.mxu0
    %v3034 = vrot.slane %v2955, 5
    %v3035 = vrot.slane %v2957, 5
    %v3036 = vrot.slane %v3026, 5
    %v3037 = vrot.slane %v3028, 5
    %v3042 = vadd.f32 %v134, %v3034
    %v3043 = vadd.f32 %v135, %v3035
    %v3044 = vadd.f32 %v136, %v3036
    %v3045 = vadd.f32 %v137, %v3037
    %v3046 = vmul.f32 %v3042, 0.5
    %v3047 = vmul.f32 %v3043, 0.5
    %v3048 = vmul.f32 %v3044, 0.5
    %v3049 = vtanh.pop %v3046
    %v3050 = vtanh.pop %v3047
    %v3051 = vtanh.pop %v3048
    %v3052 = vmul.f32 %v3049, 0.5
    %v3053 = vmul.f32 %v3050, 0.5
    %v3054 = vmul.f32 %v3051, 0.5
    %v3055 = vadd.f32 %v3052, 0.5
    %v3056 = vadd.f32 %v3053, 0.5
    %v3057 = vadd.f32 %v3054, 0.5
    %v3058 = vtanh.pop %v3045
    %v3060 = vrot.slane %v2817, 7
    %v3062 = vmul.f32 %v3056, %v3060
    %v3063 = vmul.f32 %v3055, %v3058
    %v3064 = vadd.f32 %v3062, %v3063
    %v3065 = vtanh.pop %v3064
    %v3066 = vmul.f32 %v3057, %v3065
    %3067 = vst [vmem:[#allocation3 + $0x4] sm:$0x8] %v3066
    %v3068 = vld [vmem:[#allocation7] sm:$0xff]
    %v3069 = vld [vmem:[#allocation7 + $0x8] sm:$0xff]
    %v3070 = vld [vmem:[#allocation7 + $0x10] sm:$0xff]
    %v3071 = vld [vmem:[#allocation7 + $0x18] sm:$0xff]
    %v3072 = vld [vmem:[#allocation7 + $0x20] sm:$0xff]
    %v3073 = vld [vmem:[#allocation7 + $0x28] sm:$0xff]
    %v3074 = vld [vmem:[#allocation7 + $0x30] sm:$0xff]
    %v3075 = vld [vmem:[#allocation7 + $0x38] sm:$0xff]
    %v3076 = vld [vmem:[#allocation7 + $0x40] sm:$0xff]
    %v3077 = vld [vmem:[#allocation7 + $0x48] sm:$0xff]
    %v3078 = vld [vmem:[#allocation7 + $0x50] sm:$0xff]
    %v3079 = vld [vmem:[#allocation7 + $0x58] sm:$0xff]
    %v3080 = vld [vmem:[#allocation7 + $0x60] sm:$0xff]
    %v3081 = vld [vmem:[#allocation7 + $0x68] sm:$0xff]
    %v3082 = vld [vmem:[#allocation7 + $0x70] sm:$0xff]
    %v3083 = vld [vmem:[#allocation7 + $0x78] sm:$0xff]
    %v3084 = vld [vmem:[#allocation7 + $0x80] sm:$0xff]
    %v3085 = vld [vmem:[#allocation7 + $0x88] sm:$0xff]
    %v3086 = vld [vmem:[#allocation7 + $0x90] sm:$0xff]
    %v3087 = vld [vmem:[#allocation7 + $0x98] sm:$0xff]
    %v3088 = vld [vmem:[#allocation7 + $0xa0] sm:$0xff]
    %v3089 = vld [vmem:[#allocation7 + $0xa8] sm:$0xff]
    %v3090 = vld [vmem:[#allocation7 + $0xb0] sm:$0xff]
    %v3091 = vld [vmem:[#allocation7 + $0xb8] sm:$0xff]
    %v3092 = vld [vmem:[#allocation7 + $0xc0] sm:$0xff]
    %v3093 = vld [vmem:[#allocation7 + $0xc8] sm:$0xff]
    %v3094 = vld [vmem:[#allocation7 + $0xd0] sm:$0xff]
    %v3095 = vld [vmem:[#allocation7 + $0xd8] sm:$0xff]
    %v3096 = vld [vmem:[#allocation7 + $0xe0] sm:$0xff]
    %v3097 = vld [vmem:[#allocation7 + $0xe8] sm:$0xff]
    %v3098 = vld [vmem:[#allocation7 + $0xf0] sm:$0xff]
    %v3099 = vld [vmem:[#allocation7 + $0xf8] sm:$0xff]
    %v3100 = vld [vmem:[#allocation7 + $0x100] sm:$0xff]
    %v3101 = vld [vmem:[#allocation7 + $0x108] sm:$0xff]
    %v3102 = vld [vmem:[#allocation7 + $0x110] sm:$0xff]
    %v3103 = vld [vmem:[#allocation7 + $0x118] sm:$0xff]
    %v3104 = vld [vmem:[#allocation7 + $0x120] sm:$0xff]
    %v3105 = vld [vmem:[#allocation7 + $0x128] sm:$0xff]
    %v3106 = vld [vmem:[#allocation7 + $0x130] sm:$0xff]
    %v3107 = vld [vmem:[#allocation7 + $0x138] sm:$0xff]
    %v3108 = vld [vmem:[#allocation7 + $0x140] sm:$0xff]
    %v3109 = vld [vmem:[#allocation7 + $0x148] sm:$0xff]
    %v3110 = vld [vmem:[#allocation7 + $0x150] sm:$0xff]
    %v3111 = vld [vmem:[#allocation7 + $0x158] sm:$0xff]
    %v3112 = vld [vmem:[#allocation7 + $0x160] sm:$0xff]
    %v3113 = vld [vmem:[#allocation7 + $0x168] sm:$0xff]
    %v3114 = vld [vmem:[#allocation7 + $0x170] sm:$0xff]
    %v3115 = vld [vmem:[#allocation7 + $0x178] sm:$0xff]
    %v3116 = vld [vmem:[#allocation7 + $0x180] sm:$0xff]
    %v3117 = vld [vmem:[#allocation7 + $0x188] sm:$0xff]
    %v3118 = vld [vmem:[#allocation7 + $0x190] sm:$0xff]
    %v3119 = vld [vmem:[#allocation7 + $0x198] sm:$0xff]
    %v3120 = vld [vmem:[#allocation7 + $0x1a0] sm:$0xff]
    %v3121 = vld [vmem:[#allocation7 + $0x1a8] sm:$0xff]
    %v3122 = vld [vmem:[#allocation7 + $0x1b0] sm:$0xff]
    %v3123 = vld [vmem:[#allocation7 + $0x1b8] sm:$0xff]
    %v3124 = vld [vmem:[#allocation7 + $0x1c0] sm:$0xff]
    %v3125 = vld [vmem:[#allocation7 + $0x1c8] sm:$0xff]
    %v3126 = vld [vmem:[#allocation7 + $0x1d0] sm:$0xff]
    %v3127 = vld [vmem:[#allocation7 + $0x1d8] sm:$0xff]
    %v3128 = vld [vmem:[#allocation7 + $0x1e0] sm:$0xff]
    %v3129 = vld [vmem:[#allocation7 + $0x1e8] sm:$0xff]
    %v3130 = vld [vmem:[#allocation7 + $0x1f0] sm:$0xff]
    %v3131 = vld [vmem:[#allocation7 + $0x1f8] sm:$0xff]
    %v3133 = vrot.slane %v3066, 3
    %3135 = vmatprep.subr.mxu0 %v3069
    %3136 = vmatpush1.msra.mxu0 %v3068
    %3137 = vmatprep.subr.mxu0 %v3073
    %3138 = vmatpush1.msra.mxu0 %v3072
    %3139 = vmatprep.subr.mxu0 %v3077
    %3140 = vmatpush1.msra.mxu0 %v3076
    %3141 = vmatprep.subr.mxu0 %v3081
    %3142 = vmatpush1.msra.mxu0 %v3080
    %3143 = vmatprep.subr.mxu0 %v3085
    %3144 = vmatpush1.msra.mxu0 %v3084
    %3145 = vmatprep.subr.mxu0 %v3089
    %3146 = vmatpush1.msra.mxu0 %v3088
    %3147 = vmatprep.subr.mxu0 %v3093
    %3148 = vmatpush1.msra.mxu0 %v3092
    %3149 = vmatprep.subr.mxu0 %v3097
    %3150 = vmatpush1.msra.mxu0 %v3096
    %3151 = vmatprep.subr.mxu0 %v3101
    %3152 = vmatpush1.msra.mxu0 %v3100
    %3153 = vmatprep.subr.mxu0 %v3105
    %3154 = vmatpush1.msra.mxu0 %v3104
    %3155 = vmatprep.subr.mxu0 %v3109
    %3156 = vmatpush1.msra.mxu0 %v3108
    %3157 = vmatprep.subr.mxu0 %v3113
    %3158 = vmatpush1.msra.mxu0 %v3112
    %3159 = vmatprep.subr.mxu0 %v3117
    %3160 = vmatpush1.msra.mxu0 %v3116
    %3161 = vmatprep.subr.mxu0 %v3121
    %3162 = vmatpush1.msra.mxu0 %v3120
    %3163 = vmatprep.subr.mxu0 %v3125
    %3164 = vmatpush1.msra.mxu0 %v3124
    %3165 = vmatprep.subr.mxu0 %v3129
    %3166 = vmatpush1.msra.mxu0 %v3128
    %3167 = vmatprep.subr.mxu0 0.0
    %3168 = vmatpush1.msra.mxu0 0.0
    %3169 = vmatprep.subr.mxu0 0.0
    %3170 = vmatpush1.msra.mxu0 0.0
    %3171 = vmatprep.subr.mxu0 0.0
    %3172 = vmatpush1.msra.mxu0 0.0
    %3173 = vmatprep.subr.mxu0 0.0
    %3174 = vmatpush1.msra.mxu0 0.0
    %3175 = vmatprep.subr.mxu0 0.0
    %3176 = vmatpush1.msra.mxu0 0.0
    %3177 = vmatprep.subr.mxu0 0.0
    %3178 = vmatpush1.msra.mxu0 0.0
    %3179 = vmatprep.subr.mxu0 0.0
    %3180 = vmatpush1.msra.mxu0 0.0
    %3181 = vmatprep.subr.mxu0 0.0
    %3182 = vmatpush1.msra.mxu0 0.0
    %3183 = vmatprep.subr.mxu0 0.0
    %3184 = vmatpush1.msra.mxu0 0.0
    %3185 = vmatprep.subr.mxu0 0.0
    %3186 = vmatpush1.msra.mxu0 0.0
    %3187 = vmatprep.subr.mxu0 0.0
    %3188 = vmatpush1.msra.mxu0 0.0
    %3189 = vmatprep.subr.mxu0 0.0
    %3190 = vmatpush1.msra.mxu0 0.0
    %3191 = vmatprep.subr.mxu0 0.0
    %3192 = vmatpush1.msra.mxu0 0.0
    %3193 = vmatprep.subr.mxu0 0.0
    %3194 = vmatpush1.msra.mxu0 0.0
    %3195 = vmatprep.subr.mxu0 0.0
    %3196 = vmatpush1.msra.mxu0 0.0
    %3197 = vmatprep.subr.mxu0 0.0
    %3198 = vmatpush1.msra.mxu0 0.0
    %3199 = vmatprep.mubr.f32.mxu0 0.0
    %3200 = vmatmul.mubr.f32.gmra.mrb[0].mxu0 %v3133
    %v3201 = vpop.f32.mrb[0].mxu0
    %v3202 = vadd.f32 0.0, %v3201
    %v3203 = vpop.f32.mrb[0].mxu0
    %v3204 = vadd.f32 0.0, %v3203
    %3205 = vdwg.mxu0
    %3206 = vmatprep.subr.mxu0 %v3071
    %3207 = vmatpush1.msra.mxu0 %v3070
    %3208 = vmatprep.subr.mxu0 %v3075
    %3209 = vmatpush1.msra.mxu0 %v3074
    %3210 = vmatprep.subr.mxu0 %v3079
    %3211 = vmatpush1.msra.mxu0 %v3078
    %3212 = vmatprep.subr.mxu0 %v3083
    %3213 = vmatpush1.msra.mxu0 %v3082
    %3214 = vmatprep.subr.mxu0 %v3087
    %3215 = vmatpush1.msra.mxu0 %v3086
    %3216 = vmatprep.subr.mxu0 %v3091
    %3217 = vmatpush1.msra.mxu0 %v3090
    %3218 = vmatprep.subr.mxu0 %v3095
    %3219 = vmatpush1.msra.mxu0 %v3094
    %3220 = vmatprep.subr.mxu0 %v3099
    %3221 = vmatpush1.msra.mxu0 %v3098
    %3222 = vmatprep.subr.mxu0 %v3103
    %3223 = vmatpush1.msra.mxu0 %v3102
    %3224 = vmatprep.subr.mxu0 %v3107
    %3225 = vmatpush1.msra.mxu0 %v3106
    %3226 = vmatprep.subr.mxu0 %v3111
    %3227 = vmatpush1.msra.mxu0 %v3110
    %3228 = vmatprep.subr.mxu0 %v3115
    %3229 = vmatpush1.msra.mxu0 %v3114
    %3230 = vmatprep.subr.mxu0 %v3119
    %3231 = vmatpush1.msra.mxu0 %v3118
    %3232 = vmatprep.subr.mxu0 %v3123
    %3233 = vmatpush1.msra.mxu0 %v3122
    %3234 = vmatprep.subr.mxu0 %v3127
    %3235 = vmatpush1.msra.mxu0 %v3126
    %3236 = vmatprep.subr.mxu0 %v3131
    %3237 = vmatpush1.msra.mxu0 %v3130
    %3238 = vmatprep.subr.mxu0 0.0
    %3239 = vmatpush1.msra.mxu0 0.0
    %3240 = vmatprep.subr.mxu0 0.0
    %3241 = vmatpush1.msra.mxu0 0.0
    %3242 = vmatprep.subr.mxu0 0.0
    %3243 = vmatpush1.msra.mxu0 0.0
    %3244 = vmatprep.subr.mxu0 0.0
    %3245 = vmatpush1.msra.mxu0 0.0
    %3246 = vmatprep.subr.mxu0 0.0
    %3247 = vmatpush1.msra.mxu0 0.0
    %3248 = vmatprep.subr.mxu0 0.0
    %3249 = vmatpush1.msra.mxu0 0.0
    %3250 = vmatprep.subr.mxu0 0.0
    %3251 = vmatpush1.msra.mxu0 0.0
    %3252 = vmatprep.subr.mxu0 0.0
    %3253 = vmatpush1.msra.mxu0 0.0
    %3254 = vmatprep.subr.mxu0 0.0
    %3255 = vmatpush1.msra.mxu0 0.0
    %3256 = vmatprep.subr.mxu0 0.0
    %3257 = vmatpush1.msra.mxu0 0.0
    %3258 = vmatprep.subr.mxu0 0.0
    %3259 = vmatpush1.msra.mxu0 0.0
    %3260 = vmatprep.subr.mxu0 0.0
    %3261 = vmatpush1.msra.mxu0 0.0
    %3262 = vmatprep.subr.mxu0 0.0
    %3263 = vmatpush1.msra.mxu0 0.0
    %3264 = vmatprep.subr.mxu0 0.0
    %3265 = vmatpush1.msra.mxu0 0.0
    %3266 = vmatprep.subr.mxu0 0.0
    %3267 = vmatpush1.msra.mxu0 0.0
    %3268 = vmatprep.subr.mxu0 0.0
    %3269 = vmatpush1.msra.mxu0 0.0
    %3270 = vmatprep.mubr.f32.mxu0 0.0
    %3271 = vmatmul.mubr.f32.gmra.mrb[0].mxu0 %v3133
    %v3272 = vpop.f32.mrb[0].mxu0
    %v3273 = vadd.f32 0.0, %v3272
    %v3274 = vpop.f32.mrb[0].mxu0
    %v3275 = vadd.f32 0.0, %v3274
    %3276 = vdwg.mxu0
    %v3281 = vrot.slane %v3202, 4
    %v3282 = vrot.slane %v3204, 4
    %v3283 = vrot.slane %v3273, 4
    %v3284 = vrot.slane %v3275, 4
    %v3289 = vadd.f32 %v134, %v3281
    %v3290 = vadd.f32 %v135, %v3282
    %v3291 = vadd.f32 %v136, %v3283
    %v3292 = vadd.f32 %v137, %v3284
    %v3293 = vmul.f32 %v3289, 0.5
    %v3294 = vmul.f32 %v3290, 0.5
    %v3295 = vmul.f32 %v3291, 0.5
    %v3296 = vtanh.pop %v3293
    %v3297 = vtanh.pop %v3294
    %v3298 = vtanh.pop %v3295
    %v3299 = vmul.f32 %v3296, 0.5
    %v3300 = vmul.f32 %v3297, 0.5
    %v3301 = vmul.f32 %v3298, 0.5
    %v3302 = vadd.f32 %v3299, 0.5
    %v3303 = vadd.f32 %v3300, 0.5
    %v3304 = vadd.f32 %v3301, 0.5
    %v3305 = vtanh.pop %v3292
    %v3307 = vrot.slane %v3064, 7
    %v3309 = vmul.f32 %v3303, %v3307
    %v3310 = vmul.f32 %v3302, %v3305
    %v3311 = vadd.f32 %v3309, %v3310
    %v3312 = vtanh.pop %v3311
    %v3313 = vmul.f32 %v3304, %v3312
    %3314 = vst [vmem:[#allocation3 + $0x5] sm:$0x10] %v3313
    %v3315 = vld [vmem:[#allocation7] sm:$0xff]
    %v3316 = vld [vmem:[#allocation7 + $0x8] sm:$0xff]
    %v3317 = vld [vmem:[#allocation7 + $0x10] sm:$0xff]
    %v3318 = vld [vmem:[#allocation7 + $0x18] sm:$0xff]
    %v3319 = vld [vmem:[#allocation7 + $0x20] sm:$0xff]
    %v3320 = vld [vmem:[#allocation7 + $0x28] sm:$0xff]
    %v3321 = vld [vmem:[#allocation7 + $0x30] sm:$0xff]
    %v3322 = vld [vmem:[#allocation7 + $0x38] sm:$0xff]
    %v3323 = vld [vmem:[#allocation7 + $0x40] sm:$0xff]
    %v3324 = vld [vmem:[#allocation7 + $0x48] sm:$0xff]
    %v3325 = vld [vmem:[#allocation7 + $0x50] sm:$0xff]
    %v3326 = vld [vmem:[#allocation7 + $0x58] sm:$0xff]
    %v3327 = vld [vmem:[#allocation7 + $0x60] sm:$0xff]
    %v3328 = vld [vmem:[#allocation7 + $0x68] sm:$0xff]
    %v3329 = vld [vmem:[#allocation7 + $0x70] sm:$0xff]
    %v3330 = vld [vmem:[#allocation7 + $0x78] sm:$0xff]
    %v3331 = vld [vmem:[#allocation7 + $0x80] sm:$0xff]
    %v3332 = vld [vmem:[#allocation7 + $0x88] sm:$0xff]
    %v3333 = vld [vmem:[#allocation7 + $0x90] sm:$0xff]
    %v3334 = vld [vmem:[#allocation7 + $0x98] sm:$0xff]
    %v3335 = vld [vmem:[#allocation7 + $0xa0] sm:$0xff]
    %v3336 = vld [vmem:[#allocation7 + $0xa8] sm:$0xff]
    %v3337 = vld [vmem:[#allocation7 + $0xb0] sm:$0xff]
    %v3338 = vld [vmem:[#allocation7 + $0xb8] sm:$0xff]
    %v3339 = vld [vmem:[#allocation7 + $0xc0] sm:$0xff]
    %v3340 = vld [vmem:[#allocation7 + $0xc8] sm:$0xff]
    %v3341 = vld [vmem:[#allocation7 + $0xd0] sm:$0xff]
    %v3342 = vld [vmem:[#allocation7 + $0xd8] sm:$0xff]
    %v3343 = vld [vmem:[#allocation7 + $0xe0] sm:$0xff]
    %v3344 = vld [vmem:[#allocation7 + $0xe8] sm:$0xff]
    %v3345 = vld [vmem:[#allocation7 + $0xf0] sm:$0xff]
    %v3346 = vld [vmem:[#allocation7 + $0xf8] sm:$0xff]
    %v3347 = vld [vmem:[#allocation7 + $0x100] sm:$0xff]
    %v3348 = vld [vmem:[#allocation7 + $0x108] sm:$0xff]
    %v3349 = vld [vmem:[#allocation7 + $0x110] sm:$0xff]
    %v3350 = vld [vmem:[#allocation7 + $0x118] sm:$0xff]
    %v3351 = vld [vmem:[#allocation7 + $0x120] sm:$0xff]
    %v3352 = vld [vmem:[#allocation7 + $0x128] sm:$0xff]
    %v3353 = vld [vmem:[#allocation7 + $0x130] sm:$0xff]
    %v3354 = vld [vmem:[#allocation7 + $0x138] sm:$0xff]
    %v3355 = vld [vmem:[#allocation7 + $0x140] sm:$0xff]
    %v3356 = vld [vmem:[#allocation7 + $0x148] sm:$0xff]
    %v3357 = vld [vmem:[#allocation7 + $0x150] sm:$0xff]
    %v3358 = vld [vmem:[#allocation7 + $0x158] sm:$0xff]
    %v3359 = vld [vmem:[#allocation7 + $0x160] sm:$0xff]
    %v3360 = vld [vmem:[#allocation7 + $0x168] sm:$0xff]
    %v3361 = vld [vmem:[#allocation7 + $0x170] sm:$0xff]
    %v3362 = vld [vmem:[#allocation7 + $0x178] sm:$0xff]
    %v3363 = vld [vmem:[#allocation7 + $0x180] sm:$0xff]
    %v3364 = vld [vmem:[#allocation7 + $0x188] sm:$0xff]
    %v3365 = vld [vmem:[#allocation7 + $0x190] sm:$0xff]
    %v3366 = vld [vmem:[#allocation7 + $0x198] sm:$0xff]
    %v3367 = vld [vmem:[#allocation7 + $0x1a0] sm:$0xff]
    %v3368 = vld [vmem:[#allocation7 + $0x1a8] sm:$0xff]
    %v3369 = vld [vmem:[#allocation7 + $0x1b0] sm:$0xff]
    %v3370 = vld [vmem:[#allocation7 + $0x1b8] sm:$0xff]
    %v3371 = vld [vmem:[#allocation7 + $0x1c0] sm:$0xff]
    %v3372 = vld [vmem:[#allocation7 + $0x1c8] sm:$0xff]
    %v3373 = vld [vmem:[#allocation7 + $0x1d0] sm:$0xff]
    %v3374 = vld [vmem:[#allocation7 + $0x1d8] sm:$0xff]
    %v3375 = vld [vmem:[#allocation7 + $0x1e0] sm:$0xff]
    %v3376 = vld [vmem:[#allocation7 + $0x1e8] sm:$0xff]
    %v3377 = vld [vmem:[#allocation7 + $0x1f0] sm:$0xff]
    %v3378 = vld [vmem:[#allocation7 + $0x1f8] sm:$0xff]
    %v3380 = vrot.slane %v3313, 4
    %3382 = vmatprep.subr.mxu0 %v3316
    %3383 = vmatpush1.msra.mxu0 %v3315
    %3384 = vmatprep.subr.mxu0 %v3320
    %3385 = vmatpush1.msra.mxu0 %v3319
    %3386 = vmatprep.subr.mxu0 %v3324
    %3387 = vmatpush1.msra.mxu0 %v3323
    %3388 = vmatprep.subr.mxu0 %v3328
    %3389 = vmatpush1.msra.mxu0 %v3327
    %3390 = vmatprep.subr.mxu0 %v3332
    %3391 = vmatpush1.msra.mxu0 %v3331
    %3392 = vmatprep.subr.mxu0 %v3336
    %3393 = vmatpush1.msra.mxu0 %v3335
    %3394 = vmatprep.subr.mxu0 %v3340
    %3395 = vmatpush1.msra.mxu0 %v3339
    %3396 = vmatprep.subr.mxu0 %v3344
    %3397 = vmatpush1.msra.mxu0 %v3343
    %3398 = vmatprep.subr.mxu0 %v3348
    %3399 = vmatpush1.msra.mxu0 %v3347
    %3400 = vmatprep.subr.mxu0 %v3352
    %3401 = vmatpush1.msra.mxu0 %v3351
    %3402 = vmatprep.subr.mxu0 %v3356
    %3403 = vmatpush1.msra.mxu0 %v3355
    %3404 = vmatprep.subr.mxu0 %v3360
    %3405 = vmatpush1.msra.mxu0 %v3359
    %3406 = vmatprep.subr.mxu0 %v3364
    %3407 = vmatpush1.msra.mxu0 %v3363
    %3408 = vmatprep.subr.mxu0 %v3368
    %3409 = vmatpush1.msra.mxu0 %v3367
    %3410 = vmatprep.subr.mxu0 %v3372
    %3411 = vmatpush1.msra.mxu0 %v3371
    %3412 = vmatprep.subr.mxu0 %v3376
    %3413 = vmatpush1.msra.mxu0 %v3375
    %3414 = vmatprep.subr.mxu0 0.0
    %3415 = vmatpush1.msra.mxu0 0.0
    %3416 = vmatprep.subr.mxu0 0.0
    %3417 = vmatpush1.msra.mxu0 0.0
    %3418 = vmatprep.subr.mxu0 0.0
    %3419 = vmatpush1.msra.mxu0 0.0
    %3420 = vmatprep.subr.mxu0 0.0
    %3421 = vmatpush1.msra.mxu0 0.0
    %3422 = vmatprep.subr.mxu0 0.0
    %3423 = vmatpush1.msra.mxu0 0.0
    %3424 = vmatprep.subr.mxu0 0.0
    %3425 = vmatpush1.msra.mxu0 0.0
    %3426 = vmatprep.subr.mxu0 0.0
    %3427 = vmatpush1.msra.mxu0 0.0
    %3428 = vmatprep.subr.mxu0 0.0
    %3429 = vmatpush1.msra.mxu0 0.0
    %3430 = vmatprep.subr.mxu0 0.0
    %3431 = vmatpush1.msra.mxu0 0.0
    %3432 = vmatprep.subr.mxu0 0.0
    %3433 = vmatpush1.msra.mxu0 0.0
    %3434 = vmatprep.subr.mxu0 0.0
    %3435 = vmatpush1.msra.mxu0 0.0
    %3436 = vmatprep.subr.mxu0 0.0
    %3437 = vmatpush1.msra.mxu0 0.0
    %3438 = vmatprep.subr.mxu0 0.0
    %3439 = vmatpush1.msra.mxu0 0.0
    %3440 = vmatprep.subr.mxu0 0.0
    %3441 = vmatpush1.msra.mxu0 0.0
    %3442 = vmatprep.subr.mxu0 0.0
    %3443 = vmatpush1.msra.mxu0 0.0
    %3444 = vmatprep.subr.mxu0 0.0
    %3445 = vmatpush1.msra.mxu0 0.0
    %3446 = vmatprep.mubr.f32.mxu0 0.0
    %3447 = vmatmul.mubr.f32.gmra.mrb[0].mxu0 %v3380
    %v3448 = vpop.f32.mrb[0].mxu0
    %v3449 = vadd.f32 0.0, %v3448
    %v3450 = vpop.f32.mrb[0].mxu0
    %v3451 = vadd.f32 0.0, %v3450
    %3452 = vdwg.mxu0
    %3453 = vmatprep.subr.mxu0 %v3318
    %3454 = vmatpush1.msra.mxu0 %v3317
    %3455 = vmatprep.subr.mxu0 %v3322
    %3456 = vmatpush1.msra.mxu0 %v3321
    %3457 = vmatprep.subr.mxu0 %v3326
    %3458 = vmatpush1.msra.mxu0 %v3325
    %3459 = vmatprep.subr.mxu0 %v3330
    %3460 = vmatpush1.msra.mxu0 %v3329
    %3461 = vmatprep.subr.mxu0 %v3334
    %3462 = vmatpush1.msra.mxu0 %v3333
    %3463 = vmatprep.subr.mxu0 %v3338
    %3464 = vmatpush1.msra.mxu0 %v3337
    %3465 = vmatprep.subr.mxu0 %v3342
    %3466 = vmatpush1.msra.mxu0 %v3341
    %3467 = vmatprep.subr.mxu0 %v3346
    %3468 = vmatpush1.msra.mxu0 %v3345
    %3469 = vmatprep.subr.mxu0 %v3350
    %3470 = vmatpush1.msra.mxu0 %v3349
    %3471 = vmatprep.subr.mxu0 %v3354
    %3472 = vmatpush1.msra.mxu0 %v3353
    %3473 = vmatprep.subr.mxu0 %v3358
    %3474 = vmatpush1.msra.mxu0 %v3357
    %3475 = vmatprep.subr.mxu0 %v3362
    %3476 = vmatpush1.msra.mxu0 %v3361
    %3477 = vmatprep.subr.mxu0 %v3366
    %3478 = vmatpush1.msra.mxu0 %v3365
    %3479 = vmatprep.subr.mxu0 %v3370
    %3480 = vmatpush1.msra.mxu0 %v3369
    %3481 = vmatprep.subr.mxu0 %v3374
    %3482 = vmatpush1.msra.mxu0 %v3373
    %3483 = vmatprep.subr.mxu0 %v3378
    %3484 = vmatpush1.msra.mxu0 %v3377
    %3485 = vmatprep.subr.mxu0 0.0
    %3486 = vmatpush1.msra.mxu0 0.0
    %3487 = vmatprep.subr.mxu0 0.0
    %3488 = vmatpush1.msra.mxu0 0.0
    %3489 = vmatprep.subr.mxu0 0.0
    %3490 = vmatpush1.msra.mxu0 0.0
    %3491 = vmatprep.subr.mxu0 0.0
    %3492 = vmatpush1.msra.mxu0 0.0
    %3493 = vmatprep.subr.mxu0 0.0
    %3494 = vmatpush1.msra.mxu0 0.0
    %3495 = vmatprep.subr.mxu0 0.0
    %3496 = vmatpush1.msra.mxu0 0.0
    %3497 = vmatprep.subr.mxu0 0.0
    %3498 = vmatpush1.msra.mxu0 0.0
    %3499 = vmatprep.subr.mxu0 0.0
    %3500 = vmatpush1.msra.mxu0 0.0
    %3501 = vmatprep.subr.mxu0 0.0
    %3502 = vmatpush1.msra.mxu0 0.0
    %3503 = vmatprep.subr.mxu0 0.0
    %3504 = vmatpush1.msra.mxu0 0.0
    %3505 = vmatprep.subr.mxu0 0.0
    %3506 = vmatpush1.msra.mxu0 0.0
    %3507 = vmatprep.subr.mxu0 0.0
    %3508 = vmatpush1.msra.mxu0 0.0
    %3509 = vmatprep.subr.mxu0 0.0
    %3510 = vmatpush1.msra.mxu0 0.0
    %3511 = vmatprep.subr.mxu0 0.0
    %3512 = vmatpush1.msra.mxu0 0.0
    %3513 = vmatprep.subr.mxu0 0.0
    %3514 = vmatpush1.msra.mxu0 0.0
    %3515 = vmatprep.subr.mxu0 0.0
    %3516 = vmatpush1.msra.mxu0 0.0
    %3517 = vmatprep.mubr.f32.mxu0 0.0
    %3518 = vmatmul.mubr.f32.gmra.mrb[0].mxu0 %v3380
    %v3519 = vpop.f32.mrb[0].mxu0
    %v3520 = vadd.f32 0.0, %v3519
    %v3521 = vpop.f32.mrb[0].mxu0
    %v3522 = vadd.f32 0.0, %v3521
    %3523 = vdwg.mxu0
    %v3528 = vrot.slane %v3449, 3
    %v3529 = vrot.slane %v3451, 3
    %v3530 = vrot.slane %v3520, 3
    %v3531 = vrot.slane %v3522, 3
    %v3536 = vadd.f32 %v134, %v3528
    %v3537 = vadd.f32 %v135, %v3529
    %v3538 = vadd.f32 %v136, %v3530
    %v3539 = vadd.f32 %v137, %v3531
    %v3540 = vmul.f32 %v3536, 0.5
    %v3541 = vmul.f32 %v3537, 0.5
    %v3542 = vmul.f32 %v3538, 0.5
    %v3543 = vtanh.pop %v3540
    %v3544 = vtanh.pop %v3541
    %v3545 = vtanh.pop %v3542
    %v3546 = vmul.f32 %v3543, 0.5
    %v3547 = vmul.f32 %v3544, 0.5
    %v3548 = vmul.f32 %v3545, 0.5
    %v3549 = vadd.f32 %v3546, 0.5
    %v3550 = vadd.f32 %v3547, 0.5
    %v3551 = vadd.f32 %v3548, 0.5
    %v3552 = vtanh.pop %v3539
    %v3554 = vrot.slane %v3311, 7
    %v3556 = vmul.f32 %v3550, %v3554
    %v3557 = vmul.f32 %v3549, %v3552
    %v3558 = vadd.f32 %v3556, %v3557
    %v3559 = vtanh.pop %v3558
    %v3560 = vmul.f32 %v3551, %v3559
    %3561 = vst [vmem:[#allocation3 + $0x6] sm:$0x20] %v3560
    %v3562 = vld [vmem:[#allocation7] sm:$0xff]
    %v3563 = vld [vmem:[#allocation7 + $0x8] sm:$0xff]
    %v3564 = vld [vmem:[#allocation7 + $0x10] sm:$0xff]
    %v3565 = vld [vmem:[#allocation7 + $0x18] sm:$0xff]
    %v3566 = vld [vmem:[#allocation7 + $0x20] sm:$0xff]
    %v3567 = vld [vmem:[#allocation7 + $0x28] sm:$0xff]
    %v3568 = vld [vmem:[#allocation7 + $0x30] sm:$0xff]
    %v3569 = vld [vmem:[#allocation7 + $0x38] sm:$0xff]
    %v3570 = vld [vmem:[#allocation7 + $0x40] sm:$0xff]
    %v3571 = vld [vmem:[#allocation7 + $0x48] sm:$0xff]
    %v3572 = vld [vmem:[#allocation7 + $0x50] sm:$0xff]
    %v3573 = vld [vmem:[#allocation7 + $0x58] sm:$0xff]
    %v3574 = vld [vmem:[#allocation7 + $0x60] sm:$0xff]
    %v3575 = vld [vmem:[#allocation7 + $0x68] sm:$0xff]
    %v3576 = vld [vmem:[#allocation7 + $0x70] sm:$0xff]
    %v3577 = vld [vmem:[#allocation7 + $0x78] sm:$0xff]
    %v3578 = vld [vmem:[#allocation7 + $0x80] sm:$0xff]
    %v3579 = vld [vmem:[#allocation7 + $0x88] sm:$0xff]
    %v3580 = vld [vmem:[#allocation7 + $0x90] sm:$0xff]
    %v3581 = vld [vmem:[#allocation7 + $0x98] sm:$0xff]
    %v3582 = vld [vmem:[#allocation7 + $0xa0] sm:$0xff]
    %v3583 = vld [vmem:[#allocation7 + $0xa8] sm:$0xff]
    %v3584 = vld [vmem:[#allocation7 + $0xb0] sm:$0xff]
    %v3585 = vld [vmem:[#allocation7 + $0xb8] sm:$0xff]
    %v3586 = vld [vmem:[#allocation7 + $0xc0] sm:$0xff]
    %v3587 = vld [vmem:[#allocation7 + $0xc8] sm:$0xff]
    %v3588 = vld [vmem:[#allocation7 + $0xd0] sm:$0xff]
    %v3589 = vld [vmem:[#allocation7 + $0xd8] sm:$0xff]
    %v3590 = vld [vmem:[#allocation7 + $0xe0] sm:$0xff]
    %v3591 = vld [vmem:[#allocation7 + $0xe8] sm:$0xff]
    %v3592 = vld [vmem:[#allocation7 + $0xf0] sm:$0xff]
    %v3593 = vld [vmem:[#allocation7 + $0xf8] sm:$0xff]
    %v3594 = vld [vmem:[#allocation7 + $0x100] sm:$0xff]
    %v3595 = vld [vmem:[#allocation7 + $0x108] sm:$0xff]
    %v3596 = vld [vmem:[#allocation7 + $0x110] sm:$0xff]
    %v3597 = vld [vmem:[#allocation7 + $0x118] sm:$0xff]
    %v3598 = vld [vmem:[#allocation7 + $0x120] sm:$0xff]
    %v3599 = vld [vmem:[#allocation7 + $0x128] sm:$0xff]
    %v3600 = vld [vmem:[#allocation7 + $0x130] sm:$0xff]
    %v3601 = vld [vmem:[#allocation7 + $0x138] sm:$0xff]
    %v3602 = vld [vmem:[#allocation7 + $0x140] sm:$0xff]
    %v3603 = vld [vmem:[#allocation7 + $0x148] sm:$0xff]
    %v3604 = vld [vmem:[#allocation7 + $0x150] sm:$0xff]
    %v3605 = vld [vmem:[#allocation7 + $0x158] sm:$0xff]
    %v3606 = vld [vmem:[#allocation7 + $0x160] sm:$0xff]
    %v3607 = vld [vmem:[#allocation7 + $0x168] sm:$0xff]
    %v3608 = vld [vmem:[#allocation7 + $0x170] sm:$0xff]
    %v3609 = vld [vmem:[#allocation7 + $0x178] sm:$0xff]
    %v3610 = vld [vmem:[#allocation7 + $0x180] sm:$0xff]
    %v3611 = vld [vmem:[#allocation7 + $0x188] sm:$0xff]
    %v3612 = vld [vmem:[#allocation7 + $0x190] sm:$0xff]
    %v3613 = vld [vmem:[#allocation7 + $0x198] sm:$0xff]
    %v3614 = vld [vmem:[#allocation7 + $0x1a0] sm:$0xff]
    %v3615 = vld [vmem:[#allocation7 + $0x1a8] sm:$0xff]
    %v3616 = vld [vmem:[#allocation7 + $0x1b0] sm:$0xff]
    %v3617 = vld [vmem:[#allocation7 + $0x1b8] sm:$0xff]
    %v3618 = vld [vmem:[#allocation7 + $0x1c0] sm:$0xff]
    %v3619 = vld [vmem:[#allocation7 + $0x1c8] sm:$0xff]
    %v3620 = vld [vmem:[#allocation7 + $0x1d0] sm:$0xff]
    %v3621 = vld [vmem:[#allocation7 + $0x1d8] sm:$0xff]
    %v3622 = vld [vmem:[#allocation7 + $0x1e0] sm:$0xff]
    %v3623 = vld [vmem:[#allocation7 + $0x1e8] sm:$0xff]
    %v3624 = vld [vmem:[#allocation7 + $0x1f0] sm:$0xff]
    %v3625 = vld [vmem:[#allocation7 + $0x1f8] sm:$0xff]
    %v3627 = vrot.slane %v3560, 5
    %3629 = vmatprep.subr.mxu0 %v3563
    %3630 = vmatpush1.msra.mxu0 %v3562
    %3631 = vmatprep.subr.mxu0 %v3567
    %3632 = vmatpush1.msra.mxu0 %v3566
    %3633 = vmatprep.subr.mxu0 %v3571
    %3634 = vmatpush1.msra.mxu0 %v3570
    %3635 = vmatprep.subr.mxu0 %v3575
    %3636 = vmatpush1.msra.mxu0 %v3574
    %3637 = vmatprep.subr.mxu0 %v3579
    %3638 = vmatpush1.msra.mxu0 %v3578
    %3639 = vmatprep.subr.mxu0 %v3583
    %3640 = vmatpush1.msra.mxu0 %v3582
    %3641 = vmatprep.subr.mxu0 %v3587
    %3642 = vmatpush1.msra.mxu0 %v3586
    %3643 = vmatprep.subr.mxu0 %v3591
    %3644 = vmatpush1.msra.mxu0 %v3590
    %3645 = vmatprep.subr.mxu0 %v3595
    %3646 = vmatpush1.msra.mxu0 %v3594
    %3647 = vmatprep.subr.mxu0 %v3599
    %3648 = vmatpush1.msra.mxu0 %v3598
    %3649 = vmatprep.subr.mxu0 %v3603
    %3650 = vmatpush1.msra.mxu0 %v3602
    %3651 = vmatprep.subr.mxu0 %v3607
    %3652 = vmatpush1.msra.mxu0 %v3606
    %3653 = vmatprep.subr.mxu0 %v3611
    %3654 = vmatpush1.msra.mxu0 %v3610
    %3655 = vmatprep.subr.mxu0 %v3615
    %3656 = vmatpush1.msra.mxu0 %v3614
    %3657 = vmatprep.subr.mxu0 %v3619
    %3658 = vmatpush1.msra.mxu0 %v3618
    %3659 = vmatprep.subr.mxu0 %v3623
    %3660 = vmatpush1.msra.mxu0 %v3622
    %3661 = vmatprep.subr.mxu0 0.0
    %3662 = vmatpush1.msra.mxu0 0.0
    %3663 = vmatprep.subr.mxu0 0.0
    %3664 = vmatpush1.msra.mxu0 0.0
    %3665 = vmatprep.subr.mxu0 0.0
    %3666 = vmatpush1.msra.mxu0 0.0
    %3667 = vmatprep.subr.mxu0 0.0
    %3668 = vmatpush1.msra.mxu0 0.0
    %3669 = vmatprep.subr.mxu0 0.0
    %3670 = vmatpush1.msra.mxu0 0.0
    %3671 = vmatprep.subr.mxu0 0.0
    %3672 = vmatpush1.msra.mxu0 0.0
    %3673 = vmatprep.subr.mxu0 0.0
    %3674 = vmatpush1.msra.mxu0 0.0
    %3675 = vmatprep.subr.mxu0 0.0
    %3676 = vmatpush1.msra.mxu0 0.0
    %3677 = vmatprep.subr.mxu0 0.0
    %3678 = vmatpush1.msra.mxu0 0.0
    %3679 = vmatprep.subr.mxu0 0.0
    %3680 = vmatpush1.msra.mxu0 0.0
    %3681 = vmatprep.subr.mxu0 0.0
    %3682 = vmatpush1.msra.mxu0 0.0
    %3683 = vmatprep.subr.mxu0 0.0
    %3684 = vmatpush1.msra.mxu0 0.0
    %3685 = vmatprep.subr.mxu0 0.0
    %3686 = vmatpush1.msra.mxu0 0.0
    %3687 = vmatprep.subr.mxu0 0.0
    %3688 = vmatpush1.msra.mxu0 0.0
    %3689 = vmatprep.subr.mxu0 0.0
    %3690 = vmatpush1.msra.mxu0 0.0
    %3691 = vmatprep.subr.mxu0 0.0
    %3692 = vmatpush1.msra.mxu0 0.0
    %3693 = vmatprep.mubr.f32.mxu0 0.0
    %3694 = vmatmul.mubr.f32.gmra.mrb[0].mxu0 %v3627
    %v3695 = vpop.f32.mrb[0].mxu0
    %v3696 = vadd.f32 0.0, %v3695
    %v3697 = vpop.f32.mrb[0].mxu0
    %v3698 = vadd.f32 0.0, %v3697
    %3699 = vdwg.mxu0
    %3700 = vmatprep.subr.mxu0 %v3565
    %3701 = vmatpush1.msra.mxu0 %v3564
    %3702 = vmatprep.subr.mxu0 %v3569
    %3703 = vmatpush1.msra.mxu0 %v3568
    %3704 = vmatprep.subr.mxu0 %v3573
    %3705 = vmatpush1.msra.mxu0 %v3572
    %3706 = vmatprep.subr.mxu0 %v3577
    %3707 = vmatpush1.msra.mxu0 %v3576
    %3708 = vmatprep.subr.mxu0 %v3581
    %3709 = vmatpush1.msra.mxu0 %v3580
    %3710 = vmatprep.subr.mxu0 %v3585
    %3711 = vmatpush1.msra.mxu0 %v3584
    %3712 = vmatprep.subr.mxu0 %v3589
    %3713 = vmatpush1.msra.mxu0 %v3588
    %3714 = vmatprep.subr.mxu0 %v3593
    %3715 = vmatpush1.msra.mxu0 %v3592
    %3716 = vmatprep.subr.mxu0 %v3597
    %3717 = vmatpush1.msra.mxu0 %v3596
    %3718 = vmatprep.subr.mxu0 %v3601
    %3719 = vmatpush1.msra.mxu0 %v3600
    %3720 = vmatprep.subr.mxu0 %v3605
    %3721 = vmatpush1.msra.mxu0 %v3604
    %3722 = vmatprep.subr.mxu0 %v3609
    %3723 = vmatpush1.msra.mxu0 %v3608
    %3724 = vmatprep.subr.mxu0 %v3613
    %3725 = vmatpush1.msra.mxu0 %v3612
    %3726 = vmatprep.subr.mxu0 %v3617
    %3727 = vmatpush1.msra.mxu0 %v3616
    %3728 = vmatprep.subr.mxu0 %v3621
    %3729 = vmatpush1.msra.mxu0 %v3620
    %3730 = vmatprep.subr.mxu0 %v3625
    %3731 = vmatpush1.msra.mxu0 %v3624
    %3732 = vmatprep.subr.mxu0 0.0
    %3733 = vmatpush1.msra.mxu0 0.0
    %3734 = vmatprep.subr.mxu0 0.0
    %3735 = vmatpush1.msra.mxu0 0.0
    %3736 = vmatprep.subr.mxu0 0.0
    %3737 = vmatpush1.msra.mxu0 0.0
    %3738 = vmatprep.subr.mxu0 0.0
    %3739 = vmatpush1.msra.mxu0 0.0
    %3740 = vmatprep.subr.mxu0 0.0
    %3741 = vmatpush1.msra.mxu0 0.0
    %3742 = vmatprep.subr.mxu0 0.0
    %3743 = vmatpush1.msra.mxu0 0.0
    %3744 = vmatprep.subr.mxu0 0.0
    %3745 = vmatpush1.msra.mxu0 0.0
    %3746 = vmatprep.subr.mxu0 0.0
    %3747 = vmatpush1.msra.mxu0 0.0
    %3748 = vmatprep.subr.mxu0 0.0
    %3749 = vmatpush1.msra.mxu0 0.0
    %3750 = vmatprep.subr.mxu0 0.0
    %3751 = vmatpush1.msra.mxu0 0.0
    %3752 = vmatprep.subr.mxu0 0.0
    %3753 = vmatpush1.msra.mxu0 0.0
    %3754 = vmatprep.subr.mxu0 0.0
    %3755 = vmatpush1.msra.mxu0 0.0
    %3756 = vmatprep.subr.mxu0 0.0
    %3757 = vmatpush1.msra.mxu0 0.0
    %3758 = vmatprep.subr.mxu0 0.0
    %3759 = vmatpush1.msra.mxu0 0.0
    %3760 = vmatprep.subr.mxu0 0.0
    %3761 = vmatpush1.msra.mxu0 0.0
    %3762 = vmatprep.subr.mxu0 0.0
    %3763 = vmatpush1.msra.mxu0 0.0
    %3764 = vmatprep.mubr.f32.mxu0 0.0
    %3765 = vmatmul.mubr.f32.gmra.mrb[0].mxu0 %v3627
    %v3766 = vpop.f32.mrb[0].mxu0
    %v3767 = vadd.f32 0.0, %v3766
    %v3768 = vpop.f32.mrb[0].mxu0
    %v3769 = vadd.f32 0.0, %v3768
    %3770 = vdwg.mxu0
    %v3775 = vrot.slane %v3696, 2
    %v3776 = vrot.slane %v3698, 2
    %v3777 = vrot.slane %v3767, 2
    %v3778 = vrot.slane %v3769, 2
    %v3783 = vadd.f32 %v134, %v3775
    %v3784 = vadd.f32 %v135, %v3776
    %v3785 = vadd.f32 %v136, %v3777
    %v3786 = vadd.f32 %v137, %v3778
    %v3787 = vmul.f32 %v3783, 0.5
    %v3788 = vmul.f32 %v3784, 0.5
    %v3789 = vmul.f32 %v3785, 0.5
    %v3790 = vtanh.pop %v3787
    %v3791 = vtanh.pop %v3788
    %v3792 = vtanh.pop %v3789
    %v3793 = vmul.f32 %v3790, 0.5
    %v3794 = vmul.f32 %v3791, 0.5
    %v3795 = vmul.f32 %v3792, 0.5
    %v3796 = vadd.f32 %v3793, 0.5
    %v3797 = vadd.f32 %v3794, 0.5
    %v3798 = vadd.f32 %v3795, 0.5
    %v3799 = vtanh.pop %v3786
    %v3801 = vrot.slane %v3558, 7
    %v3803 = vmul.f32 %v3797, %v3801
    %v3804 = vmul.f32 %v3796, %v3799
    %v3805 = vadd.f32 %v3803, %v3804
    %v3806 = vtanh.pop %v3805
    %v3807 = vmul.f32 %v3798, %v3806
    %3808 = vst [vmem:[#allocation3 + $0x7] sm:$0x40] %v3807
    %v3809 = vld [vmem:[#allocation7] sm:$0xff]
    %v3810 = vld [vmem:[#allocation7 + $0x8] sm:$0xff]
    %v3811 = vld [vmem:[#allocation7 + $0x10] sm:$0xff]
    %v3812 = vld [vmem:[#allocation7 + $0x18] sm:$0xff]
    %v3813 = vld [vmem:[#allocation7 + $0x20] sm:$0xff]
    %v3814 = vld [vmem:[#allocation7 + $0x28] sm:$0xff]
    %v3815 = vld [vmem:[#allocation7 + $0x30] sm:$0xff]
    %v3816 = vld [vmem:[#allocation7 + $0x38] sm:$0xff]
    %v3817 = vld [vmem:[#allocation7 + $0x40] sm:$0xff]
    %v3818 = vld [vmem:[#allocation7 + $0x48] sm:$0xff]
    %v3819 = vld [vmem:[#allocation7 + $0x50] sm:$0xff]
    %v3820 = vld [vmem:[#allocation7 + $0x58] sm:$0xff]
    %v3821 = vld [vmem:[#allocation7 + $0x60] sm:$0xff]
    %v3822 = vld [vmem:[#allocation7 + $0x68] sm:$0xff]
    %v3823 = vld [vmem:[#allocation7 + $0x70] sm:$0xff]
    %v3824 = vld [vmem:[#allocation7 + $0x78] sm:$0xff]
    %v3825 = vld [vmem:[#allocation7 + $0x80] sm:$0xff]
    %v3826 = vld [vmem:[#allocation7 + $0x88] sm:$0xff]
    %v3827 = vld [vmem:[#allocation7 + $0x90] sm:$0xff]
    %v3828 = vld [vmem:[#allocation7 + $0x98] sm:$0xff]
    %v3829 = vld [vmem:[#allocation7 + $0xa0] sm:$0xff]
    %v3830 = vld [vmem:[#allocation7 + $0xa8] sm:$0xff]
    %v3831 = vld [vmem:[#allocation7 + $0xb0] sm:$0xff]
    %v3832 = vld [vmem:[#allocation7 + $0xb8] sm:$0xff]
    %v3833 = vld [vmem:[#allocation7 + $0xc0] sm:$0xff]
    %v3834 = vld [vmem:[#allocation7 + $0xc8] sm:$0xff]
    %v3835 = vld [vmem:[#allocation7 + $0xd0] sm:$0xff]
    %v3836 = vld [vmem:[#allocation7 + $0xd8] sm:$0xff]
    %v3837 = vld [vmem:[#allocation7 + $0xe0] sm:$0xff]
    %v3838 = vld [vmem:[#allocation7 + $0xe8] sm:$0xff]
    %v3839 = vld [vmem:[#allocation7 + $0xf0] sm:$0xff]
    %v3840 = vld [vmem:[#allocation7 + $0xf8] sm:$0xff]
    %v3841 = vld [vmem:[#allocation7 + $0x100] sm:$0xff]
    %v3842 = vld [vmem:[#allocation7 + $0x108] sm:$0xff]
    %v3843 = vld [vmem:[#allocation7 + $0x110] sm:$0xff]
    %v3844 = vld [vmem:[#allocation7 + $0x118] sm:$0xff]
    %v3845 = vld [vmem:[#allocation7 + $0x120] sm:$0xff]
    %v3846 = vld [vmem:[#allocation7 + $0x128] sm:$0xff]
    %v3847 = vld [vmem:[#allocation7 + $0x130] sm:$0xff]
    %v3848 = vld [vmem:[#allocation7 + $0x138] sm:$0xff]
    %v3849 = vld [vmem:[#allocation7 + $0x140] sm:$0xff]
    %v3850 = vld [vmem:[#allocation7 + $0x148] sm:$0xff]
    %v3851 = vld [vmem:[#allocation7 + $0x150] sm:$0xff]
    %v3852 = vld [vmem:[#allocation7 + $0x158] sm:$0xff]
    %v3853 = vld [vmem:[#allocation7 + $0x160] sm:$0xff]
    %v3854 = vld [vmem:[#allocation7 + $0x168] sm:$0xff]
    %v3855 = vld [vmem:[#allocation7 + $0x170] sm:$0xff]
    %v3856 = vld [vmem:[#allocation7 + $0x178] sm:$0xff]
    %v3857 = vld [vmem:[#allocation7 + $0x180] sm:$0xff]
    %v3858 = vld [vmem:[#allocation7 + $0x188] sm:$0xff]
    %v3859 = vld [vmem:[#allocation7 + $0x190] sm:$0xff]
    %v3860 = vld [vmem:[#allocation7 + $0x198] sm:$0xff]
    %v3861 = vld [vmem:[#allocation7 + $0x1a0] sm:$0xff]
    %v3862 = vld [vmem:[#allocation7 + $0x1a8] sm:$0xff]
    %v3863 = vld [vmem:[#allocation7 + $0x1b0] sm:$0xff]
    %v3864 = vld [vmem:[#allocation7 + $0x1b8] sm:$0xff]
    %v3865 = vld [vmem:[#allocation7 + $0x1c0] sm:$0xff]
    %v3866 = vld [vmem:[#allocation7 + $0x1c8] sm:$0xff]
    %v3867 = vld [vmem:[#allocation7 + $0x1d0] sm:$0xff]
    %v3868 = vld [vmem:[#allocation7 + $0x1d8] sm:$0xff]
    %v3869 = vld [vmem:[#allocation7 + $0x1e0] sm:$0xff]
    %v3870 = vld [vmem:[#allocation7 + $0x1e8] sm:$0xff]
    %v3871 = vld [vmem:[#allocation7 + $0x1f0] sm:$0xff]
    %v3872 = vld [vmem:[#allocation7 + $0x1f8] sm:$0xff]
    %v3874 = vrot.slane %v3807, 6
    %3876 = vmatprep.subr.mxu0 %v3810
    %3877 = vmatpush1.msra.mxu0 %v3809
    %3878 = vmatprep.subr.mxu0 %v3814
    %3879 = vmatpush1.msra.mxu0 %v3813
    %3880 = vmatprep.subr.mxu0 %v3818
    %3881 = vmatpush1.msra.mxu0 %v3817
    %3882 = vmatprep.subr.mxu0 %v3822
    %3883 = vmatpush1.msra.mxu0 %v3821
    %3884 = vmatprep.subr.mxu0 %v3826
    %3885 = vmatpush1.msra.mxu0 %v3825
    %3886 = vmatprep.subr.mxu0 %v3830
    %3887 = vmatpush1.msra.mxu0 %v3829
    %3888 = vmatprep.subr.mxu0 %v3834
    %3889 = vmatpush1.msra.mxu0 %v3833
    %3890 = vmatprep.subr.mxu0 %v3838
    %3891 = vmatpush1.msra.mxu0 %v3837
    %3892 = vmatprep.subr.mxu0 %v3842
    %3893 = vmatpush1.msra.mxu0 %v3841
    %3894 = vmatprep.subr.mxu0 %v3846
    %3895 = vmatpush1.msra.mxu0 %v3845
    %3896 = vmatprep.subr.mxu0 %v3850
    %3897 = vmatpush1.msra.mxu0 %v3849
    %3898 = vmatprep.subr.mxu0 %v3854
    %3899 = vmatpush1.msra.mxu0 %v3853
    %3900 = vmatprep.subr.mxu0 %v3858
    %3901 = vmatpush1.msra.mxu0 %v3857
    %3902 = vmatprep.subr.mxu0 %v3862
    %3903 = vmatpush1.msra.mxu0 %v3861
    %3904 = vmatprep.subr.mxu0 %v3866
    %3905 = vmatpush1.msra.mxu0 %v3865
    %3906 = vmatprep.subr.mxu0 %v3870
    %3907 = vmatpush1.msra.mxu0 %v3869
    %3908 = vmatprep.subr.mxu0 0.0
    %3909 = vmatpush1.msra.mxu0 0.0
    %3910 = vmatprep.subr.mxu0 0.0
    %3911 = vmatpush1.msra.mxu0 0.0
    %3912 = vmatprep.subr.mxu0 0.0
    %3913 = vmatpush1.msra.mxu0 0.0
    %3914 = vmatprep.subr.mxu0 0.0
    %3915 = vmatpush1.msra.mxu0 0.0
    %3916 = vmatprep.subr.mxu0 0.0
    %3917 = vmatpush1.msra.mxu0 0.0
    %3918 = vmatprep.subr.mxu0 0.0
    %3919 = vmatpush1.msra.mxu0 0.0
    %3920 = vmatprep.subr.mxu0 0.0
    %3921 = vmatpush1.msra.mxu0 0.0
    %3922 = vmatprep.subr.mxu0 0.0
    %3923 = vmatpush1.msra.mxu0 0.0
    %3924 = vmatprep.subr.mxu0 0.0
    %3925 = vmatpush1.msra.mxu0 0.0
    %3926 = vmatprep.subr.mxu0 0.0
    %3927 = vmatpush1.msra.mxu0 0.0
    %3928 = vmatprep.subr.mxu0 0.0
    %3929 = vmatpush1.msra.mxu0 0.0
    %3930 = vmatprep.subr.mxu0 0.0
    %3931 = vmatpush1.msra.mxu0 0.0
    %3932 = vmatprep.subr.mxu0 0.0
    %3933 = vmatpush1.msra.mxu0 0.0
    %3934 = vmatprep.subr.mxu0 0.0
    %3935 = vmatpush1.msra.mxu0 0.0
    %3936 = vmatprep.subr.mxu0 0.0
    %3937 = vmatpush1.msra.mxu0 0.0
    %3938 = vmatprep.subr.mxu0 0.0
    %3939 = vmatpush1.msra.mxu0 0.0
    %3940 = vmatprep.mubr.f32.mxu0 0.0
    %3941 = vmatmul.mubr.f32.gmra.mrb[0].mxu0 %v3874
    %v3942 = vpop.f32.mrb[0].mxu0
    %v3943 = vadd.f32 0.0, %v3942
    %v3944 = vpop.f32.mrb[0].mxu0
    %v3945 = vadd.f32 0.0, %v3944
    %3946 = vdwg.mxu0
    %3947 = vmatprep.subr.mxu0 %v3812
    %3948 = vmatpush1.msra.mxu0 %v3811
    %3949 = vmatprep.subr.mxu0 %v3816
    %3950 = vmatpush1.msra.mxu0 %v3815
    %3951 = vmatprep.subr.mxu0 %v3820
    %3952 = vmatpush1.msra.mxu0 %v3819
    %3953 = vmatprep.subr.mxu0 %v3824
    %3954 = vmatpush1.msra.mxu0 %v3823
    %3955 = vmatprep.subr.mxu0 %v3828
    %3956 = vmatpush1.msra.mxu0 %v3827
    %3957 = vmatprep.subr.mxu0 %v3832
    %3958 = vmatpush1.msra.mxu0 %v3831
    %3959 = vmatprep.subr.mxu0 %v3836
    %3960 = vmatpush1.msra.mxu0 %v3835
    %3961 = vmatprep.subr.mxu0 %v3840
    %3962 = vmatpush1.msra.mxu0 %v3839
    %3963 = vmatprep.subr.mxu0 %v3844
    %3964 = vmatpush1.msra.mxu0 %v3843
    %3965 = vmatprep.subr.mxu0 %v3848
    %3966 = vmatpush1.msra.mxu0 %v3847
    %3967 = vmatprep.subr.mxu0 %v3852
    %3968 = vmatpush1.msra.mxu0 %v3851
    %3969 = vmatprep.subr.mxu0 %v3856
    %3970 = vmatpush1.msra.mxu0 %v3855
    %3971 = vmatprep.subr.mxu0 %v3860
    %3972 = vmatpush1.msra.mxu0 %v3859
    %3973 = vmatprep.subr.mxu0 %v3864
    %3974 = vmatpush1.msra.mxu0 %v3863
    %3975 = vmatprep.subr.mxu0 %v3868
    %3976 = vmatpush1.msra.mxu0 %v3867
    %3977 = vmatprep.subr.mxu0 %v3872
    %3978 = vmatpush1.msra.mxu0 %v3871
    %3979 = vmatprep.subr.mxu0 0.0
    %3980 = vmatpush1.msra.mxu0 0.0
    %3981 = vmatprep.subr.mxu0 0.0
    %3982 = vmatpush1.msra.mxu0 0.0
    %3983 = vmatprep.subr.mxu0 0.0
    %3984 = vmatpush1.msra.mxu0 0.0
    %3985 = vmatprep.subr.mxu0 0.0
    %3986 = vmatpush1.msra.mxu0 0.0
    %3987 = vmatprep.subr.mxu0 0.0
    %3988 = vmatpush1.msra.mxu0 0.0
    %3989 = vmatprep.subr.mxu0 0.0
    %3990 = vmatpush1.msra.mxu0 0.0
    %3991 = vmatprep.subr.mxu0 0.0
    %3992 = vmatpush1.msra.mxu0 0.0
    %3993 = vmatprep.subr.mxu0 0.0
    %3994 = vmatpush1.msra.mxu0 0.0
    %3995 = vmatprep.subr.mxu0 0.0
    %3996 = vmatpush1.msra.mxu0 0.0
    %3997 = vmatprep.subr.mxu0 0.0
    %3998 = vmatpush1.msra.mxu0 0.0
    %3999 = vmatprep.subr.mxu0 0.0
    %4000 = vmatpush1.msra.mxu0 0.0
    %4001 = vmatprep.subr.mxu0 0.0
    %4002 = vmatpush1.msra.mxu0 0.0
    %4003 = vmatprep.subr.mxu0 0.0
    %4004 = vmatpush1.msra.mxu0 0.0
    %4005 = vmatprep.subr.mxu0 0.0
    %4006 = vmatpush1.msra.mxu0 0.0
    %4007 = vmatprep.subr.mxu0 0.0
    %4008 = vmatpush1.msra.mxu0 0.0
    %4009 = vmatprep.subr.mxu0 0.0
    %4010 = vmatpush1.msra.mxu0 0.0
    %4011 = vmatprep.mubr.f32.mxu0 0.0
    %4012 = vmatmul.mubr.f32.gmra.mrb[0].mxu0 %v3874
    %v4013 = vpop.f32.mrb[0].mxu0
    %v4014 = vadd.f32 0.0, %v4013
    %v4015 = vpop.f32.mrb[0].mxu0
    %v4016 = vadd.f32 0.0, %v4015
    %4017 = vdwg.mxu0
    %v4022 = vrot.slane %v3943, 1
    %v4023 = vrot.slane %v3945, 1
    %v4024 = vrot.slane %v4014, 1
    %v4025 = vrot.slane %v4016, 1
    %v4030 = vadd.f32 %v134, %v4022
    %v4031 = vadd.f32 %v135, %v4023
    %v4032 = vadd.f32 %v136, %v4024
    %v4033 = vadd.f32 %v137, %v4025
    %v4034 = vmul.f32 %v4030, 0.5
    %v4035 = vmul.f32 %v4031, 0.5
    %v4036 = vmul.f32 %v4032, 0.5
    %v4037 = vtanh.pop %v4034
    %v4038 = vtanh.pop %v4035
    %v4039 = vtanh.pop %v4036
    %v4040 = vmul.f32 %v4037, 0.5
    %v4041 = vmul.f32 %v4038, 0.5
    %v4042 = vmul.f32 %v4039, 0.5
    %v4043 = vadd.f32 %v4040, 0.5
    %v4044 = vadd.f32 %v4041, 0.5
    %v4045 = vadd.f32 %v4042, 0.5
    %v4046 = vtanh.pop %v4033
    %v4048 = vrot.slane %v3805, 7
    %v4050 = vmul.f32 %v4044, %v4048
    %v4051 = vmul.f32 %v4043, %v4046
    %v4052 = vadd.f32 %v4050, %v4051
    %v4053 = vtanh.pop %v4052
    %v4054 = vmul.f32 %v4045, %v4053
    %4055 = vst [vmem:[#allocation3 + $0x8] sm:$0x80] %v4054
    %4056 = vst [vmem:[#allocation10 - $0x7] sm:$0x80] %v4054
    %4057 = vst [vmem:[#allocation11 - $0x7] sm:$0x80] %v4052
    %s4058 = smul.u32 8, 64
    %s4059 = smul.u32 %s4058, 4
    %s4060 = sshll.u32 %s4059, 4
    %4061 = dma.done [#allocation5], %s4060
    %v4062 = vld [vmem:[#allocation3] sm:$0xff]
    %v4063 = vld [vmem:[#allocation3 + $0x8] sm:$0xff]
    %v4064 = vld [vmem:[#allocation2] sm:$0xff]
    %v4065 = vld [vmem:[#allocation2 + $0x8] sm:$0xff]
    %v4066 = vld [vmem:[#allocation2 + $0x10] sm:$0xff]
    %v4067 = vld [vmem:[#allocation2 + $0x18] sm:$0xff]
    %v4068 = vld [vmem:[#allocation2 + $0x20] sm:$0xff]
    %v4069 = vld [vmem:[#allocation2 + $0x28] sm:$0xff]
    %v4070 = vld [vmem:[#allocation2 + $0x30] sm:$0xff]
    %v4071 = vld [vmem:[#allocation2 + $0x38] sm:$0xff]
    %v4072 = vld [vmem:[#allocation2 + $0x40] sm:$0xff]
    %v4073 = vld [vmem:[#allocation2 + $0x48] sm:$0xff]
    %v4074 = vld [vmem:[#allocation2 + $0x50] sm:$0xff]
    %v4075 = vld [vmem:[#allocation2 + $0x58] sm:$0xff]
    %v4076 = vld [vmem:[#allocation2 + $0x60] sm:$0xff]
    %v4077 = vld [vmem:[#allocation2 + $0x68] sm:$0xff]
    %v4078 = vld [vmem:[#allocation2 + $0x70] sm:$0xff]
    %v4079 = vld [vmem:[#allocation2 + $0x78] sm:$0xff]
    %v4080 = vld [vmem:[#allocation2 + $0x80] sm:$0xff]
    %v4081 = vld [vmem:[#allocation2 + $0x88] sm:$0xff]
    %v4082 = vld [vmem:[#allocation2 + $0x90] sm:$0xff]
    %v4083 = vld [vmem:[#allocation2 + $0x98] sm:$0xff]
    %v4084 = vld [vmem:[#allocation2 + $0xa0] sm:$0xff]
    %v4085 = vld [vmem:[#allocation2 + $0xa8] sm:$0xff]
    %v4086 = vld [vmem:[#allocation2 + $0xb0] sm:$0xff]
    %v4087 = vld [vmem:[#allocation2 + $0xb8] sm:$0xff]
    %v4088 = vld [vmem:[#allocation2 + $0xc0] sm:$0xff]
    %v4089 = vld [vmem:[#allocation2 + $0xc8] sm:$0xff]
    %v4090 = vld [vmem:[#allocation2 + $0xd0] sm:$0xff]
    %v4091 = vld [vmem:[#allocation2 + $0xd8] sm:$0xff]
    %v4092 = vld [vmem:[#allocation2 + $0xe0] sm:$0xff]
    %v4093 = vld [vmem:[#allocation2 + $0xe8] sm:$0xff]
    %v4094 = vld [vmem:[#allocation2 + $0xf0] sm:$0xff]
    %v4095 = vld [vmem:[#allocation2 + $0xf8] sm:$0xff]
    %v4096 = vld [vmem:[#allocation2 + $0x100] sm:$0xff]
    %v4097 = vld [vmem:[#allocation2 + $0x108] sm:$0xff]
    %v4098 = vld [vmem:[#allocation2 + $0x110] sm:$0xff]
    %v4099 = vld [vmem:[#allocation2 + $0x118] sm:$0xff]
    %v4100 = vld [vmem:[#allocation2 + $0x120] sm:$0xff]
    %v4101 = vld [vmem:[#allocation2 + $0x128] sm:$0xff]
    %v4102 = vld [vmem:[#allocation2 + $0x130] sm:$0xff]
    %v4103 = vld [vmem:[#allocation2 + $0x138] sm:$0xff]
    %v4104 = vld [vmem:[#allocation2 + $0x140] sm:$0xff]
    %v4105 = vld [vmem:[#allocation2 + $0x148] sm:$0xff]
    %v4106 = vld [vmem:[#allocation2 + $0x150] sm:$0xff]
    %v4107 = vld [vmem:[#allocation2 + $0x158] sm:$0xff]
    %v4108 = vld [vmem:[#allocation2 + $0x160] sm:$0xff]
    %v4109 = vld [vmem:[#allocation2 + $0x168] sm:$0xff]
    %v4110 = vld [vmem:[#allocation2 + $0x170] sm:$0xff]
    %v4111 = vld [vmem:[#allocation2 + $0x178] sm:$0xff]
    %v4112 = vld [vmem:[#allocation2 + $0x180] sm:$0xff]
    %v4113 = vld [vmem:[#allocation2 + $0x188] sm:$0xff]
    %v4114 = vld [vmem:[#allocation2 + $0x190] sm:$0xff]
    %v4115 = vld [vmem:[#allocation2 + $0x198] sm:$0xff]
    %v4116 = vld [vmem:[#allocation2 + $0x1a0] sm:$0xff]
    %v4117 = vld [vmem:[#allocation2 + $0x1a8] sm:$0xff]
    %v4118 = vld [vmem:[#allocation2 + $0x1b0] sm:$0xff]
    %v4119 = vld [vmem:[#allocation2 + $0x1b8] sm:$0xff]
    %v4120 = vld [vmem:[#allocation2 + $0x1c0] sm:$0xff]
    %v4121 = vld [vmem:[#allocation2 + $0x1c8] sm:$0xff]
    %v4122 = vld [vmem:[#allocation2 + $0x1d0] sm:$0xff]
    %v4123 = vld [vmem:[#allocation2 + $0x1d8] sm:$0xff]
    %v4124 = vld [vmem:[#allocation2 + $0x1e0] sm:$0xff]
    %v4125 = vld [vmem:[#allocation2 + $0x1e8] sm:$0xff]
    %v4126 = vld [vmem:[#allocation2 + $0x1f0] sm:$0xff]
    %v4127 = vld [vmem:[#allocation2 + $0x1f8] sm:$0xff]
    %v4128 = vld [vmem:[%s6] ss:$2 sm:$0xf]
    %v4130 = vlaneseq
    %v4131 = vshrl.u32 %v4130, 7
    %v4132 = vsub.s32 0, %v4131
    %v4133 = vrot.slane %v4128, %v4132
    %v4134 = vlaneseq
    %v4135 = vshrl.u32 %v4134, 7
    %v4136 = vsub.s32 1, %v4135
    %v4137 = vrot.slane %v4128, %v4136
    %v4138 = vlaneseq
    %v4139 = vshrl.u32 %v4138, 7
    %v4140 = vsub.s32 2, %v4139
    %v4141 = vrot.slane %v4128, %v4140
    %v4142 = vlaneseq
    %v4143 = vshrl.u32 %v4142, 7
    %v4144 = vsub.s32 3, %v4143
    %v4145 = vrot.slane %v4128, %v4144
    %4150 = vmatprep.subr.mxu0 %v4065
    %4151 = vmatpush1.msra.mxu0 %v4064
    %4152 = vmatprep.subr.mxu0 %v4069
    %4153 = vmatpush1.msra.mxu0 %v4068
    %4154 = vmatprep.subr.mxu0 %v4073
    %4155 = vmatpush1.msra.mxu0 %v4072
    %4156 = vmatprep.subr.mxu0 %v4077
    %4157 = vmatpush1.msra.mxu0 %v4076
    %4158 = vmatprep.subr.mxu0 %v4081
    %4159 = vmatpush1.msra.mxu0 %v4080
    %4160 = vmatprep.subr.mxu0 %v4085
    %4161 = vmatpush1.msra.mxu0 %v4084
    %4162 = vmatprep.subr.mxu0 %v4089
    %4163 = vmatpush1.msra.mxu0 %v4088
    %4164 = vmatprep.subr.mxu0 %v4093
    %4165 = vmatpush1.msra.mxu0 %v4092
    %4166 = vmatprep.subr.mxu0 %v4097
    %4167 = vmatpush1.msra.mxu0 %v4096
    %4168 = vmatprep.subr.mxu0 %v4101
    %4169 = vmatpush1.msra.mxu0 %v4100
    %4170 = vmatprep.subr.mxu0 %v4105
    %4171 = vmatpush1.msra.mxu0 %v4104
    %4172 = vmatprep.subr.mxu0 %v4109
    %4173 = vmatpush1.msra.mxu0 %v4108
    %4174 = vmatprep.subr.mxu0 %v4113
    %4175 = vmatpush1.msra.mxu0 %v4112
    %4176 = vmatprep.subr.mxu0 %v4117
    %4177 = vmatpush1.msra.mxu0 %v4116
    %4178 = vmatprep.subr.mxu0 %v4121
    %4179 = vmatpush1.msra.mxu0 %v4120
    %4180 = vmatprep.subr.mxu0 %v4125
    %4181 = vmatpush1.msra.mxu0 %v4124
    %4182 = vmatprep.subr.mxu0 0.0
    %4183 = vmatpush1.msra.mxu0 0.0
    %4184 = vmatprep.subr.mxu0 0.0
    %4185 = vmatpush1.msra.mxu0 0.0
    %4186 = vmatprep.subr.mxu0 0.0
    %4187 = vmatpush1.msra.mxu0 0.0
    %4188 = vmatprep.subr.mxu0 0.0
    %4189 = vmatpush1.msra.mxu0 0.0
    %4190 = vmatprep.subr.mxu0 0.0
    %4191 = vmatpush1.msra.mxu0 0.0
    %4192 = vmatprep.subr.mxu0 0.0
    %4193 = vmatpush1.msra.mxu0 0.0
    %4194 = vmatprep.subr.mxu0 0.0
    %4195 = vmatpush1.msra.mxu0 0.0
    %4196 = vmatprep.subr.mxu0 0.0
    %4197 = vmatpush1.msra.mxu0 0.0
    %4198 = vmatprep.subr.mxu0 0.0
    %4199 = vmatpush1.msra.mxu0 0.0
    %4200 = vmatprep.subr.mxu0 0.0
    %4201 = vmatpush1.msra.mxu0 0.0
    %4202 = vmatprep.subr.mxu0 0.0
    %4203 = vmatpush1.msra.mxu0 0.0
    %4204 = vmatprep.subr.mxu0 0.0
    %4205 = vmatpush1.msra.mxu0 0.0
    %4206 = vmatprep.subr.mxu0 0.0
    %4207 = vmatpush1.msra.mxu0 0.0
    %4208 = vmatprep.subr.mxu0 0.0
    %4209 = vmatpush1.msra.mxu0 0.0
    %4210 = vmatprep.subr.mxu0 0.0
    %4211 = vmatpush1.msra.mxu0 0.0
    %4212 = vmatprep.subr.mxu0 0.0
    %4213 = vmatpush1.msra.mxu0 0.0
    %4214 = vmatprep.mubr.f32.mxu0 0.0
    %4215 = vmatmul.mubr.f32.gmra.mrb[0].mxu0 %v4062
    %v4216 = vpop.f32.mrb[0].mxu0
    %v4217 = vadd.f32 %v4133, %v4216
    %v4218 = vpop.f32.mrb[0].mxu0
    %v4219 = vadd.f32 %v4137, %v4218
    %4220 = vmatprep.mubr.f32.mxu0 0.0
    %4221 = vmatmul.mubr.f32.gmra.mrb[0].mxu0 %v4063
    %v4222 = vpop.f32.mrb[0].mxu0
    %v4223 = vadd.f32 %v4133, %v4222
    %v4224 = vpop.f32.mrb[0].mxu0
    %v4225 = vadd.f32 %v4137, %v4224
    %4226 = vdwg.mxu0
    %4227 = vmatprep.subr.mxu0 %v4067
    %4228 = vmatpush1.msra.mxu0 %v4066
    %4229 = vmatprep.subr.mxu0 %v4071
    %4230 = vmatpush1.msra.mxu0 %v4070
    %4231 = vmatprep.subr.mxu0 %v4075
    %4232 = vmatpush1.msra.mxu0 %v4074
    %4233 = vmatprep.subr.mxu0 %v4079
    %4234 = vmatpush1.msra.mxu0 %v4078
    %4235 = vmatprep.subr.mxu0 %v4083
    %4236 = vmatpush1.msra.mxu0 %v4082
    %4237 = vmatprep.subr.mxu0 %v4087
    %4238 = vmatpush1.msra.mxu0 %v4086
    %4239 = vmatprep.subr.mxu0 %v4091
    %4240 = vmatpush1.msra.mxu0 %v4090
    %4241 = vmatprep.subr.mxu0 %v4095
    %4242 = vmatpush1.msra.mxu0 %v4094
    %4243 = vmatprep.subr.mxu0 %v4099
    %4244 = vmatpush1.msra.mxu0 %v4098
    %4245 = vmatprep.subr.mxu0 %v4103
    %4246 = vmatpush1.msra.mxu0 %v4102
    %4247 = vmatprep.subr.mxu0 %v4107
    %4248 = vmatpush1.msra.mxu0 %v4106
    %4249 = vmatprep.subr.mxu0 %v4111
    %4250 = vmatpush1.msra.mxu0 %v4110
    %4251 = vmatprep.subr.mxu0 %v4115
    %4252 = vmatpush1.msra.mxu0 %v4114
    %4253 = vmatprep.subr.mxu0 %v4119
    %4254 = vmatpush1.msra.mxu0 %v4118
    %4255 = vmatprep.subr.mxu0 %v4123
    %4256 = vmatpush1.msra.mxu0 %v4122
    %4257 = vmatprep.subr.mxu0 %v4127
    %4258 = vmatpush1.msra.mxu0 %v4126
    %4259 = vmatprep.subr.mxu0 0.0
    %4260 = vmatpush1.msra.mxu0 0.0
    %4261 = vmatprep.subr.mxu0 0.0
    %4262 = vmatpush1.msra.mxu0 0.0
    %4263 = vmatprep.subr.mxu0 0.0
    %4264 = vmatpush1.msra.mxu0 0.0
    %4265 = vmatprep.subr.mxu0 0.0
    %4266 = vmatpush1.msra.mxu0 0.0
    %4267 = vmatprep.subr.mxu0 0.0
    %4268 = vmatpush1.msra.mxu0 0.0
    %4269 = vmatprep.subr.mxu0 0.0
    %4270 = vmatpush1.msra.mxu0 0.0
    %4271 = vmatprep.subr.mxu0 0.0
    %4272 = vmatpush1.msra.mxu0 0.0
    %4273 = vmatprep.subr.mxu0 0.0
    %4274 = vmatpush1.msra.mxu0 0.0
    %4275 = vmatprep.subr.mxu0 0.0
    %4276 = vmatpush1.msra.mxu0 0.0
    %4277 = vmatprep.subr.mxu0 0.0
    %4278 = vmatpush1.msra.mxu0 0.0
    %4279 = vmatprep.subr.mxu0 0.0
    %4280 = vmatpush1.msra.mxu0 0.0
    %4281 = vmatprep.subr.mxu0 0.0
    %4282 = vmatpush1.msra.mxu0 0.0
    %4283 = vmatprep.subr.mxu0 0.0
    %4284 = vmatpush1.msra.mxu0 0.0
    %4285 = vmatprep.subr.mxu0 0.0
    %4286 = vmatpush1.msra.mxu0 0.0
    %4287 = vmatprep.subr.mxu0 0.0
    %4288 = vmatpush1.msra.mxu0 0.0
    %4289 = vmatprep.subr.mxu0 0.0
    %4290 = vmatpush1.msra.mxu0 0.0
    %4291 = vmatprep.mubr.f32.mxu0 0.0
    %4292 = vmatmul.mubr.f32.gmra.mrb[0].mxu0 %v4062
    %v4293 = vpop.f32.mrb[0].mxu0
    %v4294 = vadd.f32 %v4141, %v4293
    %v4295 = vpop.f32.mrb[0].mxu0
    %v4296 = vadd.f32 %v4145, %v4295
    %4297 = vmatprep.mubr.f32.mxu0 0.0
    %4298 = vmatmul.mubr.f32.gmra.mrb[0].mxu0 %v4063
    %v4299 = vpop.f32.mrb[0].mxu0
    %v4300 = vadd.f32 %v4141, %v4299
    %v4301 = vpop.f32.mrb[0].mxu0
    %v4302 = vadd.f32 %v4145, %v4301
    %4303 = vdwg.mxu0
    %4304 = vst [vmem:[#allocation4] sm:$0xff] %v4217
    %4305 = vst [vmem:[#allocation4 + $0x8] sm:$0xff] %v4219
    %4306 = vst [vmem:[#allocation4 + $0x10] sm:$0xff] %v4294
    %4307 = vst [vmem:[#allocation4 + $0x18] sm:$0xff] %v4296
    %4308 = vst [vmem:[#allocation4 + $0x20] sm:$0xff] %v4223
    %4309 = vst [vmem:[#allocation4 + $0x28] sm:$0xff] %v4225
    %4310 = vst [vmem:[#allocation4 + $0x30] sm:$0xff] %v4300
    %4311 = vst [vmem:[#allocation4 + $0x38] sm:$0xff] %v4302
    %s4312 = scalar_lea.vmem %s6, 1
    %v4313 = vld [vmem:[%s4312] ss:$2 sm:$0xf]
    %v4314 = vld [vmem:[#allocation4] sm:$0x3]
    %v4315 = vld [vmem:[#allocation4 + $0x8] sm:$0x3]
    %v4316 = vld [vmem:[#allocation4 + $0x10] sm:$0x3]
    %v4317 = vld [vmem:[#allocation4 + $0x18] sm:$0x3]
    %v4318 = vmul.f32 %v4314, 0.5
    %v4319 = vmul.f32 %v4315, 0.5
    %v4320 = vmul.f32 %v4316, 0.5
    %v4321 = vtanh.pop %v4318
    %v4322 = vtanh.pop %v4319
    %v4323 = vtanh.pop %v4320
    %v4324 = vmul.f32 %v4321, 0.5
    %v4325 = vmul.f32 %v4322, 0.5
    %v4326 = vmul.f32 %v4323, 0.5
    %v4327 = vadd.f32 %v4324, 0.5
    %v4328 = vadd.f32 %v4325, 0.5
    %v4329 = vadd.f32 %v4326, 0.5
    %v4330 = vtanh.pop %v4317
    %v4331 = vmul.f32 %v4328, 0.0
    %v4332 = vmul.f32 %v4327, %v4330
    %v4333 = vadd.f32 %v4331, %v4332
    %v4334 = vtanh.pop %v4333
    %v4335 = vmul.f32 %v4329, %v4334
    %v4336 = vld [vmem:[#allocation4] sm:$0xc]
    %v4337 = vld [vmem:[#allocation4 + $0x8] sm:$0xc]
    %v4338 = vld [vmem:[#allocation4 + $0x10] sm:$0xc]
    %v4339 = vld [vmem:[#allocation4 + $0x18] sm:$0xc]
    %v4340 = vld [vmem:[#allocation2 + $0x200] sm:$0xff]
    %v4341 = vld [vmem:[#allocation2 + $0x208] sm:$0xff]
    %v4342 = vld [vmem:[#allocation2 + $0x210] sm:$0xff]
    %v4343 = vld [vmem:[#allocation2 + $0x218] sm:$0xff]
    %v4344 = vld [vmem:[#allocation2 + $0x220] sm:$0xff]
    %v4345 = vld [vmem:[#allocation2 + $0x228] sm:$0xff]
    %v4346 = vld [vmem:[#allocation2 + $0x230] sm:$0xff]
    %v4347 = vld [vmem:[#allocation2 + $0x238] sm:$0xff]
    %v4348 = vld [vmem:[#allocation2 + $0x240] sm:$0xff]
    %v4349 = vld [vmem:[#allocation2 + $0x248] sm:$0xff]
    %v4350 = vld [vmem:[#allocation2 + $0x250] sm:$0xff]
    %v4351 = vld [vmem:[#allocation2 + $0x258] sm:$0xff]
    %v4352 = vld [vmem:[#allocation2 + $0x260] sm:$0xff]
    %v4353 = vld [vmem:[#allocation2 + $0x268] sm:$0xff]
    %v4354 = vld [vmem:[#allocation2 + $0x270] sm:$0xff]
    %v4355 = vld [vmem:[#allocation2 + $0x278] sm:$0xff]
    %v4356 = vld [vmem:[#allocation2 + $0x280] sm:$0xff]
    %v4357 = vld [vmem:[#allocation2 + $0x288] sm:$0xff]
    %v4358 = vld [vmem:[#allocation2 + $0x290] sm:$0xff]
    %v4359 = vld [vmem:[#allocation2 + $0x298] sm:$0xff]
    %v4360 = vld [vmem:[#allocation2 + $0x2a0] sm:$0xff]
    %v4361 = vld [vmem:[#allocation2 + $0x2a8] sm:$0xff]
    %v4362 = vld [vmem:[#allocation2 + $0x2b0] sm:$0xff]
    %v4363 = vld [vmem:[#allocation2 + $0x2b8] sm:$0xff]
    %v4364 = vld [vmem:[#allocation2 + $0x2c0] sm:$0xff]
    %v4365 = vld [vmem:[#allocation2 + $0x2c8] sm:$0xff]
    %v4366 = vld [vmem:[#allocation2 + $0x2d0] sm:$0xff]
    %v4367 = vld [vmem:[#allocation2 + $0x2d8] sm:$0xff]
    %v4368 = vld [vmem:[#allocation2 + $0x2e0] sm:$0xff]
    %v4369 = vld [vmem:[#allocation2 + $0x2e8] sm:$0xff]
    %v4370 = vld [vmem:[#allocation2 + $0x2f0] sm:$0xff]
    %v4371 = vld [vmem:[#allocation2 + $0x2f8] sm:$0xff]
    %v4372 = vld [vmem:[#allocation2 + $0x300] sm:$0xff]
    %v4373 = vld [vmem:[#allocation2 + $0x308] sm:$0xff]
    %v4374 = vld [vmem:[#allocation2 + $0x310] sm:$0xff]
    %v4375 = vld [vmem:[#allocation2 + $0x318] sm:$0xff]
    %v4376 = vld [vmem:[#allocation2 + $0x320] sm:$0xff]
    %v4377 = vld [vmem:[#allocation2 + $0x328] sm:$0xff]
    %v4378 = vld [vmem:[#allocation2 + $0x330] sm:$0xff]
    %v4379 = vld [vmem:[#allocation2 + $0x338] sm:$0xff]
    %v4380 = vld [vmem:[#allocation2 + $0x340] sm:$0xff]
    %v4381 = vld [vmem:[#allocation2 + $0x348] sm:$0xff]
    %v4382 = vld [vmem:[#allocation2 + $0x350] sm:$0xff]
    %v4383 = vld [vmem:[#allocation2 + $0x358] sm:$0xff]
    %v4384 = vld [vmem:[#allocation2 + $0x360] sm:$0xff]
    %v4385 = vld [vmem:[#allocation2 + $0x368] sm:$0xff]
    %v4386 = vld [vmem:[#allocation2 + $0x370] sm:$0xff]
    %v4387 = vld [vmem:[#allocation2 + $0x378] sm:$0xff]
    %v4388 = vld [vmem:[#allocation2 + $0x380] sm:$0xff]
    %v4389 = vld [vmem:[#allocation2 + $0x388] sm:$0xff]
    %v4390 = vld [vmem:[#allocation2 + $0x390] sm:$0xff]
    %v4391 = vld [vmem:[#allocation2 + $0x398] sm:$0xff]
    %v4392 = vld [vmem:[#allocation2 + $0x3a0] sm:$0xff]
    %v4393 = vld [vmem:[#allocation2 + $0x3a8] sm:$0xff]
    %v4394 = vld [vmem:[#allocation2 + $0x3b0] sm:$0xff]
    %v4395 = vld [vmem:[#allocation2 + $0x3b8] sm:$0xff]
    %v4396 = vld [vmem:[#allocation2 + $0x3c0] sm:$0xff]
    %v4397 = vld [vmem:[#allocation2 + $0x3c8] sm:$0xff]
    %v4398 = vld [vmem:[#allocation2 + $0x3d0] sm:$0xff]
    %v4399 = vld [vmem:[#allocation2 + $0x3d8] sm:$0xff]
    %v4400 = vld [vmem:[#allocation2 + $0x3e0] sm:$0xff]
    %v4401 = vld [vmem:[#allocation2 + $0x3e8] sm:$0xff]
    %v4402 = vld [vmem:[#allocation2 + $0x3f0] sm:$0xff]
    %v4403 = vld [vmem:[#allocation2 + $0x3f8] sm:$0xff]
    %4404 = vmatprep.subr.mxu0 %v4341
    %4405 = vmatpush1.msra.mxu0 %v4340
    %4406 = vmatprep.subr.mxu0 %v4345
    %4407 = vmatpush1.msra.mxu0 %v4344
    %4408 = vmatprep.subr.mxu0 %v4349
    %4409 = vmatpush1.msra.mxu0 %v4348
    %4410 = vmatprep.subr.mxu0 %v4353
    %4411 = vmatpush1.msra.mxu0 %v4352
    %4412 = vmatprep.subr.mxu0 %v4357
    %4413 = vmatpush1.msra.mxu0 %v4356
    %4414 = vmatprep.subr.mxu0 %v4361
    %4415 = vmatpush1.msra.mxu0 %v4360
    %4416 = vmatprep.subr.mxu0 %v4365
    %4417 = vmatpush1.msra.mxu0 %v4364
    %4418 = vmatprep.subr.mxu0 %v4369
    %4419 = vmatpush1.msra.mxu0 %v4368
    %4420 = vmatprep.subr.mxu0 %v4373
    %4421 = vmatpush1.msra.mxu0 %v4372
    %4422 = vmatprep.subr.mxu0 %v4377
    %4423 = vmatpush1.msra.mxu0 %v4376
    %4424 = vmatprep.subr.mxu0 %v4381
    %4425 = vmatpush1.msra.mxu0 %v4380
    %4426 = vmatprep.subr.mxu0 %v4385
    %4427 = vmatpush1.msra.mxu0 %v4384
    %4428 = vmatprep.subr.mxu0 %v4389
    %4429 = vmatpush1.msra.mxu0 %v4388
    %4430 = vmatprep.subr.mxu0 %v4393
    %4431 = vmatpush1.msra.mxu0 %v4392
    %4432 = vmatprep.subr.mxu0 %v4397
    %4433 = vmatpush1.msra.mxu0 %v4396
    %4434 = vmatprep.subr.mxu0 %v4401
    %4435 = vmatpush1.msra.mxu0 %v4400
    %4436 = vmatprep.subr.mxu0 0.0
    %4437 = vmatpush1.msra.mxu0 0.0
    %4438 = vmatprep.subr.mxu0 0.0
    %4439 = vmatpush1.msra.mxu0 0.0
    %4440 = vmatprep.subr.mxu0 0.0
    %4441 = vmatpush1.msra.mxu0 0.0
    %4442 = vmatprep.subr.mxu0 0.0
    %4443 = vmatpush1.msra.mxu0 0.0
    %4444 = vmatprep.subr.mxu0 0.0
    %4445 = vmatpush1.msra.mxu0 0.0
    %4446 = vmatprep.subr.mxu0 0.0
    %4447 = vmatpush1.msra.mxu0 0.0
    %4448 = vmatprep.subr.mxu0 0.0
    %4449 = vmatpush1.msra.mxu0 0.0
    %4450 = vmatprep.subr.mxu0 0.0
    %4451 = vmatpush1.msra.mxu0 0.0
    %4452 = vmatprep.subr.mxu0 0.0
    %4453 = vmatpush1.msra.mxu0 0.0
    %4454 = vmatprep.subr.mxu0 0.0
    %4455 = vmatpush1.msra.mxu0 0.0
    %4456 = vmatprep.subr.mxu0 0.0
    %4457 = vmatpush1.msra.mxu0 0.0
    %4458 = vmatprep.subr.mxu0 0.0
    %4459 = vmatpush1.msra.mxu0 0.0
    %4460 = vmatprep.subr.mxu0 0.0
    %4461 = vmatpush1.msra.mxu0 0.0
    %4462 = vmatprep.subr.mxu0 0.0
    %4463 = vmatpush1.msra.mxu0 0.0
    %4464 = vmatprep.subr.mxu0 0.0
    %4465 = vmatpush1.msra.mxu0 0.0
    %4466 = vmatprep.subr.mxu0 0.0
    %4467 = vmatpush1.msra.mxu0 0.0
    %4468 = vmatprep.mubr.f32.mxu0 0.0
    %4469 = vmatmul.mubr.f32.gmra.mrb[0].mxu0 %v4335
    %v4470 = vpop.f32.mrb[0].mxu0
    %v4471 = vadd.f32 0.0, %v4470
    %v4472 = vpop.f32.mrb[0].mxu0
    %v4473 = vadd.f32 0.0, %v4472
    %4474 = vdwg.mxu0
    %4475 = vmatprep.subr.mxu0 %v4343
    %4476 = vmatpush1.msra.mxu0 %v4342
    %4477 = vmatprep.subr.mxu0 %v4347
    %4478 = vmatpush1.msra.mxu0 %v4346
    %4479 = vmatprep.subr.mxu0 %v4351
    %4480 = vmatpush1.msra.mxu0 %v4350
    %4481 = vmatprep.subr.mxu0 %v4355
    %4482 = vmatpush1.msra.mxu0 %v4354
    %4483 = vmatprep.subr.mxu0 %v4359
    %4484 = vmatpush1.msra.mxu0 %v4358
    %4485 = vmatprep.subr.mxu0 %v4363
    %4486 = vmatpush1.msra.mxu0 %v4362
    %4487 = vmatprep.subr.mxu0 %v4367
    %4488 = vmatpush1.msra.mxu0 %v4366
    %4489 = vmatprep.subr.mxu0 %v4371
    %4490 = vmatpush1.msra.mxu0 %v4370
    %4491 = vmatprep.subr.mxu0 %v4375
    %4492 = vmatpush1.msra.mxu0 %v4374
    %4493 = vmatprep.subr.mxu0 %v4379
    %4494 = vmatpush1.msra.mxu0 %v4378
    %4495 = vmatprep.subr.mxu0 %v4383
    %4496 = vmatpush1.msra.mxu0 %v4382
    %4497 = vmatprep.subr.mxu0 %v4387
    %4498 = vmatpush1.msra.mxu0 %v4386
    %4499 = vmatprep.subr.mxu0 %v4391
    %4500 = vmatpush1.msra.mxu0 %v4390
    %4501 = vmatprep.subr.mxu0 %v4395
    %4502 = vmatpush1.msra.mxu0 %v4394
    %4503 = vmatprep.subr.mxu0 %v4399
    %4504 = vmatpush1.msra.mxu0 %v4398
    %4505 = vmatprep.subr.mxu0 %v4403
    %4506 = vmatpush1.msra.mxu0 %v4402
    %4507 = vmatprep.subr.mxu0 0.0
    %4508 = vmatpush1.msra.mxu0 0.0
    %4509 = vmatprep.subr.mxu0 0.0
    %4510 = vmatpush1.msra.mxu0 0.0
    %4511 = vmatprep.subr.mxu0 0.0
    %4512 = vmatpush1.msra.mxu0 0.0
    %4513 = vmatprep.subr.mxu0 0.0
    %4514 = vmatpush1.msra.mxu0 0.0
    %4515 = vmatprep.subr.mxu0 0.0
    %4516 = vmatpush1.msra.mxu0 0.0
    %4517 = vmatprep.subr.mxu0 0.0
    %4518 = vmatpush1.msra.mxu0 0.0
    %4519 = vmatprep.subr.mxu0 0.0
    %4520 = vmatpush1.msra.mxu0 0.0
    %4521 = vmatprep.subr.mxu0 0.0
    %4522 = vmatpush1.msra.mxu0 0.0
    %4523 = vmatprep.subr.mxu0 0.0
    %4524 = vmatpush1.msra.mxu0 0.0
    %4525 = vmatprep.subr.mxu0 0.0
    %4526 = vmatpush1.msra.mxu0 0.0
    %4527 = vmatprep.subr.mxu0 0.0
    %4528 = vmatpush1.msra.mxu0 0.0
    %4529 = vmatprep.subr.mxu0 0.0
    %4530 = vmatpush1.msra.mxu0 0.0
    %4531 = vmatprep.subr.mxu0 0.0
    %4532 = vmatpush1.msra.mxu0 0.0
    %4533 = vmatprep.subr.mxu0 0.0
    %4534 = vmatpush1.msra.mxu0 0.0
    %4535 = vmatprep.subr.mxu0 0.0
    %4536 = vmatpush1.msra.mxu0 0.0
    %4537 = vmatprep.subr.mxu0 0.0
    %4538 = vmatpush1.msra.mxu0 0.0
    %4539 = vmatprep.mubr.f32.mxu0 0.0
    %4540 = vmatmul.mubr.f32.gmra.mrb[0].mxu0 %v4335
    %v4541 = vpop.f32.mrb[0].mxu0
    %v4542 = vadd.f32 0.0, %v4541
    %v4543 = vpop.f32.mrb[0].mxu0
    %v4544 = vadd.f32 0.0, %v4543
    %4545 = vdwg.mxu0
    %v4550 = vrot.slane %v4471, 6
    %v4551 = vrot.slane %v4473, 6
    %v4552 = vrot.slane %v4542, 6
    %v4553 = vrot.slane %v4544, 6
    %v4558 = vadd.f32 %v4336, %v4550
    %v4559 = vadd.f32 %v4337, %v4551
    %v4560 = vadd.f32 %v4338, %v4552
    %v4561 = vadd.f32 %v4339, %v4553
    %v4562 = vld [vmem:[#allocation2 + $0x400] sm:$0xff]
    %v4563 = vld [vmem:[#allocation2 + $0x408] sm:$0xff]
    %v4564 = vld [vmem:[#allocation2 + $0x410] sm:$0xff]
    %v4565 = vld [vmem:[#allocation2 + $0x418] sm:$0xff]
    %v4566 = vld [vmem:[#allocation2 + $0x420] sm:$0xff]
    %v4567 = vld [vmem:[#allocation2 + $0x428] sm:$0xff]
    %v4568 = vld [vmem:[#allocation2 + $0x430] sm:$0xff]
    %v4569 = vld [vmem:[#allocation2 + $0x438] sm:$0xff]
    %v4570 = vld [vmem:[#allocation2 + $0x440] sm:$0xff]
    %v4571 = vld [vmem:[#allocation2 + $0x448] sm:$0xff]
    %v4572 = vld [vmem:[#allocation2 + $0x450] sm:$0xff]
    %v4573 = vld [vmem:[#allocation2 + $0x458] sm:$0xff]
    %v4574 = vld [vmem:[#allocation2 + $0x460] sm:$0xff]
    %v4575 = vld [vmem:[#allocation2 + $0x468] sm:$0xff]
    %v4576 = vld [vmem:[#allocation2 + $0x470] sm:$0xff]
    %v4577 = vld [vmem:[#allocation2 + $0x478] sm:$0xff]
    %v4578 = vld [vmem:[#allocation2 + $0x480] sm:$0xff]
    %v4579 = vld [vmem:[#allocation2 + $0x488] sm:$0xff]
    %v4580 = vld [vmem:[#allocation2 + $0x490] sm:$0xff]
    %v4581 = vld [vmem:[#allocation2 + $0x498] sm:$0xff]
    %v4582 = vld [vmem:[#allocation2 + $0x4a0] sm:$0xff]
    %v4583 = vld [vmem:[#allocation2 + $0x4a8] sm:$0xff]
    %v4584 = vld [vmem:[#allocation2 + $0x4b0] sm:$0xff]
    %v4585 = vld [vmem:[#allocation2 + $0x4b8] sm:$0xff]
    %v4586 = vld [vmem:[#allocation2 + $0x4c0] sm:$0xff]
    %v4587 = vld [vmem:[#allocation2 + $0x4c8] sm:$0xff]
    %v4588 = vld [vmem:[#allocation2 + $0x4d0] sm:$0xff]
    %v4589 = vld [vmem:[#allocation2 + $0x4d8] sm:$0xff]
    %v4590 = vld [vmem:[#allocation2 + $0x4e0] sm:$0xff]
    %v4591 = vld [vmem:[#allocation2 + $0x4e8] sm:$0xff]
    %v4592 = vld [vmem:[#allocation2 + $0x4f0] sm:$0xff]
    %v4593 = vld [vmem:[#allocation2 + $0x4f8] sm:$0xff]
    %v4594 = vld [vmem:[#allocation2 + $0x500] sm:$0xff]
    %v4595 = vld [vmem:[#allocation2 + $0x508] sm:$0xff]
    %v4596 = vld [vmem:[#allocation2 + $0x510] sm:$0xff]
    %v4597 = vld [vmem:[#allocation2 + $0x518] sm:$0xff]
    %v4598 = vld [vmem:[#allocation2 + $0x520] sm:$0xff]
    %v4599 = vld [vmem:[#allocation2 + $0x528] sm:$0xff]
    %v4600 = vld [vmem:[#allocation2 + $0x530] sm:$0xff]
    %v4601 = vld [vmem:[#allocation2 + $0x538] sm:$0xff]
    %v4602 = vld [vmem:[#allocation2 + $0x540] sm:$0xff]
    %v4603 = vld [vmem:[#allocation2 + $0x548] sm:$0xff]
    %v4604 = vld [vmem:[#allocation2 + $0x550] sm:$0xff]
    %v4605 = vld [vmem:[#allocation2 + $0x558] sm:$0xff]
    %v4606 = vld [vmem:[#allocation2 + $0x560] sm:$0xff]
    %v4607 = vld [vmem:[#allocation2 + $0x568] sm:$0xff]
    %v4608 = vld [vmem:[#allocation2 + $0x570] sm:$0xff]
    %v4609 = vld [vmem:[#allocation2 + $0x578] sm:$0xff]
    %v4610 = vld [vmem:[#allocation2 + $0x580] sm:$0xff]
    %v4611 = vld [vmem:[#allocation2 + $0x588] sm:$0xff]
    %v4612 = vld [vmem:[#allocation2 + $0x590] sm:$0xff]
    %v4613 = vld [vmem:[#allocation2 + $0x598] sm:$0xff]
    %v4614 = vld [vmem:[#allocation2 + $0x5a0] sm:$0xff]
    %v4615 = vld [vmem:[#allocation2 + $0x5a8] sm:$0xff]
    %v4616 = vld [vmem:[#allocation2 + $0x5b0] sm:$0xff]
    %v4617 = vld [vmem:[#allocation2 + $0x5b8] sm:$0xff]
    %v4618 = vld [vmem:[#allocation2 + $0x5c0] sm:$0xff]
    %v4619 = vld [vmem:[#allocation2 + $0x5c8] sm:$0xff]
    %v4620 = vld [vmem:[#allocation2 + $0x5d0] sm:$0xff]
    %v4621 = vld [vmem:[#allocation2 + $0x5d8] sm:$0xff]
    %v4622 = vld [vmem:[#allocation2 + $0x5e0] sm:$0xff]
    %v4623 = vld [vmem:[#allocation2 + $0x5e8] sm:$0xff]
    %v4624 = vld [vmem:[#allocation2 + $0x5f0] sm:$0xff]
    %v4625 = vld [vmem:[#allocation2 + $0x5f8] sm:$0xff]
    %v4626 = vld [vmem:[#allocation2 + $0x600] sm:$0xff]
    %v4627 = vld [vmem:[#allocation2 + $0x608] sm:$0xff]
    %v4628 = vld [vmem:[#allocation2 + $0x610] sm:$0xff]
    %v4629 = vld [vmem:[#allocation2 + $0x618] sm:$0xff]
    %v4630 = vld [vmem:[#allocation2 + $0x620] sm:$0xff]
    %v4631 = vld [vmem:[#allocation2 + $0x628] sm:$0xff]
    %v4632 = vld [vmem:[#allocation2 + $0x630] sm:$0xff]
    %v4633 = vld [vmem:[#allocation2 + $0x638] sm:$0xff]
    %v4634 = vld [vmem:[#allocation2 + $0x640] sm:$0xff]
    %v4635 = vld [vmem:[#allocation2 + $0x648] sm:$0xff]
    %v4636 = vld [vmem:[#allocation2 + $0x650] sm:$0xff]
    %v4637 = vld [vmem:[#allocation2 + $0x658] sm:$0xff]
    %v4638 = vld [vmem:[#allocation2 + $0x660] sm:$0xff]
    %v4639 = vld [vmem:[#allocation2 + $0x668] sm:$0xff]
    %v4640 = vld [vmem:[#allocation2 + $0x670] sm:$0xff]
    %v4641 = vld [vmem:[#allocation2 + $0x678] sm:$0xff]
    %v4642 = vld [vmem:[#allocation2 + $0x680] sm:$0xff]
    %v4643 = vld [vmem:[#allocation2 + $0x688] sm:$0xff]
    %v4644 = vld [vmem:[#allocation2 + $0x690] sm:$0xff]
    %v4645 = vld [vmem:[#allocation2 + $0x698] sm:$0xff]
    %v4646 = vld [vmem:[#allocation2 + $0x6a0] sm:$0xff]
    %v4647 = vld [vmem:[#allocation2 + $0x6a8] sm:$0xff]
    %v4648 = vld [vmem:[#allocation2 + $0x6b0] sm:$0xff]
    %v4649 = vld [vmem:[#allocation2 + $0x6b8] sm:$0xff]
    %v4650 = vld [vmem:[#allocation2 + $0x6c0] sm:$0xff]
    %v4651 = vld [vmem:[#allocation2 + $0x6c8] sm:$0xff]
    %v4652 = vld [vmem:[#allocation2 + $0x6d0] sm:$0xff]
    %v4653 = vld [vmem:[#allocation2 + $0x6d8] sm:$0xff]
    %v4654 = vld [vmem:[#allocation2 + $0x6e0] sm:$0xff]
    %v4655 = vld [vmem:[#allocation2 + $0x6e8] sm:$0xff]
    %v4656 = vld [vmem:[#allocation2 + $0x6f0] sm:$0xff]
    %v4657 = vld [vmem:[#allocation2 + $0x6f8] sm:$0xff]
    %v4658 = vld [vmem:[#allocation2 + $0x700] sm:$0xff]
    %v4659 = vld [vmem:[#allocation2 + $0x708] sm:$0xff]
    %v4660 = vld [vmem:[#allocation2 + $0x710] sm:$0xff]
    %v4661 = vld [vmem:[#allocation2 + $0x718] sm:$0xff]
    %v4662 = vld [vmem:[#allocation2 + $0x720] sm:$0xff]
    %v4663 = vld [vmem:[#allocation2 + $0x728] sm:$0xff]
    %v4664 = vld [vmem:[#allocation2 + $0x730] sm:$0xff]
    %v4665 = vld [vmem:[#allocation2 + $0x738] sm:$0xff]
    %v4666 = vld [vmem:[#allocation2 + $0x740] sm:$0xff]
    %v4667 = vld [vmem:[#allocation2 + $0x748] sm:$0xff]
    %v4668 = vld [vmem:[#allocation2 + $0x750] sm:$0xff]
    %v4669 = vld [vmem:[#allocation2 + $0x758] sm:$0xff]
    %v4670 = vld [vmem:[#allocation2 + $0x760] sm:$0xff]
    %v4671 = vld [vmem:[#allocation2 + $0x768] sm:$0xff]
    %v4672 = vld [vmem:[#allocation2 + $0x770] sm:$0xff]
    %v4673 = vld [vmem:[#allocation2 + $0x778] sm:$0xff]
    %v4674 = vld [vmem:[#allocation2 + $0x780] sm:$0xff]
    %v4675 = vld [vmem:[#allocation2 + $0x788] sm:$0xff]
    %v4676 = vld [vmem:[#allocation2 + $0x790] sm:$0xff]
    %v4677 = vld [vmem:[#allocation2 + $0x798] sm:$0xff]
    %v4678 = vld [vmem:[#allocation2 + $0x7a0] sm:$0xff]
    %v4679 = vld [vmem:[#allocation2 + $0x7a8] sm:$0xff]
    %v4680 = vld [vmem:[#allocation2 + $0x7b0] sm:$0xff]
    %v4681 = vld [vmem:[#allocation2 + $0x7b8] sm:$0xff]
    %v4682 = vld [vmem:[#allocation2 + $0x7c0] sm:$0xff]
    %v4683 = vld [vmem:[#allocation2 + $0x7c8] sm:$0xff]
    %v4684 = vld [vmem:[#allocation2 + $0x7d0] sm:$0xff]
    %v4685 = vld [vmem:[#allocation2 + $0x7d8] sm:$0xff]
    %v4686 = vld [vmem:[#allocation2 + $0x7e0] sm:$0xff]
    %v4687 = vld [vmem:[#allocation2 + $0x7e8] sm:$0xff]
    %v4688 = vld [vmem:[#allocation2 + $0x7f0] sm:$0xff]
    %v4689 = vld [vmem:[#allocation2 + $0x7f8] sm:$0xff]
    %4690 = vmatprep.subr.mxu0 %v4627
    %4691 = vmatpush1.msra.mxu0 %v4626
    %4692 = vmatprep.subr.mxu0 %v4631
    %4693 = vmatpush1.msra.mxu0 %v4630
    %4694 = vmatprep.subr.mxu0 %v4635
    %4695 = vmatpush1.msra.mxu0 %v4634
    %4696 = vmatprep.subr.mxu0 %v4639
    %4697 = vmatpush1.msra.mxu0 %v4638
    %4698 = vmatprep.subr.mxu0 %v4643
    %4699 = vmatpush1.msra.mxu0 %v4642
    %4700 = vmatprep.subr.mxu0 %v4647
    %4701 = vmatpush1.msra.mxu0 %v4646
    %4702 = vmatprep.subr.mxu0 %v4651
    %4703 = vmatpush1.msra.mxu0 %v4650
    %4704 = vmatprep.subr.mxu0 %v4655
    %4705 = vmatpush1.msra.mxu0 %v4654
    %4706 = vmatprep.subr.mxu0 %v4659
    %4707 = vmatpush1.msra.mxu0 %v4658
    %4708 = vmatprep.subr.mxu0 %v4663
    %4709 = vmatpush1.msra.mxu0 %v4662
    %4710 = vmatprep.subr.mxu0 %v4667
    %4711 = vmatpush1.msra.mxu0 %v4666
    %4712 = vmatprep.subr.mxu0 %v4671
    %4713 = vmatpush1.msra.mxu0 %v4670
    %4714 = vmatprep.subr.mxu0 %v4675
    %4715 = vmatpush1.msra.mxu0 %v4674
    %4716 = vmatprep.subr.mxu0 %v4679
    %4717 = vmatpush1.msra.mxu0 %v4678
    %4718 = vmatprep.subr.mxu0 %v4683
    %4719 = vmatpush1.msra.mxu0 %v4682
    %4720 = vmatprep.subr.mxu0 %v4687
    %4721 = vmatpush1.msra.mxu0 %v4686
    %4722 = vmatprep.subr.mxu0 0.0
    %4723 = vmatpush1.msra.mxu0 0.0
    %4724 = vmatprep.subr.mxu0 0.0
    %4725 = vmatpush1.msra.mxu0 0.0
    %4726 = vmatprep.subr.mxu0 0.0
    %4727 = vmatpush1.msra.mxu0 0.0
    %4728 = vmatprep.subr.mxu0 0.0
    %4729 = vmatpush1.msra.mxu0 0.0
    %4730 = vmatprep.subr.mxu0 0.0
    %4731 = vmatpush1.msra.mxu0 0.0
    %4732 = vmatprep.subr.mxu0 0.0
    %4733 = vmatpush1.msra.mxu0 0.0
    %4734 = vmatprep.subr.mxu0 0.0
    %4735 = vmatpush1.msra.mxu0 0.0
    %4736 = vmatprep.subr.mxu0 0.0
    %4737 = vmatpush1.msra.mxu0 0.0
    %4738 = vmatprep.subr.mxu0 0.0
    %4739 = vmatpush1.msra.mxu0 0.0
    %4740 = vmatprep.subr.mxu0 0.0
    %4741 = vmatpush1.msra.mxu0 0.0
    %4742 = vmatprep.subr.mxu0 0.0
    %4743 = vmatpush1.msra.mxu0 0.0
    %4744 = vmatprep.subr.mxu0 0.0
    %4745 = vmatpush1.msra.mxu0 0.0
    %4746 = vmatprep.subr.mxu0 0.0
    %4747 = vmatpush1.msra.mxu0 0.0
    %4748 = vmatprep.subr.mxu0 0.0
    %4749 = vmatpush1.msra.mxu0 0.0
    %4750 = vmatprep.subr.mxu0 0.0
    %4751 = vmatpush1.msra.mxu0 0.0
    %4752 = vmatprep.subr.mxu0 0.0
    %4753 = vmatpush1.msra.mxu0 0.0
    %4754 = vmatprep.mubr.f32.mxu0 0.0
    %4755 = vmatmul.mubr.f32.gmra.mrb[0].mxu0 0.0
    %v4756 = vpop.f32.mrb[0].mxu0
    %v4757 = vadd.f32 0.0, %v4756
    %v4758 = vpop.f32.mrb[0].mxu0
    %v4759 = vadd.f32 0.0, %v4758
    %4760 = vdwg.mxu0
    %4761 = vmatprep.subr.mxu0 %v4629
    %4762 = vmatpush1.msra.mxu0 %v4628
    %4763 = vmatprep.subr.mxu0 %v4633
    %4764 = vmatpush1.msra.mxu0 %v4632
    %4765 = vmatprep.subr.mxu0 %v4637
    %4766 = vmatpush1.msra.mxu0 %v4636
    %4767 = vmatprep.subr.mxu0 %v4641
    %4768 = vmatpush1.msra.mxu0 %v4640
    %4769 = vmatprep.subr.mxu0 %v4645
    %4770 = vmatpush1.msra.mxu0 %v4644
    %4771 = vmatprep.subr.mxu0 %v4649
    %4772 = vmatpush1.msra.mxu0 %v4648
    %4773 = vmatprep.subr.mxu0 %v4653
    %4774 = vmatpush1.msra.mxu0 %v4652
    %4775 = vmatprep.subr.mxu0 %v4657
    %4776 = vmatpush1.msra.mxu0 %v4656
    %4777 = vmatprep.subr.mxu0 %v4661
    %4778 = vmatpush1.msra.mxu0 %v4660
    %4779 = vmatprep.subr.mxu0 %v4665
    %4780 = vmatpush1.msra.mxu0 %v4664
    %4781 = vmatprep.subr.mxu0 %v4669
    %4782 = vmatpush1.msra.mxu0 %v4668
    %4783 = vmatprep.subr.mxu0 %v4673
    %4784 = vmatpush1.msra.mxu0 %v4672
    %4785 = vmatprep.subr.mxu0 %v4677
    %4786 = vmatpush1.msra.mxu0 %v4676
    %4787 = vmatprep.subr.mxu0 %v4681
    %4788 = vmatpush1.msra.mxu0 %v4680
    %4789 = vmatprep.subr.mxu0 %v4685
    %4790 = vmatpush1.msra.mxu0 %v4684
    %4791 = vmatprep.subr.mxu0 %v4689
    %4792 = vmatpush1.msra.mxu0 %v4688
    %4793 = vmatprep.subr.mxu0 0.0
    %4794 = vmatpush1.msra.mxu0 0.0
    %4795 = vmatprep.subr.mxu0 0.0
    %4796 = vmatpush1.msra.mxu0 0.0
    %4797 = vmatprep.subr.mxu0 0.0
    %4798 = vmatpush1.msra.mxu0 0.0
    %4799 = vmatprep.subr.mxu0 0.0
    %4800 = vmatpush1.msra.mxu0 0.0
    %4801 = vmatprep.subr.mxu0 0.0
    %4802 = vmatpush1.msra.mxu0 0.0
    %4803 = vmatprep.subr.mxu0 0.0
    %4804 = vmatpush1.msra.mxu0 0.0
    %4805 = vmatprep.subr.mxu0 0.0
    %4806 = vmatpush1.msra.mxu0 0.0
    %4807 = vmatprep.subr.mxu0 0.0
    %4808 = vmatpush1.msra.mxu0 0.0
    %4809 = vmatprep.subr.mxu0 0.0
    %4810 = vmatpush1.msra.mxu0 0.0
    %4811 = vmatprep.subr.mxu0 0.0
    %4812 = vmatpush1.msra.mxu0 0.0
    %4813 = vmatprep.subr.mxu0 0.0
    %4814 = vmatpush1.msra.mxu0 0.0
    %4815 = vmatprep.subr.mxu0 0.0
    %4816 = vmatpush1.msra.mxu0 0.0
    %4817 = vmatprep.subr.mxu0 0.0
    %4818 = vmatpush1.msra.mxu0 0.0
    %4819 = vmatprep.subr.mxu0 0.0
    %4820 = vmatpush1.msra.mxu0 0.0
    %4821 = vmatprep.subr.mxu0 0.0
    %4822 = vmatpush1.msra.mxu0 0.0
    %4823 = vmatprep.subr.mxu0 0.0
    %4824 = vmatpush1.msra.mxu0 0.0
    %4825 = vmatprep.mubr.f32.mxu0 0.0
    %4826 = vmatmul.mubr.f32.gmra.mrb[0].mxu0 0.0
    %v4827 = vpop.f32.mrb[0].mxu0
    %v4828 = vadd.f32 0.0, %v4827
    %v4829 = vpop.f32.mrb[0].mxu0
    %v4830 = vadd.f32 0.0, %v4829
    %4831 = vdwg.mxu0
    %4832 = vmatprep.subr.mxu0 %v4563
    %4833 = vmatpush1.msra.mxu0 %v4562
    %4834 = vmatprep.subr.mxu0 %v4567
    %4835 = vmatpush1.msra.mxu0 %v4566
    %4836 = vmatprep.subr.mxu0 %v4571
    %4837 = vmatpush1.msra.mxu0 %v4570
    %4838 = vmatprep.subr.mxu0 %v4575
    %4839 = vmatpush1.msra.mxu0 %v4574
    %4840 = vmatprep.subr.mxu0 %v4579
    %4841 = vmatpush1.msra.mxu0 %v4578
    %4842 = vmatprep.subr.mxu0 %v4583
    %4843 = vmatpush1.msra.mxu0 %v4582
    %4844 = vmatprep.subr.mxu0 %v4587
    %4845 = vmatpush1.msra.mxu0 %v4586
    %4846 = vmatprep.subr.mxu0 %v4591
    %4847 = vmatpush1.msra.mxu0 %v4590
    %4848 = vmatprep.subr.mxu0 %v4595
    %4849 = vmatpush1.msra.mxu0 %v4594
    %4850 = vmatprep.subr.mxu0 %v4599
    %4851 = vmatpush1.msra.mxu0 %v4598
    %4852 = vmatprep.subr.mxu0 %v4603
    %4853 = vmatpush1.msra.mxu0 %v4602
    %4854 = vmatprep.subr.mxu0 %v4607
    %4855 = vmatpush1.msra.mxu0 %v4606
    %4856 = vmatprep.subr.mxu0 %v4611
    %4857 = vmatpush1.msra.mxu0 %v4610
    %4858 = vmatprep.subr.mxu0 %v4615
    %4859 = vmatpush1.msra.mxu0 %v4614
    %4860 = vmatprep.subr.mxu0 %v4619
    %4861 = vmatpush1.msra.mxu0 %v4618
    %4862 = vmatprep.subr.mxu0 %v4623
    %4863 = vmatpush1.msra.mxu0 %v4622
    %4864 = vmatprep.subr.mxu0 0.0
    %4865 = vmatpush1.msra.mxu0 0.0
    %4866 = vmatprep.subr.mxu0 0.0
    %4867 = vmatpush1.msra.mxu0 0.0
    %4868 = vmatprep.subr.mxu0 0.0
    %4869 = vmatpush1.msra.mxu0 0.0
    %4870 = vmatprep.subr.mxu0 0.0
    %4871 = vmatpush1.msra.mxu0 0.0
    %4872 = vmatprep.subr.mxu0 0.0
    %4873 = vmatpush1.msra.mxu0 0.0
    %4874 = vmatprep.subr.mxu0 0.0
    %4875 = vmatpush1.msra.mxu0 0.0
    %4876 = vmatprep.subr.mxu0 0.0
    %4877 = vmatpush1.msra.mxu0 0.0
    %4878 = vmatprep.subr.mxu0 0.0
    %4879 = vmatpush1.msra.mxu0 0.0
    %4880 = vmatprep.subr.mxu0 0.0
    %4881 = vmatpush1.msra.mxu0 0.0
    %4882 = vmatprep.subr.mxu0 0.0
    %4883 = vmatpush1.msra.mxu0 0.0
    %4884 = vmatprep.subr.mxu0 0.0
    %4885 = vmatpush1.msra.mxu0 0.0
    %4886 = vmatprep.subr.mxu0 0.0
    %4887 = vmatpush1.msra.mxu0 0.0
    %4888 = vmatprep.subr.mxu0 0.0
    %4889 = vmatpush1.msra.mxu0 0.0
    %4890 = vmatprep.subr.mxu0 0.0
    %4891 = vmatpush1.msra.mxu0 0.0
    %4892 = vmatprep.subr.mxu0 0.0
    %4893 = vmatpush1.msra.mxu0 0.0
    %4894 = vmatprep.subr.mxu0 0.0
    %4895 = vmatpush1.msra.mxu0 0.0
    %4896 = vmatprep.mubr.f32.mxu0 0.0
    %4897 = vmatmul.mubr.f32.gmra.mrb[0].mxu0 %v4335
    %v4898 = vpop.f32.mrb[0].mxu0
    %v4899 = vadd.f32 %v4757, %v4898
    %v4900 = vpop.f32.mrb[0].mxu0
    %v4901 = vadd.f32 %v4759, %v4900
    %4902 = vdwg.mxu0
    %4903 = vmatprep.subr.mxu0 %v4565
    %4904 = vmatpush1.msra.mxu0 %v4564
    %4905 = vmatprep.subr.mxu0 %v4569
    %4906 = vmatpush1.msra.mxu0 %v4568
    %4907 = vmatprep.subr.mxu0 %v4573
    %4908 = vmatpush1.msra.mxu0 %v4572
    %4909 = vmatprep.subr.mxu0 %v4577
    %4910 = vmatpush1.msra.mxu0 %v4576
    %4911 = vmatprep.subr.mxu0 %v4581
    %4912 = vmatpush1.msra.mxu0 %v4580
    %4913 = vmatprep.subr.mxu0 %v4585
    %4914 = vmatpush1.msra.mxu0 %v4584
    %4915 = vmatprep.subr.mxu0 %v4589
    %4916 = vmatpush1.msra.mxu0 %v4588
    %4917 = vmatprep.subr.mxu0 %v4593
    %4918 = vmatpush1.msra.mxu0 %v4592
    %4919 = vmatprep.subr.mxu0 %v4597
    %4920 = vmatpush1.msra.mxu0 %v4596
    %4921 = vmatprep.subr.mxu0 %v4601
    %4922 = vmatpush1.msra.mxu0 %v4600
    %4923 = vmatprep.subr.mxu0 %v4605
    %4924 = vmatpush1.msra.mxu0 %v4604
    %4925 = vmatprep.subr.mxu0 %v4609
    %4926 = vmatpush1.msra.mxu0 %v4608
    %4927 = vmatprep.subr.mxu0 %v4613
    %4928 = vmatpush1.msra.mxu0 %v4612
    %4929 = vmatprep.subr.mxu0 %v4617
    %4930 = vmatpush1.msra.mxu0 %v4616
    %4931 = vmatprep.subr.mxu0 %v4621
    %4932 = vmatpush1.msra.mxu0 %v4620
    %4933 = vmatprep.subr.mxu0 %v4625
    %4934 = vmatpush1.msra.mxu0 %v4624
    %4935 = vmatprep.subr.mxu0 0.0
    %4936 = vmatpush1.msra.mxu0 0.0
    %4937 = vmatprep.subr.mxu0 0.0
    %4938 = vmatpush1.msra.mxu0 0.0
    %4939 = vmatprep.subr.mxu0 0.0
    %4940 = vmatpush1.msra.mxu0 0.0
    %4941 = vmatprep.subr.mxu0 0.0
    %4942 = vmatpush1.msra.mxu0 0.0
    %4943 = vmatprep.subr.mxu0 0.0
    %4944 = vmatpush1.msra.mxu0 0.0
    %4945 = vmatprep.subr.mxu0 0.0
    %4946 = vmatpush1.msra.mxu0 0.0
    %4947 = vmatprep.subr.mxu0 0.0
    %4948 = vmatpush1.msra.mxu0 0.0
    %4949 = vmatprep.subr.mxu0 0.0
    %4950 = vmatpush1.msra.mxu0 0.0
    %4951 = vmatprep.subr.mxu0 0.0
    %4952 = vmatpush1.msra.mxu0 0.0
    %4953 = vmatprep.subr.mxu0 0.0
    %4954 = vmatpush1.msra.mxu0 0.0
    %4955 = vmatprep.subr.mxu0 0.0
    %4956 = vmatpush1.msra.mxu0 0.0
    %4957 = vmatprep.subr.mxu0 0.0
    %4958 = vmatpush1.msra.mxu0 0.0
    %4959 = vmatprep.subr.mxu0 0.0
    %4960 = vmatpush1.msra.mxu0 0.0
    %4961 = vmatprep.subr.mxu0 0.0
    %4962 = vmatpush1.msra.mxu0 0.0
    %4963 = vmatprep.subr.mxu0 0.0
    %4964 = vmatpush1.msra.mxu0 0.0
    %4965 = vmatprep.subr.mxu0 0.0
    %4966 = vmatpush1.msra.mxu0 0.0
    %4967 = vmatprep.mubr.f32.mxu0 0.0
    %4968 = vmatmul.mubr.f32.gmra.mrb[0].mxu0 %v4335
    %v4969 = vpop.f32.mrb[0].mxu0
    %v4970 = vadd.f32 %v4828, %v4969
    %v4971 = vpop.f32.mrb[0].mxu0
    %v4972 = vadd.f32 %v4830, %v4971
    %4973 = vdwg.mxu0
    %v4975 = vlaneseq
    %v4976 = vshrl.u32 %v4975, 7
    %v4977 = vsub.s32 0, %v4976
    %v4978 = vrot.slane %v4313, %v4977
    %v4979 = vlaneseq
    %v4980 = vshrl.u32 %v4979, 7
    %v4981 = vsub.s32 1, %v4980
    %v4982 = vrot.slane %v4313, %v4981
    %v4983 = vlaneseq
    %v4984 = vshrl.u32 %v4983, 7
    %v4985 = vsub.s32 2, %v4984
    %v4986 = vrot.slane %v4313, %v4985
    %v4987 = vlaneseq
    %v4988 = vshrl.u32 %v4987, 7
    %v4989 = vsub.s32 3, %v4988
    %v4990 = vrot.slane %v4313, %v4989
    %v4995 = vadd.f32 %v4899, %v4978
    %v4996 = vadd.f32 %v4901, %v4982
    %v4997 = vadd.f32 %v4970, %v4986
    %v4998 = vadd.f32 %v4972, %v4990
    %v4999 = vmul.f32 %v4558, 0.5
    %v5000 = vmul.f32 %v4559, 0.5
    %v5001 = vmul.f32 %v4560, 0.5
    %v5002 = vtanh.pop %v4999
    %v5003 = vtanh.pop %v5000
    %v5004 = vtanh.pop %v5001
    %v5005 = vmul.f32 %v5002, 0.5
    %v5006 = vmul.f32 %v5003, 0.5
    %v5007 = vmul.f32 %v5004, 0.5
    %v5008 = vadd.f32 %v5005, 0.5
    %v5009 = vadd.f32 %v5006, 0.5
    %v5010 = vadd.f32 %v5007, 0.5
    %v5011 = vtanh.pop %v4561
    %v5013 = vrot.slane %v4333, 6
    %v5015 = vmul.f32 %v5009, %v5013
    %v5016 = vmul.f32 %v5008, %v5011
    %v5017 = vadd.f32 %v5015, %v5016
    %v5018 = vtanh.pop %v5017
    %v5019 = vmul.f32 %v5010, %v5018
    %v5020 = vmul.f32 %v4995, 0.5
    %v5021 = vmul.f32 %v4996, 0.5
    %v5022 = vmul.f32 %v4997, 0.5
    %v5023 = vtanh.pop %v5020
    %v5024 = vtanh.pop %v5021
    %v5025 = vtanh.pop %v5022
    %v5026 = vmul.f32 %v5023, 0.5
    %v5027 = vmul.f32 %v5024, 0.5
    %v5028 = vmul.f32 %v5025, 0.5
    %v5029 = vadd.f32 %v5026, 0.5
    %v5030 = vadd.f32 %v5027, 0.5
    %v5031 = vadd.f32 %v5028, 0.5
    %v5032 = vtanh.pop %v4998
    %v5033 = vmul.f32 %v5030, 0.0
    %v5034 = vmul.f32 %v5029, %v5032
    %v5035 = vadd.f32 %v5033, %v5034
    %v5036 = vtanh.pop %v5035
    %v5037 = vmul.f32 %v5031, %v5036
    %v5038 = vld [vmem:[#allocation4] sm:$0x30]
    %v5039 = vld [vmem:[#allocation4 + $0x8] sm:$0x30]
    %v5040 = vld [vmem:[#allocation4 + $0x10] sm:$0x30]
    %v5041 = vld [vmem:[#allocation4 + $0x18] sm:$0x30]
    %v5043 = vrot.slane %v5019, 2
    %5045 = vmatprep.subr.mxu0 %v4341
    %5046 = vmatpush1.msra.mxu0 %v4340
    %5047 = vmatprep.subr.mxu0 %v4345
    %5048 = vmatpush1.msra.mxu0 %v4344
    %5049 = vmatprep.subr.mxu0 %v4349
    %5050 = vmatpush1.msra.mxu0 %v4348
    %5051 = vmatprep.subr.mxu0 %v4353
    %5052 = vmatpush1.msra.mxu0 %v4352
    %5053 = vmatprep.subr.mxu0 %v4357
    %5054 = vmatpush1.msra.mxu0 %v4356
    %5055 = vmatprep.subr.mxu0 %v4361
    %5056 = vmatpush1.msra.mxu0 %v4360
    %5057 = vmatprep.subr.mxu0 %v4365
    %5058 = vmatpush1.msra.mxu0 %v4364
    %5059 = vmatprep.subr.mxu0 %v4369
    %5060 = vmatpush1.msra.mxu0 %v4368
    %5061 = vmatprep.subr.mxu0 %v4373
    %5062 = vmatpush1.msra.mxu0 %v4372
    %5063 = vmatprep.subr.mxu0 %v4377
    %5064 = vmatpush1.msra.mxu0 %v4376
    %5065 = vmatprep.subr.mxu0 %v4381
    %5066 = vmatpush1.msra.mxu0 %v4380
    %5067 = vmatprep.subr.mxu0 %v4385
    %5068 = vmatpush1.msra.mxu0 %v4384
    %5069 = vmatprep.subr.mxu0 %v4389
    %5070 = vmatpush1.msra.mxu0 %v4388
    %5071 = vmatprep.subr.mxu0 %v4393
    %5072 = vmatpush1.msra.mxu0 %v4392
    %5073 = vmatprep.subr.mxu0 %v4397
    %5074 = vmatpush1.msra.mxu0 %v4396
    %5075 = vmatprep.subr.mxu0 %v4401
    %5076 = vmatpush1.msra.mxu0 %v4400
    %5077 = vmatprep.subr.mxu0 0.0
    %5078 = vmatpush1.msra.mxu0 0.0
    %5079 = vmatprep.subr.mxu0 0.0
    %5080 = vmatpush1.msra.mxu0 0.0
    %5081 = vmatprep.subr.mxu0 0.0
    %5082 = vmatpush1.msra.mxu0 0.0
    %5083 = vmatprep.subr.mxu0 0.0
    %5084 = vmatpush1.msra.mxu0 0.0
    %5085 = vmatprep.subr.mxu0 0.0
    %5086 = vmatpush1.msra.mxu0 0.0
    %5087 = vmatprep.subr.mxu0 0.0
    %5088 = vmatpush1.msra.mxu0 0.0
    %5089 = vmatprep.subr.mxu0 0.0
    %5090 = vmatpush1.msra.mxu0 0.0
    %5091 = vmatprep.subr.mxu0 0.0
    %5092 = vmatpush1.msra.mxu0 0.0
    %5093 = vmatprep.subr.mxu0 0.0
    %5094 = vmatpush1.msra.mxu0 0.0
    %5095 = vmatprep.subr.mxu0 0.0
    %5096 = vmatpush1.msra.mxu0 0.0
    %5097 = vmatprep.subr.mxu0 0.0
    %5098 = vmatpush1.msra.mxu0 0.0
    %5099 = vmatprep.subr.mxu0 0.0
    %5100 = vmatpush1.msra.mxu0 0.0
    %5101 = vmatprep.subr.mxu0 0.0
    %5102 = vmatpush1.msra.mxu0 0.0
    %5103 = vmatprep.subr.mxu0 0.0
    %5104 = vmatpush1.msra.mxu0 0.0
    %5105 = vmatprep.subr.mxu0 0.0
    %5106 = vmatpush1.msra.mxu0 0.0
    %5107 = vmatprep.subr.mxu0 0.0
    %5108 = vmatpush1.msra.mxu0 0.0
    %5109 = vmatprep.mubr.f32.mxu0 0.0
    %5110 = vmatmul.mubr.f32.gmra.mrb[0].mxu0 %v5043
    %v5111 = vpop.f32.mrb[0].mxu0
    %v5112 = vadd.f32 0.0, %v5111
    %v5113 = vpop.f32.mrb[0].mxu0
    %v5114 = vadd.f32 0.0, %v5113
    %5115 = vdwg.mxu0
    %5116 = vmatprep.subr.mxu0 %v4343
    %5117 = vmatpush1.msra.mxu0 %v4342
    %5118 = vmatprep.subr.mxu0 %v4347
    %5119 = vmatpush1.msra.mxu0 %v4346
    %5120 = vmatprep.subr.mxu0 %v4351
    %5121 = vmatpush1.msra.mxu0 %v4350
    %5122 = vmatprep.subr.mxu0 %v4355
    %5123 = vmatpush1.msra.mxu0 %v4354
    %5124 = vmatprep.subr.mxu0 %v4359
    %5125 = vmatpush1.msra.mxu0 %v4358
    %5126 = vmatprep.subr.mxu0 %v4363
    %5127 = vmatpush1.msra.mxu0 %v4362
    %5128 = vmatprep.subr.mxu0 %v4367
    %5129 = vmatpush1.msra.mxu0 %v4366
    %5130 = vmatprep.subr.mxu0 %v4371
    %5131 = vmatpush1.msra.mxu0 %v4370
    %5132 = vmatprep.subr.mxu0 %v4375
    %5133 = vmatpush1.msra.mxu0 %v4374
    %5134 = vmatprep.subr.mxu0 %v4379
    %5135 = vmatpush1.msra.mxu0 %v4378
    %5136 = vmatprep.subr.mxu0 %v4383
    %5137 = vmatpush1.msra.mxu0 %v4382
    %5138 = vmatprep.subr.mxu0 %v4387
    %5139 = vmatpush1.msra.mxu0 %v4386
    %5140 = vmatprep.subr.mxu0 %v4391
    %5141 = vmatpush1.msra.mxu0 %v4390
    %5142 = vmatprep.subr.mxu0 %v4395
    %5143 = vmatpush1.msra.mxu0 %v4394
    %5144 = vmatprep.subr.mxu0 %v4399
    %5145 = vmatpush1.msra.mxu0 %v4398
    %5146 = vmatprep.subr.mxu0 %v4403
    %5147 = vmatpush1.msra.mxu0 %v4402
    %5148 = vmatprep.subr.mxu0 0.0
    %5149 = vmatpush1.msra.mxu0 0.0
    %5150 = vmatprep.subr.mxu0 0.0
    %5151 = vmatpush1.msra.mxu0 0.0
    %5152 = vmatprep.subr.mxu0 0.0
    %5153 = vmatpush1.msra.mxu0 0.0
    %5154 = vmatprep.subr.mxu0 0.0
    %5155 = vmatpush1.msra.mxu0 0.0
    %5156 = vmatprep.subr.mxu0 0.0
    %5157 = vmatpush1.msra.mxu0 0.0
    %5158 = vmatprep.subr.mxu0 0.0
    %5159 = vmatpush1.msra.mxu0 0.0
    %5160 = vmatprep.subr.mxu0 0.0
    %5161 = vmatpush1.msra.mxu0 0.0
    %5162 = vmatprep.subr.mxu0 0.0
    %5163 = vmatpush1.msra.mxu0 0.0
    %5164 = vmatprep.subr.mxu0 0.0
    %5165 = vmatpush1.msra.mxu0 0.0
    %5166 = vmatprep.subr.mxu0 0.0
    %5167 = vmatpush1.msra.mxu0 0.0
    %5168 = vmatprep.subr.mxu0 0.0
    %5169 = vmatpush1.msra.mxu0 0.0
    %5170 = vmatprep.subr.mxu0 0.0
    %5171 = vmatpush1.msra.mxu0 0.0
    %5172 = vmatprep.subr.mxu0 0.0
    %5173 = vmatpush1.msra.mxu0 0.0
    %5174 = vmatprep.subr.mxu0 0.0
    %5175 = vmatpush1.msra.mxu0 0.0
    %5176 = vmatprep.subr.mxu0 0.0
    %5177 = vmatpush1.msra.mxu0 0.0
    %5178 = vmatprep.subr.mxu0 0.0
    %5179 = vmatpush1.msra.mxu0 0.0
    %5180 = vmatprep.mubr.f32.mxu0 0.0
    %5181 = vmatmul.mubr.f32.gmra.mrb[0].mxu0 %v5043
    %v5182 = vpop.f32.mrb[0].mxu0
    %v5183 = vadd.f32 0.0, %v5182
    %v5184 = vpop.f32.mrb[0].mxu0
    %v5185 = vadd.f32 0.0, %v5184
    %5186 = vdwg.mxu0
    %v5191 = vrot.slane %v5112, 4
    %v5192 = vrot.slane %v5114, 4
    %v5193 = vrot.slane %v5183, 4
    %v5194 = vrot.slane %v5185, 4
    %v5199 = vadd.f32 %v5038, %v5191
    %v5200 = vadd.f32 %v5039, %v5192
    %v5201 = vadd.f32 %v5040, %v5193
    %v5202 = vadd.f32 %v5041, %v5194
    %5203 = vmatprep.subr.mxu0 %v4627
    %5204 = vmatpush1.msra.mxu0 %v4626
    %5205 = vmatprep.subr.mxu0 %v4631
    %5206 = vmatpush1.msra.mxu0 %v4630
    %5207 = vmatprep.subr.mxu0 %v4635
    %5208 = vmatpush1.msra.mxu0 %v4634
    %5209 = vmatprep.subr.mxu0 %v4639
    %5210 = vmatpush1.msra.mxu0 %v4638
    %5211 = vmatprep.subr.mxu0 %v4643
    %5212 = vmatpush1.msra.mxu0 %v4642
    %5213 = vmatprep.subr.mxu0 %v4647
    %5214 = vmatpush1.msra.mxu0 %v4646
    %5215 = vmatprep.subr.mxu0 %v4651
    %5216 = vmatpush1.msra.mxu0 %v4650
    %5217 = vmatprep.subr.mxu0 %v4655
    %5218 = vmatpush1.msra.mxu0 %v4654
    %5219 = vmatprep.subr.mxu0 %v4659
    %5220 = vmatpush1.msra.mxu0 %v4658
    %5221 = vmatprep.subr.mxu0 %v4663
    %5222 = vmatpush1.msra.mxu0 %v4662
    %5223 = vmatprep.subr.mxu0 %v4667
    %5224 = vmatpush1.msra.mxu0 %v4666
    %5225 = vmatprep.subr.mxu0 %v4671
    %5226 = vmatpush1.msra.mxu0 %v4670
    %5227 = vmatprep.subr.mxu0 %v4675
    %5228 = vmatpush1.msra.mxu0 %v4674
    %5229 = vmatprep.subr.mxu0 %v4679
    %5230 = vmatpush1.msra.mxu0 %v4678
    %5231 = vmatprep.subr.mxu0 %v4683
    %5232 = vmatpush1.msra.mxu0 %v4682
    %5233 = vmatprep.subr.mxu0 %v4687
    %5234 = vmatpush1.msra.mxu0 %v4686
    %5235 = vmatprep.subr.mxu0 0.0
    %5236 = vmatpush1.msra.mxu0 0.0
    %5237 = vmatprep.subr.mxu0 0.0
    %5238 = vmatpush1.msra.mxu0 0.0
    %5239 = vmatprep.subr.mxu0 0.0
    %5240 = vmatpush1.msra.mxu0 0.0
    %5241 = vmatprep.subr.mxu0 0.0
    %5242 = vmatpush1.msra.mxu0 0.0
    %5243 = vmatprep.subr.mxu0 0.0
    %5244 = vmatpush1.msra.mxu0 0.0
    %5245 = vmatprep.subr.mxu0 0.0
    %5246 = vmatpush1.msra.mxu0 0.0
    %5247 = vmatprep.subr.mxu0 0.0
    %5248 = vmatpush1.msra.mxu0 0.0
    %5249 = vmatprep.subr.mxu0 0.0
    %5250 = vmatpush1.msra.mxu0 0.0
    %5251 = vmatprep.subr.mxu0 0.0
    %5252 = vmatpush1.msra.mxu0 0.0
    %5253 = vmatprep.subr.mxu0 0.0
    %5254 = vmatpush1.msra.mxu0 0.0
    %5255 = vmatprep.subr.mxu0 0.0
    %5256 = vmatpush1.msra.mxu0 0.0
    %5257 = vmatprep.subr.mxu0 0.0
    %5258 = vmatpush1.msra.mxu0 0.0
    %5259 = vmatprep.subr.mxu0 0.0
    %5260 = vmatpush1.msra.mxu0 0.0
    %5261 = vmatprep.subr.mxu0 0.0
    %5262 = vmatpush1.msra.mxu0 0.0
    %5263 = vmatprep.subr.mxu0 0.0
    %5264 = vmatpush1.msra.mxu0 0.0
    %5265 = vmatprep.subr.mxu0 0.0
    %5266 = vmatpush1.msra.mxu0 0.0
    %5267 = vmatprep.mubr.f32.mxu0 0.0
    %5268 = vmatmul.mubr.f32.gmra.mrb[0].mxu0 %v5037
    %v5269 = vpop.f32.mrb[0].mxu0
    %v5270 = vadd.f32 0.0, %v5269
    %v5271 = vpop.f32.mrb[0].mxu0
    %v5272 = vadd.f32 0.0, %v5271
    %5273 = vdwg.mxu0
    %5274 = vmatprep.subr.mxu0 %v4629
    %5275 = vmatpush1.msra.mxu0 %v4628
    %5276 = vmatprep.subr.mxu0 %v4633
    %5277 = vmatpush1.msra.mxu0 %v4632
    %5278 = vmatprep.subr.mxu0 %v4637
    %5279 = vmatpush1.msra.mxu0 %v4636
    %5280 = vmatprep.subr.mxu0 %v4641
    %5281 = vmatpush1.msra.mxu0 %v4640
    %5282 = vmatprep.subr.mxu0 %v4645
    %5283 = vmatpush1.msra.mxu0 %v4644
    %5284 = vmatprep.subr.mxu0 %v4649
    %5285 = vmatpush1.msra.mxu0 %v4648
    %5286 = vmatprep.subr.mxu0 %v4653
    %5287 = vmatpush1.msra.mxu0 %v4652
    %5288 = vmatprep.subr.mxu0 %v4657
    %5289 = vmatpush1.msra.mxu0 %v4656
    %5290 = vmatprep.subr.mxu0 %v4661
    %5291 = vmatpush1.msra.mxu0 %v4660
    %5292 = vmatprep.subr.mxu0 %v4665
    %5293 = vmatpush1.msra.mxu0 %v4664
    %5294 = vmatprep.subr.mxu0 %v4669
    %5295 = vmatpush1.msra.mxu0 %v4668
    %5296 = vmatprep.subr.mxu0 %v4673
    %5297 = vmatpush1.msra.mxu0 %v4672
    %5298 = vmatprep.subr.mxu0 %v4677
    %5299 = vmatpush1.msra.mxu0 %v4676
    %5300 = vmatprep.subr.mxu0 %v4681
    %5301 = vmatpush1.msra.mxu0 %v4680
    %5302 = vmatprep.subr.mxu0 %v4685
    %5303 = vmatpush1.msra.mxu0 %v4684
    %5304 = vmatprep.subr.mxu0 %v4689
    %5305 = vmatpush1.msra.mxu0 %v4688
    %5306 = vmatprep.subr.mxu0 0.0
    %5307 = vmatpush1.msra.mxu0 0.0
    %5308 = vmatprep.subr.mxu0 0.0
    %5309 = vmatpush1.msra.mxu0 0.0
    %5310 = vmatprep.subr.mxu0 0.0
    %5311 = vmatpush1.msra.mxu0 0.0
    %5312 = vmatprep.subr.mxu0 0.0
    %5313 = vmatpush1.msra.mxu0 0.0
    %5314 = vmatprep.subr.mxu0 0.0
    %5315 = vmatpush1.msra.mxu0 0.0
    %5316 = vmatprep.subr.mxu0 0.0
    %5317 = vmatpush1.msra.mxu0 0.0
    %5318 = vmatprep.subr.mxu0 0.0
    %5319 = vmatpush1.msra.mxu0 0.0
    %5320 = vmatprep.subr.mxu0 0.0
    %5321 = vmatpush1.msra.mxu0 0.0
    %5322 = vmatprep.subr.mxu0 0.0
    %5323 = vmatpush1.msra.mxu0 0.0
    %5324 = vmatprep.subr.mxu0 0.0
    %5325 = vmatpush1.msra.mxu0 0.0
    %5326 = vmatprep.subr.mxu0 0.0
    %5327 = vmatpush1.msra.mxu0 0.0
    %5328 = vmatprep.subr.mxu0 0.0
    %5329 = vmatpush1.msra.mxu0 0.0
    %5330 = vmatprep.subr.mxu0 0.0
    %5331 = vmatpush1.msra.mxu0 0.0
    %5332 = vmatprep.subr.mxu0 0.0
    %5333 = vmatpush1.msra.mxu0 0.0
    %5334 = vmatprep.subr.mxu0 0.0
    %5335 = vmatpush1.msra.mxu0 0.0
    %5336 = vmatprep.subr.mxu0 0.0
    %5337 = vmatpush1.msra.mxu0 0.0
    %5338 = vmatprep.mubr.f32.mxu0 0.0
    %5339 = vmatmul.mubr.f32.gmra.mrb[0].mxu0 %v5037
    %v5340 = vpop.f32.mrb[0].mxu0
    %v5341 = vadd.f32 0.0, %v5340
    %v5342 = vpop.f32.mrb[0].mxu0
    %v5343 = vadd.f32 0.0, %v5342
    %5344 = vdwg.mxu0
    %5345 = vmatprep.subr.mxu0 %v4563
    %5346 = vmatpush1.msra.mxu0 %v4562
    %5347 = vmatprep.subr.mxu0 %v4567
    %5348 = vmatpush1.msra.mxu0 %v4566
    %5349 = vmatprep.subr.mxu0 %v4571
    %5350 = vmatpush1.msra.mxu0 %v4570
    %5351 = vmatprep.subr.mxu0 %v4575
    %5352 = vmatpush1.msra.mxu0 %v4574
    %5353 = vmatprep.subr.mxu0 %v4579
    %5354 = vmatpush1.msra.mxu0 %v4578
    %5355 = vmatprep.subr.mxu0 %v4583
    %5356 = vmatpush1.msra.mxu0 %v4582
    %5357 = vmatprep.subr.mxu0 %v4587
    %5358 = vmatpush1.msra.mxu0 %v4586
    %5359 = vmatprep.subr.mxu0 %v4591
    %5360 = vmatpush1.msra.mxu0 %v4590
    %5361 = vmatprep.subr.mxu0 %v4595
    %5362 = vmatpush1.msra.mxu0 %v4594
    %5363 = vmatprep.subr.mxu0 %v4599
    %5364 = vmatpush1.msra.mxu0 %v4598
    %5365 = vmatprep.subr.mxu0 %v4603
    %5366 = vmatpush1.msra.mxu0 %v4602
    %5367 = vmatprep.subr.mxu0 %v4607
    %5368 = vmatpush1.msra.mxu0 %v4606
    %5369 = vmatprep.subr.mxu0 %v4611
    %5370 = vmatpush1.msra.mxu0 %v4610
    %5371 = vmatprep.subr.mxu0 %v4615
    %5372 = vmatpush1.msra.mxu0 %v4614
    %5373 = vmatprep.subr.mxu0 %v4619
    %5374 = vmatpush1.msra.mxu0 %v4618
    %5375 = vmatprep.subr.mxu0 %v4623
    %5376 = vmatpush1.msra.mxu0 %v4622
    %5377 = vmatprep.subr.mxu0 0.0
    %5378 = vmatpush1.msra.mxu0 0.0
    %5379 = vmatprep.subr.mxu0 0.0
    %5380 = vmatpush1.msra.mxu0 0.0
    %5381 = vmatprep.subr.mxu0 0.0
    %5382 = vmatpush1.msra.mxu0 0.0
    %5383 = vmatprep.subr.mxu0 0.0
    %5384 = vmatpush1.msra.mxu0 0.0
    %5385 = vmatprep.subr.mxu0 0.0
    %5386 = vmatpush1.msra.mxu0 0.0
    %5387 = vmatprep.subr.mxu0 0.0
    %5388 = vmatpush1.msra.mxu0 0.0
    %5389 = vmatprep.subr.mxu0 0.0
    %5390 = vmatpush1.msra.mxu0 0.0
    %5391 = vmatprep.subr.mxu0 0.0
    %5392 = vmatpush1.msra.mxu0 0.0
    %5393 = vmatprep.subr.mxu0 0.0
    %5394 = vmatpush1.msra.mxu0 0.0
    %5395 = vmatprep.subr.mxu0 0.0
    %5396 = vmatpush1.msra.mxu0 0.0
    %5397 = vmatprep.subr.mxu0 0.0
    %5398 = vmatpush1.msra.mxu0 0.0
    %5399 = vmatprep.subr.mxu0 0.0
    %5400 = vmatpush1.msra.mxu0 0.0
    %5401 = vmatprep.subr.mxu0 0.0
    %5402 = vmatpush1.msra.mxu0 0.0
    %5403 = vmatprep.subr.mxu0 0.0
    %5404 = vmatpush1.msra.mxu0 0.0
    %5405 = vmatprep.subr.mxu0 0.0
    %5406 = vmatpush1.msra.mxu0 0.0
    %5407 = vmatprep.subr.mxu0 0.0
    %5408 = vmatpush1.msra.mxu0 0.0
    %5409 = vmatprep.mubr.f32.mxu0 0.0
    %5410 = vmatmul.mubr.f32.gmra.mrb[0].mxu0 %v5043
    %v5411 = vpop.f32.mrb[0].mxu0
    %v5412 = vadd.f32 %v5270, %v5411
    %v5413 = vpop.f32.mrb[0].mxu0
    %v5414 = vadd.f32 %v5272, %v5413
    %5415 = vdwg.mxu0
    %5416 = vmatprep.subr.mxu0 %v4565
    %5417 = vmatpush1.msra.mxu0 %v4564
    %5418 = vmatprep.subr.mxu0 %v4569
    %5419 = vmatpush1.msra.mxu0 %v4568
    %5420 = vmatprep.subr.mxu0 %v4573
    %5421 = vmatpush1.msra.mxu0 %v4572
    %5422 = vmatprep.subr.mxu0 %v4577
    %5423 = vmatpush1.msra.mxu0 %v4576
    %5424 = vmatprep.subr.mxu0 %v4581
    %5425 = vmatpush1.msra.mxu0 %v4580
    %5426 = vmatprep.subr.mxu0 %v4585
    %5427 = vmatpush1.msra.mxu0 %v4584
    %5428 = vmatprep.subr.mxu0 %v4589
    %5429 = vmatpush1.msra.mxu0 %v4588
    %5430 = vmatprep.subr.mxu0 %v4593
    %5431 = vmatpush1.msra.mxu0 %v4592
    %5432 = vmatprep.subr.mxu0 %v4597
    %5433 = vmatpush1.msra.mxu0 %v4596
    %5434 = vmatprep.subr.mxu0 %v4601
    %5435 = vmatpush1.msra.mxu0 %v4600
    %5436 = vmatprep.subr.mxu0 %v4605
    %5437 = vmatpush1.msra.mxu0 %v4604
    %5438 = vmatprep.subr.mxu0 %v4609
    %5439 = vmatpush1.msra.mxu0 %v4608
    %5440 = vmatprep.subr.mxu0 %v4613
    %5441 = vmatpush1.msra.mxu0 %v4612
    %5442 = vmatprep.subr.mxu0 %v4617
    %5443 = vmatpush1.msra.mxu0 %v4616
    %5444 = vmatprep.subr.mxu0 %v4621
    %5445 = vmatpush1.msra.mxu0 %v4620
    %5446 = vmatprep.subr.mxu0 %v4625
    %5447 = vmatpush1.msra.mxu0 %v4624
    %5448 = vmatprep.subr.mxu0 0.0
    %5449 = vmatpush1.msra.mxu0 0.0
    %5450 = vmatprep.subr.mxu0 0.0
    %5451 = vmatpush1.msra.mxu0 0.0
    %5452 = vmatprep.subr.mxu0 0.0
    %5453 = vmatpush1.msra.mxu0 0.0
    %5454 = vmatprep.subr.mxu0 0.0
    %5455 = vmatpush1.msra.mxu0 0.0
    %5456 = vmatprep.subr.mxu0 0.0
    %5457 = vmatpush1.msra.mxu0 0.0
    %5458 = vmatprep.subr.mxu0 0.0
    %5459 = vmatpush1.msra.mxu0 0.0
    %5460 = vmatprep.subr.mxu0 0.0
    %5461 = vmatpush1.msra.mxu0 0.0
    %5462 = vmatprep.subr.mxu0 0.0
    %5463 = vmatpush1.msra.mxu0 0.0
    %5464 = vmatprep.subr.mxu0 0.0
    %5465 = vmatpush1.msra.mxu0 0.0
    %5466 = vmatprep.subr.mxu0 0.0
    %5467 = vmatpush1.msra.mxu0 0.0
    %5468 = vmatprep.subr.mxu0 0.0
    %5469 = vmatpush1.msra.mxu0 0.0
    %5470 = vmatprep.subr.mxu0 0.0
    %5471 = vmatpush1.msra.mxu0 0.0
    %5472 = vmatprep.subr.mxu0 0.0
    %5473 = vmatpush1.msra.mxu0 0.0
    %5474 = vmatprep.subr.mxu0 0.0
    %5475 = vmatpush1.msra.mxu0 0.0
    %5476 = vmatprep.subr.mxu0 0.0
    %5477 = vmatpush1.msra.mxu0 0.0
    %5478 = vmatprep.subr.mxu0 0.0
    %5479 = vmatpush1.msra.mxu0 0.0
    %5480 = vmatprep.mubr.f32.mxu0 0.0
    %5481 = vmatmul.mubr.f32.gmra.mrb[0].mxu0 %v5043
    %v5482 = vpop.f32.mrb[0].mxu0
    %v5483 = vadd.f32 %v5341, %v5482
    %v5484 = vpop.f32.mrb[0].mxu0
    %v5485 = vadd.f32 %v5343, %v5484
    %5486 = vdwg.mxu0
    %v5487 = vadd.f32 %v5412, %v4978
    %v5488 = vadd.f32 %v5414, %v4982
    %v5489 = vadd.f32 %v5483, %v4986
    %v5490 = vadd.f32 %v5485, %v4990
    %v5491 = vmul.f32 %v5199, 0.5
    %v5492 = vmul.f32 %v5200, 0.5
    %v5493 = vmul.f32 %v5201, 0.5
    %v5494 = vtanh.pop %v5491
    %v5495 = vtanh.pop %v5492
    %v5496 = vtanh.pop %v5493
    %v5497 = vmul.f32 %v5494, 0.5
    %v5498 = vmul.f32 %v5495, 0.5
    %v5499 = vmul.f32 %v5496, 0.5
    %v5500 = vadd.f32 %v5497, 0.5
    %v5501 = vadd.f32 %v5498, 0.5
    %v5502 = vadd.f32 %v5499, 0.5
    %v5503 = vtanh.pop %v5202
    %v5505 = vrot.slane %v5017, 6
    %v5507 = vmul.f32 %v5501, %v5505
    %v5508 = vmul.f32 %v5500, %v5503
    %v5509 = vadd.f32 %v5507, %v5508
    %v5510 = vtanh.pop %v5509
    %v5511 = vmul.f32 %v5502, %v5510
    %v5512 = vmul.f32 %v5487, 0.5
    %v5513 = vmul.f32 %v5488, 0.5
    %v5514 = vmul.f32 %v5489, 0.5
    %v5515 = vtanh.pop %v5512
    %v5516 = vtanh.pop %v5513
    %v5517 = vtanh.pop %v5514
    %v5518 = vmul.f32 %v5515, 0.5
    %v5519 = vmul.f32 %v5516, 0.5
    %v5520 = vmul.f32 %v5517, 0.5
    %v5521 = vadd.f32 %v5518, 0.5
    %v5522 = vadd.f32 %v5519, 0.5
    %v5523 = vadd.f32 %v5520, 0.5
    %v5524 = vtanh.pop %v5490
    %v5525 = vmul.f32 %v5522, %v5035
    %v5526 = vmul.f32 %v5521, %v5524
    %v5527 = vadd.f32 %v5525, %v5526
    %v5528 = vtanh.pop %v5527
    %v5529 = vmul.f32 %v5523, %v5528
    %v5530 = vld [vmem:[#allocation4] sm:$0xc0]
    %v5531 = vld [vmem:[#allocation4 + $0x8] sm:$0xc0]
    %v5532 = vld [vmem:[#allocation4 + $0x10] sm:$0xc0]
    %v5533 = vld [vmem:[#allocation4 + $0x18] sm:$0xc0]
    %v5535 = vrot.slane %v5511, 4
    %5537 = vmatprep.subr.mxu0 %v4341
    %5538 = vmatpush1.msra.mxu0 %v4340
    %5539 = vmatprep.subr.mxu0 %v4345
    %5540 = vmatpush1.msra.mxu0 %v4344
    %5541 = vmatprep.subr.mxu0 %v4349
    %5542 = vmatpush1.msra.mxu0 %v4348
    %5543 = vmatprep.subr.mxu0 %v4353
    %5544 = vmatpush1.msra.mxu0 %v4352
    %5545 = vmatprep.subr.mxu0 %v4357
    %5546 = vmatpush1.msra.mxu0 %v4356
    %5547 = vmatprep.subr.mxu0 %v4361
    %5548 = vmatpush1.msra.mxu0 %v4360
    %5549 = vmatprep.subr.mxu0 %v4365
    %5550 = vmatpush1.msra.mxu0 %v4364
    %5551 = vmatprep.subr.mxu0 %v4369
    %5552 = vmatpush1.msra.mxu0 %v4368
    %5553 = vmatprep.subr.mxu0 %v4373
    %5554 = vmatpush1.msra.mxu0 %v4372
    %5555 = vmatprep.subr.mxu0 %v4377
    %5556 = vmatpush1.msra.mxu0 %v4376
    %5557 = vmatprep.subr.mxu0 %v4381
    %5558 = vmatpush1.msra.mxu0 %v4380
    %5559 = vmatprep.subr.mxu0 %v4385
    %5560 = vmatpush1.msra.mxu0 %v4384
    %5561 = vmatprep.subr.mxu0 %v4389
    %5562 = vmatpush1.msra.mxu0 %v4388
    %5563 = vmatprep.subr.mxu0 %v4393
    %5564 = vmatpush1.msra.mxu0 %v4392
    %5565 = vmatprep.subr.mxu0 %v4397
    %5566 = vmatpush1.msra.mxu0 %v4396
    %5567 = vmatprep.subr.mxu0 %v4401
    %5568 = vmatpush1.msra.mxu0 %v4400
    %5569 = vmatprep.subr.mxu0 0.0
    %5570 = vmatpush1.msra.mxu0 0.0
    %5571 = vmatprep.subr.mxu0 0.0
    %5572 = vmatpush1.msra.mxu0 0.0
    %5573 = vmatprep.subr.mxu0 0.0
    %5574 = vmatpush1.msra.mxu0 0.0
    %5575 = vmatprep.subr.mxu0 0.0
    %5576 = vmatpush1.msra.mxu0 0.0
    %5577 = vmatprep.subr.mxu0 0.0
    %5578 = vmatpush1.msra.mxu0 0.0
    %5579 = vmatprep.subr.mxu0 0.0
    %5580 = vmatpush1.msra.mxu0 0.0
    %5581 = vmatprep.subr.mxu0 0.0
    %5582 = vmatpush1.msra.mxu0 0.0
    %5583 = vmatprep.subr.mxu0 0.0
    %5584 = vmatpush1.msra.mxu0 0.0
    %5585 = vmatprep.subr.mxu0 0.0
    %5586 = vmatpush1.msra.mxu0 0.0
    %5587 = vmatprep.subr.mxu0 0.0
    %5588 = vmatpush1.msra.mxu0 0.0
    %5589 = vmatprep.subr.mxu0 0.0
    %5590 = vmatpush1.msra.mxu0 0.0
    %5591 = vmatprep.subr.mxu0 0.0
    %5592 = vmatpush1.msra.mxu0 0.0
    %5593 = vmatprep.subr.mxu0 0.0
    %5594 = vmatpush1.msra.mxu0 0.0
    %5595 = vmatprep.subr.mxu0 0.0
    %5596 = vmatpush1.msra.mxu0 0.0
    %5597 = vmatprep.subr.mxu0 0.0
    %5598 = vmatpush1.msra.mxu0 0.0
    %5599 = vmatprep.subr.mxu0 0.0
    %5600 = vmatpush1.msra.mxu0 0.0
    %5601 = vmatprep.mubr.f32.mxu0 0.0
    %5602 = vmatmul.mubr.f32.gmra.mrb[0].mxu0 %v5535
    %v5603 = vpop.f32.mrb[0].mxu0
    %v5604 = vadd.f32 0.0, %v5603
    %v5605 = vpop.f32.mrb[0].mxu0
    %v5606 = vadd.f32 0.0, %v5605
    %5607 = vdwg.mxu0
    %5608 = vmatprep.subr.mxu0 %v4343
    %5609 = vmatpush1.msra.mxu0 %v4342
    %5610 = vmatprep.subr.mxu0 %v4347
    %5611 = vmatpush1.msra.mxu0 %v4346
    %5612 = vmatprep.subr.mxu0 %v4351
    %5613 = vmatpush1.msra.mxu0 %v4350
    %5614 = vmatprep.subr.mxu0 %v4355
    %5615 = vmatpush1.msra.mxu0 %v4354
    %5616 = vmatprep.subr.mxu0 %v4359
    %5617 = vmatpush1.msra.mxu0 %v4358
    %5618 = vmatprep.subr.mxu0 %v4363
    %5619 = vmatpush1.msra.mxu0 %v4362
    %5620 = vmatprep.subr.mxu0 %v4367
    %5621 = vmatpush1.msra.mxu0 %v4366
    %5622 = vmatprep.subr.mxu0 %v4371
    %5623 = vmatpush1.msra.mxu0 %v4370
    %5624 = vmatprep.subr.mxu0 %v4375
    %5625 = vmatpush1.msra.mxu0 %v4374
    %5626 = vmatprep.subr.mxu0 %v4379
    %5627 = vmatpush1.msra.mxu0 %v4378
    %5628 = vmatprep.subr.mxu0 %v4383
    %5629 = vmatpush1.msra.mxu0 %v4382
    %5630 = vmatprep.subr.mxu0 %v4387
    %5631 = vmatpush1.msra.mxu0 %v4386
    %5632 = vmatprep.subr.mxu0 %v4391
    %5633 = vmatpush1.msra.mxu0 %v4390
    %5634 = vmatprep.subr.mxu0 %v4395
    %5635 = vmatpush1.msra.mxu0 %v4394
    %5636 = vmatprep.subr.mxu0 %v4399
    %5637 = vmatpush1.msra.mxu0 %v4398
    %5638 = vmatprep.subr.mxu0 %v4403
    %5639 = vmatpush1.msra.mxu0 %v4402
    %5640 = vmatprep.subr.mxu0 0.0
    %5641 = vmatpush1.msra.mxu0 0.0
    %5642 = vmatprep.subr.mxu0 0.0
    %5643 = vmatpush1.msra.mxu0 0.0
    %5644 = vmatprep.subr.mxu0 0.0
    %5645 = vmatpush1.msra.mxu0 0.0
    %5646 = vmatprep.subr.mxu0 0.0
    %5647 = vmatpush1.msra.mxu0 0.0
    %5648 = vmatprep.subr.mxu0 0.0
    %5649 = vmatpush1.msra.mxu0 0.0
    %5650 = vmatprep.subr.mxu0 0.0
    %5651 = vmatpush1.msra.mxu0 0.0
    %5652 = vmatprep.subr.mxu0 0.0
    %5653 = vmatpush1.msra.mxu0 0.0
    %5654 = vmatprep.subr.mxu0 0.0
    %5655 = vmatpush1.msra.mxu0 0.0
    %5656 = vmatprep.subr.mxu0 0.0
    %5657 = vmatpush1.msra.mxu0 0.0
    %5658 = vmatprep.subr.mxu0 0.0
    %5659 = vmatpush1.msra.mxu0 0.0
    %5660 = vmatprep.subr.mxu0 0.0
    %5661 = vmatpush1.msra.mxu0 0.0
    %5662 = vmatprep.subr.mxu0 0.0
    %5663 = vmatpush1.msra.mxu0 0.0
    %5664 = vmatprep.subr.mxu0 0.0
    %5665 = vmatpush1.msra.mxu0 0.0
    %5666 = vmatprep.subr.mxu0 0.0
    %5667 = vmatpush1.msra.mxu0 0.0
    %5668 = vmatprep.subr.mxu0 0.0
    %5669 = vmatpush1.msra.mxu0 0.0
    %5670 = vmatprep.subr.mxu0 0.0
    %5671 = vmatpush1.msra.mxu0 0.0
    %5672 = vmatprep.mubr.f32.mxu0 0.0
    %5673 = vmatmul.mubr.f32.gmra.mrb[0].mxu0 %v5535
    %v5674 = vpop.f32.mrb[0].mxu0
    %v5675 = vadd.f32 0.0, %v5674
    %v5676 = vpop.f32.mrb[0].mxu0
    %v5677 = vadd.f32 0.0, %v5676
    %5678 = vdwg.mxu0
    %v5683 = vrot.slane %v5604, 2
    %v5684 = vrot.slane %v5606, 2
    %v5685 = vrot.slane %v5675, 2
    %v5686 = vrot.slane %v5677, 2
    %v5691 = vadd.f32 %v5530, %v5683
    %v5692 = vadd.f32 %v5531, %v5684
    %v5693 = vadd.f32 %v5532, %v5685
    %v5694 = vadd.f32 %v5533, %v5686
    %5695 = vmatprep.subr.mxu0 %v4627
    %5696 = vmatpush1.msra.mxu0 %v4626
    %5697 = vmatprep.subr.mxu0 %v4631
    %5698 = vmatpush1.msra.mxu0 %v4630
    %5699 = vmatprep.subr.mxu0 %v4635
    %5700 = vmatpush1.msra.mxu0 %v4634
    %5701 = vmatprep.subr.mxu0 %v4639
    %5702 = vmatpush1.msra.mxu0 %v4638
    %5703 = vmatprep.subr.mxu0 %v4643
    %5704 = vmatpush1.msra.mxu0 %v4642
    %5705 = vmatprep.subr.mxu0 %v4647
    %5706 = vmatpush1.msra.mxu0 %v4646
    %5707 = vmatprep.subr.mxu0 %v4651
    %5708 = vmatpush1.msra.mxu0 %v4650
    %5709 = vmatprep.subr.mxu0 %v4655
    %5710 = vmatpush1.msra.mxu0 %v4654
    %5711 = vmatprep.subr.mxu0 %v4659
    %5712 = vmatpush1.msra.mxu0 %v4658
    %5713 = vmatprep.subr.mxu0 %v4663
    %5714 = vmatpush1.msra.mxu0 %v4662
    %5715 = vmatprep.subr.mxu0 %v4667
    %5716 = vmatpush1.msra.mxu0 %v4666
    %5717 = vmatprep.subr.mxu0 %v4671
    %5718 = vmatpush1.msra.mxu0 %v4670
    %5719 = vmatprep.subr.mxu0 %v4675
    %5720 = vmatpush1.msra.mxu0 %v4674
    %5721 = vmatprep.subr.mxu0 %v4679
    %5722 = vmatpush1.msra.mxu0 %v4678
    %5723 = vmatprep.subr.mxu0 %v4683
    %5724 = vmatpush1.msra.mxu0 %v4682
    %5725 = vmatprep.subr.mxu0 %v4687
    %5726 = vmatpush1.msra.mxu0 %v4686
    %5727 = vmatprep.subr.mxu0 0.0
    %5728 = vmatpush1.msra.mxu0 0.0
    %5729 = vmatprep.subr.mxu0 0.0
    %5730 = vmatpush1.msra.mxu0 0.0
    %5731 = vmatprep.subr.mxu0 0.0
    %5732 = vmatpush1.msra.mxu0 0.0
    %5733 = vmatprep.subr.mxu0 0.0
    %5734 = vmatpush1.msra.mxu0 0.0
    %5735 = vmatprep.subr.mxu0 0.0
    %5736 = vmatpush1.msra.mxu0 0.0
    %5737 = vmatprep.subr.mxu0 0.0
    %5738 = vmatpush1.msra.mxu0 0.0
    %5739 = vmatprep.subr.mxu0 0.0
    %5740 = vmatpush1.msra.mxu0 0.0
    %5741 = vmatprep.subr.mxu0 0.0
    %5742 = vmatpush1.msra.mxu0 0.0
    %5743 = vmatprep.subr.mxu0 0.0
    %5744 = vmatpush1.msra.mxu0 0.0
    %5745 = vmatprep.subr.mxu0 0.0
    %5746 = vmatpush1.msra.mxu0 0.0
    %5747 = vmatprep.subr.mxu0 0.0
    %5748 = vmatpush1.msra.mxu0 0.0
    %5749 = vmatprep.subr.mxu0 0.0
    %5750 = vmatpush1.msra.mxu0 0.0
    %5751 = vmatprep.subr.mxu0 0.0
    %5752 = vmatpush1.msra.mxu0 0.0
    %5753 = vmatprep.subr.mxu0 0.0
    %5754 = vmatpush1.msra.mxu0 0.0
    %5755 = vmatprep.subr.mxu0 0.0
    %5756 = vmatpush1.msra.mxu0 0.0
    %5757 = vmatprep.subr.mxu0 0.0
    %5758 = vmatpush1.msra.mxu0 0.0
    %5759 = vmatprep.mubr.f32.mxu0 0.0
    %5760 = vmatmul.mubr.f32.gmra.mrb[0].mxu0 %v5529
    %v5761 = vpop.f32.mrb[0].mxu0
    %v5762 = vadd.f32 0.0, %v5761
    %v5763 = vpop.f32.mrb[0].mxu0
    %v5764 = vadd.f32 0.0, %v5763
    %5765 = vdwg.mxu0
    %5766 = vmatprep.subr.mxu0 %v4629
    %5767 = vmatpush1.msra.mxu0 %v4628
    %5768 = vmatprep.subr.mxu0 %v4633
    %5769 = vmatpush1.msra.mxu0 %v4632
    %5770 = vmatprep.subr.mxu0 %v4637
    %5771 = vmatpush1.msra.mxu0 %v4636
    %5772 = vmatprep.subr.mxu0 %v4641
    %5773 = vmatpush1.msra.mxu0 %v4640
    %5774 = vmatprep.subr.mxu0 %v4645
    %5775 = vmatpush1.msra.mxu0 %v4644
    %5776 = vmatprep.subr.mxu0 %v4649
    %5777 = vmatpush1.msra.mxu0 %v4648
    %5778 = vmatprep.subr.mxu0 %v4653
    %5779 = vmatpush1.msra.mxu0 %v4652
    %5780 = vmatprep.subr.mxu0 %v4657
    %5781 = vmatpush1.msra.mxu0 %v4656
    %5782 = vmatprep.subr.mxu0 %v4661
    %5783 = vmatpush1.msra.mxu0 %v4660
    %5784 = vmatprep.subr.mxu0 %v4665
    %5785 = vmatpush1.msra.mxu0 %v4664
    %5786 = vmatprep.subr.mxu0 %v4669
    %5787 = vmatpush1.msra.mxu0 %v4668
    %5788 = vmatprep.subr.mxu0 %v4673
    %5789 = vmatpush1.msra.mxu0 %v4672
    %5790 = vmatprep.subr.mxu0 %v4677
    %5791 = vmatpush1.msra.mxu0 %v4676
    %5792 = vmatprep.subr.mxu0 %v4681
    %5793 = vmatpush1.msra.mxu0 %v4680
    %5794 = vmatprep.subr.mxu0 %v4685
    %5795 = vmatpush1.msra.mxu0 %v4684
    %5796 = vmatprep.subr.mxu0 %v4689
    %5797 = vmatpush1.msra.mxu0 %v4688
    %5798 = vmatprep.subr.mxu0 0.0
    %5799 = vmatpush1.msra.mxu0 0.0
    %5800 = vmatprep.subr.mxu0 0.0
    %5801 = vmatpush1.msra.mxu0 0.0
    %5802 = vmatprep.subr.mxu0 0.0
    %5803 = vmatpush1.msra.mxu0 0.0
    %5804 = vmatprep.subr.mxu0 0.0
    %5805 = vmatpush1.msra.mxu0 0.0
    %5806 = vmatprep.subr.mxu0 0.0
    %5807 = vmatpush1.msra.mxu0 0.0
    %5808 = vmatprep.subr.mxu0 0.0
    %5809 = vmatpush1.msra.mxu0 0.0
    %5810 = vmatprep.subr.mxu0 0.0
    %5811 = vmatpush1.msra.mxu0 0.0
    %5812 = vmatprep.subr.mxu0 0.0
    %5813 = vmatpush1.msra.mxu0 0.0
    %5814 = vmatprep.subr.mxu0 0.0
    %5815 = vmatpush1.msra.mxu0 0.0
    %5816 = vmatprep.subr.mxu0 0.0
    %5817 = vmatpush1.msra.mxu0 0.0
    %5818 = vmatprep.subr.mxu0 0.0
    %5819 = vmatpush1.msra.mxu0 0.0
    %5820 = vmatprep.subr.mxu0 0.0
    %5821 = vmatpush1.msra.mxu0 0.0
    %5822 = vmatprep.subr.mxu0 0.0
    %5823 = vmatpush1.msra.mxu0 0.0
    %5824 = vmatprep.subr.mxu0 0.0
    %5825 = vmatpush1.msra.mxu0 0.0
    %5826 = vmatprep.subr.mxu0 0.0
    %5827 = vmatpush1.msra.mxu0 0.0
    %5828 = vmatprep.subr.mxu0 0.0
    %5829 = vmatpush1.msra.mxu0 0.0
    %5830 = vmatprep.mubr.f32.mxu0 0.0
    %5831 = vmatmul.mubr.f32.gmra.mrb[0].mxu0 %v5529
    %v5832 = vpop.f32.mrb[0].mxu0
    %v5833 = vadd.f32 0.0, %v5832
    %v5834 = vpop.f32.mrb[0].mxu0
    %v5835 = vadd.f32 0.0, %v5834
    %5836 = vdwg.mxu0
    %5837 = vmatprep.subr.mxu0 %v4563
    %5838 = vmatpush1.msra.mxu0 %v4562
    %5839 = vmatprep.subr.mxu0 %v4567
    %5840 = vmatpush1.msra.mxu0 %v4566
    %5841 = vmatprep.subr.mxu0 %v4571
    %5842 = vmatpush1.msra.mxu0 %v4570
    %5843 = vmatprep.subr.mxu0 %v4575
    %5844 = vmatpush1.msra.mxu0 %v4574
    %5845 = vmatprep.subr.mxu0 %v4579
    %5846 = vmatpush1.msra.mxu0 %v4578
    %5847 = vmatprep.subr.mxu0 %v4583
    %5848 = vmatpush1.msra.mxu0 %v4582
    %5849 = vmatprep.subr.mxu0 %v4587
    %5850 = vmatpush1.msra.mxu0 %v4586
    %5851 = vmatprep.subr.mxu0 %v4591
    %5852 = vmatpush1.msra.mxu0 %v4590
    %5853 = vmatprep.subr.mxu0 %v4595
    %5854 = vmatpush1.msra.mxu0 %v4594
    %5855 = vmatprep.subr.mxu0 %v4599
    %5856 = vmatpush1.msra.mxu0 %v4598
    %5857 = vmatprep.subr.mxu0 %v4603
    %5858 = vmatpush1.msra.mxu0 %v4602
    %5859 = vmatprep.subr.mxu0 %v4607
    %5860 = vmatpush1.msra.mxu0 %v4606
    %5861 = vmatprep.subr.mxu0 %v4611
    %5862 = vmatpush1.msra.mxu0 %v4610
    %5863 = vmatprep.subr.mxu0 %v4615
    %5864 = vmatpush1.msra.mxu0 %v4614
    %5865 = vmatprep.subr.mxu0 %v4619
    %5866 = vmatpush1.msra.mxu0 %v4618
    %5867 = vmatprep.subr.mxu0 %v4623
    %5868 = vmatpush1.msra.mxu0 %v4622
    %5869 = vmatprep.subr.mxu0 0.0
    %5870 = vmatpush1.msra.mxu0 0.0
    %5871 = vmatprep.subr.mxu0 0.0
    %5872 = vmatpush1.msra.mxu0 0.0
    %5873 = vmatprep.subr.mxu0 0.0
    %5874 = vmatpush1.msra.mxu0 0.0
    %5875 = vmatprep.subr.mxu0 0.0
    %5876 = vmatpush1.msra.mxu0 0.0
    %5877 = vmatprep.subr.mxu0 0.0
    %5878 = vmatpush1.msra.mxu0 0.0
    %5879 = vmatprep.subr.mxu0 0.0
    %5880 = vmatpush1.msra.mxu0 0.0
    %5881 = vmatprep.subr.mxu0 0.0
    %5882 = vmatpush1.msra.mxu0 0.0
    %5883 = vmatprep.subr.mxu0 0.0
    %5884 = vmatpush1.msra.mxu0 0.0
    %5885 = vmatprep.subr.mxu0 0.0
    %5886 = vmatpush1.msra.mxu0 0.0
    %5887 = vmatprep.subr.mxu0 0.0
    %5888 = vmatpush1.msra.mxu0 0.0
    %5889 = vmatprep.subr.mxu0 0.0
    %5890 = vmatpush1.msra.mxu0 0.0
    %5891 = vmatprep.subr.mxu0 0.0
    %5892 = vmatpush1.msra.mxu0 0.0
    %5893 = vmatprep.subr.mxu0 0.0
    %5894 = vmatpush1.msra.mxu0 0.0
    %5895 = vmatprep.subr.mxu0 0.0
    %5896 = vmatpush1.msra.mxu0 0.0
    %5897 = vmatprep.subr.mxu0 0.0
    %5898 = vmatpush1.msra.mxu0 0.0
    %5899 = vmatprep.subr.mxu0 0.0
    %5900 = vmatpush1.msra.mxu0 0.0
    %5901 = vmatprep.mubr.f32.mxu0 0.0
    %5902 = vmatmul.mubr.f32.gmra.mrb[0].mxu0 %v5535
    %v5903 = vpop.f32.mrb[0].mxu0
    %v5904 = vadd.f32 %v5762, %v5903
    %v5905 = vpop.f32.mrb[0].mxu0
    %v5906 = vadd.f32 %v5764, %v5905
    %5907 = vdwg.mxu0
    %5908 = vmatprep.subr.mxu0 %v4565
    %5909 = vmatpush1.msra.mxu0 %v4564
    %5910 = vmatprep.subr.mxu0 %v4569
    %5911 = vmatpush1.msra.mxu0 %v4568
    %5912 = vmatprep.subr.mxu0 %v4573
    %5913 = vmatpush1.msra.mxu0 %v4572
    %5914 = vmatprep.subr.mxu0 %v4577
    %5915 = vmatpush1.msra.mxu0 %v4576
    %5916 = vmatprep.subr.mxu0 %v4581
    %5917 = vmatpush1.msra.mxu0 %v4580
    %5918 = vmatprep.subr.mxu0 %v4585
    %5919 = vmatpush1.msra.mxu0 %v4584
    %5920 = vmatprep.subr.mxu0 %v4589
    %5921 = vmatpush1.msra.mxu0 %v4588
    %5922 = vmatprep.subr.mxu0 %v4593
    %5923 = vmatpush1.msra.mxu0 %v4592
    %5924 = vmatprep.subr.mxu0 %v4597
    %5925 = vmatpush1.msra.mxu0 %v4596
    %5926 = vmatprep.subr.mxu0 %v4601
    %5927 = vmatpush1.msra.mxu0 %v4600
    %5928 = vmatprep.subr.mxu0 %v4605
    %5929 = vmatpush1.msra.mxu0 %v4604
    %5930 = vmatprep.subr.mxu0 %v4609
    %5931 = vmatpush1.msra.mxu0 %v4608
    %5932 = vmatprep.subr.mxu0 %v4613
    %5933 = vmatpush1.msra.mxu0 %v4612
    %5934 = vmatprep.subr.mxu0 %v4617
    %5935 = vmatpush1.msra.mxu0 %v4616
    %5936 = vmatprep.subr.mxu0 %v4621
    %5937 = vmatpush1.msra.mxu0 %v4620
    %5938 = vmatprep.subr.mxu0 %v4625
    %5939 = vmatpush1.msra.mxu0 %v4624
    %5940 = vmatprep.subr.mxu0 0.0
    %5941 = vmatpush1.msra.mxu0 0.0
    %5942 = vmatprep.subr.mxu0 0.0
    %5943 = vmatpush1.msra.mxu0 0.0
    %5944 = vmatprep.subr.mxu0 0.0
    %5945 = vmatpush1.msra.mxu0 0.0
    %5946 = vmatprep.subr.mxu0 0.0
    %5947 = vmatpush1.msra.mxu0 0.0
    %5948 = vmatprep.subr.mxu0 0.0
    %5949 = vmatpush1.msra.mxu0 0.0
    %5950 = vmatprep.subr.mxu0 0.0
    %5951 = vmatpush1.msra.mxu0 0.0
    %5952 = vmatprep.subr.mxu0 0.0
    %5953 = vmatpush1.msra.mxu0 0.0
    %5954 = vmatprep.subr.mxu0 0.0
    %5955 = vmatpush1.msra.mxu0 0.0
    %5956 = vmatprep.subr.mxu0 0.0
    %5957 = vmatpush1.msra.mxu0 0.0
    %5958 = vmatprep.subr.mxu0 0.0
    %5959 = vmatpush1.msra.mxu0 0.0
    %5960 = vmatprep.subr.mxu0 0.0
    %5961 = vmatpush1.msra.mxu0 0.0
    %5962 = vmatprep.subr.mxu0 0.0
    %5963 = vmatpush1.msra.mxu0 0.0
    %5964 = vmatprep.subr.mxu0 0.0
    %5965 = vmatpush1.msra.mxu0 0.0
    %5966 = vmatprep.subr.mxu0 0.0
    %5967 = vmatpush1.msra.mxu0 0.0
    %5968 = vmatprep.subr.mxu0 0.0
    %5969 = vmatpush1.msra.mxu0 0.0
    %5970 = vmatprep.subr.mxu0 0.0
    %5971 = vmatpush1.msra.mxu0 0.0
    %5972 = vmatprep.mubr.f32.mxu0 0.0
    %5973 = vmatmul.mubr.f32.gmra.mrb[0].mxu0 %v5535
    %v5974 = vpop.f32.mrb[0].mxu0
    %v5975 = vadd.f32 %v5833, %v5974
    %v5976 = vpop.f32.mrb[0].mxu0
    %v5977 = vadd.f32 %v5835, %v5976
    %5978 = vdwg.mxu0
    %v5979 = vadd.f32 %v5904, %v4978
    %v5980 = vadd.f32 %v5906, %v4982
    %v5981 = vadd.f32 %v5975, %v4986
    %v5982 = vadd.f32 %v5977, %v4990
    %v5983 = vmul.f32 %v5691, 0.5
    %v5984 = vmul.f32 %v5692, 0.5
    %v5985 = vmul.f32 %v5693, 0.5
    %v5986 = vtanh.pop %v5983
    %v5987 = vtanh.pop %v5984
    %v5988 = vtanh.pop %v5985
    %v5989 = vmul.f32 %v5986, 0.5
    %v5990 = vmul.f32 %v5987, 0.5
    %v5991 = vmul.f32 %v5988, 0.5
    %v5992 = vadd.f32 %v5989, 0.5
    %v5993 = vadd.f32 %v5990, 0.5
    %v5994 = vadd.f32 %v5991, 0.5
    %v5995 = vtanh.pop %v5694
    %v5997 = vrot.slane %v5509, 6
    %v5999 = vmul.f32 %v5993, %v5997
    %v6000 = vmul.f32 %v5992, %v5995
    %v6001 = vadd.f32 %v5999, %v6000
    %v6002 = vtanh.pop %v6001
    %v6003 = vmul.f32 %v5994, %v6002
    %v6004 = vmul.f32 %v5979, 0.5
    %v6005 = vmul.f32 %v5980, 0.5
    %v6006 = vmul.f32 %v5981, 0.5
    %v6007 = vtanh.pop %v6004
    %v6008 = vtanh.pop %v6005
    %v6009 = vtanh.pop %v6006
    %v6010 = vmul.f32 %v6007, 0.5
    %v6011 = vmul.f32 %v6008, 0.5
    %v6012 = vmul.f32 %v6009, 0.5
    %v6013 = vadd.f32 %v6010, 0.5
    %v6014 = vadd.f32 %v6011, 0.5
    %v6015 = vadd.f32 %v6012, 0.5
    %v6016 = vtanh.pop %v5982
    %v6017 = vmul.f32 %v6014, %v5527
    %v6018 = vmul.f32 %v6013, %v6016
    %v6019 = vadd.f32 %v6017, %v6018
    %v6020 = vtanh.pop %v6019
    %v6021 = vmul.f32 %v6015, %v6020
    %v6022 = vld [vmem:[#allocation4 + $0x20] sm:$0x3]
    %v6023 = vld [vmem:[#allocation4 + $0x28] sm:$0x3]
    %v6024 = vld [vmem:[#allocation4 + $0x30] sm:$0x3]
    %v6025 = vld [vmem:[#allocation4 + $0x38] sm:$0x3]
    %v6027 = vrot.slane %v6003, 6
    %6029 = vmatprep.subr.mxu0 %v4341
    %6030 = vmatpush1.msra.mxu0 %v4340
    %6031 = vmatprep.subr.mxu0 %v4345
    %6032 = vmatpush1.msra.mxu0 %v4344
    %6033 = vmatprep.subr.mxu0 %v4349
    %6034 = vmatpush1.msra.mxu0 %v4348
    %6035 = vmatprep.subr.mxu0 %v4353
    %6036 = vmatpush1.msra.mxu0 %v4352
    %6037 = vmatprep.subr.mxu0 %v4357
    %6038 = vmatpush1.msra.mxu0 %v4356
    %6039 = vmatprep.subr.mxu0 %v4361
    %6040 = vmatpush1.msra.mxu0 %v4360
    %6041 = vmatprep.subr.mxu0 %v4365
    %6042 = vmatpush1.msra.mxu0 %v4364
    %6043 = vmatprep.subr.mxu0 %v4369
    %6044 = vmatpush1.msra.mxu0 %v4368
    %6045 = vmatprep.subr.mxu0 %v4373
    %6046 = vmatpush1.msra.mxu0 %v4372
    %6047 = vmatprep.subr.mxu0 %v4377
    %6048 = vmatpush1.msra.mxu0 %v4376
    %6049 = vmatprep.subr.mxu0 %v4381
    %6050 = vmatpush1.msra.mxu0 %v4380
    %6051 = vmatprep.subr.mxu0 %v4385
    %6052 = vmatpush1.msra.mxu0 %v4384
    %6053 = vmatprep.subr.mxu0 %v4389
    %6054 = vmatpush1.msra.mxu0 %v4388
    %6055 = vmatprep.subr.mxu0 %v4393
    %6056 = vmatpush1.msra.mxu0 %v4392
    %6057 = vmatprep.subr.mxu0 %v4397
    %6058 = vmatpush1.msra.mxu0 %v4396
    %6059 = vmatprep.subr.mxu0 %v4401
    %6060 = vmatpush1.msra.mxu0 %v4400
    %6061 = vmatprep.subr.mxu0 0.0
    %6062 = vmatpush1.msra.mxu0 0.0
    %6063 = vmatprep.subr.mxu0 0.0
    %6064 = vmatpush1.msra.mxu0 0.0
    %6065 = vmatprep.subr.mxu0 0.0
    %6066 = vmatpush1.msra.mxu0 0.0
    %6067 = vmatprep.subr.mxu0 0.0
    %6068 = vmatpush1.msra.mxu0 0.0
    %6069 = vmatprep.subr.mxu0 0.0
    %6070 = vmatpush1.msra.mxu0 0.0
    %6071 = vmatprep.subr.mxu0 0.0
    %6072 = vmatpush1.msra.mxu0 0.0
    %6073 = vmatprep.subr.mxu0 0.0
    %6074 = vmatpush1.msra.mxu0 0.0
    %6075 = vmatprep.subr.mxu0 0.0
    %6076 = vmatpush1.msra.mxu0 0.0
    %6077 = vmatprep.subr.mxu0 0.0
    %6078 = vmatpush1.msra.mxu0 0.0
    %6079 = vmatprep.subr.mxu0 0.0
    %6080 = vmatpush1.msra.mxu0 0.0
    %6081 = vmatprep.subr.mxu0 0.0
    %6082 = vmatpush1.msra.mxu0 0.0
    %6083 = vmatprep.subr.mxu0 0.0
    %6084 = vmatpush1.msra.mxu0 0.0
    %6085 = vmatprep.subr.mxu0 0.0
    %6086 = vmatpush1.msra.mxu0 0.0
    %6087 = vmatprep.subr.mxu0 0.0
    %6088 = vmatpush1.msra.mxu0 0.0
    %6089 = vmatprep.subr.mxu0 0.0
    %6090 = vmatpush1.msra.mxu0 0.0
    %6091 = vmatprep.subr.mxu0 0.0
    %6092 = vmatpush1.msra.mxu0 0.0
    %6093 = vmatprep.mubr.f32.mxu0 0.0
    %6094 = vmatmul.mubr.f32.gmra.mrb[0].mxu0 %v6027
    %v6095 = vpop.f32.mrb[0].mxu0
    %v6096 = vadd.f32 0.0, %v6095
    %v6097 = vpop.f32.mrb[0].mxu0
    %v6098 = vadd.f32 0.0, %v6097
    %6099 = vdwg.mxu0
    %6100 = vmatprep.subr.mxu0 %v4343
    %6101 = vmatpush1.msra.mxu0 %v4342
    %6102 = vmatprep.subr.mxu0 %v4347
    %6103 = vmatpush1.msra.mxu0 %v4346
    %6104 = vmatprep.subr.mxu0 %v4351
    %6105 = vmatpush1.msra.mxu0 %v4350
    %6106 = vmatprep.subr.mxu0 %v4355
    %6107 = vmatpush1.msra.mxu0 %v4354
    %6108 = vmatprep.subr.mxu0 %v4359
    %6109 = vmatpush1.msra.mxu0 %v4358
    %6110 = vmatprep.subr.mxu0 %v4363
    %6111 = vmatpush1.msra.mxu0 %v4362
    %6112 = vmatprep.subr.mxu0 %v4367
    %6113 = vmatpush1.msra.mxu0 %v4366
    %6114 = vmatprep.subr.mxu0 %v4371
    %6115 = vmatpush1.msra.mxu0 %v4370
    %6116 = vmatprep.subr.mxu0 %v4375
    %6117 = vmatpush1.msra.mxu0 %v4374
    %6118 = vmatprep.subr.mxu0 %v4379
    %6119 = vmatpush1.msra.mxu0 %v4378
    %6120 = vmatprep.subr.mxu0 %v4383
    %6121 = vmatpush1.msra.mxu0 %v4382
    %6122 = vmatprep.subr.mxu0 %v4387
    %6123 = vmatpush1.msra.mxu0 %v4386
    %6124 = vmatprep.subr.mxu0 %v4391
    %6125 = vmatpush1.msra.mxu0 %v4390
    %6126 = vmatprep.subr.mxu0 %v4395
    %6127 = vmatpush1.msra.mxu0 %v4394
    %6128 = vmatprep.subr.mxu0 %v4399
    %6129 = vmatpush1.msra.mxu0 %v4398
    %6130 = vmatprep.subr.mxu0 %v4403
    %6131 = vmatpush1.msra.mxu0 %v4402
    %6132 = vmatprep.subr.mxu0 0.0
    %6133 = vmatpush1.msra.mxu0 0.0
    %6134 = vmatprep.subr.mxu0 0.0
    %6135 = vmatpush1.msra.mxu0 0.0
    %6136 = vmatprep.subr.mxu0 0.0
    %6137 = vmatpush1.msra.mxu0 0.0
    %6138 = vmatprep.subr.mxu0 0.0
    %6139 = vmatpush1.msra.mxu0 0.0
    %6140 = vmatprep.subr.mxu0 0.0
    %6141 = vmatpush1.msra.mxu0 0.0
    %6142 = vmatprep.subr.mxu0 0.0
    %6143 = vmatpush1.msra.mxu0 0.0
    %6144 = vmatprep.subr.mxu0 0.0
    %6145 = vmatpush1.msra.mxu0 0.0
    %6146 = vmatprep.subr.mxu0 0.0
    %6147 = vmatpush1.msra.mxu0 0.0
    %6148 = vmatprep.subr.mxu0 0.0
    %6149 = vmatpush1.msra.mxu0 0.0
    %6150 = vmatprep.subr.mxu0 0.0
    %6151 = vmatpush1.msra.mxu0 0.0
    %6152 = vmatprep.subr.mxu0 0.0
    %6153 = vmatpush1.msra.mxu0 0.0
    %6154 = vmatprep.subr.mxu0 0.0
    %6155 = vmatpush1.msra.mxu0 0.0
    %6156 = vmatprep.subr.mxu0 0.0
    %6157 = vmatpush1.msra.mxu0 0.0
    %6158 = vmatprep.subr.mxu0 0.0
    %6159 = vmatpush1.msra.mxu0 0.0
    %6160 = vmatprep.subr.mxu0 0.0
    %6161 = vmatpush1.msra.mxu0 0.0
    %6162 = vmatprep.subr.mxu0 0.0
    %6163 = vmatpush1.msra.mxu0 0.0
    %6164 = vmatprep.mubr.f32.mxu0 0.0
    %6165 = vmatmul.mubr.f32.gmra.mrb[0].mxu0 %v6027
    %v6166 = vpop.f32.mrb[0].mxu0
    %v6167 = vadd.f32 0.0, %v6166
    %v6168 = vpop.f32.mrb[0].mxu0
    %v6169 = vadd.f32 0.0, %v6168
    %6170 = vdwg.mxu0
    %v6171 = vadd.f32 %v6022, %v6096
    %v6172 = vadd.f32 %v6023, %v6098
    %v6173 = vadd.f32 %v6024, %v6167
    %v6174 = vadd.f32 %v6025, %v6169
    %6175 = vmatprep.subr.mxu0 %v4627
    %6176 = vmatpush1.msra.mxu0 %v4626
    %6177 = vmatprep.subr.mxu0 %v4631
    %6178 = vmatpush1.msra.mxu0 %v4630
    %6179 = vmatprep.subr.mxu0 %v4635
    %6180 = vmatpush1.msra.mxu0 %v4634
    %6181 = vmatprep.subr.mxu0 %v4639
    %6182 = vmatpush1.msra.mxu0 %v4638
    %6183 = vmatprep.subr.mxu0 %v4643
    %6184 = vmatpush1.msra.mxu0 %v4642
    %6185 = vmatprep.subr.mxu0 %v4647
    %6186 = vmatpush1.msra.mxu0 %v4646
    %6187 = vmatprep.subr.mxu0 %v4651
    %6188 = vmatpush1.msra.mxu0 %v4650
    %6189 = vmatprep.subr.mxu0 %v4655
    %6190 = vmatpush1.msra.mxu0 %v4654
    %6191 = vmatprep.subr.mxu0 %v4659
    %6192 = vmatpush1.msra.mxu0 %v4658
    %6193 = vmatprep.subr.mxu0 %v4663
    %6194 = vmatpush1.msra.mxu0 %v4662
    %6195 = vmatprep.subr.mxu0 %v4667
    %6196 = vmatpush1.msra.mxu0 %v4666
    %6197 = vmatprep.subr.mxu0 %v4671
    %6198 = vmatpush1.msra.mxu0 %v4670
    %6199 = vmatprep.subr.mxu0 %v4675
    %6200 = vmatpush1.msra.mxu0 %v4674
    %6201 = vmatprep.subr.mxu0 %v4679
    %6202 = vmatpush1.msra.mxu0 %v4678
    %6203 = vmatprep.subr.mxu0 %v4683
    %6204 = vmatpush1.msra.mxu0 %v4682
    %6205 = vmatprep.subr.mxu0 %v4687
    %6206 = vmatpush1.msra.mxu0 %v4686
    %6207 = vmatprep.subr.mxu0 0.0
    %6208 = vmatpush1.msra.mxu0 0.0
    %6209 = vmatprep.subr.mxu0 0.0
    %6210 = vmatpush1.msra.mxu0 0.0
    %6211 = vmatprep.subr.mxu0 0.0
    %6212 = vmatpush1.msra.mxu0 0.0
    %6213 = vmatprep.subr.mxu0 0.0
    %6214 = vmatpush1.msra.mxu0 0.0
    %6215 = vmatprep.subr.mxu0 0.0
    %6216 = vmatpush1.msra.mxu0 0.0
    %6217 = vmatprep.subr.mxu0 0.0
    %6218 = vmatpush1.msra.mxu0 0.0
    %6219 = vmatprep.subr.mxu0 0.0
    %6220 = vmatpush1.msra.mxu0 0.0
    %6221 = vmatprep.subr.mxu0 0.0
    %6222 = vmatpush1.msra.mxu0 0.0
    %6223 = vmatprep.subr.mxu0 0.0
    %6224 = vmatpush1.msra.mxu0 0.0
    %6225 = vmatprep.subr.mxu0 0.0
    %6226 = vmatpush1.msra.mxu0 0.0
    %6227 = vmatprep.subr.mxu0 0.0
    %6228 = vmatpush1.msra.mxu0 0.0
    %6229 = vmatprep.subr.mxu0 0.0
    %6230 = vmatpush1.msra.mxu0 0.0
    %6231 = vmatprep.subr.mxu0 0.0
    %6232 = vmatpush1.msra.mxu0 0.0
    %6233 = vmatprep.subr.mxu0 0.0
    %6234 = vmatpush1.msra.mxu0 0.0
    %6235 = vmatprep.subr.mxu0 0.0
    %6236 = vmatpush1.msra.mxu0 0.0
    %6237 = vmatprep.subr.mxu0 0.0
    %6238 = vmatpush1.msra.mxu0 0.0
    %6239 = vmatprep.mubr.f32.mxu0 0.0
    %6240 = vmatmul.mubr.f32.gmra.mrb[0].mxu0 %v6021
    %v6241 = vpop.f32.mrb[0].mxu0
    %v6242 = vadd.f32 0.0, %v6241
    %v6243 = vpop.f32.mrb[0].mxu0
    %v6244 = vadd.f32 0.0, %v6243
    %6245 = vdwg.mxu0
    %6246 = vmatprep.subr.mxu0 %v4629
    %6247 = vmatpush1.msra.mxu0 %v4628
    %6248 = vmatprep.subr.mxu0 %v4633
    %6249 = vmatpush1.msra.mxu0 %v4632
    %6250 = vmatprep.subr.mxu0 %v4637
    %6251 = vmatpush1.msra.mxu0 %v4636
    %6252 = vmatprep.subr.mxu0 %v4641
    %6253 = vmatpush1.msra.mxu0 %v4640
    %6254 = vmatprep.subr.mxu0 %v4645
    %6255 = vmatpush1.msra.mxu0 %v4644
    %6256 = vmatprep.subr.mxu0 %v4649
    %6257 = vmatpush1.msra.mxu0 %v4648
    %6258 = vmatprep.subr.mxu0 %v4653
    %6259 = vmatpush1.msra.mxu0 %v4652
    %6260 = vmatprep.subr.mxu0 %v4657
    %6261 = vmatpush1.msra.mxu0 %v4656
    %6262 = vmatprep.subr.mxu0 %v4661
    %6263 = vmatpush1.msra.mxu0 %v4660
    %6264 = vmatprep.subr.mxu0 %v4665
    %6265 = vmatpush1.msra.mxu0 %v4664
    %6266 = vmatprep.subr.mxu0 %v4669
    %6267 = vmatpush1.msra.mxu0 %v4668
    %6268 = vmatprep.subr.mxu0 %v4673
    %6269 = vmatpush1.msra.mxu0 %v4672
    %6270 = vmatprep.subr.mxu0 %v4677
    %6271 = vmatpush1.msra.mxu0 %v4676
    %6272 = vmatprep.subr.mxu0 %v4681
    %6273 = vmatpush1.msra.mxu0 %v4680
    %6274 = vmatprep.subr.mxu0 %v4685
    %6275 = vmatpush1.msra.mxu0 %v4684
    %6276 = vmatprep.subr.mxu0 %v4689
    %6277 = vmatpush1.msra.mxu0 %v4688
    %6278 = vmatprep.subr.mxu0 0.0
    %6279 = vmatpush1.msra.mxu0 0.0
    %6280 = vmatprep.subr.mxu0 0.0
    %6281 = vmatpush1.msra.mxu0 0.0
    %6282 = vmatprep.subr.mxu0 0.0
    %6283 = vmatpush1.msra.mxu0 0.0
    %6284 = vmatprep.subr.mxu0 0.0
    %6285 = vmatpush1.msra.mxu0 0.0
    %6286 = vmatprep.subr.mxu0 0.0
    %6287 = vmatpush1.msra.mxu0 0.0
    %6288 = vmatprep.subr.mxu0 0.0
    %6289 = vmatpush1.msra.mxu0 0.0
    %6290 = vmatprep.subr.mxu0 0.0
    %6291 = vmatpush1.msra.mxu0 0.0
    %6292 = vmatprep.subr.mxu0 0.0
    %6293 = vmatpush1.msra.mxu0 0.0
    %6294 = vmatprep.subr.mxu0 0.0
    %6295 = vmatpush1.msra.mxu0 0.0
    %6296 = vmatprep.subr.mxu0 0.0
    %6297 = vmatpush1.msra.mxu0 0.0
    %6298 = vmatprep.subr.mxu0 0.0
    %6299 = vmatpush1.msra.mxu0 0.0
    %6300 = vmatprep.subr.mxu0 0.0
    %6301 = vmatpush1.msra.mxu0 0.0
    %6302 = vmatprep.subr.mxu0 0.0
    %6303 = vmatpush1.msra.mxu0 0.0
    %6304 = vmatprep.subr.mxu0 0.0
    %6305 = vmatpush1.msra.mxu0 0.0
    %6306 = vmatprep.subr.mxu0 0.0
    %6307 = vmatpush1.msra.mxu0 0.0
    %6308 = vmatprep.subr.mxu0 0.0
    %6309 = vmatpush1.msra.mxu0 0.0
    %6310 = vmatprep.mubr.f32.mxu0 0.0
    %6311 = vmatmul.mubr.f32.gmra.mrb[0].mxu0 %v6021
    %v6312 = vpop.f32.mrb[0].mxu0
    %v6313 = vadd.f32 0.0, %v6312
    %v6314 = vpop.f32.mrb[0].mxu0
    %v6315 = vadd.f32 0.0, %v6314
    %6316 = vdwg.mxu0
    %6317 = vmatprep.subr.mxu0 %v4563
    %6318 = vmatpush1.msra.mxu0 %v4562
    %6319 = vmatprep.subr.mxu0 %v4567
    %6320 = vmatpush1.msra.mxu0 %v4566
    %6321 = vmatprep.subr.mxu0 %v4571
    %6322 = vmatpush1.msra.mxu0 %v4570
    %6323 = vmatprep.subr.mxu0 %v4575
    %6324 = vmatpush1.msra.mxu0 %v4574
    %6325 = vmatprep.subr.mxu0 %v4579
    %6326 = vmatpush1.msra.mxu0 %v4578
    %6327 = vmatprep.subr.mxu0 %v4583
    %6328 = vmatpush1.msra.mxu0 %v4582
    %6329 = vmatprep.subr.mxu0 %v4587
    %6330 = vmatpush1.msra.mxu0 %v4586
    %6331 = vmatprep.subr.mxu0 %v4591
    %6332 = vmatpush1.msra.mxu0 %v4590
    %6333 = vmatprep.subr.mxu0 %v4595
    %6334 = vmatpush1.msra.mxu0 %v4594
    %6335 = vmatprep.subr.mxu0 %v4599
    %6336 = vmatpush1.msra.mxu0 %v4598
    %6337 = vmatprep.subr.mxu0 %v4603
    %6338 = vmatpush1.msra.mxu0 %v4602
    %6339 = vmatprep.subr.mxu0 %v4607
    %6340 = vmatpush1.msra.mxu0 %v4606
    %6341 = vmatprep.subr.mxu0 %v4611
    %6342 = vmatpush1.msra.mxu0 %v4610
    %6343 = vmatprep.subr.mxu0 %v4615
    %6344 = vmatpush1.msra.mxu0 %v4614
    %6345 = vmatprep.subr.mxu0 %v4619
    %6346 = vmatpush1.msra.mxu0 %v4618
    %6347 = vmatprep.subr.mxu0 %v4623
    %6348 = vmatpush1.msra.mxu0 %v4622
    %6349 = vmatprep.subr.mxu0 0.0
    %6350 = vmatpush1.msra.mxu0 0.0
    %6351 = vmatprep.subr.mxu0 0.0
    %6352 = vmatpush1.msra.mxu0 0.0
    %6353 = vmatprep.subr.mxu0 0.0
    %6354 = vmatpush1.msra.mxu0 0.0
    %6355 = vmatprep.subr.mxu0 0.0
    %6356 = vmatpush1.msra.mxu0 0.0
    %6357 = vmatprep.subr.mxu0 0.0
    %6358 = vmatpush1.msra.mxu0 0.0
    %6359 = vmatprep.subr.mxu0 0.0
    %6360 = vmatpush1.msra.mxu0 0.0
    %6361 = vmatprep.subr.mxu0 0.0
    %6362 = vmatpush1.msra.mxu0 0.0
    %6363 = vmatprep.subr.mxu0 0.0
    %6364 = vmatpush1.msra.mxu0 0.0
    %6365 = vmatprep.subr.mxu0 0.0
    %6366 = vmatpush1.msra.mxu0 0.0
    %6367 = vmatprep.subr.mxu0 0.0
    %6368 = vmatpush1.msra.mxu0 0.0
    %6369 = vmatprep.subr.mxu0 0.0
    %6370 = vmatpush1.msra.mxu0 0.0
    %6371 = vmatprep.subr.mxu0 0.0
    %6372 = vmatpush1.msra.mxu0 0.0
    %6373 = vmatprep.subr.mxu0 0.0
    %6374 = vmatpush1.msra.mxu0 0.0
    %6375 = vmatprep.subr.mxu0 0.0
    %6376 = vmatpush1.msra.mxu0 0.0
    %6377 = vmatprep.subr.mxu0 0.0
    %6378 = vmatpush1.msra.mxu0 0.0
    %6379 = vmatprep.subr.mxu0 0.0
    %6380 = vmatpush1.msra.mxu0 0.0
    %6381 = vmatprep.mubr.f32.mxu0 0.0
    %6382 = vmatmul.mubr.f32.gmra.mrb[0].mxu0 %v6027
    %v6383 = vpop.f32.mrb[0].mxu0
    %v6384 = vadd.f32 %v6242, %v6383
    %v6385 = vpop.f32.mrb[0].mxu0
    %v6386 = vadd.f32 %v6244, %v6385
    %6387 = vdwg.mxu0
    %6388 = vmatprep.subr.mxu0 %v4565
    %6389 = vmatpush1.msra.mxu0 %v4564
    %6390 = vmatprep.subr.mxu0 %v4569
    %6391 = vmatpush1.msra.mxu0 %v4568
    %6392 = vmatprep.subr.mxu0 %v4573
    %6393 = vmatpush1.msra.mxu0 %v4572
    %6394 = vmatprep.subr.mxu0 %v4577
    %6395 = vmatpush1.msra.mxu0 %v4576
    %6396 = vmatprep.subr.mxu0 %v4581
    %6397 = vmatpush1.msra.mxu0 %v4580
    %6398 = vmatprep.subr.mxu0 %v4585
    %6399 = vmatpush1.msra.mxu0 %v4584
    %6400 = vmatprep.subr.mxu0 %v4589
    %6401 = vmatpush1.msra.mxu0 %v4588
    %6402 = vmatprep.subr.mxu0 %v4593
    %6403 = vmatpush1.msra.mxu0 %v4592
    %6404 = vmatprep.subr.mxu0 %v4597
    %6405 = vmatpush1.msra.mxu0 %v4596
    %6406 = vmatprep.subr.mxu0 %v4601
    %6407 = vmatpush1.msra.mxu0 %v4600
    %6408 = vmatprep.subr.mxu0 %v4605
    %6409 = vmatpush1.msra.mxu0 %v4604
    %6410 = vmatprep.subr.mxu0 %v4609
    %6411 = vmatpush1.msra.mxu0 %v4608
    %6412 = vmatprep.subr.mxu0 %v4613
    %6413 = vmatpush1.msra.mxu0 %v4612
    %6414 = vmatprep.subr.mxu0 %v4617
    %6415 = vmatpush1.msra.mxu0 %v4616
    %6416 = vmatprep.subr.mxu0 %v4621
    %6417 = vmatpush1.msra.mxu0 %v4620
    %6418 = vmatprep.subr.mxu0 %v4625
    %6419 = vmatpush1.msra.mxu0 %v4624
    %6420 = vmatprep.subr.mxu0 0.0
    %6421 = vmatpush1.msra.mxu0 0.0
    %6422 = vmatprep.subr.mxu0 0.0
    %6423 = vmatpush1.msra.mxu0 0.0
    %6424 = vmatprep.subr.mxu0 0.0
    %6425 = vmatpush1.msra.mxu0 0.0
    %6426 = vmatprep.subr.mxu0 0.0
    %6427 = vmatpush1.msra.mxu0 0.0
    %6428 = vmatprep.subr.mxu0 0.0
    %6429 = vmatpush1.msra.mxu0 0.0
    %6430 = vmatprep.subr.mxu0 0.0
    %6431 = vmatpush1.msra.mxu0 0.0
    %6432 = vmatprep.subr.mxu0 0.0
    %6433 = vmatpush1.msra.mxu0 0.0
    %6434 = vmatprep.subr.mxu0 0.0
    %6435 = vmatpush1.msra.mxu0 0.0
    %6436 = vmatprep.subr.mxu0 0.0
    %6437 = vmatpush1.msra.mxu0 0.0
    %6438 = vmatprep.subr.mxu0 0.0
    %6439 = vmatpush1.msra.mxu0 0.0
    %6440 = vmatprep.subr.mxu0 0.0
    %6441 = vmatpush1.msra.mxu0 0.0
    %6442 = vmatprep.subr.mxu0 0.0
    %6443 = vmatpush1.msra.mxu0 0.0
    %6444 = vmatprep.subr.mxu0 0.0
    %6445 = vmatpush1.msra.mxu0 0.0
    %6446 = vmatprep.subr.mxu0 0.0
    %6447 = vmatpush1.msra.mxu0 0.0
    %6448 = vmatprep.subr.mxu0 0.0
    %6449 = vmatpush1.msra.mxu0 0.0
    %6450 = vmatprep.subr.mxu0 0.0
    %6451 = vmatpush1.msra.mxu0 0.0
    %6452 = vmatprep.mubr.f32.mxu0 0.0
    %6453 = vmatmul.mubr.f32.gmra.mrb[0].mxu0 %v6027
    %v6454 = vpop.f32.mrb[0].mxu0
    %v6455 = vadd.f32 %v6313, %v6454
    %v6456 = vpop.f32.mrb[0].mxu0
    %v6457 = vadd.f32 %v6315, %v6456
    %6458 = vdwg.mxu0
    %v6459 = vadd.f32 %v6384, %v4978
    %v6460 = vadd.f32 %v6386, %v4982
    %v6461 = vadd.f32 %v6455, %v4986
    %v6462 = vadd.f32 %v6457, %v4990
    %v6463 = vmul.f32 %v6171, 0.5
    %v6464 = vmul.f32 %v6172, 0.5
    %v6465 = vmul.f32 %v6173, 0.5
    %v6466 = vtanh.pop %v6463
    %v6467 = vtanh.pop %v6464
    %v6468 = vtanh.pop %v6465
    %v6469 = vmul.f32 %v6466, 0.5
    %v6470 = vmul.f32 %v6467, 0.5
    %v6471 = vmul.f32 %v6468, 0.5
    %v6472 = vadd.f32 %v6469, 0.5
    %v6473 = vadd.f32 %v6470, 0.5
    %v6474 = vadd.f32 %v6471, 0.5
    %v6475 = vtanh.pop %v6174
    %v6477 = vrot.slane %v6001, 6
    %v6479 = vmul.f32 %v6473, %v6477
    %v6480 = vmul.f32 %v6472, %v6475
    %v6481 = vadd.f32 %v6479, %v6480
    %v6482 = vtanh.pop %v6481
    %v6483 = vmul.f32 %v6474, %v6482
    %v6484 = vmul.f32 %v6459, 0.5
    %v6485 = vmul.f32 %v6460, 0.5
    %v6486 = vmul.f32 %v6461, 0.5
    %v6487 = vtanh.pop %v6484
    %v6488 = vtanh.pop %v6485
    %v6489 = vtanh.pop %v6486
    %v6490 = vmul.f32 %v6487, 0.5
    %v6491 = vmul.f32 %v6488, 0.5
    %v6492 = vmul.f32 %v6489, 0.5
    %v6493 = vadd.f32 %v6490, 0.5
    %v6494 = vadd.f32 %v6491, 0.5
    %v6495 = vadd.f32 %v6492, 0.5
    %v6496 = vtanh.pop %v6462
    %v6497 = vmul.f32 %v6494, %v6019
    %v6498 = vmul.f32 %v6493, %v6496
    %v6499 = vadd.f32 %v6497, %v6498
    %v6500 = vtanh.pop %v6499
    %v6501 = vmul.f32 %v6495, %v6500
    %v6502 = vld [vmem:[#allocation4 + $0x20] sm:$0xc]
    %v6503 = vld [vmem:[#allocation4 + $0x28] sm:$0xc]
    %v6504 = vld [vmem:[#allocation4 + $0x30] sm:$0xc]
    %v6505 = vld [vmem:[#allocation4 + $0x38] sm:$0xc]
    %6506 = vmatprep.subr.mxu0 %v4341
    %6507 = vmatpush1.msra.mxu0 %v4340
    %6508 = vmatprep.subr.mxu0 %v4345
    %6509 = vmatpush1.msra.mxu0 %v4344
    %6510 = vmatprep.subr.mxu0 %v4349
    %6511 = vmatpush1.msra.mxu0 %v4348
    %6512 = vmatprep.subr.mxu0 %v4353
    %6513 = vmatpush1.msra.mxu0 %v4352
    %6514 = vmatprep.subr.mxu0 %v4357
    %6515 = vmatpush1.msra.mxu0 %v4356
    %6516 = vmatprep.subr.mxu0 %v4361
    %6517 = vmatpush1.msra.mxu0 %v4360
    %6518 = vmatprep.subr.mxu0 %v4365
    %6519 = vmatpush1.msra.mxu0 %v4364
    %6520 = vmatprep.subr.mxu0 %v4369
    %6521 = vmatpush1.msra.mxu0 %v4368
    %6522 = vmatprep.subr.mxu0 %v4373
    %6523 = vmatpush1.msra.mxu0 %v4372
    %6524 = vmatprep.subr.mxu0 %v4377
    %6525 = vmatpush1.msra.mxu0 %v4376
    %6526 = vmatprep.subr.mxu0 %v4381
    %6527 = vmatpush1.msra.mxu0 %v4380
    %6528 = vmatprep.subr.mxu0 %v4385
    %6529 = vmatpush1.msra.mxu0 %v4384
    %6530 = vmatprep.subr.mxu0 %v4389
    %6531 = vmatpush1.msra.mxu0 %v4388
    %6532 = vmatprep.subr.mxu0 %v4393
    %6533 = vmatpush1.msra.mxu0 %v4392
    %6534 = vmatprep.subr.mxu0 %v4397
    %6535 = vmatpush1.msra.mxu0 %v4396
    %6536 = vmatprep.subr.mxu0 %v4401
    %6537 = vmatpush1.msra.mxu0 %v4400
    %6538 = vmatprep.subr.mxu0 0.0
    %6539 = vmatpush1.msra.mxu0 0.0
    %6540 = vmatprep.subr.mxu0 0.0
    %6541 = vmatpush1.msra.mxu0 0.0
    %6542 = vmatprep.subr.mxu0 0.0
    %6543 = vmatpush1.msra.mxu0 0.0
    %6544 = vmatprep.subr.mxu0 0.0
    %6545 = vmatpush1.msra.mxu0 0.0
    %6546 = vmatprep.subr.mxu0 0.0
    %6547 = vmatpush1.msra.mxu0 0.0
    %6548 = vmatprep.subr.mxu0 0.0
    %6549 = vmatpush1.msra.mxu0 0.0
    %6550 = vmatprep.subr.mxu0 0.0
    %6551 = vmatpush1.msra.mxu0 0.0
    %6552 = vmatprep.subr.mxu0 0.0
    %6553 = vmatpush1.msra.mxu0 0.0
    %6554 = vmatprep.subr.mxu0 0.0
    %6555 = vmatpush1.msra.mxu0 0.0
    %6556 = vmatprep.subr.mxu0 0.0
    %6557 = vmatpush1.msra.mxu0 0.0
    %6558 = vmatprep.subr.mxu0 0.0
    %6559 = vmatpush1.msra.mxu0 0.0
    %6560 = vmatprep.subr.mxu0 0.0
    %6561 = vmatpush1.msra.mxu0 0.0
    %6562 = vmatprep.subr.mxu0 0.0
    %6563 = vmatpush1.msra.mxu0 0.0
    %6564 = vmatprep.subr.mxu0 0.0
    %6565 = vmatpush1.msra.mxu0 0.0
    %6566 = vmatprep.subr.mxu0 0.0
    %6567 = vmatpush1.msra.mxu0 0.0
    %6568 = vmatprep.subr.mxu0 0.0
    %6569 = vmatpush1.msra.mxu0 0.0
    %6570 = vmatprep.mubr.f32.mxu0 0.0
    %6571 = vmatmul.mubr.f32.gmra.mrb[0].mxu0 %v6483
    %v6572 = vpop.f32.mrb[0].mxu0
    %v6573 = vadd.f32 0.0, %v6572
    %v6574 = vpop.f32.mrb[0].mxu0
    %v6575 = vadd.f32 0.0, %v6574
    %6576 = vdwg.mxu0
    %6577 = vmatprep.subr.mxu0 %v4343
    %6578 = vmatpush1.msra.mxu0 %v4342
    %6579 = vmatprep.subr.mxu0 %v4347
    %6580 = vmatpush1.msra.mxu0 %v4346
    %6581 = vmatprep.subr.mxu0 %v4351
    %6582 = vmatpush1.msra.mxu0 %v4350
    %6583 = vmatprep.subr.mxu0 %v4355
    %6584 = vmatpush1.msra.mxu0 %v4354
    %6585 = vmatprep.subr.mxu0 %v4359
    %6586 = vmatpush1.msra.mxu0 %v4358
    %6587 = vmatprep.subr.mxu0 %v4363
    %6588 = vmatpush1.msra.mxu0 %v4362
    %6589 = vmatprep.subr.mxu0 %v4367
    %6590 = vmatpush1.msra.mxu0 %v4366
    %6591 = vmatprep.subr.mxu0 %v4371
    %6592 = vmatpush1.msra.mxu0 %v4370
    %6593 = vmatprep.subr.mxu0 %v4375
    %6594 = vmatpush1.msra.mxu0 %v4374
    %6595 = vmatprep.subr.mxu0 %v4379
    %6596 = vmatpush1.msra.mxu0 %v4378
    %6597 = vmatprep.subr.mxu0 %v4383
    %6598 = vmatpush1.msra.mxu0 %v4382
    %6599 = vmatprep.subr.mxu0 %v4387
    %6600 = vmatpush1.msra.mxu0 %v4386
    %6601 = vmatprep.subr.mxu0 %v4391
    %6602 = vmatpush1.msra.mxu0 %v4390
    %6603 = vmatprep.subr.mxu0 %v4395
    %6604 = vmatpush1.msra.mxu0 %v4394
    %6605 = vmatprep.subr.mxu0 %v4399
    %6606 = vmatpush1.msra.mxu0 %v4398
    %6607 = vmatprep.subr.mxu0 %v4403
    %6608 = vmatpush1.msra.mxu0 %v4402
    %6609 = vmatprep.subr.mxu0 0.0
    %6610 = vmatpush1.msra.mxu0 0.0
    %6611 = vmatprep.subr.mxu0 0.0
    %6612 = vmatpush1.msra.mxu0 0.0
    %6613 = vmatprep.subr.mxu0 0.0
    %6614 = vmatpush1.msra.mxu0 0.0
    %6615 = vmatprep.subr.mxu0 0.0
    %6616 = vmatpush1.msra.mxu0 0.0
    %6617 = vmatprep.subr.mxu0 0.0
    %6618 = vmatpush1.msra.mxu0 0.0
    %6619 = vmatprep.subr.mxu0 0.0
    %6620 = vmatpush1.msra.mxu0 0.0
    %6621 = vmatprep.subr.mxu0 0.0
    %6622 = vmatpush1.msra.mxu0 0.0
    %6623 = vmatprep.subr.mxu0 0.0
    %6624 = vmatpush1.msra.mxu0 0.0
    %6625 = vmatprep.subr.mxu0 0.0
    %6626 = vmatpush1.msra.mxu0 0.0
    %6627 = vmatprep.subr.mxu0 0.0
    %6628 = vmatpush1.msra.mxu0 0.0
    %6629 = vmatprep.subr.mxu0 0.0
    %6630 = vmatpush1.msra.mxu0 0.0
    %6631 = vmatprep.subr.mxu0 0.0
    %6632 = vmatpush1.msra.mxu0 0.0
    %6633 = vmatprep.subr.mxu0 0.0
    %6634 = vmatpush1.msra.mxu0 0.0
    %6635 = vmatprep.subr.mxu0 0.0
    %6636 = vmatpush1.msra.mxu0 0.0
    %6637 = vmatprep.subr.mxu0 0.0
    %6638 = vmatpush1.msra.mxu0 0.0
    %6639 = vmatprep.subr.mxu0 0.0
    %6640 = vmatpush1.msra.mxu0 0.0
    %6641 = vmatprep.mubr.f32.mxu0 0.0
    %6642 = vmatmul.mubr.f32.gmra.mrb[0].mxu0 %v6483
    %v6643 = vpop.f32.mrb[0].mxu0
    %v6644 = vadd.f32 0.0, %v6643
    %v6645 = vpop.f32.mrb[0].mxu0
    %v6646 = vadd.f32 0.0, %v6645
    %6647 = vdwg.mxu0
    %v6652 = vrot.slane %v6573, 6
    %v6653 = vrot.slane %v6575, 6
    %v6654 = vrot.slane %v6644, 6
    %v6655 = vrot.slane %v6646, 6
    %v6660 = vadd.f32 %v6502, %v6652
    %v6661 = vadd.f32 %v6503, %v6653
    %v6662 = vadd.f32 %v6504, %v6654
    %v6663 = vadd.f32 %v6505, %v6655
    %6664 = vmatprep.subr.mxu0 %v4627
    %6665 = vmatpush1.msra.mxu0 %v4626
    %6666 = vmatprep.subr.mxu0 %v4631
    %6667 = vmatpush1.msra.mxu0 %v4630
    %6668 = vmatprep.subr.mxu0 %v4635
    %6669 = vmatpush1.msra.mxu0 %v4634
    %6670 = vmatprep.subr.mxu0 %v4639
    %6671 = vmatpush1.msra.mxu0 %v4638
    %6672 = vmatprep.subr.mxu0 %v4643
    %6673 = vmatpush1.msra.mxu0 %v4642
    %6674 = vmatprep.subr.mxu0 %v4647
    %6675 = vmatpush1.msra.mxu0 %v4646
    %6676 = vmatprep.subr.mxu0 %v4651
    %6677 = vmatpush1.msra.mxu0 %v4650
    %6678 = vmatprep.subr.mxu0 %v4655
    %6679 = vmatpush1.msra.mxu0 %v4654
    %6680 = vmatprep.subr.mxu0 %v4659
    %6681 = vmatpush1.msra.mxu0 %v4658
    %6682 = vmatprep.subr.mxu0 %v4663
    %6683 = vmatpush1.msra.mxu0 %v4662
    %6684 = vmatprep.subr.mxu0 %v4667
    %6685 = vmatpush1.msra.mxu0 %v4666
    %6686 = vmatprep.subr.mxu0 %v4671
    %6687 = vmatpush1.msra.mxu0 %v4670
    %6688 = vmatprep.subr.mxu0 %v4675
    %6689 = vmatpush1.msra.mxu0 %v4674
    %6690 = vmatprep.subr.mxu0 %v4679
    %6691 = vmatpush1.msra.mxu0 %v4678
    %6692 = vmatprep.subr.mxu0 %v4683
    %6693 = vmatpush1.msra.mxu0 %v4682
    %6694 = vmatprep.subr.mxu0 %v4687
    %6695 = vmatpush1.msra.mxu0 %v4686
    %6696 = vmatprep.subr.mxu0 0.0
    %6697 = vmatpush1.msra.mxu0 0.0
    %6698 = vmatprep.subr.mxu0 0.0
    %6699 = vmatpush1.msra.mxu0 0.0
    %6700 = vmatprep.subr.mxu0 0.0
    %6701 = vmatpush1.msra.mxu0 0.0
    %6702 = vmatprep.subr.mxu0 0.0
    %6703 = vmatpush1.msra.mxu0 0.0
    %6704 = vmatprep.subr.mxu0 0.0
    %6705 = vmatpush1.msra.mxu0 0.0
    %6706 = vmatprep.subr.mxu0 0.0
    %6707 = vmatpush1.msra.mxu0 0.0
    %6708 = vmatprep.subr.mxu0 0.0
    %6709 = vmatpush1.msra.mxu0 0.0
    %6710 = vmatprep.subr.mxu0 0.0
    %6711 = vmatpush1.msra.mxu0 0.0
    %6712 = vmatprep.subr.mxu0 0.0
    %6713 = vmatpush1.msra.mxu0 0.0
    %6714 = vmatprep.subr.mxu0 0.0
    %6715 = vmatpush1.msra.mxu0 0.0
    %6716 = vmatprep.subr.mxu0 0.0
    %6717 = vmatpush1.msra.mxu0 0.0
    %6718 = vmatprep.subr.mxu0 0.0
    %6719 = vmatpush1.msra.mxu0 0.0
    %6720 = vmatprep.subr.mxu0 0.0
    %6721 = vmatpush1.msra.mxu0 0.0
    %6722 = vmatprep.subr.mxu0 0.0
    %6723 = vmatpush1.msra.mxu0 0.0
    %6724 = vmatprep.subr.mxu0 0.0
    %6725 = vmatpush1.msra.mxu0 0.0
    %6726 = vmatprep.subr.mxu0 0.0
    %6727 = vmatpush1.msra.mxu0 0.0
    %6728 = vmatprep.mubr.f32.mxu0 0.0
    %6729 = vmatmul.mubr.f32.gmra.mrb[0].mxu0 %v6501
    %v6730 = vpop.f32.mrb[0].mxu0
    %v6731 = vadd.f32 0.0, %v6730
    %v6732 = vpop.f32.mrb[0].mxu0
    %v6733 = vadd.f32 0.0, %v6732
    %6734 = vdwg.mxu0
    %6735 = vmatprep.subr.mxu0 %v4629
    %6736 = vmatpush1.msra.mxu0 %v4628
    %6737 = vmatprep.subr.mxu0 %v4633
    %6738 = vmatpush1.msra.mxu0 %v4632
    %6739 = vmatprep.subr.mxu0 %v4637
    %6740 = vmatpush1.msra.mxu0 %v4636
    %6741 = vmatprep.subr.mxu0 %v4641
    %6742 = vmatpush1.msra.mxu0 %v4640
    %6743 = vmatprep.subr.mxu0 %v4645
    %6744 = vmatpush1.msra.mxu0 %v4644
    %6745 = vmatprep.subr.mxu0 %v4649
    %6746 = vmatpush1.msra.mxu0 %v4648
    %6747 = vmatprep.subr.mxu0 %v4653
    %6748 = vmatpush1.msra.mxu0 %v4652
    %6749 = vmatprep.subr.mxu0 %v4657
    %6750 = vmatpush1.msra.mxu0 %v4656
    %6751 = vmatprep.subr.mxu0 %v4661
    %6752 = vmatpush1.msra.mxu0 %v4660
    %6753 = vmatprep.subr.mxu0 %v4665
    %6754 = vmatpush1.msra.mxu0 %v4664
    %6755 = vmatprep.subr.mxu0 %v4669
    %6756 = vmatpush1.msra.mxu0 %v4668
    %6757 = vmatprep.subr.mxu0 %v4673
    %6758 = vmatpush1.msra.mxu0 %v4672
    %6759 = vmatprep.subr.mxu0 %v4677
    %6760 = vmatpush1.msra.mxu0 %v4676
    %6761 = vmatprep.subr.mxu0 %v4681
    %6762 = vmatpush1.msra.mxu0 %v4680
    %6763 = vmatprep.subr.mxu0 %v4685
    %6764 = vmatpush1.msra.mxu0 %v4684
    %6765 = vmatprep.subr.mxu0 %v4689
    %6766 = vmatpush1.msra.mxu0 %v4688
    %6767 = vmatprep.subr.mxu0 0.0
    %6768 = vmatpush1.msra.mxu0 0.0
    %6769 = vmatprep.subr.mxu0 0.0
    %6770 = vmatpush1.msra.mxu0 0.0
    %6771 = vmatprep.subr.mxu0 0.0
    %6772 = vmatpush1.msra.mxu0 0.0
    %6773 = vmatprep.subr.mxu0 0.0
    %6774 = vmatpush1.msra.mxu0 0.0
    %6775 = vmatprep.subr.mxu0 0.0
    %6776 = vmatpush1.msra.mxu0 0.0
    %6777 = vmatprep.subr.mxu0 0.0
    %6778 = vmatpush1.msra.mxu0 0.0
    %6779 = vmatprep.subr.mxu0 0.0
    %6780 = vmatpush1.msra.mxu0 0.0
    %6781 = vmatprep.subr.mxu0 0.0
    %6782 = vmatpush1.msra.mxu0 0.0
    %6783 = vmatprep.subr.mxu0 0.0
    %6784 = vmatpush1.msra.mxu0 0.0
    %6785 = vmatprep.subr.mxu0 0.0
    %6786 = vmatpush1.msra.mxu0 0.0
    %6787 = vmatprep.subr.mxu0 0.0
    %6788 = vmatpush1.msra.mxu0 0.0
    %6789 = vmatprep.subr.mxu0 0.0
    %6790 = vmatpush1.msra.mxu0 0.0
    %6791 = vmatprep.subr.mxu0 0.0
    %6792 = vmatpush1.msra.mxu0 0.0
    %6793 = vmatprep.subr.mxu0 0.0
    %6794 = vmatpush1.msra.mxu0 0.0
    %6795 = vmatprep.subr.mxu0 0.0
    %6796 = vmatpush1.msra.mxu0 0.0
    %6797 = vmatprep.subr.mxu0 0.0
    %6798 = vmatpush1.msra.mxu0 0.0
    %6799 = vmatprep.mubr.f32.mxu0 0.0
    %6800 = vmatmul.mubr.f32.gmra.mrb[0].mxu0 %v6501
    %v6801 = vpop.f32.mrb[0].mxu0
    %v6802 = vadd.f32 0.0, %v6801
    %v6803 = vpop.f32.mrb[0].mxu0
    %v6804 = vadd.f32 0.0, %v6803
    %6805 = vdwg.mxu0
    %6806 = vmatprep.subr.mxu0 %v4563
    %6807 = vmatpush1.msra.mxu0 %v4562
    %6808 = vmatprep.subr.mxu0 %v4567
    %6809 = vmatpush1.msra.mxu0 %v4566
    %6810 = vmatprep.subr.mxu0 %v4571
    %6811 = vmatpush1.msra.mxu0 %v4570
    %6812 = vmatprep.subr.mxu0 %v4575
    %6813 = vmatpush1.msra.mxu0 %v4574
    %6814 = vmatprep.subr.mxu0 %v4579
    %6815 = vmatpush1.msra.mxu0 %v4578
    %6816 = vmatprep.subr.mxu0 %v4583
    %6817 = vmatpush1.msra.mxu0 %v4582
    %6818 = vmatprep.subr.mxu0 %v4587
    %6819 = vmatpush1.msra.mxu0 %v4586
    %6820 = vmatprep.subr.mxu0 %v4591
    %6821 = vmatpush1.msra.mxu0 %v4590
    %6822 = vmatprep.subr.mxu0 %v4595
    %6823 = vmatpush1.msra.mxu0 %v4594
    %6824 = vmatprep.subr.mxu0 %v4599
    %6825 = vmatpush1.msra.mxu0 %v4598
    %6826 = vmatprep.subr.mxu0 %v4603
    %6827 = vmatpush1.msra.mxu0 %v4602
    %6828 = vmatprep.subr.mxu0 %v4607
    %6829 = vmatpush1.msra.mxu0 %v4606
    %6830 = vmatprep.subr.mxu0 %v4611
    %6831 = vmatpush1.msra.mxu0 %v4610
    %6832 = vmatprep.subr.mxu0 %v4615
    %6833 = vmatpush1.msra.mxu0 %v4614
    %6834 = vmatprep.subr.mxu0 %v4619
    %6835 = vmatpush1.msra.mxu0 %v4618
    %6836 = vmatprep.subr.mxu0 %v4623
    %6837 = vmatpush1.msra.mxu0 %v4622
    %6838 = vmatprep.subr.mxu0 0.0
    %6839 = vmatpush1.msra.mxu0 0.0
    %6840 = vmatprep.subr.mxu0 0.0
    %6841 = vmatpush1.msra.mxu0 0.0
    %6842 = vmatprep.subr.mxu0 0.0
    %6843 = vmatpush1.msra.mxu0 0.0
    %6844 = vmatprep.subr.mxu0 0.0
    %6845 = vmatpush1.msra.mxu0 0.0
    %6846 = vmatprep.subr.mxu0 0.0
    %6847 = vmatpush1.msra.mxu0 0.0
    %6848 = vmatprep.subr.mxu0 0.0
    %6849 = vmatpush1.msra.mxu0 0.0
    %6850 = vmatprep.subr.mxu0 0.0
    %6851 = vmatpush1.msra.mxu0 0.0
    %6852 = vmatprep.subr.mxu0 0.0
    %6853 = vmatpush1.msra.mxu0 0.0
    %6854 = vmatprep.subr.mxu0 0.0
    %6855 = vmatpush1.msra.mxu0 0.0
    %6856 = vmatprep.subr.mxu0 0.0
    %6857 = vmatpush1.msra.mxu0 0.0
    %6858 = vmatprep.subr.mxu0 0.0
    %6859 = vmatpush1.msra.mxu0 0.0
    %6860 = vmatprep.subr.mxu0 0.0
    %6861 = vmatpush1.msra.mxu0 0.0
    %6862 = vmatprep.subr.mxu0 0.0
    %6863 = vmatpush1.msra.mxu0 0.0
    %6864 = vmatprep.subr.mxu0 0.0
    %6865 = vmatpush1.msra.mxu0 0.0
    %6866 = vmatprep.subr.mxu0 0.0
    %6867 = vmatpush1.msra.mxu0 0.0
    %6868 = vmatprep.subr.mxu0 0.0
    %6869 = vmatpush1.msra.mxu0 0.0
    %6870 = vmatprep.mubr.f32.mxu0 0.0
    %6871 = vmatmul.mubr.f32.gmra.mrb[0].mxu0 %v6483
    %v6872 = vpop.f32.mrb[0].mxu0
    %v6873 = vadd.f32 %v6731, %v6872
    %v6874 = vpop.f32.mrb[0].mxu0
    %v6875 = vadd.f32 %v6733, %v6874
    %6876 = vdwg.mxu0
    %6877 = vmatprep.subr.mxu0 %v4565
    %6878 = vmatpush1.msra.mxu0 %v4564
    %6879 = vmatprep.subr.mxu0 %v4569
    %6880 = vmatpush1.msra.mxu0 %v4568
    %6881 = vmatprep.subr.mxu0 %v4573
    %6882 = vmatpush1.msra.mxu0 %v4572
    %6883 = vmatprep.subr.mxu0 %v4577
    %6884 = vmatpush1.msra.mxu0 %v4576
    %6885 = vmatprep.subr.mxu0 %v4581
    %6886 = vmatpush1.msra.mxu0 %v4580
    %6887 = vmatprep.subr.mxu0 %v4585
    %6888 = vmatpush1.msra.mxu0 %v4584
    %6889 = vmatprep.subr.mxu0 %v4589
    %6890 = vmatpush1.msra.mxu0 %v4588
    %6891 = vmatprep.subr.mxu0 %v4593
    %6892 = vmatpush1.msra.mxu0 %v4592
    %6893 = vmatprep.subr.mxu0 %v4597
    %6894 = vmatpush1.msra.mxu0 %v4596
    %6895 = vmatprep.subr.mxu0 %v4601
    %6896 = vmatpush1.msra.mxu0 %v4600
    %6897 = vmatprep.subr.mxu0 %v4605
    %6898 = vmatpush1.msra.mxu0 %v4604
    %6899 = vmatprep.subr.mxu0 %v4609
    %6900 = vmatpush1.msra.mxu0 %v4608
    %6901 = vmatprep.subr.mxu0 %v4613
    %6902 = vmatpush1.msra.mxu0 %v4612
    %6903 = vmatprep.subr.mxu0 %v4617
    %6904 = vmatpush1.msra.mxu0 %v4616
    %6905 = vmatprep.subr.mxu0 %v4621
    %6906 = vmatpush1.msra.mxu0 %v4620
    %6907 = vmatprep.subr.mxu0 %v4625
    %6908 = vmatpush1.msra.mxu0 %v4624
    %6909 = vmatprep.subr.mxu0 0.0
    %6910 = vmatpush1.msra.mxu0 0.0
    %6911 = vmatprep.subr.mxu0 0.0
    %6912 = vmatpush1.msra.mxu0 0.0
    %6913 = vmatprep.subr.mxu0 0.0
    %6914 = vmatpush1.msra.mxu0 0.0
    %6915 = vmatprep.subr.mxu0 0.0
    %6916 = vmatpush1.msra.mxu0 0.0
    %6917 = vmatprep.subr.mxu0 0.0
    %6918 = vmatpush1.msra.mxu0 0.0
    %6919 = vmatprep.subr.mxu0 0.0
    %6920 = vmatpush1.msra.mxu0 0.0
    %6921 = vmatprep.subr.mxu0 0.0
    %6922 = vmatpush1.msra.mxu0 0.0
    %6923 = vmatprep.subr.mxu0 0.0
    %6924 = vmatpush1.msra.mxu0 0.0
    %6925 = vmatprep.subr.mxu0 0.0
    %6926 = vmatpush1.msra.mxu0 0.0
    %6927 = vmatprep.subr.mxu0 0.0
    %6928 = vmatpush1.msra.mxu0 0.0
    %6929 = vmatprep.subr.mxu0 0.0
    %6930 = vmatpush1.msra.mxu0 0.0
    %6931 = vmatprep.subr.mxu0 0.0
    %6932 = vmatpush1.msra.mxu0 0.0
    %6933 = vmatprep.subr.mxu0 0.0
    %6934 = vmatpush1.msra.mxu0 0.0
    %6935 = vmatprep.subr.mxu0 0.0
    %6936 = vmatpush1.msra.mxu0 0.0
    %6937 = vmatprep.subr.mxu0 0.0
    %6938 = vmatpush1.msra.mxu0 0.0
    %6939 = vmatprep.subr.mxu0 0.0
    %6940 = vmatpush1.msra.mxu0 0.0
    %6941 = vmatprep.mubr.f32.mxu0 0.0
    %6942 = vmatmul.mubr.f32.gmra.mrb[0].mxu0 %v6483
    %v6943 = vpop.f32.mrb[0].mxu0
    %v6944 = vadd.f32 %v6802, %v6943
    %v6945 = vpop.f32.mrb[0].mxu0
    %v6946 = vadd.f32 %v6804, %v6945
    %6947 = vdwg.mxu0
    %v6948 = vadd.f32 %v6873, %v4978
    %v6949 = vadd.f32 %v6875, %v4982
    %v6950 = vadd.f32 %v6944, %v4986
    %v6951 = vadd.f32 %v6946, %v4990
    %v6952 = vmul.f32 %v6660, 0.5
    %v6953 = vmul.f32 %v6661, 0.5
    %v6954 = vmul.f32 %v6662, 0.5
    %v6955 = vtanh.pop %v6952
    %v6956 = vtanh.pop %v6953
    %v6957 = vtanh.pop %v6954
    %v6958 = vmul.f32 %v6955, 0.5
    %v6959 = vmul.f32 %v6956, 0.5
    %v6960 = vmul.f32 %v6957, 0.5
    %v6961 = vadd.f32 %v6958, 0.5
    %v6962 = vadd.f32 %v6959, 0.5
    %v6963 = vadd.f32 %v6960, 0.5
    %v6964 = vtanh.pop %v6663
    %v6966 = vrot.slane %v6481, 6
    %v6968 = vmul.f32 %v6962, %v6966
    %v6969 = vmul.f32 %v6961, %v6964
    %v6970 = vadd.f32 %v6968, %v6969
    %v6971 = vtanh.pop %v6970
    %v6972 = vmul.f32 %v6963, %v6971
    %v6973 = vmul.f32 %v6948, 0.5
    %v6974 = vmul.f32 %v6949, 0.5
    %v6975 = vmul.f32 %v6950, 0.5
    %v6976 = vtanh.pop %v6973
    %v6977 = vtanh.pop %v6974
    %v6978 = vtanh.pop %v6975
    %v6979 = vmul.f32 %v6976, 0.5
    %v6980 = vmul.f32 %v6977, 0.5
    %v6981 = vmul.f32 %v6978, 0.5
    %v6982 = vadd.f32 %v6979, 0.5
    %v6983 = vadd.f32 %v6980, 0.5
    %v6984 = vadd.f32 %v6981, 0.5
    %v6985 = vtanh.pop %v6951
    %v6986 = vmul.f32 %v6983, %v6499
    %v6987 = vmul.f32 %v6982, %v6985
    %v6988 = vadd.f32 %v6986, %v6987
    %v6989 = vtanh.pop %v6988
    %v6990 = vmul.f32 %v6984, %v6989
    %v6991 = vld [vmem:[#allocation4 + $0x20] sm:$0x30]
    %v6992 = vld [vmem:[#allocation4 + $0x28] sm:$0x30]
    %v6993 = vld [vmem:[#allocation4 + $0x30] sm:$0x30]
    %v6994 = vld [vmem:[#allocation4 + $0x38] sm:$0x30]
    %v6996 = vrot.slane %v6972, 2
    %6998 = vmatprep.subr.mxu0 %v4341
    %6999 = vmatpush1.msra.mxu0 %v4340
    %7000 = vmatprep.subr.mxu0 %v4345
    %7001 = vmatpush1.msra.mxu0 %v4344
    %7002 = vmatprep.subr.mxu0 %v4349
    %7003 = vmatpush1.msra.mxu0 %v4348
    %7004 = vmatprep.subr.mxu0 %v4353
    %7005 = vmatpush1.msra.mxu0 %v4352
    %7006 = vmatprep.subr.mxu0 %v4357
    %7007 = vmatpush1.msra.mxu0 %v4356
    %7008 = vmatprep.subr.mxu0 %v4361
    %7009 = vmatpush1.msra.mxu0 %v4360
    %7010 = vmatprep.subr.mxu0 %v4365
    %7011 = vmatpush1.msra.mxu0 %v4364
    %7012 = vmatprep.subr.mxu0 %v4369
    %7013 = vmatpush1.msra.mxu0 %v4368
    %7014 = vmatprep.subr.mxu0 %v4373
    %7015 = vmatpush1.msra.mxu0 %v4372
    %7016 = vmatprep.subr.mxu0 %v4377
    %7017 = vmatpush1.msra.mxu0 %v4376
    %7018 = vmatprep.subr.mxu0 %v4381
    %7019 = vmatpush1.msra.mxu0 %v4380
    %7020 = vmatprep.subr.mxu0 %v4385
    %7021 = vmatpush1.msra.mxu0 %v4384
    %7022 = vmatprep.subr.mxu0 %v4389
    %7023 = vmatpush1.msra.mxu0 %v4388
    %7024 = vmatprep.subr.mxu0 %v4393
    %7025 = vmatpush1.msra.mxu0 %v4392
    %7026 = vmatprep.subr.mxu0 %v4397
    %7027 = vmatpush1.msra.mxu0 %v4396
    %7028 = vmatprep.subr.mxu0 %v4401
    %7029 = vmatpush1.msra.mxu0 %v4400
    %7030 = vmatprep.subr.mxu0 0.0
    %7031 = vmatpush1.msra.mxu0 0.0
    %7032 = vmatprep.subr.mxu0 0.0
    %7033 = vmatpush1.msra.mxu0 0.0
    %7034 = vmatprep.subr.mxu0 0.0
    %7035 = vmatpush1.msra.mxu0 0.0
    %7036 = vmatprep.subr.mxu0 0.0
    %7037 = vmatpush1.msra.mxu0 0.0
    %7038 = vmatprep.subr.mxu0 0.0
    %7039 = vmatpush1.msra.mxu0 0.0
    %7040 = vmatprep.subr.mxu0 0.0
    %7041 = vmatpush1.msra.mxu0 0.0
    %7042 = vmatprep.subr.mxu0 0.0
    %7043 = vmatpush1.msra.mxu0 0.0
    %7044 = vmatprep.subr.mxu0 0.0
    %7045 = vmatpush1.msra.mxu0 0.0
    %7046 = vmatprep.subr.mxu0 0.0
    %7047 = vmatpush1.msra.mxu0 0.0
    %7048 = vmatprep.subr.mxu0 0.0
    %7049 = vmatpush1.msra.mxu0 0.0
    %7050 = vmatprep.subr.mxu0 0.0
    %7051 = vmatpush1.msra.mxu0 0.0
    %7052 = vmatprep.subr.mxu0 0.0
    %7053 = vmatpush1.msra.mxu0 0.0
    %7054 = vmatprep.subr.mxu0 0.0
    %7055 = vmatpush1.msra.mxu0 0.0
    %7056 = vmatprep.subr.mxu0 0.0
    %7057 = vmatpush1.msra.mxu0 0.0
    %7058 = vmatprep.subr.mxu0 0.0
    %7059 = vmatpush1.msra.mxu0 0.0
    %7060 = vmatprep.subr.mxu0 0.0
    %7061 = vmatpush1.msra.mxu0 0.0
    %7062 = vmatprep.mubr.f32.mxu0 0.0
    %7063 = vmatmul.mubr.f32.gmra.mrb[0].mxu0 %v6996
    %v7064 = vpop.f32.mrb[0].mxu0
    %v7065 = vadd.f32 0.0, %v7064
    %v7066 = vpop.f32.mrb[0].mxu0
    %v7067 = vadd.f32 0.0, %v7066
    %7068 = vdwg.mxu0
    %7069 = vmatprep.subr.mxu0 %v4343
    %7070 = vmatpush1.msra.mxu0 %v4342
    %7071 = vmatprep.subr.mxu0 %v4347
    %7072 = vmatpush1.msra.mxu0 %v4346
    %7073 = vmatprep.subr.mxu0 %v4351
    %7074 = vmatpush1.msra.mxu0 %v4350
    %7075 = vmatprep.subr.mxu0 %v4355
    %7076 = vmatpush1.msra.mxu0 %v4354
    %7077 = vmatprep.subr.mxu0 %v4359
    %7078 = vmatpush1.msra.mxu0 %v4358
    %7079 = vmatprep.subr.mxu0 %v4363
    %7080 = vmatpush1.msra.mxu0 %v4362
    %7081 = vmatprep.subr.mxu0 %v4367
    %7082 = vmatpush1.msra.mxu0 %v4366
    %7083 = vmatprep.subr.mxu0 %v4371
    %7084 = vmatpush1.msra.mxu0 %v4370
    %7085 = vmatprep.subr.mxu0 %v4375
    %7086 = vmatpush1.msra.mxu0 %v4374
    %7087 = vmatprep.subr.mxu0 %v4379
    %7088 = vmatpush1.msra.mxu0 %v4378
    %7089 = vmatprep.subr.mxu0 %v4383
    %7090 = vmatpush1.msra.mxu0 %v4382
    %7091 = vmatprep.subr.mxu0 %v4387
    %7092 = vmatpush1.msra.mxu0 %v4386
    %7093 = vmatprep.subr.mxu0 %v4391
    %7094 = vmatpush1.msra.mxu0 %v4390
    %7095 = vmatprep.subr.mxu0 %v4395
    %7096 = vmatpush1.msra.mxu0 %v4394
    %7097 = vmatprep.subr.mxu0 %v4399
    %7098 = vmatpush1.msra.mxu0 %v4398
    %7099 = vmatprep.subr.mxu0 %v4403
    %7100 = vmatpush1.msra.mxu0 %v4402
    %7101 = vmatprep.subr.mxu0 0.0
    %7102 = vmatpush1.msra.mxu0 0.0
    %7103 = vmatprep.subr.mxu0 0.0
    %7104 = vmatpush1.msra.mxu0 0.0
    %7105 = vmatprep.subr.mxu0 0.0
    %7106 = vmatpush1.msra.mxu0 0.0
    %7107 = vmatprep.subr.mxu0 0.0
    %7108 = vmatpush1.msra.mxu0 0.0
    %7109 = vmatprep.subr.mxu0 0.0
    %7110 = vmatpush1.msra.mxu0 0.0
    %7111 = vmatprep.subr.mxu0 0.0
    %7112 = vmatpush1.msra.mxu0 0.0
    %7113 = vmatprep.subr.mxu0 0.0
    %7114 = vmatpush1.msra.mxu0 0.0
    %7115 = vmatprep.subr.mxu0 0.0
    %7116 = vmatpush1.msra.mxu0 0.0
    %7117 = vmatprep.subr.mxu0 0.0
    %7118 = vmatpush1.msra.mxu0 0.0
    %7119 = vmatprep.subr.mxu0 0.0
    %7120 = vmatpush1.msra.mxu0 0.0
    %7121 = vmatprep.subr.mxu0 0.0
    %7122 = vmatpush1.msra.mxu0 0.0
    %7123 = vmatprep.subr.mxu0 0.0
    %7124 = vmatpush1.msra.mxu0 0.0
    %7125 = vmatprep.subr.mxu0 0.0
    %7126 = vmatpush1.msra.mxu0 0.0
    %7127 = vmatprep.subr.mxu0 0.0
    %7128 = vmatpush1.msra.mxu0 0.0
    %7129 = vmatprep.subr.mxu0 0.0
    %7130 = vmatpush1.msra.mxu0 0.0
    %7131 = vmatprep.subr.mxu0 0.0
    %7132 = vmatpush1.msra.mxu0 0.0
    %7133 = vmatprep.mubr.f32.mxu0 0.0
    %7134 = vmatmul.mubr.f32.gmra.mrb[0].mxu0 %v6996
    %v7135 = vpop.f32.mrb[0].mxu0
    %v7136 = vadd.f32 0.0, %v7135
    %v7137 = vpop.f32.mrb[0].mxu0
    %v7138 = vadd.f32 0.0, %v7137
    %7139 = vdwg.mxu0
    %v7144 = vrot.slane %v7065, 4
    %v7145 = vrot.slane %v7067, 4
    %v7146 = vrot.slane %v7136, 4
    %v7147 = vrot.slane %v7138, 4
    %v7152 = vadd.f32 %v6991, %v7144
    %v7153 = vadd.f32 %v6992, %v7145
    %v7154 = vadd.f32 %v6993, %v7146
    %v7155 = vadd.f32 %v6994, %v7147
    %7156 = vmatprep.subr.mxu0 %v4627
    %7157 = vmatpush1.msra.mxu0 %v4626
    %7158 = vmatprep.subr.mxu0 %v4631
    %7159 = vmatpush1.msra.mxu0 %v4630
    %7160 = vmatprep.subr.mxu0 %v4635
    %7161 = vmatpush1.msra.mxu0 %v4634
    %7162 = vmatprep.subr.mxu0 %v4639
    %7163 = vmatpush1.msra.mxu0 %v4638
    %7164 = vmatprep.subr.mxu0 %v4643
    %7165 = vmatpush1.msra.mxu0 %v4642
    %7166 = vmatprep.subr.mxu0 %v4647
    %7167 = vmatpush1.msra.mxu0 %v4646
    %7168 = vmatprep.subr.mxu0 %v4651
    %7169 = vmatpush1.msra.mxu0 %v4650
    %7170 = vmatprep.subr.mxu0 %v4655
    %7171 = vmatpush1.msra.mxu0 %v4654
    %7172 = vmatprep.subr.mxu0 %v4659
    %7173 = vmatpush1.msra.mxu0 %v4658
    %7174 = vmatprep.subr.mxu0 %v4663
    %7175 = vmatpush1.msra.mxu0 %v4662
    %7176 = vmatprep.subr.mxu0 %v4667
    %7177 = vmatpush1.msra.mxu0 %v4666
    %7178 = vmatprep.subr.mxu0 %v4671
    %7179 = vmatpush1.msra.mxu0 %v4670
    %7180 = vmatprep.subr.mxu0 %v4675
    %7181 = vmatpush1.msra.mxu0 %v4674
    %7182 = vmatprep.subr.mxu0 %v4679
    %7183 = vmatpush1.msra.mxu0 %v4678
    %7184 = vmatprep.subr.mxu0 %v4683
    %7185 = vmatpush1.msra.mxu0 %v4682
    %7186 = vmatprep.subr.mxu0 %v4687
    %7187 = vmatpush1.msra.mxu0 %v4686
    %7188 = vmatprep.subr.mxu0 0.0
    %7189 = vmatpush1.msra.mxu0 0.0
    %7190 = vmatprep.subr.mxu0 0.0
    %7191 = vmatpush1.msra.mxu0 0.0
    %7192 = vmatprep.subr.mxu0 0.0
    %7193 = vmatpush1.msra.mxu0 0.0
    %7194 = vmatprep.subr.mxu0 0.0
    %7195 = vmatpush1.msra.mxu0 0.0
    %7196 = vmatprep.subr.mxu0 0.0
    %7197 = vmatpush1.msra.mxu0 0.0
    %7198 = vmatprep.subr.mxu0 0.0
    %7199 = vmatpush1.msra.mxu0 0.0
    %7200 = vmatprep.subr.mxu0 0.0
    %7201 = vmatpush1.msra.mxu0 0.0
    %7202 = vmatprep.subr.mxu0 0.0
    %7203 = vmatpush1.msra.mxu0 0.0
    %7204 = vmatprep.subr.mxu0 0.0
    %7205 = vmatpush1.msra.mxu0 0.0
    %7206 = vmatprep.subr.mxu0 0.0
    %7207 = vmatpush1.msra.mxu0 0.0
    %7208 = vmatprep.subr.mxu0 0.0
    %7209 = vmatpush1.msra.mxu0 0.0
    %7210 = vmatprep.subr.mxu0 0.0
    %7211 = vmatpush1.msra.mxu0 0.0
    %7212 = vmatprep.subr.mxu0 0.0
    %7213 = vmatpush1.msra.mxu0 0.0
    %7214 = vmatprep.subr.mxu0 0.0
    %7215 = vmatpush1.msra.mxu0 0.0
    %7216 = vmatprep.subr.mxu0 0.0
    %7217 = vmatpush1.msra.mxu0 0.0
    %7218 = vmatprep.subr.mxu0 0.0
    %7219 = vmatpush1.msra.mxu0 0.0
    %7220 = vmatprep.mubr.f32.mxu0 0.0
    %7221 = vmatmul.mubr.f32.gmra.mrb[0].mxu0 %v6990
    %v7222 = vpop.f32.mrb[0].mxu0
    %v7223 = vadd.f32 0.0, %v7222
    %v7224 = vpop.f32.mrb[0].mxu0
    %v7225 = vadd.f32 0.0, %v7224
    %7226 = vdwg.mxu0
    %7227 = vmatprep.subr.mxu0 %v4629
    %7228 = vmatpush1.msra.mxu0 %v4628
    %7229 = vmatprep.subr.mxu0 %v4633
    %7230 = vmatpush1.msra.mxu0 %v4632
    %7231 = vmatprep.subr.mxu0 %v4637
    %7232 = vmatpush1.msra.mxu0 %v4636
    %7233 = vmatprep.subr.mxu0 %v4641
    %7234 = vmatpush1.msra.mxu0 %v4640
    %7235 = vmatprep.subr.mxu0 %v4645
    %7236 = vmatpush1.msra.mxu0 %v4644
    %7237 = vmatprep.subr.mxu0 %v4649
    %7238 = vmatpush1.msra.mxu0 %v4648
    %7239 = vmatprep.subr.mxu0 %v4653
    %7240 = vmatpush1.msra.mxu0 %v4652
    %7241 = vmatprep.subr.mxu0 %v4657
    %7242 = vmatpush1.msra.mxu0 %v4656
    %7243 = vmatprep.subr.mxu0 %v4661
    %7244 = vmatpush1.msra.mxu0 %v4660
    %7245 = vmatprep.subr.mxu0 %v4665
    %7246 = vmatpush1.msra.mxu0 %v4664
    %7247 = vmatprep.subr.mxu0 %v4669
    %7248 = vmatpush1.msra.mxu0 %v4668
    %7249 = vmatprep.subr.mxu0 %v4673
    %7250 = vmatpush1.msra.mxu0 %v4672
    %7251 = vmatprep.subr.mxu0 %v4677
    %7252 = vmatpush1.msra.mxu0 %v4676
    %7253 = vmatprep.subr.mxu0 %v4681
    %7254 = vmatpush1.msra.mxu0 %v4680
    %7255 = vmatprep.subr.mxu0 %v4685
    %7256 = vmatpush1.msra.mxu0 %v4684
    %7257 = vmatprep.subr.mxu0 %v4689
    %7258 = vmatpush1.msra.mxu0 %v4688
    %7259 = vmatprep.subr.mxu0 0.0
    %7260 = vmatpush1.msra.mxu0 0.0
    %7261 = vmatprep.subr.mxu0 0.0
    %7262 = vmatpush1.msra.mxu0 0.0
    %7263 = vmatprep.subr.mxu0 0.0
    %7264 = vmatpush1.msra.mxu0 0.0
    %7265 = vmatprep.subr.mxu0 0.0
    %7266 = vmatpush1.msra.mxu0 0.0
    %7267 = vmatprep.subr.mxu0 0.0
    %7268 = vmatpush1.msra.mxu0 0.0
    %7269 = vmatprep.subr.mxu0 0.0
    %7270 = vmatpush1.msra.mxu0 0.0
    %7271 = vmatprep.subr.mxu0 0.0
    %7272 = vmatpush1.msra.mxu0 0.0
    %7273 = vmatprep.subr.mxu0 0.0
    %7274 = vmatpush1.msra.mxu0 0.0
    %7275 = vmatprep.subr.mxu0 0.0
    %7276 = vmatpush1.msra.mxu0 0.0
    %7277 = vmatprep.subr.mxu0 0.0
    %7278 = vmatpush1.msra.mxu0 0.0
    %7279 = vmatprep.subr.mxu0 0.0
    %7280 = vmatpush1.msra.mxu0 0.0
    %7281 = vmatprep.subr.mxu0 0.0
    %7282 = vmatpush1.msra.mxu0 0.0
    %7283 = vmatprep.subr.mxu0 0.0
    %7284 = vmatpush1.msra.mxu0 0.0
    %7285 = vmatprep.subr.mxu0 0.0
    %7286 = vmatpush1.msra.mxu0 0.0
    %7287 = vmatprep.subr.mxu0 0.0
    %7288 = vmatpush1.msra.mxu0 0.0
    %7289 = vmatprep.subr.mxu0 0.0
    %7290 = vmatpush1.msra.mxu0 0.0
    %7291 = vmatprep.mubr.f32.mxu0 0.0
    %7292 = vmatmul.mubr.f32.gmra.mrb[0].mxu0 %v6990
    %v7293 = vpop.f32.mrb[0].mxu0
    %v7294 = vadd.f32 0.0, %v7293
    %v7295 = vpop.f32.mrb[0].mxu0
    %v7296 = vadd.f32 0.0, %v7295
    %7297 = vdwg.mxu0
    %7298 = vmatprep.subr.mxu0 %v4563
    %7299 = vmatpush1.msra.mxu0 %v4562
    %7300 = vmatprep.subr.mxu0 %v4567
    %7301 = vmatpush1.msra.mxu0 %v4566
    %7302 = vmatprep.subr.mxu0 %v4571
    %7303 = vmatpush1.msra.mxu0 %v4570
    %7304 = vmatprep.subr.mxu0 %v4575
    %7305 = vmatpush1.msra.mxu0 %v4574
    %7306 = vmatprep.subr.mxu0 %v4579
    %7307 = vmatpush1.msra.mxu0 %v4578
    %7308 = vmatprep.subr.mxu0 %v4583
    %7309 = vmatpush1.msra.mxu0 %v4582
    %7310 = vmatprep.subr.mxu0 %v4587
    %7311 = vmatpush1.msra.mxu0 %v4586
    %7312 = vmatprep.subr.mxu0 %v4591
    %7313 = vmatpush1.msra.mxu0 %v4590
    %7314 = vmatprep.subr.mxu0 %v4595
    %7315 = vmatpush1.msra.mxu0 %v4594
    %7316 = vmatprep.subr.mxu0 %v4599
    %7317 = vmatpush1.msra.mxu0 %v4598
    %7318 = vmatprep.subr.mxu0 %v4603
    %7319 = vmatpush1.msra.mxu0 %v4602
    %7320 = vmatprep.subr.mxu0 %v4607
    %7321 = vmatpush1.msra.mxu0 %v4606
    %7322 = vmatprep.subr.mxu0 %v4611
    %7323 = vmatpush1.msra.mxu0 %v4610
    %7324 = vmatprep.subr.mxu0 %v4615
    %7325 = vmatpush1.msra.mxu0 %v4614
    %7326 = vmatprep.subr.mxu0 %v4619
    %7327 = vmatpush1.msra.mxu0 %v4618
    %7328 = vmatprep.subr.mxu0 %v4623
    %7329 = vmatpush1.msra.mxu0 %v4622
    %7330 = vmatprep.subr.mxu0 0.0
    %7331 = vmatpush1.msra.mxu0 0.0
    %7332 = vmatprep.subr.mxu0 0.0
    %7333 = vmatpush1.msra.mxu0 0.0
    %7334 = vmatprep.subr.mxu0 0.0
    %7335 = vmatpush1.msra.mxu0 0.0
    %7336 = vmatprep.subr.mxu0 0.0
    %7337 = vmatpush1.msra.mxu0 0.0
    %7338 = vmatprep.subr.mxu0 0.0
    %7339 = vmatpush1.msra.mxu0 0.0
    %7340 = vmatprep.subr.mxu0 0.0
    %7341 = vmatpush1.msra.mxu0 0.0
    %7342 = vmatprep.subr.mxu0 0.0
    %7343 = vmatpush1.msra.mxu0 0.0
    %7344 = vmatprep.subr.mxu0 0.0
    %7345 = vmatpush1.msra.mxu0 0.0
    %7346 = vmatprep.subr.mxu0 0.0
    %7347 = vmatpush1.msra.mxu0 0.0
    %7348 = vmatprep.subr.mxu0 0.0
    %7349 = vmatpush1.msra.mxu0 0.0
    %7350 = vmatprep.subr.mxu0 0.0
    %7351 = vmatpush1.msra.mxu0 0.0
    %7352 = vmatprep.subr.mxu0 0.0
    %7353 = vmatpush1.msra.mxu0 0.0
    %7354 = vmatprep.subr.mxu0 0.0
    %7355 = vmatpush1.msra.mxu0 0.0
    %7356 = vmatprep.subr.mxu0 0.0
    %7357 = vmatpush1.msra.mxu0 0.0
    %7358 = vmatprep.subr.mxu0 0.0
    %7359 = vmatpush1.msra.mxu0 0.0
    %7360 = vmatprep.subr.mxu0 0.0
    %7361 = vmatpush1.msra.mxu0 0.0
    %7362 = vmatprep.mubr.f32.mxu0 0.0
    %7363 = vmatmul.mubr.f32.gmra.mrb[0].mxu0 %v6996
    %v7364 = vpop.f32.mrb[0].mxu0
    %v7365 = vadd.f32 %v7223, %v7364
    %v7366 = vpop.f32.mrb[0].mxu0
    %v7367 = vadd.f32 %v7225, %v7366
    %7368 = vdwg.mxu0
    %7369 = vmatprep.subr.mxu0 %v4565
    %7370 = vmatpush1.msra.mxu0 %v4564
    %7371 = vmatprep.subr.mxu0 %v4569
    %7372 = vmatpush1.msra.mxu0 %v4568
    %7373 = vmatprep.subr.mxu0 %v4573
    %7374 = vmatpush1.msra.mxu0 %v4572
    %7375 = vmatprep.subr.mxu0 %v4577
    %7376 = vmatpush1.msra.mxu0 %v4576
    %7377 = vmatprep.subr.mxu0 %v4581
    %7378 = vmatpush1.msra.mxu0 %v4580
    %7379 = vmatprep.subr.mxu0 %v4585
    %7380 = vmatpush1.msra.mxu0 %v4584
    %7381 = vmatprep.subr.mxu0 %v4589
    %7382 = vmatpush1.msra.mxu0 %v4588
    %7383 = vmatprep.subr.mxu0 %v4593
    %7384 = vmatpush1.msra.mxu0 %v4592
    %7385 = vmatprep.subr.mxu0 %v4597
    %7386 = vmatpush1.msra.mxu0 %v4596
    %7387 = vmatprep.subr.mxu0 %v4601
    %7388 = vmatpush1.msra.mxu0 %v4600
    %7389 = vmatprep.subr.mxu0 %v4605
    %7390 = vmatpush1.msra.mxu0 %v4604
    %7391 = vmatprep.subr.mxu0 %v4609
    %7392 = vmatpush1.msra.mxu0 %v4608
    %7393 = vmatprep.subr.mxu0 %v4613
    %7394 = vmatpush1.msra.mxu0 %v4612
    %7395 = vmatprep.subr.mxu0 %v4617
    %7396 = vmatpush1.msra.mxu0 %v4616
    %7397 = vmatprep.subr.mxu0 %v4621
    %7398 = vmatpush1.msra.mxu0 %v4620
    %7399 = vmatprep.subr.mxu0 %v4625
    %7400 = vmatpush1.msra.mxu0 %v4624
    %7401 = vmatprep.subr.mxu0 0.0
    %7402 = vmatpush1.msra.mxu0 0.0
    %7403 = vmatprep.subr.mxu0 0.0
    %7404 = vmatpush1.msra.mxu0 0.0
    %7405 = vmatprep.subr.mxu0 0.0
    %7406 = vmatpush1.msra.mxu0 0.0
    %7407 = vmatprep.subr.mxu0 0.0
    %7408 = vmatpush1.msra.mxu0 0.0
    %7409 = vmatprep.subr.mxu0 0.0
    %7410 = vmatpush1.msra.mxu0 0.0
    %7411 = vmatprep.subr.mxu0 0.0
    %7412 = vmatpush1.msra.mxu0 0.0
    %7413 = vmatprep.subr.mxu0 0.0
    %7414 = vmatpush1.msra.mxu0 0.0
    %7415 = vmatprep.subr.mxu0 0.0
    %7416 = vmatpush1.msra.mxu0 0.0
    %7417 = vmatprep.subr.mxu0 0.0
    %7418 = vmatpush1.msra.mxu0 0.0
    %7419 = vmatprep.subr.mxu0 0.0
    %7420 = vmatpush1.msra.mxu0 0.0
    %7421 = vmatprep.subr.mxu0 0.0
    %7422 = vmatpush1.msra.mxu0 0.0
    %7423 = vmatprep.subr.mxu0 0.0
    %7424 = vmatpush1.msra.mxu0 0.0
    %7425 = vmatprep.subr.mxu0 0.0
    %7426 = vmatpush1.msra.mxu0 0.0
    %7427 = vmatprep.subr.mxu0 0.0
    %7428 = vmatpush1.msra.mxu0 0.0
    %7429 = vmatprep.subr.mxu0 0.0
    %7430 = vmatpush1.msra.mxu0 0.0
    %7431 = vmatprep.subr.mxu0 0.0
    %7432 = vmatpush1.msra.mxu0 0.0
    %7433 = vmatprep.mubr.f32.mxu0 0.0
    %7434 = vmatmul.mubr.f32.gmra.mrb[0].mxu0 %v6996
    %v7435 = vpop.f32.mrb[0].mxu0
    %v7436 = vadd.f32 %v7294, %v7435
    %v7437 = vpop.f32.mrb[0].mxu0
    %v7438 = vadd.f32 %v7296, %v7437
    %7439 = vdwg.mxu0
    %v7440 = vadd.f32 %v7365, %v4978
    %v7441 = vadd.f32 %v7367, %v4982
    %v7442 = vadd.f32 %v7436, %v4986
    %v7443 = vadd.f32 %v7438, %v4990
    %v7444 = vmul.f32 %v7152, 0.5
    %v7445 = vmul.f32 %v7153, 0.5
    %v7446 = vmul.f32 %v7154, 0.5
    %v7447 = vtanh.pop %v7444
    %v7448 = vtanh.pop %v7445
    %v7449 = vtanh.pop %v7446
    %v7450 = vmul.f32 %v7447, 0.5
    %v7451 = vmul.f32 %v7448, 0.5
    %v7452 = vmul.f32 %v7449, 0.5
    %v7453 = vadd.f32 %v7450, 0.5
    %v7454 = vadd.f32 %v7451, 0.5
    %v7455 = vadd.f32 %v7452, 0.5
    %v7456 = vtanh.pop %v7155
    %v7458 = vrot.slane %v6970, 6
    %v7460 = vmul.f32 %v7454, %v7458
    %v7461 = vmul.f32 %v7453, %v7456
    %v7462 = vadd.f32 %v7460, %v7461
    %v7463 = vtanh.pop %v7462
    %v7464 = vmul.f32 %v7455, %v7463
    %v7465 = vmul.f32 %v7440, 0.5
    %v7466 = vmul.f32 %v7441, 0.5
    %v7467 = vmul.f32 %v7442, 0.5
    %v7468 = vtanh.pop %v7465
    %v7469 = vtanh.pop %v7466
    %v7470 = vtanh.pop %v7467
    %v7471 = vmul.f32 %v7468, 0.5
    %v7472 = vmul.f32 %v7469, 0.5
    %v7473 = vmul.f32 %v7470, 0.5
    %v7474 = vadd.f32 %v7471, 0.5
    %v7475 = vadd.f32 %v7472, 0.5
    %v7476 = vadd.f32 %v7473, 0.5
    %v7477 = vtanh.pop %v7443
    %v7478 = vmul.f32 %v7475, %v6988
    %v7479 = vmul.f32 %v7474, %v7477
    %v7480 = vadd.f32 %v7478, %v7479
    %v7481 = vtanh.pop %v7480
    %v7482 = vmul.f32 %v7476, %v7481
    %v7483 = vld [vmem:[#allocation4 + $0x20] sm:$0xc0]
    %v7484 = vld [vmem:[#allocation4 + $0x28] sm:$0xc0]
    %v7485 = vld [vmem:[#allocation4 + $0x30] sm:$0xc0]
    %v7486 = vld [vmem:[#allocation4 + $0x38] sm:$0xc0]
    %v7488 = vrot.slane %v7464, 4
    %7490 = vmatprep.subr.mxu0 %v4341
    %7491 = vmatpush1.msra.mxu0 %v4340
    %7492 = vmatprep.subr.mxu0 %v4345
    %7493 = vmatpush1.msra.mxu0 %v4344
    %7494 = vmatprep.subr.mxu0 %v4349
    %7495 = vmatpush1.msra.mxu0 %v4348
    %7496 = vmatprep.subr.mxu0 %v4353
    %7497 = vmatpush1.msra.mxu0 %v4352
    %7498 = vmatprep.subr.mxu0 %v4357
    %7499 = vmatpush1.msra.mxu0 %v4356
    %7500 = vmatprep.subr.mxu0 %v4361
    %7501 = vmatpush1.msra.mxu0 %v4360
    %7502 = vmatprep.subr.mxu0 %v4365
    %7503 = vmatpush1.msra.mxu0 %v4364
    %7504 = vmatprep.subr.mxu0 %v4369
    %7505 = vmatpush1.msra.mxu0 %v4368
    %7506 = vmatprep.subr.mxu0 %v4373
    %7507 = vmatpush1.msra.mxu0 %v4372
    %7508 = vmatprep.subr.mxu0 %v4377
    %7509 = vmatpush1.msra.mxu0 %v4376
    %7510 = vmatprep.subr.mxu0 %v4381
    %7511 = vmatpush1.msra.mxu0 %v4380
    %7512 = vmatprep.subr.mxu0 %v4385
    %7513 = vmatpush1.msra.mxu0 %v4384
    %7514 = vmatprep.subr.mxu0 %v4389
    %7515 = vmatpush1.msra.mxu0 %v4388
    %7516 = vmatprep.subr.mxu0 %v4393
    %7517 = vmatpush1.msra.mxu0 %v4392
    %7518 = vmatprep.subr.mxu0 %v4397
    %7519 = vmatpush1.msra.mxu0 %v4396
    %7520 = vmatprep.subr.mxu0 %v4401
    %7521 = vmatpush1.msra.mxu0 %v4400
    %7522 = vmatprep.subr.mxu0 0.0
    %7523 = vmatpush1.msra.mxu0 0.0
    %7524 = vmatprep.subr.mxu0 0.0
    %7525 = vmatpush1.msra.mxu0 0.0
    %7526 = vmatprep.subr.mxu0 0.0
    %7527 = vmatpush1.msra.mxu0 0.0
    %7528 = vmatprep.subr.mxu0 0.0
    %7529 = vmatpush1.msra.mxu0 0.0
    %7530 = vmatprep.subr.mxu0 0.0
    %7531 = vmatpush1.msra.mxu0 0.0
    %7532 = vmatprep.subr.mxu0 0.0
    %7533 = vmatpush1.msra.mxu0 0.0
    %7534 = vmatprep.subr.mxu0 0.0
    %7535 = vmatpush1.msra.mxu0 0.0
    %7536 = vmatprep.subr.mxu0 0.0
    %7537 = vmatpush1.msra.mxu0 0.0
    %7538 = vmatprep.subr.mxu0 0.0
    %7539 = vmatpush1.msra.mxu0 0.0
    %7540 = vmatprep.subr.mxu0 0.0
    %7541 = vmatpush1.msra.mxu0 0.0
    %7542 = vmatprep.subr.mxu0 0.0
    %7543 = vmatpush1.msra.mxu0 0.0
    %7544 = vmatprep.subr.mxu0 0.0
    %7545 = vmatpush1.msra.mxu0 0.0
    %7546 = vmatprep.subr.mxu0 0.0
    %7547 = vmatpush1.msra.mxu0 0.0
    %7548 = vmatprep.subr.mxu0 0.0
    %7549 = vmatpush1.msra.mxu0 0.0
    %7550 = vmatprep.subr.mxu0 0.0
    %7551 = vmatpush1.msra.mxu0 0.0
    %7552 = vmatprep.subr.mxu0 0.0
    %7553 = vmatpush1.msra.mxu0 0.0
    %7554 = vmatprep.mubr.f32.mxu0 0.0
    %7555 = vmatmul.mubr.f32.gmra.mrb[0].mxu0 %v7488
    %v7556 = vpop.f32.mrb[0].mxu0
    %v7557 = vadd.f32 0.0, %v7556
    %v7558 = vpop.f32.mrb[0].mxu0
    %v7559 = vadd.f32 0.0, %v7558
    %7560 = vdwg.mxu0
    %7561 = vmatprep.subr.mxu0 %v4343
    %7562 = vmatpush1.msra.mxu0 %v4342
    %7563 = vmatprep.subr.mxu0 %v4347
    %7564 = vmatpush1.msra.mxu0 %v4346
    %7565 = vmatprep.subr.mxu0 %v4351
    %7566 = vmatpush1.msra.mxu0 %v4350
    %7567 = vmatprep.subr.mxu0 %v4355
    %7568 = vmatpush1.msra.mxu0 %v4354
    %7569 = vmatprep.subr.mxu0 %v4359
    %7570 = vmatpush1.msra.mxu0 %v4358
    %7571 = vmatprep.subr.mxu0 %v4363
    %7572 = vmatpush1.msra.mxu0 %v4362
    %7573 = vmatprep.subr.mxu0 %v4367
    %7574 = vmatpush1.msra.mxu0 %v4366
    %7575 = vmatprep.subr.mxu0 %v4371
    %7576 = vmatpush1.msra.mxu0 %v4370
    %7577 = vmatprep.subr.mxu0 %v4375
    %7578 = vmatpush1.msra.mxu0 %v4374
    %7579 = vmatprep.subr.mxu0 %v4379
    %7580 = vmatpush1.msra.mxu0 %v4378
    %7581 = vmatprep.subr.mxu0 %v4383
    %7582 = vmatpush1.msra.mxu0 %v4382
    %7583 = vmatprep.subr.mxu0 %v4387
    %7584 = vmatpush1.msra.mxu0 %v4386
    %7585 = vmatprep.subr.mxu0 %v4391
    %7586 = vmatpush1.msra.mxu0 %v4390
    %7587 = vmatprep.subr.mxu0 %v4395
    %7588 = vmatpush1.msra.mxu0 %v4394
    %7589 = vmatprep.subr.mxu0 %v4399
    %7590 = vmatpush1.msra.mxu0 %v4398
    %7591 = vmatprep.subr.mxu0 %v4403
    %7592 = vmatpush1.msra.mxu0 %v4402
    %7593 = vmatprep.subr.mxu0 0.0
    %7594 = vmatpush1.msra.mxu0 0.0
    %7595 = vmatprep.subr.mxu0 0.0
    %7596 = vmatpush1.msra.mxu0 0.0
    %7597 = vmatprep.subr.mxu0 0.0
    %7598 = vmatpush1.msra.mxu0 0.0
    %7599 = vmatprep.subr.mxu0 0.0
    %7600 = vmatpush1.msra.mxu0 0.0
    %7601 = vmatprep.subr.mxu0 0.0
    %7602 = vmatpush1.msra.mxu0 0.0
    %7603 = vmatprep.subr.mxu0 0.0
    %7604 = vmatpush1.msra.mxu0 0.0
    %7605 = vmatprep.subr.mxu0 0.0
    %7606 = vmatpush1.msra.mxu0 0.0
    %7607 = vmatprep.subr.mxu0 0.0
    %7608 = vmatpush1.msra.mxu0 0.0
    %7609 = vmatprep.subr.mxu0 0.0
    %7610 = vmatpush1.msra.mxu0 0.0
    %7611 = vmatprep.subr.mxu0 0.0
    %7612 = vmatpush1.msra.mxu0 0.0
    %7613 = vmatprep.subr.mxu0 0.0
    %7614 = vmatpush1.msra.mxu0 0.0
    %7615 = vmatprep.subr.mxu0 0.0
    %7616 = vmatpush1.msra.mxu0 0.0
    %7617 = vmatprep.subr.mxu0 0.0
    %7618 = vmatpush1.msra.mxu0 0.0
    %7619 = vmatprep.subr.mxu0 0.0
    %7620 = vmatpush1.msra.mxu0 0.0
    %7621 = vmatprep.subr.mxu0 0.0
    %7622 = vmatpush1.msra.mxu0 0.0
    %7623 = vmatprep.subr.mxu0 0.0
    %7624 = vmatpush1.msra.mxu0 0.0
    %7625 = vmatprep.mubr.f32.mxu0 0.0
    %7626 = vmatmul.mubr.f32.gmra.mrb[0].mxu0 %v7488
    %v7627 = vpop.f32.mrb[0].mxu0
    %v7628 = vadd.f32 0.0, %v7627
    %v7629 = vpop.f32.mrb[0].mxu0
    %v7630 = vadd.f32 0.0, %v7629
    %7631 = vdwg.mxu0
    %v7636 = vrot.slane %v7557, 2
    %v7637 = vrot.slane %v7559, 2
    %v7638 = vrot.slane %v7628, 2
    %v7639 = vrot.slane %v7630, 2
    %v7644 = vadd.f32 %v7483, %v7636
    %v7645 = vadd.f32 %v7484, %v7637
    %v7646 = vadd.f32 %v7485, %v7638
    %v7647 = vadd.f32 %v7486, %v7639
    %7648 = vmatprep.subr.mxu0 %v4627
    %7649 = vmatpush1.msra.mxu0 %v4626
    %7650 = vmatprep.subr.mxu0 %v4631
    %7651 = vmatpush1.msra.mxu0 %v4630
    %7652 = vmatprep.subr.mxu0 %v4635
    %7653 = vmatpush1.msra.mxu0 %v4634
    %7654 = vmatprep.subr.mxu0 %v4639
    %7655 = vmatpush1.msra.mxu0 %v4638
    %7656 = vmatprep.subr.mxu0 %v4643
    %7657 = vmatpush1.msra.mxu0 %v4642
    %7658 = vmatprep.subr.mxu0 %v4647
    %7659 = vmatpush1.msra.mxu0 %v4646
    %7660 = vmatprep.subr.mxu0 %v4651
    %7661 = vmatpush1.msra.mxu0 %v4650
    %7662 = vmatprep.subr.mxu0 %v4655
    %7663 = vmatpush1.msra.mxu0 %v4654
    %7664 = vmatprep.subr.mxu0 %v4659
    %7665 = vmatpush1.msra.mxu0 %v4658
    %7666 = vmatprep.subr.mxu0 %v4663
    %7667 = vmatpush1.msra.mxu0 %v4662
    %7668 = vmatprep.subr.mxu0 %v4667
    %7669 = vmatpush1.msra.mxu0 %v4666
    %7670 = vmatprep.subr.mxu0 %v4671
    %7671 = vmatpush1.msra.mxu0 %v4670
    %7672 = vmatprep.subr.mxu0 %v4675
    %7673 = vmatpush1.msra.mxu0 %v4674
    %7674 = vmatprep.subr.mxu0 %v4679
    %7675 = vmatpush1.msra.mxu0 %v4678
    %7676 = vmatprep.subr.mxu0 %v4683
    %7677 = vmatpush1.msra.mxu0 %v4682
    %7678 = vmatprep.subr.mxu0 %v4687
    %7679 = vmatpush1.msra.mxu0 %v4686
    %7680 = vmatprep.subr.mxu0 0.0
    %7681 = vmatpush1.msra.mxu0 0.0
    %7682 = vmatprep.subr.mxu0 0.0
    %7683 = vmatpush1.msra.mxu0 0.0
    %7684 = vmatprep.subr.mxu0 0.0
    %7685 = vmatpush1.msra.mxu0 0.0
    %7686 = vmatprep.subr.mxu0 0.0
    %7687 = vmatpush1.msra.mxu0 0.0
    %7688 = vmatprep.subr.mxu0 0.0
    %7689 = vmatpush1.msra.mxu0 0.0
    %7690 = vmatprep.subr.mxu0 0.0
    %7691 = vmatpush1.msra.mxu0 0.0
    %7692 = vmatprep.subr.mxu0 0.0
    %7693 = vmatpush1.msra.mxu0 0.0
    %7694 = vmatprep.subr.mxu0 0.0
    %7695 = vmatpush1.msra.mxu0 0.0
    %7696 = vmatprep.subr.mxu0 0.0
    %7697 = vmatpush1.msra.mxu0 0.0
    %7698 = vmatprep.subr.mxu0 0.0
    %7699 = vmatpush1.msra.mxu0 0.0
    %7700 = vmatprep.subr.mxu0 0.0
    %7701 = vmatpush1.msra.mxu0 0.0
    %7702 = vmatprep.subr.mxu0 0.0
    %7703 = vmatpush1.msra.mxu0 0.0
    %7704 = vmatprep.subr.mxu0 0.0
    %7705 = vmatpush1.msra.mxu0 0.0
    %7706 = vmatprep.subr.mxu0 0.0
    %7707 = vmatpush1.msra.mxu0 0.0
    %7708 = vmatprep.subr.mxu0 0.0
    %7709 = vmatpush1.msra.mxu0 0.0
    %7710 = vmatprep.subr.mxu0 0.0
    %7711 = vmatpush1.msra.mxu0 0.0
    %7712 = vmatprep.mubr.f32.mxu0 0.0
    %7713 = vmatmul.mubr.f32.gmra.mrb[0].mxu0 %v7482
    %v7714 = vpop.f32.mrb[0].mxu0
    %v7715 = vadd.f32 0.0, %v7714
    %v7716 = vpop.f32.mrb[0].mxu0
    %v7717 = vadd.f32 0.0, %v7716
    %7718 = vdwg.mxu0
    %7719 = vmatprep.subr.mxu0 %v4629
    %7720 = vmatpush1.msra.mxu0 %v4628
    %7721 = vmatprep.subr.mxu0 %v4633
    %7722 = vmatpush1.msra.mxu0 %v4632
    %7723 = vmatprep.subr.mxu0 %v4637
    %7724 = vmatpush1.msra.mxu0 %v4636
    %7725 = vmatprep.subr.mxu0 %v4641
    %7726 = vmatpush1.msra.mxu0 %v4640
    %7727 = vmatprep.subr.mxu0 %v4645
    %7728 = vmatpush1.msra.mxu0 %v4644
    %7729 = vmatprep.subr.mxu0 %v4649
    %7730 = vmatpush1.msra.mxu0 %v4648
    %7731 = vmatprep.subr.mxu0 %v4653
    %7732 = vmatpush1.msra.mxu0 %v4652
    %7733 = vmatprep.subr.mxu0 %v4657
    %7734 = vmatpush1.msra.mxu0 %v4656
    %7735 = vmatprep.subr.mxu0 %v4661
    %7736 = vmatpush1.msra.mxu0 %v4660
    %7737 = vmatprep.subr.mxu0 %v4665
    %7738 = vmatpush1.msra.mxu0 %v4664
    %7739 = vmatprep.subr.mxu0 %v4669
    %7740 = vmatpush1.msra.mxu0 %v4668
    %7741 = vmatprep.subr.mxu0 %v4673
    %7742 = vmatpush1.msra.mxu0 %v4672
    %7743 = vmatprep.subr.mxu0 %v4677
    %7744 = vmatpush1.msra.mxu0 %v4676
    %7745 = vmatprep.subr.mxu0 %v4681
    %7746 = vmatpush1.msra.mxu0 %v4680
    %7747 = vmatprep.subr.mxu0 %v4685
    %7748 = vmatpush1.msra.mxu0 %v4684
    %7749 = vmatprep.subr.mxu0 %v4689
    %7750 = vmatpush1.msra.mxu0 %v4688
    %7751 = vmatprep.subr.mxu0 0.0
    %7752 = vmatpush1.msra.mxu0 0.0
    %7753 = vmatprep.subr.mxu0 0.0
    %7754 = vmatpush1.msra.mxu0 0.0
    %7755 = vmatprep.subr.mxu0 0.0
    %7756 = vmatpush1.msra.mxu0 0.0
    %7757 = vmatprep.subr.mxu0 0.0
    %7758 = vmatpush1.msra.mxu0 0.0
    %7759 = vmatprep.subr.mxu0 0.0
    %7760 = vmatpush1.msra.mxu0 0.0
    %7761 = vmatprep.subr.mxu0 0.0
    %7762 = vmatpush1.msra.mxu0 0.0
    %7763 = vmatprep.subr.mxu0 0.0
    %7764 = vmatpush1.msra.mxu0 0.0
    %7765 = vmatprep.subr.mxu0 0.0
    %7766 = vmatpush1.msra.mxu0 0.0
    %7767 = vmatprep.subr.mxu0 0.0
    %7768 = vmatpush1.msra.mxu0 0.0
    %7769 = vmatprep.subr.mxu0 0.0
    %7770 = vmatpush1.msra.mxu0 0.0
    %7771 = vmatprep.subr.mxu0 0.0
    %7772 = vmatpush1.msra.mxu0 0.0
    %7773 = vmatprep.subr.mxu0 0.0
    %7774 = vmatpush1.msra.mxu0 0.0
    %7775 = vmatprep.subr.mxu0 0.0
    %7776 = vmatpush1.msra.mxu0 0.0
    %7777 = vmatprep.subr.mxu0 0.0
    %7778 = vmatpush1.msra.mxu0 0.0
    %7779 = vmatprep.subr.mxu0 0.0
    %7780 = vmatpush1.msra.mxu0 0.0
    %7781 = vmatprep.subr.mxu0 0.0
    %7782 = vmatpush1.msra.mxu0 0.0
    %7783 = vmatprep.mubr.f32.mxu0 0.0
    %7784 = vmatmul.mubr.f32.gmra.mrb[0].mxu0 %v7482
    %v7785 = vpop.f32.mrb[0].mxu0
    %v7786 = vadd.f32 0.0, %v7785
    %v7787 = vpop.f32.mrb[0].mxu0
    %v7788 = vadd.f32 0.0, %v7787
    %7789 = vdwg.mxu0
    %7790 = vmatprep.subr.mxu0 %v4563
    %7791 = vmatpush1.msra.mxu0 %v4562
    %7792 = vmatprep.subr.mxu0 %v4567
    %7793 = vmatpush1.msra.mxu0 %v4566
    %7794 = vmatprep.subr.mxu0 %v4571
    %7795 = vmatpush1.msra.mxu0 %v4570
    %7796 = vmatprep.subr.mxu0 %v4575
    %7797 = vmatpush1.msra.mxu0 %v4574
    %7798 = vmatprep.subr.mxu0 %v4579
    %7799 = vmatpush1.msra.mxu0 %v4578
    %7800 = vmatprep.subr.mxu0 %v4583
    %7801 = vmatpush1.msra.mxu0 %v4582
    %7802 = vmatprep.subr.mxu0 %v4587
    %7803 = vmatpush1.msra.mxu0 %v4586
    %7804 = vmatprep.subr.mxu0 %v4591
    %7805 = vmatpush1.msra.mxu0 %v4590
    %7806 = vmatprep.subr.mxu0 %v4595
    %7807 = vmatpush1.msra.mxu0 %v4594
    %7808 = vmatprep.subr.mxu0 %v4599
    %7809 = vmatpush1.msra.mxu0 %v4598
    %7810 = vmatprep.subr.mxu0 %v4603
    %7811 = vmatpush1.msra.mxu0 %v4602
    %7812 = vmatprep.subr.mxu0 %v4607
    %7813 = vmatpush1.msra.mxu0 %v4606
    %7814 = vmatprep.subr.mxu0 %v4611
    %7815 = vmatpush1.msra.mxu0 %v4610
    %7816 = vmatprep.subr.mxu0 %v4615
    %7817 = vmatpush1.msra.mxu0 %v4614
    %7818 = vmatprep.subr.mxu0 %v4619
    %7819 = vmatpush1.msra.mxu0 %v4618
    %7820 = vmatprep.subr.mxu0 %v4623
    %7821 = vmatpush1.msra.mxu0 %v4622
    %7822 = vmatprep.subr.mxu0 0.0
    %7823 = vmatpush1.msra.mxu0 0.0
    %7824 = vmatprep.subr.mxu0 0.0
    %7825 = vmatpush1.msra.mxu0 0.0
    %7826 = vmatprep.subr.mxu0 0.0
    %7827 = vmatpush1.msra.mxu0 0.0
    %7828 = vmatprep.subr.mxu0 0.0
    %7829 = vmatpush1.msra.mxu0 0.0
    %7830 = vmatprep.subr.mxu0 0.0
    %7831 = vmatpush1.msra.mxu0 0.0
    %7832 = vmatprep.subr.mxu0 0.0
    %7833 = vmatpush1.msra.mxu0 0.0
    %7834 = vmatprep.subr.mxu0 0.0
    %7835 = vmatpush1.msra.mxu0 0.0
    %7836 = vmatprep.subr.mxu0 0.0
    %7837 = vmatpush1.msra.mxu0 0.0
    %7838 = vmatprep.subr.mxu0 0.0
    %7839 = vmatpush1.msra.mxu0 0.0
    %7840 = vmatprep.subr.mxu0 0.0
    %7841 = vmatpush1.msra.mxu0 0.0
    %7842 = vmatprep.subr.mxu0 0.0
    %7843 = vmatpush1.msra.mxu0 0.0
    %7844 = vmatprep.subr.mxu0 0.0
    %7845 = vmatpush1.msra.mxu0 0.0
    %7846 = vmatprep.subr.mxu0 0.0
    %7847 = vmatpush1.msra.mxu0 0.0
    %7848 = vmatprep.subr.mxu0 0.0
    %7849 = vmatpush1.msra.mxu0 0.0
    %7850 = vmatprep.subr.mxu0 0.0
    %7851 = vmatpush1.msra.mxu0 0.0
    %7852 = vmatprep.subr.mxu0 0.0
    %7853 = vmatpush1.msra.mxu0 0.0
    %7854 = vmatprep.mubr.f32.mxu0 0.0
    %7855 = vmatmul.mubr.f32.gmra.mrb[0].mxu0 %v7488
    %v7856 = vpop.f32.mrb[0].mxu0
    %v7857 = vadd.f32 %v7715, %v7856
    %v7858 = vpop.f32.mrb[0].mxu0
    %v7859 = vadd.f32 %v7717, %v7858
    %7860 = vdwg.mxu0
    %7861 = vmatprep.subr.mxu0 %v4565
    %7862 = vmatpush1.msra.mxu0 %v4564
    %7863 = vmatprep.subr.mxu0 %v4569
    %7864 = vmatpush1.msra.mxu0 %v4568
    %7865 = vmatprep.subr.mxu0 %v4573
    %7866 = vmatpush1.msra.mxu0 %v4572
    %7867 = vmatprep.subr.mxu0 %v4577
    %7868 = vmatpush1.msra.mxu0 %v4576
    %7869 = vmatprep.subr.mxu0 %v4581
    %7870 = vmatpush1.msra.mxu0 %v4580
    %7871 = vmatprep.subr.mxu0 %v4585
    %7872 = vmatpush1.msra.mxu0 %v4584
    %7873 = vmatprep.subr.mxu0 %v4589
    %7874 = vmatpush1.msra.mxu0 %v4588
    %7875 = vmatprep.subr.mxu0 %v4593
    %7876 = vmatpush1.msra.mxu0 %v4592
    %7877 = vmatprep.subr.mxu0 %v4597
    %7878 = vmatpush1.msra.mxu0 %v4596
    %7879 = vmatprep.subr.mxu0 %v4601
    %7880 = vmatpush1.msra.mxu0 %v4600
    %7881 = vmatprep.subr.mxu0 %v4605
    %7882 = vmatpush1.msra.mxu0 %v4604
    %7883 = vmatprep.subr.mxu0 %v4609
    %7884 = vmatpush1.msra.mxu0 %v4608
    %7885 = vmatprep.subr.mxu0 %v4613
    %7886 = vmatpush1.msra.mxu0 %v4612
    %7887 = vmatprep.subr.mxu0 %v4617
    %7888 = vmatpush1.msra.mxu0 %v4616
    %7889 = vmatprep.subr.mxu0 %v4621
    %7890 = vmatpush1.msra.mxu0 %v4620
    %7891 = vmatprep.subr.mxu0 %v4625
    %7892 = vmatpush1.msra.mxu0 %v4624
    %7893 = vmatprep.subr.mxu0 0.0
    %7894 = vmatpush1.msra.mxu0 0.0
    %7895 = vmatprep.subr.mxu0 0.0
    %7896 = vmatpush1.msra.mxu0 0.0
    %7897 = vmatprep.subr.mxu0 0.0
    %7898 = vmatpush1.msra.mxu0 0.0
    %7899 = vmatprep.subr.mxu0 0.0
    %7900 = vmatpush1.msra.mxu0 0.0
    %7901 = vmatprep.subr.mxu0 0.0
    %7902 = vmatpush1.msra.mxu0 0.0
    %7903 = vmatprep.subr.mxu0 0.0
    %7904 = vmatpush1.msra.mxu0 0.0
    %7905 = vmatprep.subr.mxu0 0.0
    %7906 = vmatpush1.msra.mxu0 0.0
    %7907 = vmatprep.subr.mxu0 0.0
    %7908 = vmatpush1.msra.mxu0 0.0
    %7909 = vmatprep.subr.mxu0 0.0
    %7910 = vmatpush1.msra.mxu0 0.0
    %7911 = vmatprep.subr.mxu0 0.0
    %7912 = vmatpush1.msra.mxu0 0.0
    %7913 = vmatprep.subr.mxu0 0.0
    %7914 = vmatpush1.msra.mxu0 0.0
    %7915 = vmatprep.subr.mxu0 0.0
    %7916 = vmatpush1.msra.mxu0 0.0
    %7917 = vmatprep.subr.mxu0 0.0
    %7918 = vmatpush1.msra.mxu0 0.0
    %7919 = vmatprep.subr.mxu0 0.0
    %7920 = vmatpush1.msra.mxu0 0.0
    %7921 = vmatprep.subr.mxu0 0.0
    %7922 = vmatpush1.msra.mxu0 0.0
    %7923 = vmatprep.subr.mxu0 0.0
    %7924 = vmatpush1.msra.mxu0 0.0
    %7925 = vmatprep.mubr.f32.mxu0 0.0
    %7926 = vmatmul.mubr.f32.gmra.mrb[0].mxu0 %v7488
    %v7927 = vpop.f32.mrb[0].mxu0
    %v7928 = vadd.f32 %v7786, %v7927
    %v7929 = vpop.f32.mrb[0].mxu0
    %v7930 = vadd.f32 %v7788, %v7929
    %7931 = vdwg.mxu0
    %v7932 = vadd.f32 %v7857, %v4978
    %v7933 = vadd.f32 %v7859, %v4982
    %v7934 = vadd.f32 %v7928, %v4986
    %v7935 = vadd.f32 %v7930, %v4990
    %v7936 = vmul.f32 %v7644, 0.5
    %v7937 = vmul.f32 %v7645, 0.5
    %v7938 = vmul.f32 %v7646, 0.5
    %v7939 = vtanh.pop %v7936
    %v7940 = vtanh.pop %v7937
    %v7941 = vtanh.pop %v7938
    %v7942 = vmul.f32 %v7939, 0.5
    %v7943 = vmul.f32 %v7940, 0.5
    %v7944 = vmul.f32 %v7941, 0.5
    %v7945 = vadd.f32 %v7942, 0.5
    %v7946 = vadd.f32 %v7943, 0.5
    %v7947 = vadd.f32 %v7944, 0.5
    %v7948 = vtanh.pop %v7647
    %v7950 = vrot.slane %v7462, 6
    %v7952 = vmul.f32 %v7946, %v7950
    %v7953 = vmul.f32 %v7945, %v7948
    %v7954 = vadd.f32 %v7952, %v7953
    %v7955 = vtanh.pop %v7954
    %v7956 = vmul.f32 %v7947, %v7955
    %v7957 = vmul.f32 %v7932, 0.5
    %v7958 = vmul.f32 %v7933, 0.5
    %v7959 = vmul.f32 %v7934, 0.5
    %v7960 = vtanh.pop %v7957
    %v7961 = vtanh.pop %v7958
    %v7962 = vtanh.pop %v7959
    %v7963 = vmul.f32 %v7960, 0.5
    %v7964 = vmul.f32 %v7961, 0.5
    %v7965 = vmul.f32 %v7962, 0.5
    %v7966 = vadd.f32 %v7963, 0.5
    %v7967 = vadd.f32 %v7964, 0.5
    %v7968 = vadd.f32 %v7965, 0.5
    %v7969 = vtanh.pop %v7935
    %v7970 = vmul.f32 %v7967, %v7480
    %v7971 = vmul.f32 %v7966, %v7969
    %v7972 = vadd.f32 %v7970, %v7971
    %v7973 = vtanh.pop %v7972
    %v7974 = vmul.f32 %v7968, %v7973
    %7975 = vmatprep.subr.mxu0 %v4627
    %7976 = vmatpush1.msra.mxu0 %v4626
    %7977 = vmatprep.subr.mxu0 %v4631
    %7978 = vmatpush1.msra.mxu0 %v4630
    %7979 = vmatprep.subr.mxu0 %v4635
    %7980 = vmatpush1.msra.mxu0 %v4634
    %7981 = vmatprep.subr.mxu0 %v4639
    %7982 = vmatpush1.msra.mxu0 %v4638
    %7983 = vmatprep.subr.mxu0 %v4643
    %7984 = vmatpush1.msra.mxu0 %v4642
    %7985 = vmatprep.subr.mxu0 %v4647
    %7986 = vmatpush1.msra.mxu0 %v4646
    %7987 = vmatprep.subr.mxu0 %v4651
    %7988 = vmatpush1.msra.mxu0 %v4650
    %7989 = vmatprep.subr.mxu0 %v4655
    %7990 = vmatpush1.msra.mxu0 %v4654
    %7991 = vmatprep.subr.mxu0 %v4659
    %7992 = vmatpush1.msra.mxu0 %v4658
    %7993 = vmatprep.subr.mxu0 %v4663
    %7994 = vmatpush1.msra.mxu0 %v4662
    %7995 = vmatprep.subr.mxu0 %v4667
    %7996 = vmatpush1.msra.mxu0 %v4666
    %7997 = vmatprep.subr.mxu0 %v4671
    %7998 = vmatpush1.msra.mxu0 %v4670
    %7999 = vmatprep.subr.mxu0 %v4675
    %8000 = vmatpush1.msra.mxu0 %v4674
    %8001 = vmatprep.subr.mxu0 %v4679
    %8002 = vmatpush1.msra.mxu0 %v4678
    %8003 = vmatprep.subr.mxu0 %v4683
    %8004 = vmatpush1.msra.mxu0 %v4682
    %8005 = vmatprep.subr.mxu0 %v4687
    %8006 = vmatpush1.msra.mxu0 %v4686
    %8007 = vmatprep.subr.mxu0 0.0
    %8008 = vmatpush1.msra.mxu0 0.0
    %8009 = vmatprep.subr.mxu0 0.0
    %8010 = vmatpush1.msra.mxu0 0.0
    %8011 = vmatprep.subr.mxu0 0.0
    %8012 = vmatpush1.msra.mxu0 0.0
    %8013 = vmatprep.subr.mxu0 0.0
    %8014 = vmatpush1.msra.mxu0 0.0
    %8015 = vmatprep.subr.mxu0 0.0
    %8016 = vmatpush1.msra.mxu0 0.0
    %8017 = vmatprep.subr.mxu0 0.0
    %8018 = vmatpush1.msra.mxu0 0.0
    %8019 = vmatprep.subr.mxu0 0.0
    %8020 = vmatpush1.msra.mxu0 0.0
    %8021 = vmatprep.subr.mxu0 0.0
    %8022 = vmatpush1.msra.mxu0 0.0
    %8023 = vmatprep.subr.mxu0 0.0
    %8024 = vmatpush1.msra.mxu0 0.0
    %8025 = vmatprep.subr.mxu0 0.0
    %8026 = vmatpush1.msra.mxu0 0.0
    %8027 = vmatprep.subr.mxu0 0.0
    %8028 = vmatpush1.msra.mxu0 0.0
    %8029 = vmatprep.subr.mxu0 0.0
    %8030 = vmatpush1.msra.mxu0 0.0
    %8031 = vmatprep.subr.mxu0 0.0
    %8032 = vmatpush1.msra.mxu0 0.0
    %8033 = vmatprep.subr.mxu0 0.0
    %8034 = vmatpush1.msra.mxu0 0.0
    %8035 = vmatprep.subr.mxu0 0.0
    %8036 = vmatpush1.msra.mxu0 0.0
    %8037 = vmatprep.subr.mxu0 0.0
    %8038 = vmatpush1.msra.mxu0 0.0
    %8039 = vmatprep.mubr.f32.mxu0 0.0
    %8040 = vmatmul.mubr.f32.gmra.mrb[0].mxu0 %v7974
    %v8041 = vpop.f32.mrb[0].mxu0
    %v8042 = vadd.f32 0.0, %v8041
    %v8043 = vpop.f32.mrb[0].mxu0
    %v8044 = vadd.f32 0.0, %v8043
    %8045 = vdwg.mxu0
    %8046 = vmatprep.subr.mxu0 %v4629
    %8047 = vmatpush1.msra.mxu0 %v4628
    %8048 = vmatprep.subr.mxu0 %v4633
    %8049 = vmatpush1.msra.mxu0 %v4632
    %8050 = vmatprep.subr.mxu0 %v4637
    %8051 = vmatpush1.msra.mxu0 %v4636
    %8052 = vmatprep.subr.mxu0 %v4641
    %8053 = vmatpush1.msra.mxu0 %v4640
    %8054 = vmatprep.subr.mxu0 %v4645
    %8055 = vmatpush1.msra.mxu0 %v4644
    %8056 = vmatprep.subr.mxu0 %v4649
    %8057 = vmatpush1.msra.mxu0 %v4648
    %8058 = vmatprep.subr.mxu0 %v4653
    %8059 = vmatpush1.msra.mxu0 %v4652
    %8060 = vmatprep.subr.mxu0 %v4657
    %8061 = vmatpush1.msra.mxu0 %v4656
    %8062 = vmatprep.subr.mxu0 %v4661
    %8063 = vmatpush1.msra.mxu0 %v4660
    %8064 = vmatprep.subr.mxu0 %v4665
    %8065 = vmatpush1.msra.mxu0 %v4664
    %8066 = vmatprep.subr.mxu0 %v4669
    %8067 = vmatpush1.msra.mxu0 %v4668
    %8068 = vmatprep.subr.mxu0 %v4673
    %8069 = vmatpush1.msra.mxu0 %v4672
    %8070 = vmatprep.subr.mxu0 %v4677
    %8071 = vmatpush1.msra.mxu0 %v4676
    %8072 = vmatprep.subr.mxu0 %v4681
    %8073 = vmatpush1.msra.mxu0 %v4680
    %8074 = vmatprep.subr.mxu0 %v4685
    %8075 = vmatpush1.msra.mxu0 %v4684
    %8076 = vmatprep.subr.mxu0 %v4689
    %8077 = vmatpush1.msra.mxu0 %v4688
    %8078 = vmatprep.subr.mxu0 0.0
    %8079 = vmatpush1.msra.mxu0 0.0
    %8080 = vmatprep.subr.mxu0 0.0
    %8081 = vmatpush1.msra.mxu0 0.0
    %8082 = vmatprep.subr.mxu0 0.0
    %8083 = vmatpush1.msra.mxu0 0.0
    %8084 = vmatprep.subr.mxu0 0.0
    %8085 = vmatpush1.msra.mxu0 0.0
    %8086 = vmatprep.subr.mxu0 0.0
    %8087 = vmatpush1.msra.mxu0 0.0
    %8088 = vmatprep.subr.mxu0 0.0
    %8089 = vmatpush1.msra.mxu0 0.0
    %8090 = vmatprep.subr.mxu0 0.0
    %8091 = vmatpush1.msra.mxu0 0.0
    %8092 = vmatprep.subr.mxu0 0.0
    %8093 = vmatpush1.msra.mxu0 0.0
    %8094 = vmatprep.subr.mxu0 0.0
    %8095 = vmatpush1.msra.mxu0 0.0
    %8096 = vmatprep.subr.mxu0 0.0
    %8097 = vmatpush1.msra.mxu0 0.0
    %8098 = vmatprep.subr.mxu0 0.0
    %8099 = vmatpush1.msra.mxu0 0.0
    %8100 = vmatprep.subr.mxu0 0.0
    %8101 = vmatpush1.msra.mxu0 0.0
    %8102 = vmatprep.subr.mxu0 0.0
    %8103 = vmatpush1.msra.mxu0 0.0
    %8104 = vmatprep.subr.mxu0 0.0
    %8105 = vmatpush1.msra.mxu0 0.0
    %8106 = vmatprep.subr.mxu0 0.0
    %8107 = vmatpush1.msra.mxu0 0.0
    %8108 = vmatprep.subr.mxu0 0.0
    %8109 = vmatpush1.msra.mxu0 0.0
    %8110 = vmatprep.mubr.f32.mxu0 0.0
    %8111 = vmatmul.mubr.f32.gmra.mrb[0].mxu0 %v7974
    %v8112 = vpop.f32.mrb[0].mxu0
    %v8113 = vadd.f32 0.0, %v8112
    %v8114 = vpop.f32.mrb[0].mxu0
    %v8115 = vadd.f32 0.0, %v8114
    %8116 = vdwg.mxu0
    %v8118 = vrot.slane %v7956, 6
    %8120 = vmatprep.subr.mxu0 %v4563
    %8121 = vmatpush1.msra.mxu0 %v4562
    %8122 = vmatprep.subr.mxu0 %v4567
    %8123 = vmatpush1.msra.mxu0 %v4566
    %8124 = vmatprep.subr.mxu0 %v4571
    %8125 = vmatpush1.msra.mxu0 %v4570
    %8126 = vmatprep.subr.mxu0 %v4575
    %8127 = vmatpush1.msra.mxu0 %v4574
    %8128 = vmatprep.subr.mxu0 %v4579
    %8129 = vmatpush1.msra.mxu0 %v4578
    %8130 = vmatprep.subr.mxu0 %v4583
    %8131 = vmatpush1.msra.mxu0 %v4582
    %8132 = vmatprep.subr.mxu0 %v4587
    %8133 = vmatpush1.msra.mxu0 %v4586
    %8134 = vmatprep.subr.mxu0 %v4591
    %8135 = vmatpush1.msra.mxu0 %v4590
    %8136 = vmatprep.subr.mxu0 %v4595
    %8137 = vmatpush1.msra.mxu0 %v4594
    %8138 = vmatprep.subr.mxu0 %v4599
    %8139 = vmatpush1.msra.mxu0 %v4598
    %8140 = vmatprep.subr.mxu0 %v4603
    %8141 = vmatpush1.msra.mxu0 %v4602
    %8142 = vmatprep.subr.mxu0 %v4607
    %8143 = vmatpush1.msra.mxu0 %v4606
    %8144 = vmatprep.subr.mxu0 %v4611
    %8145 = vmatpush1.msra.mxu0 %v4610
    %8146 = vmatprep.subr.mxu0 %v4615
    %8147 = vmatpush1.msra.mxu0 %v4614
    %8148 = vmatprep.subr.mxu0 %v4619
    %8149 = vmatpush1.msra.mxu0 %v4618
    %8150 = vmatprep.subr.mxu0 %v4623
    %8151 = vmatpush1.msra.mxu0 %v4622
    %8152 = vmatprep.subr.mxu0 0.0
    %8153 = vmatpush1.msra.mxu0 0.0
    %8154 = vmatprep.subr.mxu0 0.0
    %8155 = vmatpush1.msra.mxu0 0.0
    %8156 = vmatprep.subr.mxu0 0.0
    %8157 = vmatpush1.msra.mxu0 0.0
    %8158 = vmatprep.subr.mxu0 0.0
    %8159 = vmatpush1.msra.mxu0 0.0
    %8160 = vmatprep.subr.mxu0 0.0
    %8161 = vmatpush1.msra.mxu0 0.0
    %8162 = vmatprep.subr.mxu0 0.0
    %8163 = vmatpush1.msra.mxu0 0.0
    %8164 = vmatprep.subr.mxu0 0.0
    %8165 = vmatpush1.msra.mxu0 0.0
    %8166 = vmatprep.subr.mxu0 0.0
    %8167 = vmatpush1.msra.mxu0 0.0
    %8168 = vmatprep.subr.mxu0 0.0
    %8169 = vmatpush1.msra.mxu0 0.0
    %8170 = vmatprep.subr.mxu0 0.0
    %8171 = vmatpush1.msra.mxu0 0.0
    %8172 = vmatprep.subr.mxu0 0.0
    %8173 = vmatpush1.msra.mxu0 0.0
    %8174 = vmatprep.subr.mxu0 0.0
    %8175 = vmatpush1.msra.mxu0 0.0
    %8176 = vmatprep.subr.mxu0 0.0
    %8177 = vmatpush1.msra.mxu0 0.0
    %8178 = vmatprep.subr.mxu0 0.0
    %8179 = vmatpush1.msra.mxu0 0.0
    %8180 = vmatprep.subr.mxu0 0.0
    %8181 = vmatpush1.msra.mxu0 0.0
    %8182 = vmatprep.subr.mxu0 0.0
    %8183 = vmatpush1.msra.mxu0 0.0
    %8184 = vmatprep.mubr.f32.mxu0 0.0
    %8185 = vmatmul.mubr.f32.gmra.mrb[0].mxu0 %v8118
    %v8186 = vpop.f32.mrb[0].mxu0
    %v8187 = vadd.f32 %v8042, %v8186
    %v8188 = vpop.f32.mrb[0].mxu0
    %v8189 = vadd.f32 %v8044, %v8188
    %8190 = vdwg.mxu0
    %8191 = vmatprep.subr.mxu0 %v4565
    %8192 = vmatpush1.msra.mxu0 %v4564
    %8193 = vmatprep.subr.mxu0 %v4569
    %8194 = vmatpush1.msra.mxu0 %v4568
    %8195 = vmatprep.subr.mxu0 %v4573
    %8196 = vmatpush1.msra.mxu0 %v4572
    %8197 = vmatprep.subr.mxu0 %v4577
    %8198 = vmatpush1.msra.mxu0 %v4576
    %8199 = vmatprep.subr.mxu0 %v4581
    %8200 = vmatpush1.msra.mxu0 %v4580
    %8201 = vmatprep.subr.mxu0 %v4585
    %8202 = vmatpush1.msra.mxu0 %v4584
    %8203 = vmatprep.subr.mxu0 %v4589
    %8204 = vmatpush1.msra.mxu0 %v4588
    %8205 = vmatprep.subr.mxu0 %v4593
    %8206 = vmatpush1.msra.mxu0 %v4592
    %8207 = vmatprep.subr.mxu0 %v4597
    %8208 = vmatpush1.msra.mxu0 %v4596
    %8209 = vmatprep.subr.mxu0 %v4601
    %8210 = vmatpush1.msra.mxu0 %v4600
    %8211 = vmatprep.subr.mxu0 %v4605
    %8212 = vmatpush1.msra.mxu0 %v4604
    %8213 = vmatprep.subr.mxu0 %v4609
    %8214 = vmatpush1.msra.mxu0 %v4608
    %8215 = vmatprep.subr.mxu0 %v4613
    %8216 = vmatpush1.msra.mxu0 %v4612
    %8217 = vmatprep.subr.mxu0 %v4617
    %8218 = vmatpush1.msra.mxu0 %v4616
    %8219 = vmatprep.subr.mxu0 %v4621
    %8220 = vmatpush1.msra.mxu0 %v4620
    %8221 = vmatprep.subr.mxu0 %v4625
    %8222 = vmatpush1.msra.mxu0 %v4624
    %8223 = vmatprep.subr.mxu0 0.0
    %8224 = vmatpush1.msra.mxu0 0.0
    %8225 = vmatprep.subr.mxu0 0.0
    %8226 = vmatpush1.msra.mxu0 0.0
    %8227 = vmatprep.subr.mxu0 0.0
    %8228 = vmatpush1.msra.mxu0 0.0
    %8229 = vmatprep.subr.mxu0 0.0
    %8230 = vmatpush1.msra.mxu0 0.0
    %8231 = vmatprep.subr.mxu0 0.0
    %8232 = vmatpush1.msra.mxu0 0.0
    %8233 = vmatprep.subr.mxu0 0.0
    %8234 = vmatpush1.msra.mxu0 0.0
    %8235 = vmatprep.subr.mxu0 0.0
    %8236 = vmatpush1.msra.mxu0 0.0
    %8237 = vmatprep.subr.mxu0 0.0
    %8238 = vmatpush1.msra.mxu0 0.0
    %8239 = vmatprep.subr.mxu0 0.0
    %8240 = vmatpush1.msra.mxu0 0.0
    %8241 = vmatprep.subr.mxu0 0.0
    %8242 = vmatpush1.msra.mxu0 0.0
    %8243 = vmatprep.subr.mxu0 0.0
    %8244 = vmatpush1.msra.mxu0 0.0
    %8245 = vmatprep.subr.mxu0 0.0
    %8246 = vmatpush1.msra.mxu0 0.0
    %8247 = vmatprep.subr.mxu0 0.0
    %8248 = vmatpush1.msra.mxu0 0.0
    %8249 = vmatprep.subr.mxu0 0.0
    %8250 = vmatpush1.msra.mxu0 0.0
    %8251 = vmatprep.subr.mxu0 0.0
    %8252 = vmatpush1.msra.mxu0 0.0
    %8253 = vmatprep.subr.mxu0 0.0
    %8254 = vmatpush1.msra.mxu0 0.0
    %8255 = vmatprep.mubr.f32.mxu0 0.0
    %8256 = vmatmul.mubr.f32.gmra.mrb[0].mxu0 %v8118
    %v8257 = vpop.f32.mrb[0].mxu0
    %v8258 = vadd.f32 %v8113, %v8257
    %v8259 = vpop.f32.mrb[0].mxu0
    %v8260 = vadd.f32 %v8115, %v8259
    %8261 = vdwg.mxu0
    %v8262 = vadd.f32 %v8187, %v4978
    %v8263 = vadd.f32 %v8189, %v4982
    %v8264 = vadd.f32 %v8258, %v4986
    %v8265 = vadd.f32 %v8260, %v4990
    %v8266 = vmul.f32 %v8262, 0.5
    %v8267 = vmul.f32 %v8263, 0.5
    %v8268 = vmul.f32 %v8264, 0.5
    %v8269 = vtanh.pop %v8266
    %v8270 = vtanh.pop %v8267
    %v8271 = vtanh.pop %v8268
    %v8272 = vmul.f32 %v8269, 0.5
    %v8273 = vmul.f32 %v8270, 0.5
    %v8274 = vmul.f32 %v8271, 0.5
    %v8275 = vadd.f32 %v8272, 0.5
    %v8276 = vadd.f32 %v8273, 0.5
    %v8277 = vadd.f32 %v8274, 0.5
    %v8278 = vtanh.pop %v8265
    %v8279 = vmul.f32 %v8276, %v7972
    %v8280 = vmul.f32 %v8275, %v8278
    %v8281 = vadd.f32 %v8279, %v8280
    %v8282 = vtanh.pop %v8281
    %v8283 = vmul.f32 %v8277, %v8282
    %8284 = vst [vmem:[%s11] sm:$0x3] %v8281
    %v8285 = vld [vmem:[%s7] sm:$0x1]
    %v8287 = vlaneseq
    %v8288 = vshrl.u32 %v8287, 7
    %v8289 = vsub.s32 0, %v8288
    %v8290 = vrot.slane %v8285, %v8289
    %v8292 = vmul.f32 %v8283, %v8290
    %vm8293 = vcmask 1041408
    %v8294 = vsel %vm8293, %v8292, 0.0
    %8295 = vadd.xlane.f32.xlu0 %v8294
    %v8296 = vpop.xlane.xlu0 %8295
    %v8297 = vld [vmem:[#allocation6] sm:$0x1]
    %v8299 = vlaneseq
    %v8300 = vshrl.u32 %v8299, 7
    %v8301 = vsub.s32 0, %v8300
    %v8302 = vrot.slane %v8297, %v8301
    %v8304 = vadd.f32 %v8296, %v8302
    %vm8305 = vcmask 1024
    %8306 = vst.msk [vmem:[%s10] sm:$0x3] %vm8305, %v8304
    // Predicated region
    $region46: #{lstmdf_forward.1} parent=1 // pred_check
      _
    $region47: #{lstmdf_forward.1} parent=1 // pred_check_branch
      %8308 = sbr.rel (0) target = $region49
    $region48: #{lstmdf_forward.1} parent=1 // pred_region
      _
    $region49: #{lstmdf_forward.1} parent=1 // pred_fallthru
      _
    // Predicated region
    $region50: #{lstmdf_forward.1} parent=1 // pred_check
      _
    $region51: #{lstmdf_forward.1} parent=1 // pred_check_branch
      %8310 = sbr.rel (0) target = $region53
    $region52: #{lstmdf_forward.1} parent=1 // pred_region
      _
    $region53: #{lstmdf_forward.1} parent=1 // pred_fallthru
      _
    // Predicated region
    $region54: #{lstmdf_forward.1} parent=1 // pred_check
      _
    $region55: #{lstmdf_forward.1} parent=1 // pred_check_branch
      %8312 = sbr.rel (0) target = $region57
    $region56: #{lstmdf_forward.1} parent=1 // pred_region
      %s8314 = ssub.s32 16, 16
      %8315 = vsyncadd [#allocation9], %s8314
      %s8317 = sshll.u32 [#allocation10], 4
      %s8318 = int_to_ptr.vmem [resolvable:$true] %s8317
      %8320 = dma.vmem_to_hbm [thread:$0]  %s8318, 16, %s12, [#allocation9]
    $region57: #{lstmdf_forward.1} parent=1 // pred_fallthru
      _
    // Predicated region
    $region58: #{lstmdf_forward.1} parent=1 // pred_check
      _
    $region59: #{lstmdf_forward.1} parent=1 // pred_check_branch
      %8322 = sbr.rel (0) target = $region61
    $region60: #{lstmdf_forward.1} parent=1 // pred_region
      %s8324 = ssub.s32 16, 16
      %8325 = vsyncadd [#allocation12], %s8324
      %s8327 = sshll.u32 [#allocation11], 4
      %s8328 = int_to_ptr.vmem [resolvable:$true] %s8327
      %8330 = dma.vmem_to_hbm [thread:$0]  %s8328, 16, %s13, [#allocation12]
    $region61: #{lstmdf_forward.1} parent=1 // pred_fallthru
      _
    // Predicated region
    $region62: #{lstmdf_forward.1} parent=1 // pred_check
      _
    $region63: #{lstmdf_forward.1} parent=1 // pred_check_branch
      %8332 = sbr.rel (0) target = $region65
    $region64: #{lstmdf_forward.1} parent=1 // pred_region
      _
    $region65: #{lstmdf_forward.1} parent=1 // pred_fallthru
      _
    // Predicated region
    $region66: #{lstmdf_forward.1} parent=1 // pred_check
      _
    $region67: #{lstmdf_forward.1} parent=1 // pred_check_branch
      %8334 = sbr.rel (0) target = $region69
    $region68: #{lstmdf_forward.1} parent=1 // pred_region
      _
    $region69: #{lstmdf_forward.1} parent=1 // pred_fallthru
      _
    // Predicated region
    $region70: #{lstmdf_forward.1} parent=1 // pred_check
      _
    $region71: #{lstmdf_forward.1} parent=1 // pred_check_branch
      %8336 = sbr.rel (0) target = $region73
    $region72: #{lstmdf_forward.1} parent=1 // pred_region
      %8337 = dma.done [#allocation9], 16
    $region73: #{lstmdf_forward.1} parent=1 // pred_fallthru
      _
    // Predicated region
    $region74: #{lstmdf_forward.1} parent=1 // pred_check
      _
    $region75: #{lstmdf_forward.1} parent=1 // pred_check_branch
      %8339 = sbr.rel (0) target = $region77
    $region76: #{lstmdf_forward.1} parent=1 // pred_region
      %8340 = dma.done [#allocation12], 16
    $region77: #{lstmdf_forward.1} parent=1 // pred_fallthru
      _
    %8341 = vsyncpa [#allocation8], 1
    %8342 = vsyncpa [#allocation9], 1
    %8343 = vsyncpa [#allocation12], 1
  %8344 = vsyncmov [#allocation5]
  %s8345 = vpop.sfrf %8344
  %p8346 = scmp.eq.s32.totalorder %s8345, 0
  %p8347 = pneg %p8346
  %8349 = shalt.err (%p8347)

</llo_original>
